<compile_context>
chip_gen: v7x
topology: tpu7x:2x2x1
jax: 0.10.0
libtpu: 0.0.40
codegen_flags: <defaults>
</compile_context>

<pallas_src>
import functools

import jax
import jax.numpy as jnp
from jax.experimental import pallas as pl
from jax.experimental.pallas import tpu as pltpu

KH = KW = 3
PAD = 1


# ----------------------------- per-image kernel ---------------------------- #
def _deltauq_image_kernel(x_ref, anc_ref, wc_ref, bc_ref, pool_ref, wl_ref, bl_ref,
                          mu_ref, std_ref, cal_ref, *, H, W, A):
    """One grid step = one image: build anchored batch in VMEM, conv3x3 (fused
    K=54 matmul), ReLU, GAP (selector matmul), linear head, anchor statistics.

    x_ref    : (1, H+2, W+2, C)  bf16   padded image b            (grid-blocked)
    anc_ref  : (A, H+2, W+2, C)  bf16   padded anchors            (resident)
    wc_ref   : (9*2C, F)         bf16   fused-tap conv weight     (resident)
    bc_ref   : (1, F)            f32
    pool_ref : (A, A*H*W)        f32    GAP selector (1/(H*W) block-diagonal)
    wl_ref   : (F, NC)           f32    linear head
    bl_ref   : (1, NC)           f32
    outputs  : (1, 1, NC) blocks of the (n_img, 1, NC) result arrays
    """
    anc = anc_ref[...]                               # (A, H+2, W+2, C) bf16
    diff = x_ref[...] - anc                          # broadcast x over anchors

    # Fused in-VMEM im2col: for each 3x3 tap, [anchor C chans | diff C chans]
    # stacked along the contraction dim -> (A, H, W, 9*2C). Column order
    # matches wc.reshape(9*2C, F).
    cols = []
    for di in range(KH):
        for dj in range(KW):
            cols.append(anc[:, di:di + H, dj:dj + W, :])
            cols.append(diff[:, di:di + H, dj:dj + W, :])
    lhs = jnp.concatenate(cols, axis=-1)                           # (A, H, W, 54)
    lhs = lhs.reshape(A * H * W, lhs.shape[-1])                    # leading-dim collapse

    # ONE MXU matmul for the whole conv (K = 54 instead of 9 x K = 6).
    acc = jnp.dot(lhs, wc_ref[...], preferred_element_type=jnp.float32)  # (A*HW, F)
    hid = jnp.maximum(acc + bc_ref[...], 0.0)                      # ReLU

    # Global average pool as a selector matmul (no reshape of hid).
    feat = jnp.dot(pool_ref[...], hid, preferred_element_type=jnp.float32)  # (A, F)

    # Classifier head.
    logits = jnp.dot(feat, wl_ref[...],
                     preferred_element_type=jnp.float32) + bl_ref[...]      # (A, NC)

    # Anchor-axis statistics for this image.
    mu = jnp.mean(logits, axis=0, keepdims=True)                   # (1, NC)
    s = 0.5 * (jnp.tanh(0.5 * logits) + 1.0)                       # stable sigmoid
    s_mean = jnp.mean(s, axis=0, keepdims=True)
    # unbiased std (torch default); guarded so n_anchors == 1 gives 0, not NaN
    var = jnp.sum((s - s_mean) ** 2, axis=0, keepdims=True) / max(A - 1, 1)
    std = jnp.sqrt(var)                                            # (1, NC)

    c = jnp.mean(std, axis=1, keepdims=True)                       # (1, 1)
    cal = mu / (1.0 + jnp.exp(c))                                  # calibrate(mu, std)

    mu_ref[...] = mu[None]
    std_ref[...] = std[None]
    cal_ref[...] = cal[None]


# ------------------------------ host-side glue ----------------------------- #
def _prepare_inputs(x, anchors, n_anchors):
    """Spatially pad, move channels minor (NHWC), cast to bf16 (de-duplicated)."""
    xs = jnp.transpose(x, (0, 2, 3, 1))
    an = jnp.transpose(anchors[:n_anchors], (0, 2, 3, 1))
    pad = ((0, 0), (PAD, PAD), (PAD, PAD), (0, 0))
    return (jnp.pad(xs, pad).astype(jnp.bfloat16),
            jnp.pad(an, pad).astype(jnp.bfloat16))


def delta_uq_cnn_forward(x, params, anchors, n_anchors=1,
                         return_std=False, calibrate=False):
    # TODO(synk): training-mode branch (random anchor resampling + batch
    #             doubling), torchvision corruption() transforms, and
    #             anchors=None (random shuffled-minibatch anchors) are not
    #             implemented — inference path with fixed anchors only.
    if n_anchors == 1 and return_std:
        raise Warning('Use n_anchor>1, std. dev cannot be computed!')
    assert n_anchors <= anchors.shape[0], "n_anchors exceeds number of anchors"

    wc, bc, wl, bl = params
    n_img, C, H, W = x.shape
    F = wc.shape[-1]
    NC = wl.shape[-1]
    A = n_anchors
    HW = H * W

    x_pad, anc_pad = _prepare_inputs(x, anchors, A)                # bf16, de-duplicated
    wc_fused = wc.reshape(KH * KW * 2 * C, F).astype(jnp.bfloat16)

    # GAP selector: pool[a, a*H*W + p] = 1/(H*W)  (rows of hid are (a, h, w)).
    row = jax.lax.broadcasted_iota(jnp.int32, (A, A * HW), 0)
    col = jax.lax.broadcasted_iota(jnp.int32, (A, A * HW), 1)
    pool = jnp.where(col // HW == row, 1.0 / HW, 0.0).astype(jnp.float32)

    kernel = functools.partial(_deltauq_image_kernel, H=H, W=W, A=A)

    grid_spec = pltpu.PrefetchScalarGridSpec(
        num_scalar_prefetch=0,
        grid=(n_img,),
        in_specs=[
            pl.BlockSpec((1, H + 2 * PAD, W + 2 * PAD, C), lambda b: (b, 0, 0, 0)),
            pl.BlockSpec((A, H + 2 * PAD, W + 2 * PAD, C), lambda b: (0, 0, 0, 0)),
            pl.BlockSpec((KH * KW * 2 * C, F), lambda b: (0, 0)),
            pl.BlockSpec((1, F), lambda b: (0, 0)),
            pl.BlockSpec((A, A * HW), lambda b: (0, 0)),
            pl.BlockSpec((F, NC), lambda b: (0, 0)),
            pl.BlockSpec((1, NC), lambda b: (0, 0)),
        ],
        out_specs=[
            pl.BlockSpec((1, 1, NC), lambda b: (b, 0, 0)),
            pl.BlockSpec((1, 1, NC), lambda b: (b, 0, 0)),
            pl.BlockSpec((1, 1, NC), lambda b: (b, 0, 0)),
        ],
    )

    mu, std, cal = pl.pallas_call(
        kernel,
        grid_spec=grid_spec,
        out_shape=(
            jax.ShapeDtypeStruct((n_img, 1, NC), jnp.float32),
            jax.ShapeDtypeStruct((n_img, 1, NC), jnp.float32),
            jax.ShapeDtypeStruct((n_img, 1, NC), jnp.float32),
        ),
        compiler_params=pltpu.CompilerParams(
            # Image axis is fully independent -> shards across v7x's two
            # TensorCores; a no-op on v5e/v6e (1 TC). Blocks here are tiny; at
            # realistic H/W/A, re-budget against v7x's 64 MiB VMEM
            # (vmem_limit_bytes) and split the per-step block if needed.
            dimension_semantics=("parallel",),
        ),
    )(x_pad, anc_pad, wc_fused, bc, pool, wl, bl)

    mu = mu[:, 0, :]
    std = std[:, 0, :]
    cal = cal[:, 0, :]

    if return_std:
        return (cal, std) if calibrate else (mu, std)
    return mu


# -------------------------- pure-JAX reference ----------------------------- #
def _reference_forward(x, params, anchors, n_anchors):
    """Reference mirroring the kernel's bf16 conv operands (f32 elsewhere)."""
    wc, bc, wl, bl = params
    n_img, C, H, W = x.shape
    F = wc.shape[-1]
    refs = jnp.repeat(anchors[:n_anchors].astype(jnp.bfloat16), n_img, axis=0)
    diff = jnp.tile(x.astype(jnp.bfloat16), (n_anchors, 1, 1, 1)) - refs
    batch = jnp.concatenate([refs, diff], axis=1)                  # (N, 2C, H, W)
    xp = jnp.pad(batch, ((0, 0), (0, 0), (PAD, PAD), (PAD, PAD)))
    N = n_anchors * n_img
    acc = jnp.zeros((N, H, W, F), jnp.float32)
    for di in range(KH):
        for dj in range(KW):
            win = xp[:, :, di:di + H, dj:dj + W].transpose(0, 2, 3, 1)
            acc = acc + jnp.einsum(
                "nhwc,cf->nhwf", win, wc[di * KW + dj].astype(jnp.bfloat16),
                preferred_element_type=jnp.float32)
    hid = jnp.maximum(acc + bc[0], 0.0)
    feat = hid.mean(axis=(1, 2))                                   # (N, F)
    logits = jnp.dot(feat, wl) + bl                                # (N, NC)
    p = logits.reshape(n_anchors, n_img, -1)
    mu = p.mean(0)
    s = jax.nn.sigmoid(p)
    var = ((s - s.mean(0)) ** 2).sum(0) / max(n_anchors - 1, 1)
    std = jnp.sqrt(var)
    c = jnp.mean(std, axis=1, keepdims=True)
    cal = mu / (1.0 + jnp.exp(c))
    return cal, std, mu


if __name__ == "__main__":
    key = jax.random.PRNGKey(0)
    k1, k2, k3, k4, k5, k6 = jax.random.split(key, 6)

    N_IMG, C, H, W = 2, 3, 16, 16        # base network sees 2*C = 6 input channels
    N_ANCHORS = 4                        # anchored batch size N = 8
    F, NC = 16, 10

    x = jax.random.normal(k1, (N_IMG, C, H, W), jnp.float32)
    anchors = jax.random.normal(k2, (N_ANCHORS, C, H, W), jnp.float32)

    # deterministic synthetic base-network parameters
    wc = 0.1 * jax.random.normal(k3, (KH * KW, 2 * C, F), jnp.float32)  # per-tap conv weight
    bc = 0.1 * jax.random.normal(k4, (1, F), jnp.float32)
    wl = 0.1 * jax.random.normal(k5, (F, NC), jnp.float32)              # linear head
    bl = 0.1 * jax.random.normal(k6, (1, NC), jnp.float32)
    params = (wc, bc, wl, bl)

    mu_cal, std = delta_uq_cnn_forward(
        x, params, anchors, n_anchors=N_ANCHORS, return_std=True, calibrate=True)
    jax.block_until_ready((mu_cal, std))

    cal_ref, std_ref, _ = _reference_forward(x, params, anchors, N_ANCHORS)
    assert mu_cal.shape == (N_IMG, NC) and std.shape == (N_IMG, NC)
    assert bool(jnp.allclose(mu_cal, cal_ref, rtol=3e-2, atol=3e-3)), "calibrated mu mismatch"
    assert bool(jnp.allclose(std, std_ref, rtol=3e-2, atol=3e-3)), "std mismatch"
    print("KERNEL_OK")
</pallas_src>

<mosaic_0001>
module attributes {stable_mosaic.version = 11 : i64} {
  func.func @_deltauq_image_kernel(%arg0: i32, %arg1: memref<1x18x18x3xbf16, #tpu.memory_space<vmem>>, %arg2: memref<4x18x18x3xbf16, #tpu.memory_space<vmem>>, %arg3: memref<54x16xbf16, #tpu.memory_space<vmem>>, %arg4: memref<1x16xf32, #tpu.memory_space<vmem>>, %arg5: memref<4x1024xf32, #tpu.memory_space<vmem>>, %arg6: memref<16x10xf32, #tpu.memory_space<vmem>>, %arg7: memref<1x10xf32, #tpu.memory_space<vmem>>, %arg8: memref<1x1x10xf32, #tpu.memory_space<vmem>>, %arg9: memref<1x1x10xf32, #tpu.memory_space<vmem>>, %arg10: memref<1x1x10xf32, #tpu.memory_space<vmem>>) attributes {dimension_semantics = [#tpu.dimension_semantics<parallel>], iteration_bounds = array<i64: 2>, scalar_prefetch = 0 : i64, scratch_operands = 0 : i64, tpu.core_type = #tpu.core_type<tc>, window_params = [{transform_indices = @transform_0, window_bounds = array<i64: 1, 18, 18, 3>}, {pipeline_mode = #tpu.pipeline_mode<synchronous>, transform_indices = @transform_1, window_bounds = array<i64: 4, 18, 18, 3>}, {pipeline_mode = #tpu.pipeline_mode<synchronous>, transform_indices = @transform_2, window_bounds = array<i64: 54, 16>}, {pipeline_mode = #tpu.pipeline_mode<synchronous>, transform_indices = @transform_3, window_bounds = array<i64: 1, 16>}, {pipeline_mode = #tpu.pipeline_mode<synchronous>, transform_indices = @transform_4, window_bounds = array<i64: 4, 1024>}, {pipeline_mode = #tpu.pipeline_mode<synchronous>, transform_indices = @transform_5, window_bounds = array<i64: 16, 10>}, {pipeline_mode = #tpu.pipeline_mode<synchronous>, transform_indices = @transform_6, window_bounds = array<i64: 1, 10>}, {transform_indices = @transform_7, window_bounds = array<i64: 1, 1, 10>}, {transform_indices = @transform_8, window_bounds = array<i64: 1, 1, 10>}, {transform_indices = @transform_9, window_bounds = array<i64: 1, 1, 10>}]} {
    %c0 = arith.constant 0 : index
    %c0_0 = arith.constant 0 : index
    %c0_1 = arith.constant 0 : index
    %c0_2 = arith.constant 0 : index
    %0 = vector.load %arg2[%c0, %c0_0, %c0_1, %c0_2] : memref<4x18x18x3xbf16, #tpu.memory_space<vmem>>, vector<4x18x18x3xbf16>
    %c0_3 = arith.constant 0 : index
    %c0_4 = arith.constant 0 : index
    %c0_5 = arith.constant 0 : index
    %c0_6 = arith.constant 0 : index
    %1 = vector.load %arg1[%c0_3, %c0_4, %c0_5, %c0_6] : memref<1x18x18x3xbf16, #tpu.memory_space<vmem>>, vector<1x18x18x3xbf16>
    %2 = vector.broadcast %1 : vector<1x18x18x3xbf16> to vector<4x18x18x3xbf16>
    %3 = arith.subf %2, %0 : vector<4x18x18x3xbf16>
    %4 = vector.extract_strided_slice %0 {offsets = [0, 0, 0, 0], sizes = [4, 16, 16, 3], strides = [1, 1, 1, 1]} : vector<4x18x18x3xbf16> to vector<4x16x16x3xbf16>
    %5 = vector.extract_strided_slice %3 {offsets = [0, 0, 0, 0], sizes = [4, 16, 16, 3], strides = [1, 1, 1, 1]} : vector<4x18x18x3xbf16> to vector<4x16x16x3xbf16>
    %6 = vector.extract_strided_slice %0 {offsets = [0, 0, 1, 0], sizes = [4, 16, 16, 3], strides = [1, 1, 1, 1]} : vector<4x18x18x3xbf16> to vector<4x16x16x3xbf16>
    %7 = vector.extract_strided_slice %3 {offsets = [0, 0, 1, 0], sizes = [4, 16, 16, 3], strides = [1, 1, 1, 1]} : vector<4x18x18x3xbf16> to vector<4x16x16x3xbf16>
    %8 = vector.extract_strided_slice %0 {offsets = [0, 0, 2, 0], sizes = [4, 16, 16, 3], strides = [1, 1, 1, 1]} : vector<4x18x18x3xbf16> to vector<4x16x16x3xbf16>
    %9 = vector.extract_strided_slice %3 {offsets = [0, 0, 2, 0], sizes = [4, 16, 16, 3], strides = [1, 1, 1, 1]} : vector<4x18x18x3xbf16> to vector<4x16x16x3xbf16>
    %10 = vector.extract_strided_slice %0 {offsets = [0, 1, 0, 0], sizes = [4, 16, 16, 3], strides = [1, 1, 1, 1]} : vector<4x18x18x3xbf16> to vector<4x16x16x3xbf16>
    %11 = vector.extract_strided_slice %3 {offsets = [0, 1, 0, 0], sizes = [4, 16, 16, 3], strides = [1, 1, 1, 1]} : vector<4x18x18x3xbf16> to vector<4x16x16x3xbf16>
    %12 = vector.extract_strided_slice %0 {offsets = [0, 1, 1, 0], sizes = [4, 16, 16, 3], strides = [1, 1, 1, 1]} : vector<4x18x18x3xbf16> to vector<4x16x16x3xbf16>
    %13 = vector.extract_strided_slice %3 {offsets = [0, 1, 1, 0], sizes = [4, 16, 16, 3], strides = [1, 1, 1, 1]} : vector<4x18x18x3xbf16> to vector<4x16x16x3xbf16>
    %14 = vector.extract_strided_slice %0 {offsets = [0, 1, 2, 0], sizes = [4, 16, 16, 3], strides = [1, 1, 1, 1]} : vector<4x18x18x3xbf16> to vector<4x16x16x3xbf16>
    %15 = vector.extract_strided_slice %3 {offsets = [0, 1, 2, 0], sizes = [4, 16, 16, 3], strides = [1, 1, 1, 1]} : vector<4x18x18x3xbf16> to vector<4x16x16x3xbf16>
    %16 = vector.extract_strided_slice %0 {offsets = [0, 2, 0, 0], sizes = [4, 16, 16, 3], strides = [1, 1, 1, 1]} : vector<4x18x18x3xbf16> to vector<4x16x16x3xbf16>
    %17 = vector.extract_strided_slice %3 {offsets = [0, 2, 0, 0], sizes = [4, 16, 16, 3], strides = [1, 1, 1, 1]} : vector<4x18x18x3xbf16> to vector<4x16x16x3xbf16>
    %18 = vector.extract_strided_slice %0 {offsets = [0, 2, 1, 0], sizes = [4, 16, 16, 3], strides = [1, 1, 1, 1]} : vector<4x18x18x3xbf16> to vector<4x16x16x3xbf16>
    %19 = vector.extract_strided_slice %3 {offsets = [0, 2, 1, 0], sizes = [4, 16, 16, 3], strides = [1, 1, 1, 1]} : vector<4x18x18x3xbf16> to vector<4x16x16x3xbf16>
    %20 = vector.extract_strided_slice %0 {offsets = [0, 2, 2, 0], sizes = [4, 16, 16, 3], strides = [1, 1, 1, 1]} : vector<4x18x18x3xbf16> to vector<4x16x16x3xbf16>
    %21 = vector.extract_strided_slice %3 {offsets = [0, 2, 2, 0], sizes = [4, 16, 16, 3], strides = [1, 1, 1, 1]} : vector<4x18x18x3xbf16> to vector<4x16x16x3xbf16>
    %22 = tpu.concatenate %4, %5, %6, %7, %8, %9, %10, %11, %12, %13, %14, %15, %16, %17, %18, %19 in 3 : vector<4x16x16x3xbf16>, vector<4x16x16x3xbf16>, vector<4x16x16x3xbf16>, vector<4x16x16x3xbf16>, vector<4x16x16x3xbf16>, vector<4x16x16x3xbf16>, vector<4x16x16x3xbf16>, vector<4x16x16x3xbf16>, vector<4x16x16x3xbf16>, vector<4x16x16x3xbf16>, vector<4x16x16x3xbf16>, vector<4x16x16x3xbf16>, vector<4x16x16x3xbf16>, vector<4x16x16x3xbf16>, vector<4x16x16x3xbf16>, vector<4x16x16x3xbf16> -> vector<4x16x16x48xbf16>
    %23 = tpu.concatenate %20, %21 in 3 : vector<4x16x16x3xbf16>, vector<4x16x16x3xbf16> -> vector<4x16x16x6xbf16>
    %24 = tpu.concatenate %22, %23 in 3 : vector<4x16x16x48xbf16>, vector<4x16x16x6xbf16> -> vector<4x16x16x54xbf16>
    %25 = vector.shape_cast %24 : vector<4x16x16x54xbf16> to vector<1024x54xbf16>
    %c0_7 = arith.constant 0 : index
    %c0_8 = arith.constant 0 : index
    %26 = vector.load %arg3[%c0_7, %c0_8] : memref<54x16xbf16, #tpu.memory_space<vmem>>, vector<54x16xbf16>
    %cst = arith.constant dense<0.000000e+00> : vector<1024x16xf32>
    %27 = tpu.matmul %25, %26, %cst {dimension_numbers = #tpu.dot_dimension_numbers<[1], [0], [0], [1], [0, 0, 1, 1], [], []>} : vector<1024x54xbf16>, vector<54x16xbf16>, vector<1024x16xf32> -> vector<1024x16xf32>
    %c0_9 = arith.constant 0 : index
    %c0_10 = arith.constant 0 : index
    %28 = vector.load %arg4[%c0_9, %c0_10] : memref<1x16xf32, #tpu.memory_space<vmem>>, vector<1x16xf32>
    %29 = vector.broadcast %28 : vector<1x16xf32> to vector<1024x16xf32>
    %30 = arith.addf %27, %29 : vector<1024x16xf32>
    %cst_11 = arith.constant 0.000000e+00 : f32
    %31 = vector.broadcast %cst_11 : f32 to vector<1024x16xf32>
    %32 = arith.maximumf %30, %31 : vector<1024x16xf32>
    %c0_12 = arith.constant 0 : index
    %c0_13 = arith.constant 0 : index
    %33 = vector.load %arg5[%c0_12, %c0_13] : memref<4x1024xf32, #tpu.memory_space<vmem>>, vector<4x1024xf32>
    %cst_14 = arith.constant dense<0.000000e+00> : vector<4x16xf32>
    %34 = tpu.matmul %33, %32, %cst_14 {dimension_numbers = #tpu.dot_dimension_numbers<[1], [0], [0], [1], [0, 0, 1, 1], [], []>} : vector<4x1024xf32>, vector<1024x16xf32>, vector<4x16xf32> -> vector<4x16xf32>
    %c0_15 = arith.constant 0 : index
    %c0_16 = arith.constant 0 : index
    %35 = vector.load %arg6[%c0_15, %c0_16] : memref<16x10xf32, #tpu.memory_space<vmem>>, vector<16x10xf32>
    %cst_17 = arith.constant dense<0.000000e+00> : vector<4x10xf32>
    %36 = tpu.matmul %34, %35, %cst_17 {dimension_numbers = #tpu.dot_dimension_numbers<[1], [0], [0], [1], [0, 0, 1, 1], [], []>} : vector<4x16xf32>, vector<16x10xf32>, vector<4x10xf32> -> vector<4x10xf32>
    %c0_18 = arith.constant 0 : index
    %c0_19 = arith.constant 0 : index
    %37 = vector.load %arg7[%c0_18, %c0_19] : memref<1x10xf32, #tpu.memory_space<vmem>>, vector<1x10xf32>
    %38 = vector.broadcast %37 : vector<1x10xf32> to vector<4x10xf32>
    %39 = arith.addf %36, %38 : vector<4x10xf32>
    %cst_20 = arith.constant dense<0.000000e+00> : vector<10xf32>
    %40 = vector.multi_reduction <add>, %39, %cst_20 [0] : vector<4x10xf32> to vector<10xf32>
    %41 = vector.shape_cast %40 : vector<10xf32> to vector<1x10xf32>
    %cst_21 = arith.constant 4.000000e+00 : f32
    %42 = vector.broadcast %cst_21 : f32 to vector<1x10xf32>
    %43 = arith.divf %41, %42 : vector<1x10xf32>
    %cst_22 = arith.constant 5.000000e-01 : f32
    %44 = vector.broadcast %cst_22 : f32 to vector<4x10xf32>
    %45 = arith.mulf %44, %39 : vector<4x10xf32>
    %46 = math.tanh %45 : vector<4x10xf32>
    %cst_23 = arith.constant 1.000000e+00 : f32
    %47 = vector.broadcast %cst_23 : f32 to vector<4x10xf32>
    %48 = arith.addf %46, %47 : vector<4x10xf32>
    %cst_24 = arith.constant 5.000000e-01 : f32
    %49 = vector.broadcast %cst_24 : f32 to vector<4x10xf32>
    %50 = arith.mulf %49, %48 : vector<4x10xf32>
    %cst_25 = arith.constant dense<0.000000e+00> : vector<10xf32>
    %51 = vector.multi_reduction <add>, %50, %cst_25 [0] : vector<4x10xf32> to vector<10xf32>
    %52 = vector.shape_cast %51 : vector<10xf32> to vector<1x10xf32>
    %cst_26 = arith.constant 4.000000e+00 : f32
    %53 = vector.broadcast %cst_26 : f32 to vector<1x10xf32>
    %54 = arith.divf %52, %53 : vector<1x10xf32>
    %55 = vector.broadcast %54 : vector<1x10xf32> to vector<4x10xf32>
    %56 = arith.subf %50, %55 : vector<4x10xf32>
    %57 = arith.mulf %56, %56 : vector<4x10xf32>
    %cst_27 = arith.constant dense<0.000000e+00> : vector<10xf32>
    %58 = vector.multi_reduction <add>, %57, %cst_27 [0] : vector<4x10xf32> to vector<10xf32>
    %59 = vector.shape_cast %58 : vector<10xf32> to vector<1x10xf32>
    %cst_28 = arith.constant 3.000000e+00 : f32
    %60 = vector.broadcast %cst_28 : f32 to vector<1x10xf32>
    %61 = arith.divf %59, %60 : vector<1x10xf32>
    %62 = math.sqrt %61 : vector<1x10xf32>
    %cst_29 = arith.constant dense<0.000000e+00> : vector<1xf32>
    %63 = vector.multi_reduction <add>, %62, %cst_29 [1] : vector<1x10xf32> to vector<1xf32>
    %64 = vector.shape_cast %63 : vector<1xf32> to vector<1x1xf32>
    %cst_30 = arith.constant 1.000000e+01 : f32
    %65 = vector.broadcast %cst_30 : f32 to vector<1x1xf32>
    %66 = arith.divf %64, %65 : vector<1x1xf32>
    %67 = math.exp %66 : vector<1x1xf32>
    %cst_31 = arith.constant 1.000000e+00 : f32
    %68 = vector.broadcast %cst_31 : f32 to vector<1x1xf32>
    %69 = arith.addf %68, %67 : vector<1x1xf32>
    %70 = vector.broadcast %69 : vector<1x1xf32> to vector<1x10xf32>
    %71 = arith.divf %43, %70 : vector<1x10xf32>
    %72 = vector.shape_cast %43 : vector<1x10xf32> to vector<1x1x10xf32>
    %c0_32 = arith.constant 0 : index
    %c0_33 = arith.constant 0 : index
    %c0_34 = arith.constant 0 : index
    %73 = vector.load %arg8[%c0_32, %c0_33, %c0_34] : memref<1x1x10xf32, #tpu.memory_space<vmem>>, vector<1x1x10xf32>
    tpu.vector_store %arg8[%c0_32, %c0_33, %c0_34], %72 {strides = array<i32>} : memref<1x1x10xf32, #tpu.memory_space<vmem>>, vector<1x1x10xf32>,
    %74 = vector.shape_cast %62 : vector<1x10xf32> to vector<1x1x10xf32>
    %c0_35 = arith.constant 0 : index
    %c0_36 = arith.constant 0 : index
    %c0_37 = arith.constant 0 : index
    %75 = vector.load %arg9[%c0_35, %c0_36, %c0_37] : memref<1x1x10xf32, #tpu.memory_space<vmem>>, vector<1x1x10xf32>
    tpu.vector_store %arg9[%c0_35, %c0_36, %c0_37], %74 {strides = array<i32>} : memref<1x1x10xf32, #tpu.memory_space<vmem>>, vector<1x1x10xf32>,
    %76 = vector.shape_cast %71 : vector<1x10xf32> to vector<1x1x10xf32>
    %c0_38 = arith.constant 0 : index
    %c0_39 = arith.constant 0 : index
    %c0_40 = arith.constant 0 : index
    %77 = vector.load %arg10[%c0_38, %c0_39, %c0_40] : memref<1x1x10xf32, #tpu.memory_space<vmem>>, vector<1x1x10xf32>
    tpu.vector_store %arg10[%c0_38, %c0_39, %c0_40], %76 {strides = array<i32>} : memref<1x1x10xf32, #tpu.memory_space<vmem>>, vector<1x1x10xf32>,
    return
  }
  func.func @transform_0(%arg0: i32) -> (i32, i32, i32, i32) {
    %c0_i32 = arith.constant 0 : i32
    %c0_i32_0 = arith.constant 0 : i32
    %c0_i32_1 = arith.constant 0 : i32
    %c0_i32_2 = arith.constant 0 : i32
    return %arg0, %c0_i32, %c0_i32_0, %c0_i32_1 : i32, i32, i32, i32
  }
  func.func @transform_1(%arg0: i32) -> (i32, i32, i32, i32) {
    %c0_i32 = arith.constant 0 : i32
    %c0_i32_0 = arith.constant 0 : i32
    %c0_i32_1 = arith.constant 0 : i32
    %c0_i32_2 = arith.constant 0 : i32
    %c0_i32_3 = arith.constant 0 : i32
    return %c0_i32, %c0_i32_0, %c0_i32_1, %c0_i32_2 : i32, i32, i32, i32
  }
  func.func @transform_2(%arg0: i32) -> (i32, i32) {
    %c0_i32 = arith.constant 0 : i32
    %c0_i32_0 = arith.constant 0 : i32
    %c0_i32_1 = arith.constant 0 : i32
    return %c0_i32, %c0_i32_0 : i32, i32
  }
  func.func @transform_3(%arg0: i32) -> (i32, i32) {
    %c0_i32 = arith.constant 0 : i32
    %c0_i32_0 = arith.constant 0 : i32
    %c0_i32_1 = arith.constant 0 : i32
    return %c0_i32, %c0_i32_0 : i32, i32
  }
  func.func @transform_4(%arg0: i32) -> (i32, i32) {
    %c0_i32 = arith.constant 0 : i32
    %c0_i32_0 = arith.constant 0 : i32
    %c0_i32_1 = arith.constant 0 : i32
    return %c0_i32, %c0_i32_0 : i32, i32
  }
  func.func @transform_5(%arg0: i32) -> (i32, i32) {
    %c0_i32 = arith.constant 0 : i32
    %c0_i32_0 = arith.constant 0 : i32
    %c0_i32_1 = arith.constant 0 : i32
    return %c0_i32, %c0_i32_0 : i32, i32
  }
  func.func @transform_6(%arg0: i32) -> (i32, i32) {
    %c0_i32 = arith.constant 0 : i32
    %c0_i32_0 = arith.constant 0 : i32
    %c0_i32_1 = arith.constant 0 : i32
    return %c0_i32, %c0_i32_0 : i32, i32
  }
  func.func @transform_7(%arg0: i32) -> (i32, i32, i32) {
    %c0_i32 = arith.constant 0 : i32
    %c0_i32_0 = arith.constant 0 : i32
    %c0_i32_1 = arith.constant 0 : i32
    return %arg0, %c0_i32, %c0_i32_0 : i32, i32, i32
  }
  func.func @transform_8(%arg0: i32) -> (i32, i32, i32) {
    %c0_i32 = arith.constant 0 : i32
    %c0_i32_0 = arith.constant 0 : i32
    %c0_i32_1 = arith.constant 0 : i32
    return %arg0, %c0_i32, %c0_i32_0 : i32, i32, i32
  }
  func.func @transform_9(%arg0: i32) -> (i32, i32, i32) {
    %c0_i32 = arith.constant 0 : i32
    %c0_i32_0 = arith.constant 0 : i32
    %c0_i32_1 = arith.constant 0 : i32
    return %arg0, %c0_i32, %c0_i32_0 : i32, i32, i32
  }
}

</mosaic_0001>

<llo_original>
// kernel: tpu_custom_call.1
$region0: #{tpu_custom_call.1}
  #allocation0 [shape = 'u32[]', space=smem, size = 0x4, offset = 0x4, fixed_abs, tag = 'smem constant byte address 0x4 - core index']
  #allocation1 [shape = 'u32[144,128]{1,0:T(1,128)}', space=vmem, size = 0x12000, scoped, tag = 'internal scratch']
  %s0 = inlined_call_operand.vmem [shape: bf16[2,18,18,3], index: 0, kind: input, shape index: {}]
  %s1 = inlined_call_operand.vmem [shape: bf16[4,18,18,3], index: 1, kind: input, shape index: {}]
  %s2 = inlined_call_operand.vmem [shape: bf16[54,16], index: 2, kind: input, shape index: {}]
  %s3 = inlined_call_operand.vmem [shape: f32[1,16], index: 3, kind: input, shape index: {}]
  %s4 = inlined_call_operand.vmem [shape: f32[4,1024], index: 4, kind: input, shape index: {}]
  %s5 = inlined_call_operand.vmem [shape: f32[16,10], index: 5, kind: input, shape index: {}]
  %s6 = inlined_call_operand.vmem [shape: f32[1,10], index: 6, kind: input, shape index: {}]
  %s7 = inlined_call_operand.hbm [shape: f32[2,1,10], index: 7, kind: output, shape index: {0}]
  %s8 = inlined_call_operand.hbm [shape: f32[2,1,10], index: 8, kind: output, shape index: {1}]
  %s9 = inlined_call_operand.hbm [shape: f32[2,1,10], index: 9, kind: output, shape index: {2}]
  %10 = xla_tuple %s7, %s8, %s9
  %s11 = sld [smem:[#allocation0]]
  $region77: #{tpu_custom_call.1} parent=0
    _
  %s13 = ssub.s32 1, %s11
  %s14 = scalar_select 0, %s13, %s11
  $region1: #{tpu_custom_call.1} parent=0
    #allocation2 [shape = 'u8[1024]{0}', space=vmem, size = 0x400, scoped, tag = 'output window, operand 0']
    #allocation3 [shape = 's32[2]{0}', space=sflag, size = 0x8, scoped, tag = 'scoped memory for tpu_custom_call.1']
    #allocation4 [shape = 'u8[1024]{0}', space=vmem, size = 0x400, scoped, tag = 'output window, operand 1']
    #allocation5 [shape = 's32[2]{0}', space=sflag, size = 0x8, scoped, tag = 'scoped memory for tpu_custom_call.1']
    #allocation6 [shape = 'u8[1024]{0}', space=vmem, size = 0x400, scoped, tag = 'output window, operand 2']
    %15 = vsyncpa [#allocation3], 0
    %s16 = scalar_lea.sflag [#allocation3], 1
    %17 = vsyncpa %s16, 0
    %18 = vsyncpa [#allocation5], 0
    %s19 = scalar_lea.sflag [#allocation5], 1
    %20 = vsyncpa %s19, 0
    loop: start=0, step=1, limit=4
    $region2: #{tpu_custom_call.1} parent=1 // loop_pre_header
      _
    $region3: #{tpu_custom_call.1} parent=1 // loop_header
      %s22 = sphi 0, %s26
      %p23 = scmp.ge.s32.totalorder %s22, 4
      %s32 = sphi 0, %s34
      %s35 = sphi 0, %s32
      %s36 = sphi 0, %s35
      %s52 = sphi 0, %s36
      %s56 = sphi 0, %s56
      %s58 = sphi 0, %s56
      %s59 = sphi 0, %s58
      %s73 = sphi 0, %s59
      %s77 = sphi 0, %s77
      %s79 = sphi 0, %s77
      %s80 = sphi 0, %s79
      %s94 = sphi 0, %s80
      %s98 = sphi 0, %s98
      %s100 = sphi 0, %s98
      %s101 = sphi 0, %s100
      %s115 = sphi 0, %s101
      %s119 = sphi 0, %s119
      %s121 = sphi 0, %s119
      %s122 = sphi 0, %s121
      %s136 = sphi 0, %s122
      %s140 = sphi 0, %s140
      %s142 = sphi 0, %s140
      %s143 = sphi 0, %s142
      %s157 = sphi 0, %s143
      %s161 = sphi 0, %s161
      %s163 = sphi 0, %s161
      %s164 = sphi 0, %s163
      %s178 = sphi 0, %s164
      %s184 = sphi 0, %s186
      %s187 = sphi 0, %s184
      %s188 = sphi 0, %s187
      %s204 = sphi 0, %s188
      %s210 = sphi 0, %s212
      %s213 = sphi 0, %s210
      %s214 = sphi 0, %s213
      %s230 = sphi 0, %s214
      %s236 = sphi 0, %s238
      %s239 = sphi 0, %s236
      %s240 = sphi 0, %s239
      %s256 = sphi 0, %s240
    $region4: #{tpu_custom_call.1} parent=1 // loop_header_branch
      %25 = sbr.rel (%p23) target = $region8
    $region5: #{tpu_custom_call.1} parent=1 // loop_body
      %s27 = ssub.s32 %s22, 1
      %s28 = ssub.s32 %s22, 2
      %s29 = sadd.s32 %s22, 1
      %s30 = ssub.s32 %s22, %s29
      %p31 = scmp.eq.s32.totalorder %s30, 0
      %s33 = sadd.s32 %s32, 1
      %s34 = scalar_select %p31, %s32, %s33
      %p37 = pneg %p31
      %p38 = scmp.eq.s32.totalorder %s22, 1
      %p39 = por %p37, %p38
      %p40 = scmp.ne.s32.totalorder %s32, %s35
      %p41 = scmp.eq.s32.totalorder %s22, 0
      %p42 = por %p40, %p41
      %p43 = scmp.ne.s32.totalorder %s32, %s35
      %p44 = scmp.eq.s32.totalorder %s27, 1
      %p45 = por %p43, %p44
      %p46 = scmp.ne.s32.totalorder %s35, %s36
      %p47 = scmp.eq.s32.totalorder %s27, 0
      %p48 = por %p46, %p47
      %p49 = scmp.ne.s32.totalorder %s35, %s36
      %p50 = scmp.eq.s32.totalorder %s28, 1
      %p51 = por %p49, %p50
      %p53 = scmp.ne.s32.totalorder %s36, %s52
      %p54 = scmp.eq.s32.totalorder %s28, 0
      %p55 = por %p53, %p54
      %s57 = sadd.s32 %s56, 1
      %p60 = scmp.eq.s32.totalorder %s22, 1
      %p61 = scmp.ne.s32.totalorder %s56, %s58
      %p62 = scmp.eq.s32.totalorder %s22, 0
      %p63 = por %p61, %p62
      %p64 = scmp.ne.s32.totalorder %s56, %s58
      %p65 = scmp.eq.s32.totalorder %s27, 1
      %p66 = por %p64, %p65
      %p67 = scmp.ne.s32.totalorder %s58, %s59
      %p68 = scmp.eq.s32.totalorder %s27, 0
      %p69 = por %p67, %p68
      %p70 = scmp.ne.s32.totalorder %s58, %s59
      %p71 = scmp.eq.s32.totalorder %s28, 1
      %p72 = por %p70, %p71
      %p74 = scmp.ne.s32.totalorder %s59, %s73
      %p75 = scmp.eq.s32.totalorder %s28, 0
      %p76 = por %p74, %p75
      %s78 = sadd.s32 %s77, 1
      %p81 = scmp.eq.s32.totalorder %s22, 1
      %p82 = scmp.ne.s32.totalorder %s77, %s79
      %p83 = scmp.eq.s32.totalorder %s22, 0
      %p84 = por %p82, %p83
      %p85 = scmp.ne.s32.totalorder %s77, %s79
      %p86 = scmp.eq.s32.totalorder %s27, 1
      %p87 = por %p85, %p86
      %p88 = scmp.ne.s32.totalorder %s79, %s80
      %p89 = scmp.eq.s32.totalorder %s27, 0
      %p90 = por %p88, %p89
      %p91 = scmp.ne.s32.totalorder %s79, %s80
      %p92 = scmp.eq.s32.totalorder %s28, 1
      %p93 = por %p91, %p92
      %p95 = scmp.ne.s32.totalorder %s80, %s94
      %p96 = scmp.eq.s32.totalorder %s28, 0
      %p97 = por %p95, %p96
      %s99 = sadd.s32 %s98, 1
      %p102 = scmp.eq.s32.totalorder %s22, 1
      %p103 = scmp.ne.s32.totalorder %s98, %s100
      %p104 = scmp.eq.s32.totalorder %s22, 0
      %p105 = por %p103, %p104
      %p106 = scmp.ne.s32.totalorder %s98, %s100
      %p107 = scmp.eq.s32.totalorder %s27, 1
      %p108 = por %p106, %p107
      %p109 = scmp.ne.s32.totalorder %s100, %s101
      %p110 = scmp.eq.s32.totalorder %s27, 0
      %p111 = por %p109, %p110
      %p112 = scmp.ne.s32.totalorder %s100, %s101
      %p113 = scmp.eq.s32.totalorder %s28, 1
      %p114 = por %p112, %p113
      %p116 = scmp.ne.s32.totalorder %s101, %s115
      %p117 = scmp.eq.s32.totalorder %s28, 0
      %p118 = por %p116, %p117
      %s120 = sadd.s32 %s119, 1
      %p123 = scmp.eq.s32.totalorder %s22, 1
      %p124 = scmp.ne.s32.totalorder %s119, %s121
      %p125 = scmp.eq.s32.totalorder %s22, 0
      %p126 = por %p124, %p125
      %p127 = scmp.ne.s32.totalorder %s119, %s121
      %p128 = scmp.eq.s32.totalorder %s27, 1
      %p129 = por %p127, %p128
      %p130 = scmp.ne.s32.totalorder %s121, %s122
      %p131 = scmp.eq.s32.totalorder %s27, 0
      %p132 = por %p130, %p131
      %p133 = scmp.ne.s32.totalorder %s121, %s122
      %p134 = scmp.eq.s32.totalorder %s28, 1
      %p135 = por %p133, %p134
      %p137 = scmp.ne.s32.totalorder %s122, %s136
      %p138 = scmp.eq.s32.totalorder %s28, 0
      %p139 = por %p137, %p138
      %s141 = sadd.s32 %s140, 1
      %p144 = scmp.eq.s32.totalorder %s22, 1
      %p145 = scmp.ne.s32.totalorder %s140, %s142
      %p146 = scmp.eq.s32.totalorder %s22, 0
      %p147 = por %p145, %p146
      %p148 = scmp.ne.s32.totalorder %s140, %s142
      %p149 = scmp.eq.s32.totalorder %s27, 1
      %p150 = por %p148, %p149
      %p151 = scmp.ne.s32.totalorder %s142, %s143
      %p152 = scmp.eq.s32.totalorder %s27, 0
      %p153 = por %p151, %p152
      %p154 = scmp.ne.s32.totalorder %s142, %s143
      %p155 = scmp.eq.s32.totalorder %s28, 1
      %p156 = por %p154, %p155
      %p158 = scmp.ne.s32.totalorder %s143, %s157
      %p159 = scmp.eq.s32.totalorder %s28, 0
      %p160 = por %p158, %p159
      %s162 = sadd.s32 %s161, 1
      %p165 = scmp.eq.s32.totalorder %s22, 1
      %p166 = scmp.ne.s32.totalorder %s161, %s163
      %p167 = scmp.eq.s32.totalorder %s22, 0
      %p168 = por %p166, %p167
      %p169 = scmp.ne.s32.totalorder %s161, %s163
      %p170 = scmp.eq.s32.totalorder %s27, 1
      %p171 = por %p169, %p170
      %p172 = scmp.ne.s32.totalorder %s163, %s164
      %p173 = scmp.eq.s32.totalorder %s27, 0
      %p174 = por %p172, %p173
      %p175 = scmp.ne.s32.totalorder %s163, %s164
      %p176 = scmp.eq.s32.totalorder %s28, 1
      %p177 = por %p175, %p176
      %p179 = scmp.ne.s32.totalorder %s164, %s178
      %p180 = scmp.eq.s32.totalorder %s28, 0
      %p181 = por %p179, %p180
      %s182 = ssub.s32 %s22, %s29
      %p183 = scmp.eq.s32.totalorder %s182, 0
      %s185 = sadd.s32 %s184, 1
      %s186 = scalar_select %p183, %s184, %s185
      %p189 = pneg %p183
      %p190 = scmp.eq.s32.totalorder %s22, 1
      %p191 = por %p189, %p190
      %p192 = scmp.ne.s32.totalorder %s184, %s187
      %p193 = scmp.eq.s32.totalorder %s22, 0
      %p194 = por %p192, %p193
      %p195 = scmp.ne.s32.totalorder %s184, %s187
      %p196 = scmp.eq.s32.totalorder %s27, 1
      %p197 = por %p195, %p196
      %p198 = scmp.ne.s32.totalorder %s187, %s188
      %p199 = scmp.eq.s32.totalorder %s27, 0
      %p200 = por %p198, %p199
      %p201 = scmp.ne.s32.totalorder %s187, %s188
      %p202 = scmp.eq.s32.totalorder %s28, 1
      %p203 = por %p201, %p202
      %p205 = scmp.ne.s32.totalorder %s188, %s204
      %p206 = scmp.eq.s32.totalorder %s28, 0
      %p207 = por %p205, %p206
      %s208 = ssub.s32 %s22, %s29
      %p209 = scmp.eq.s32.totalorder %s208, 0
      %s211 = sadd.s32 %s210, 1
      %s212 = scalar_select %p209, %s210, %s211
      %p215 = pneg %p209
      %p216 = scmp.eq.s32.totalorder %s22, 1
      %p217 = por %p215, %p216
      %p218 = scmp.ne.s32.totalorder %s210, %s213
      %p219 = scmp.eq.s32.totalorder %s22, 0
      %p220 = por %p218, %p219
      %p221 = scmp.ne.s32.totalorder %s210, %s213
      %p222 = scmp.eq.s32.totalorder %s27, 1
      %p223 = por %p221, %p222
      %p224 = scmp.ne.s32.totalorder %s213, %s214
      %p225 = scmp.eq.s32.totalorder %s27, 0
      %p226 = por %p224, %p225
      %p227 = scmp.ne.s32.totalorder %s213, %s214
      %p228 = scmp.eq.s32.totalorder %s28, 1
      %p229 = por %p227, %p228
      %p231 = scmp.ne.s32.totalorder %s214, %s230
      %p232 = scmp.eq.s32.totalorder %s28, 0
      %p233 = por %p231, %p232
      %s234 = ssub.s32 %s22, %s29
      %p235 = scmp.eq.s32.totalorder %s234, 0
      %s237 = sadd.s32 %s236, 1
      %s238 = scalar_select %p235, %s236, %s237
      %p241 = pneg %p235
      %p242 = scmp.eq.s32.totalorder %s22, 1
      %p243 = por %p241, %p242
      %p244 = scmp.ne.s32.totalorder %s236, %s239
      %p245 = scmp.eq.s32.totalorder %s22, 0
      %p246 = por %p244, %p245
      %p247 = scmp.ne.s32.totalorder %s236, %s239
      %p248 = scmp.eq.s32.totalorder %s27, 1
      %p249 = por %p247, %p248
      %p250 = scmp.ne.s32.totalorder %s239, %s240
      %p251 = scmp.eq.s32.totalorder %s27, 0
      %p252 = por %p250, %p251
      %p253 = scmp.ne.s32.totalorder %s239, %s240
      %p254 = scmp.eq.s32.totalorder %s28, 1
      %p255 = por %p253, %p254
      %p257 = scmp.ne.s32.totalorder %s240, %s256
      %p258 = scmp.eq.s32.totalorder %s28, 0
      %p259 = por %p257, %p258
      %p260 = scmp.le.s32.totalorder 1, %s22
      %p261 = scmp.lt.s32.totalorder %s22, 3
      %p262 = pnand %p260, %p261
      %p263 = pneg %p262
      // Predicated region
      $region9: #{tpu_custom_call.1} parent=5 // pred_check
        _
      $region10: #{tpu_custom_call.1} parent=5 // pred_check_branch
        %265 = sbr.rel (%p262) target = $region12
      $region11: #{tpu_custom_call.1} parent=5 // pred_region
        %s266 = ssub.s32 %s22, 1
        // Predicated region
        $region13: #{tpu_custom_call.1} parent=11 // pred_check
          %p267 = pneg %p69
        $region14: #{tpu_custom_call.1} parent=11 // pred_check_branch
          %269 = sbr.rel (%p267) target = $region16
        $region15: #{tpu_custom_call.1} parent=11 // pred_region
          _
        $region16: #{tpu_custom_call.1} parent=11 // pred_fallthru
          _
        // Predicated region
        $region17: #{tpu_custom_call.1} parent=11 // pred_check
          %p270 = pneg %p90
        $region18: #{tpu_custom_call.1} parent=11 // pred_check_branch
          %272 = sbr.rel (%p270) target = $region20
        $region19: #{tpu_custom_call.1} parent=11 // pred_region
          _
        $region20: #{tpu_custom_call.1} parent=11 // pred_fallthru
          _
        // Predicated region
        $region21: #{tpu_custom_call.1} parent=11 // pred_check
          %p273 = pneg %p111
        $region22: #{tpu_custom_call.1} parent=11 // pred_check_branch
          %275 = sbr.rel (%p273) target = $region24
        $region23: #{tpu_custom_call.1} parent=11 // pred_region
          _
        $region24: #{tpu_custom_call.1} parent=11 // pred_fallthru
          _
        // Predicated region
        $region25: #{tpu_custom_call.1} parent=11 // pred_check
          %p276 = pneg %p132
        $region26: #{tpu_custom_call.1} parent=11 // pred_check_branch
          %278 = sbr.rel (%p276) target = $region28
        $region27: #{tpu_custom_call.1} parent=11 // pred_region
          _
        $region28: #{tpu_custom_call.1} parent=11 // pred_fallthru
          _
        // Predicated region
        $region29: #{tpu_custom_call.1} parent=11 // pred_check
          %p279 = pneg %p153
        $region30: #{tpu_custom_call.1} parent=11 // pred_check_branch
          %281 = sbr.rel (%p279) target = $region32
        $region31: #{tpu_custom_call.1} parent=11 // pred_region
          _
        $region32: #{tpu_custom_call.1} parent=11 // pred_fallthru
          _
        // Predicated region
        $region33: #{tpu_custom_call.1} parent=11 // pred_check
          %p282 = pneg %p174
        $region34: #{tpu_custom_call.1} parent=11 // pred_check_branch
          %284 = sbr.rel (%p282) target = $region36
        $region35: #{tpu_custom_call.1} parent=11 // pred_region
          _
        $region36: #{tpu_custom_call.1} parent=11 // pred_fallthru
          _
      $region12: #{tpu_custom_call.1} parent=5 // pred_fallthru
        _
      %p285 = scmp.lt.s32.totalorder %s22, 2
      // Predicated region
      $region37: #{tpu_custom_call.1} parent=5 // pred_check
        %p286 = pneg %p285
      $region38: #{tpu_custom_call.1} parent=5 // pred_check_branch
        %288 = sbr.rel (%p286) target = $region40
      $region39: #{tpu_custom_call.1} parent=5 // pred_region
        // Predicated region
        $region41: #{tpu_custom_call.1} parent=39 // pred_check
          %p289 = pneg %p42
        $region42: #{tpu_custom_call.1} parent=39 // pred_check_branch
          %291 = sbr.rel (%p289) target = $region44
        $region43: #{tpu_custom_call.1} parent=39 // pred_region
          %p292 = scmp.lt.s32.totalorder %s22, 1
          %s293 = scalar_select %p292, %s22, 1
          %s294 = smul.addr %s293, 54
          %s295 = smul.addr %s294, 4
          %s296 = scalar_lea.vmem %s0, %s295
        $region44: #{tpu_custom_call.1} parent=39 // pred_fallthru
          _
      $region40: #{tpu_custom_call.1} parent=5 // pred_fallthru
        _
      %p297 = scmp.le.s32.totalorder 1, %s22
      %p298 = scmp.lt.s32.totalorder %s22, 3
      %p299 = pnand %p297, %p298
      %p300 = pneg %p299
      // Predicated region
      $region45: #{tpu_custom_call.1} parent=5 // pred_check
        _
      $region46: #{tpu_custom_call.1} parent=5 // pred_check_branch
        %302 = sbr.rel (%p299) target = $region48
      $region47: #{tpu_custom_call.1} parent=5 // pred_region
        %s303 = ssub.s32 %s22, 1
        %p304 = scmp.lt.s32.totalorder %s27, 1
        %s305 = scalar_select %p304, %s27, 1
        %s306 = smul.addr %s305, 54
        %s307 = smul.addr %s306, 4
        %s308 = scalar_lea.vmem %s0, %s307
        %p309 = pneg %p48
        %p310 = pneg %p45
        %p311 = pneg %p69
        %p312 = pneg %p66
        %p313 = pneg %p90
        %p314 = pneg %p87
        %p315 = pneg %p111
        %p316 = pneg %p108
        %p317 = pneg %p132
        %p318 = pneg %p129
        %p319 = pneg %p153
        %p320 = pneg %p150
        %p321 = pneg %p174
        %p322 = pneg %p171
        %p323 = pneg %p200
        %p324 = pneg %p197
        %s325 = sand.u32 %s187, 1
        %s326 = scalar_lea.sflag [#allocation3], %s325
        %s327 = sand.u32 %s187, 1
        %s328 = scalar_lea.vmem [#allocation2], %s327
        %p329 = pneg %p226
        %p330 = pneg %p223
        %s331 = sand.u32 %s27, 1
        %s332 = scalar_lea.sflag [#allocation5], %s331
        %s333 = sand.u32 %s213, 1
        %s334 = scalar_lea.vmem [#allocation4], %s333
        %p335 = pneg %p252
        %p336 = pneg %p249
        %s337 = sand.u32 %s27, 1
        %s338 = scalar_lea.sflag [#allocation5], %s337
        %s339 = sand.u32 %s239, 1
        %s340 = scalar_lea.vmem [#allocation6], %s339
        %p341 = scmp.lt.s32.totalorder %s27, 1
        %s342 = scalar_select %p341, %s27, 1
        %s343 = smul.addr %s342, 54
        %s344 = smul.addr %s343, 4
        %s345 = scalar_lea.vmem %s0, %s344
        %v347 = vld [vmem:[%s1] sm:$0xf]
        %v348 = vld [vmem:[%s1 + $0x4] sm:$0xf]
        %v349 = vld [vmem:[%s1 + $0x8] sm:$0x1]
        %v350 = vld [vmem:[%s1 + $0xc] sm:$0xf]
        %v351 = vld [vmem:[%s1 + $0x10] sm:$0xf]
        %v352 = vld [vmem:[%s1 + $0x14] sm:$0x1]
        %v353 = vld [vmem:[%s1 + $0x18] sm:$0xf]
        %v354 = vld [vmem:[%s1 + $0x1c] sm:$0xf]
        %v355 = vld [vmem:[%s1 + $0x20] sm:$0x1]
        %v356 = vld [vmem:[%s1 + $0x24] sm:$0xf]
        %v357 = vld [vmem:[%s1 + $0x28] sm:$0xf]
        %v358 = vld [vmem:[%s1 + $0x2c] sm:$0x1]
        %v359 = vld [vmem:[%s1 + $0x30] sm:$0xf]
        %v360 = vld [vmem:[%s1 + $0x34] sm:$0xf]
        %v361 = vld [vmem:[%s1 + $0x38] sm:$0x1]
        %v362 = vld [vmem:[%s1 + $0x3c] sm:$0xf]
        %v363 = vld [vmem:[%s1 + $0x40] sm:$0xf]
        %v364 = vld [vmem:[%s1 + $0x44] sm:$0x1]
        %v365 = vld [vmem:[%s1 + $0x48] sm:$0xf]
        %v366 = vld [vmem:[%s1 + $0x4c] sm:$0xf]
        %v367 = vld [vmem:[%s1 + $0x50] sm:$0x1]
        %v368 = vld [vmem:[%s1 + $0x54] sm:$0xf]
        %v369 = vld [vmem:[%s1 + $0x58] sm:$0xf]
        %v370 = vld [vmem:[%s1 + $0x5c] sm:$0x1]
        %v371 = vld [vmem:[%s1 + $0x60] sm:$0xf]
        %v372 = vld [vmem:[%s1 + $0x64] sm:$0xf]
        %v373 = vld [vmem:[%s1 + $0x68] sm:$0x1]
        %v374 = vld [vmem:[%s1 + $0x6c] sm:$0xf]
        %v375 = vld [vmem:[%s1 + $0x70] sm:$0xf]
        %v376 = vld [vmem:[%s1 + $0x74] sm:$0x1]
        %v377 = vld [vmem:[%s1 + $0x78] sm:$0xf]
        %v378 = vld [vmem:[%s1 + $0x7c] sm:$0xf]
        %v379 = vld [vmem:[%s1 + $0x80] sm:$0x1]
        %v380 = vld [vmem:[%s1 + $0x84] sm:$0xf]
        %v381 = vld [vmem:[%s1 + $0x88] sm:$0xf]
        %v382 = vld [vmem:[%s1 + $0x8c] sm:$0x1]
        %v383 = vld [vmem:[%s1 + $0x90] sm:$0xf]
        %v384 = vld [vmem:[%s1 + $0x94] sm:$0xf]
        %v385 = vld [vmem:[%s1 + $0x98] sm:$0x1]
        %v386 = vld [vmem:[%s1 + $0x9c] sm:$0xf]
        %v387 = vld [vmem:[%s1 + $0xa0] sm:$0xf]
        %v388 = vld [vmem:[%s1 + $0xa4] sm:$0x1]
        %v389 = vld [vmem:[%s1 + $0xa8] sm:$0xf]
        %v390 = vld [vmem:[%s1 + $0xac] sm:$0xf]
        %v391 = vld [vmem:[%s1 + $0xb0] sm:$0x1]
        %v392 = vld [vmem:[%s1 + $0xb4] sm:$0xf]
        %v393 = vld [vmem:[%s1 + $0xb8] sm:$0xf]
        %v394 = vld [vmem:[%s1 + $0xbc] sm:$0x1]
        %v395 = vld [vmem:[%s1 + $0xc0] sm:$0xf]
        %v396 = vld [vmem:[%s1 + $0xc4] sm:$0xf]
        %v397 = vld [vmem:[%s1 + $0xc8] sm:$0x1]
        %v398 = vld [vmem:[%s1 + $0xcc] sm:$0xf]
        %v399 = vld [vmem:[%s1 + $0xd0] sm:$0xf]
        %v400 = vld [vmem:[%s1 + $0xd4] sm:$0x1]
        %v401 = vld [vmem:[%s1 + $0xd8] sm:$0xf]
        %v402 = vld [vmem:[%s1 + $0xdc] sm:$0xf]
        %v403 = vld [vmem:[%s1 + $0xe0] sm:$0x1]
        %v404 = vld [vmem:[%s1 + $0xe4] sm:$0xf]
        %v405 = vld [vmem:[%s1 + $0xe8] sm:$0xf]
        %v406 = vld [vmem:[%s1 + $0xec] sm:$0x1]
        %v407 = vld [vmem:[%s1 + $0xf0] sm:$0xf]
        %v408 = vld [vmem:[%s1 + $0xf4] sm:$0xf]
        %v409 = vld [vmem:[%s1 + $0xf8] sm:$0x1]
        %v410 = vld [vmem:[%s1 + $0xfc] sm:$0xf]
        %v411 = vld [vmem:[%s1 + $0x100] sm:$0xf]
        %v412 = vld [vmem:[%s1 + $0x104] sm:$0x1]
        %v413 = vld [vmem:[%s1 + $0x108] sm:$0xf]
        %v414 = vld [vmem:[%s1 + $0x10c] sm:$0xf]
        %v415 = vld [vmem:[%s1 + $0x110] sm:$0x1]
        %v416 = vld [vmem:[%s1 + $0x114] sm:$0xf]
        %v417 = vld [vmem:[%s1 + $0x118] sm:$0xf]
        %v418 = vld [vmem:[%s1 + $0x11c] sm:$0x1]
        %v419 = vld [vmem:[%s1 + $0x120] sm:$0xf]
        %v420 = vld [vmem:[%s1 + $0x124] sm:$0xf]
        %v421 = vld [vmem:[%s1 + $0x128] sm:$0x1]
        %v422 = vld [vmem:[%s1 + $0x12c] sm:$0xf]
        %v423 = vld [vmem:[%s1 + $0x130] sm:$0xf]
        %v424 = vld [vmem:[%s1 + $0x134] sm:$0x1]
        %v425 = vld [vmem:[%s1 + $0x138] sm:$0xf]
        %v426 = vld [vmem:[%s1 + $0x13c] sm:$0xf]
        %v427 = vld [vmem:[%s1 + $0x140] sm:$0x1]
        %v428 = vld [vmem:[%s1 + $0x144] sm:$0xf]
        %v429 = vld [vmem:[%s1 + $0x148] sm:$0xf]
        %v430 = vld [vmem:[%s1 + $0x14c] sm:$0x1]
        %v431 = vld [vmem:[%s1 + $0x150] sm:$0xf]
        %v432 = vld [vmem:[%s1 + $0x154] sm:$0xf]
        %v433 = vld [vmem:[%s1 + $0x158] sm:$0x1]
        %v434 = vld [vmem:[%s1 + $0x15c] sm:$0xf]
        %v435 = vld [vmem:[%s1 + $0x160] sm:$0xf]
        %v436 = vld [vmem:[%s1 + $0x164] sm:$0x1]
        %v437 = vld [vmem:[%s1 + $0x168] sm:$0xf]
        %v438 = vld [vmem:[%s1 + $0x16c] sm:$0xf]
        %v439 = vld [vmem:[%s1 + $0x170] sm:$0x1]
        %v440 = vld [vmem:[%s1 + $0x174] sm:$0xf]
        %v441 = vld [vmem:[%s1 + $0x178] sm:$0xf]
        %v442 = vld [vmem:[%s1 + $0x17c] sm:$0x1]
        %v443 = vld [vmem:[%s1 + $0x180] sm:$0xf]
        %v444 = vld [vmem:[%s1 + $0x184] sm:$0xf]
        %v445 = vld [vmem:[%s1 + $0x188] sm:$0x1]
        %v446 = vld [vmem:[%s1 + $0x18c] sm:$0xf]
        %v447 = vld [vmem:[%s1 + $0x190] sm:$0xf]
        %v448 = vld [vmem:[%s1 + $0x194] sm:$0x1]
        %v449 = vld [vmem:[%s1 + $0x198] sm:$0xf]
        %v450 = vld [vmem:[%s1 + $0x19c] sm:$0xf]
        %v451 = vld [vmem:[%s1 + $0x1a0] sm:$0x1]
        %v452 = vld [vmem:[%s1 + $0x1a4] sm:$0xf]
        %v453 = vld [vmem:[%s1 + $0x1a8] sm:$0xf]
        %v454 = vld [vmem:[%s1 + $0x1ac] sm:$0x1]
        %v455 = vld [vmem:[%s1 + $0x1b0] sm:$0xf]
        %v456 = vld [vmem:[%s1 + $0x1b4] sm:$0xf]
        %v457 = vld [vmem:[%s1 + $0x1b8] sm:$0x1]
        %v458 = vld [vmem:[%s1 + $0x1bc] sm:$0xf]
        %v459 = vld [vmem:[%s1 + $0x1c0] sm:$0xf]
        %v460 = vld [vmem:[%s1 + $0x1c4] sm:$0x1]
        %v461 = vld [vmem:[%s1 + $0x1c8] sm:$0xf]
        %v462 = vld [vmem:[%s1 + $0x1cc] sm:$0xf]
        %v463 = vld [vmem:[%s1 + $0x1d0] sm:$0x1]
        %v464 = vld [vmem:[%s1 + $0x1d4] sm:$0xf]
        %v465 = vld [vmem:[%s1 + $0x1d8] sm:$0xf]
        %v466 = vld [vmem:[%s1 + $0x1dc] sm:$0x1]
        %v467 = vld [vmem:[%s1 + $0x1e0] sm:$0xf]
        %v468 = vld [vmem:[%s1 + $0x1e4] sm:$0xf]
        %v469 = vld [vmem:[%s1 + $0x1e8] sm:$0x1]
        %v470 = vld [vmem:[%s1 + $0x1ec] sm:$0xf]
        %v471 = vld [vmem:[%s1 + $0x1f0] sm:$0xf]
        %v472 = vld [vmem:[%s1 + $0x1f4] sm:$0x1]
        %v473 = vld [vmem:[%s1 + $0x1f8] sm:$0xf]
        %v474 = vld [vmem:[%s1 + $0x1fc] sm:$0xf]
        %v475 = vld [vmem:[%s1 + $0x200] sm:$0x1]
        %v476 = vld [vmem:[%s1 + $0x204] sm:$0xf]
        %v477 = vld [vmem:[%s1 + $0x208] sm:$0xf]
        %v478 = vld [vmem:[%s1 + $0x20c] sm:$0x1]
        %v479 = vld [vmem:[%s1 + $0x210] sm:$0xf]
        %v480 = vld [vmem:[%s1 + $0x214] sm:$0xf]
        %v481 = vld [vmem:[%s1 + $0x218] sm:$0x1]
        %v482 = vld [vmem:[%s1 + $0x21c] sm:$0xf]
        %v483 = vld [vmem:[%s1 + $0x220] sm:$0xf]
        %v484 = vld [vmem:[%s1 + $0x224] sm:$0x1]
        %v485 = vld [vmem:[%s1 + $0x228] sm:$0xf]
        %v486 = vld [vmem:[%s1 + $0x22c] sm:$0xf]
        %v487 = vld [vmem:[%s1 + $0x230] sm:$0x1]
        %v488 = vld [vmem:[%s1 + $0x234] sm:$0xf]
        %v489 = vld [vmem:[%s1 + $0x238] sm:$0xf]
        %v490 = vld [vmem:[%s1 + $0x23c] sm:$0x1]
        %v491 = vld [vmem:[%s1 + $0x240] sm:$0xf]
        %v492 = vld [vmem:[%s1 + $0x244] sm:$0xf]
        %v493 = vld [vmem:[%s1 + $0x248] sm:$0x1]
        %v494 = vld [vmem:[%s1 + $0x24c] sm:$0xf]
        %v495 = vld [vmem:[%s1 + $0x250] sm:$0xf]
        %v496 = vld [vmem:[%s1 + $0x254] sm:$0x1]
        %v497 = vld [vmem:[%s1 + $0x258] sm:$0xf]
        %v498 = vld [vmem:[%s1 + $0x25c] sm:$0xf]
        %v499 = vld [vmem:[%s1 + $0x260] sm:$0x1]
        %v500 = vld [vmem:[%s1 + $0x264] sm:$0xf]
        %v501 = vld [vmem:[%s1 + $0x268] sm:$0xf]
        %v502 = vld [vmem:[%s1 + $0x26c] sm:$0x1]
        %v503 = vld [vmem:[%s1 + $0x270] sm:$0xf]
        %v504 = vld [vmem:[%s1 + $0x274] sm:$0xf]
        %v505 = vld [vmem:[%s1 + $0x278] sm:$0x1]
        %v506 = vld [vmem:[%s1 + $0x27c] sm:$0xf]
        %v507 = vld [vmem:[%s1 + $0x280] sm:$0xf]
        %v508 = vld [vmem:[%s1 + $0x284] sm:$0x1]
        %v509 = vld [vmem:[%s1 + $0x288] sm:$0xf]
        %v510 = vld [vmem:[%s1 + $0x28c] sm:$0xf]
        %v511 = vld [vmem:[%s1 + $0x290] sm:$0x1]
        %v512 = vld [vmem:[%s1 + $0x294] sm:$0xf]
        %v513 = vld [vmem:[%s1 + $0x298] sm:$0xf]
        %v514 = vld [vmem:[%s1 + $0x29c] sm:$0x1]
        %v515 = vld [vmem:[%s1 + $0x2a0] sm:$0xf]
        %v516 = vld [vmem:[%s1 + $0x2a4] sm:$0xf]
        %v517 = vld [vmem:[%s1 + $0x2a8] sm:$0x1]
        %v518 = vld [vmem:[%s1 + $0x2ac] sm:$0xf]
        %v519 = vld [vmem:[%s1 + $0x2b0] sm:$0xf]
        %v520 = vld [vmem:[%s1 + $0x2b4] sm:$0x1]
        %v521 = vld [vmem:[%s1 + $0x2b8] sm:$0xf]
        %v522 = vld [vmem:[%s1 + $0x2bc] sm:$0xf]
        %v523 = vld [vmem:[%s1 + $0x2c0] sm:$0x1]
        %v524 = vld [vmem:[%s1 + $0x2c4] sm:$0xf]
        %v525 = vld [vmem:[%s1 + $0x2c8] sm:$0xf]
        %v526 = vld [vmem:[%s1 + $0x2cc] sm:$0x1]
        %v527 = vld [vmem:[%s1 + $0x2d0] sm:$0xf]
        %v528 = vld [vmem:[%s1 + $0x2d4] sm:$0xf]
        %v529 = vld [vmem:[%s1 + $0x2d8] sm:$0x1]
        %v530 = vld [vmem:[%s1 + $0x2dc] sm:$0xf]
        %v531 = vld [vmem:[%s1 + $0x2e0] sm:$0xf]
        %v532 = vld [vmem:[%s1 + $0x2e4] sm:$0x1]
        %v533 = vld [vmem:[%s1 + $0x2e8] sm:$0xf]
        %v534 = vld [vmem:[%s1 + $0x2ec] sm:$0xf]
        %v535 = vld [vmem:[%s1 + $0x2f0] sm:$0x1]
        %v536 = vld [vmem:[%s1 + $0x2f4] sm:$0xf]
        %v537 = vld [vmem:[%s1 + $0x2f8] sm:$0xf]
        %v538 = vld [vmem:[%s1 + $0x2fc] sm:$0x1]
        %v539 = vld [vmem:[%s1 + $0x300] sm:$0xf]
        %v540 = vld [vmem:[%s1 + $0x304] sm:$0xf]
        %v541 = vld [vmem:[%s1 + $0x308] sm:$0x1]
        %v542 = vld [vmem:[%s1 + $0x30c] sm:$0xf]
        %v543 = vld [vmem:[%s1 + $0x310] sm:$0xf]
        %v544 = vld [vmem:[%s1 + $0x314] sm:$0x1]
        %v545 = vld [vmem:[%s1 + $0x318] sm:$0xf]
        %v546 = vld [vmem:[%s1 + $0x31c] sm:$0xf]
        %v547 = vld [vmem:[%s1 + $0x320] sm:$0x1]
        %v548 = vld [vmem:[%s1 + $0x324] sm:$0xf]
        %v549 = vld [vmem:[%s1 + $0x328] sm:$0xf]
        %v550 = vld [vmem:[%s1 + $0x32c] sm:$0x1]
        %v551 = vld [vmem:[%s1 + $0x330] sm:$0xf]
        %v552 = vld [vmem:[%s1 + $0x334] sm:$0xf]
        %v553 = vld [vmem:[%s1 + $0x338] sm:$0x1]
        %v554 = vld [vmem:[%s1 + $0x33c] sm:$0xf]
        %v555 = vld [vmem:[%s1 + $0x340] sm:$0xf]
        %v556 = vld [vmem:[%s1 + $0x344] sm:$0x1]
        %v557 = vld [vmem:[%s1 + $0x348] sm:$0xf]
        %v558 = vld [vmem:[%s1 + $0x34c] sm:$0xf]
        %v559 = vld [vmem:[%s1 + $0x350] sm:$0x1]
        %v560 = vld [vmem:[%s1 + $0x354] sm:$0xf]
        %v561 = vld [vmem:[%s1 + $0x358] sm:$0xf]
        %v562 = vld [vmem:[%s1 + $0x35c] sm:$0x1]
        %v563 = vld [vmem:[%s345] sm:$0xf]
        %v564 = vld [vmem:[%s345 + $0x4] sm:$0xf]
        %v565 = vld [vmem:[%s345 + $0x8] sm:$0x1]
        %v566 = vld [vmem:[%s345 + $0xc] sm:$0xf]
        %v567 = vld [vmem:[%s345 + $0x10] sm:$0xf]
        %v568 = vld [vmem:[%s345 + $0x14] sm:$0x1]
        %v569 = vld [vmem:[%s345 + $0x18] sm:$0xf]
        %v570 = vld [vmem:[%s345 + $0x1c] sm:$0xf]
        %v571 = vld [vmem:[%s345 + $0x20] sm:$0x1]
        %v572 = vld [vmem:[%s345 + $0x24] sm:$0xf]
        %v573 = vld [vmem:[%s345 + $0x28] sm:$0xf]
        %v574 = vld [vmem:[%s345 + $0x2c] sm:$0x1]
        %v575 = vld [vmem:[%s345 + $0x30] sm:$0xf]
        %v576 = vld [vmem:[%s345 + $0x34] sm:$0xf]
        %v577 = vld [vmem:[%s345 + $0x38] sm:$0x1]
        %v578 = vld [vmem:[%s345 + $0x3c] sm:$0xf]
        %v579 = vld [vmem:[%s345 + $0x40] sm:$0xf]
        %v580 = vld [vmem:[%s345 + $0x44] sm:$0x1]
        %v581 = vld [vmem:[%s345 + $0x48] sm:$0xf]
        %v582 = vld [vmem:[%s345 + $0x4c] sm:$0xf]
        %v583 = vld [vmem:[%s345 + $0x50] sm:$0x1]
        %v584 = vld [vmem:[%s345 + $0x54] sm:$0xf]
        %v585 = vld [vmem:[%s345 + $0x58] sm:$0xf]
        %v586 = vld [vmem:[%s345 + $0x5c] sm:$0x1]
        %v587 = vld [vmem:[%s345 + $0x60] sm:$0xf]
        %v588 = vld [vmem:[%s345 + $0x64] sm:$0xf]
        %v589 = vld [vmem:[%s345 + $0x68] sm:$0x1]
        %v590 = vld [vmem:[%s345 + $0x6c] sm:$0xf]
        %v591 = vld [vmem:[%s345 + $0x70] sm:$0xf]
        %v592 = vld [vmem:[%s345 + $0x74] sm:$0x1]
        %v593 = vld [vmem:[%s345 + $0x78] sm:$0xf]
        %v594 = vld [vmem:[%s345 + $0x7c] sm:$0xf]
        %v595 = vld [vmem:[%s345 + $0x80] sm:$0x1]
        %v596 = vld [vmem:[%s345 + $0x84] sm:$0xf]
        %v597 = vld [vmem:[%s345 + $0x88] sm:$0xf]
        %v598 = vld [vmem:[%s345 + $0x8c] sm:$0x1]
        %v599 = vld [vmem:[%s345 + $0x90] sm:$0xf]
        %v600 = vld [vmem:[%s345 + $0x94] sm:$0xf]
        %v601 = vld [vmem:[%s345 + $0x98] sm:$0x1]
        %v602 = vld [vmem:[%s345 + $0x9c] sm:$0xf]
        %v603 = vld [vmem:[%s345 + $0xa0] sm:$0xf]
        %v604 = vld [vmem:[%s345 + $0xa4] sm:$0x1]
        %v605 = vld [vmem:[%s345 + $0xa8] sm:$0xf]
        %v606 = vld [vmem:[%s345 + $0xac] sm:$0xf]
        %v607 = vld [vmem:[%s345 + $0xb0] sm:$0x1]
        %v608 = vld [vmem:[%s345 + $0xb4] sm:$0xf]
        %v609 = vld [vmem:[%s345 + $0xb8] sm:$0xf]
        %v610 = vld [vmem:[%s345 + $0xbc] sm:$0x1]
        %v611 = vld [vmem:[%s345 + $0xc0] sm:$0xf]
        %v612 = vld [vmem:[%s345 + $0xc4] sm:$0xf]
        %v613 = vld [vmem:[%s345 + $0xc8] sm:$0x1]
        %v614 = vld [vmem:[%s345 + $0xcc] sm:$0xf]
        %v615 = vld [vmem:[%s345 + $0xd0] sm:$0xf]
        %v616 = vld [vmem:[%s345 + $0xd4] sm:$0x1]
        %v617 = vsub.bf16 %v563, %v347
        %v618 = vsub.bf16 %v564, %v348
        %v619 = vsub.bf16 %v565, %v349
        %v620 = vsub.bf16 %v566, %v350
        %v621 = vsub.bf16 %v567, %v351
        %v622 = vsub.bf16 %v568, %v352
        %v623 = vsub.bf16 %v569, %v353
        %v624 = vsub.bf16 %v570, %v354
        %v625 = vsub.bf16 %v571, %v355
        %v626 = vsub.bf16 %v572, %v356
        %v627 = vsub.bf16 %v573, %v357
        %v628 = vsub.bf16 %v574, %v358
        %v629 = vsub.bf16 %v575, %v359
        %v630 = vsub.bf16 %v576, %v360
        %v631 = vsub.bf16 %v577, %v361
        %v632 = vsub.bf16 %v578, %v362
        %v633 = vsub.bf16 %v579, %v363
        %v634 = vsub.bf16 %v580, %v364
        %v635 = vsub.bf16 %v581, %v365
        %v636 = vsub.bf16 %v582, %v366
        %v637 = vsub.bf16 %v583, %v367
        %v638 = vsub.bf16 %v584, %v368
        %v639 = vsub.bf16 %v585, %v369
        %v640 = vsub.bf16 %v586, %v370
        %v641 = vsub.bf16 %v587, %v371
        %v642 = vsub.bf16 %v588, %v372
        %v643 = vsub.bf16 %v589, %v373
        %v644 = vsub.bf16 %v590, %v374
        %v645 = vsub.bf16 %v591, %v375
        %v646 = vsub.bf16 %v592, %v376
        %v647 = vsub.bf16 %v593, %v377
        %v648 = vsub.bf16 %v594, %v378
        %v649 = vsub.bf16 %v595, %v379
        %v650 = vsub.bf16 %v596, %v380
        %v651 = vsub.bf16 %v597, %v381
        %v652 = vsub.bf16 %v598, %v382
        %v653 = vsub.bf16 %v599, %v383
        %v654 = vsub.bf16 %v600, %v384
        %v655 = vsub.bf16 %v601, %v385
        %v656 = vsub.bf16 %v602, %v386
        %v657 = vsub.bf16 %v603, %v387
        %v658 = vsub.bf16 %v604, %v388
        %v659 = vsub.bf16 %v605, %v389
        %v660 = vsub.bf16 %v606, %v390
        %v661 = vsub.bf16 %v607, %v391
        %v662 = vsub.bf16 %v608, %v392
        %v663 = vsub.bf16 %v609, %v393
        %v664 = vsub.bf16 %v610, %v394
        %v665 = vsub.bf16 %v611, %v395
        %v666 = vsub.bf16 %v612, %v396
        %v667 = vsub.bf16 %v613, %v397
        %v668 = vsub.bf16 %v614, %v398
        %v669 = vsub.bf16 %v615, %v399
        %v670 = vsub.bf16 %v616, %v400
        %v671 = vsub.bf16 %v563, %v401
        %v672 = vsub.bf16 %v564, %v402
        %v673 = vsub.bf16 %v565, %v403
        %v674 = vsub.bf16 %v566, %v404
        %v675 = vsub.bf16 %v567, %v405
        %v676 = vsub.bf16 %v568, %v406
        %v677 = vsub.bf16 %v569, %v407
        %v678 = vsub.bf16 %v570, %v408
        %v679 = vsub.bf16 %v571, %v409
        %v680 = vsub.bf16 %v572, %v410
        %v681 = vsub.bf16 %v573, %v411
        %v682 = vsub.bf16 %v574, %v412
        %v683 = vsub.bf16 %v575, %v413
        %v684 = vsub.bf16 %v576, %v414
        %v685 = vsub.bf16 %v577, %v415
        %v686 = vsub.bf16 %v578, %v416
        %v687 = vsub.bf16 %v579, %v417
        %v688 = vsub.bf16 %v580, %v418
        %v689 = vsub.bf16 %v581, %v419
        %v690 = vsub.bf16 %v582, %v420
        %v691 = vsub.bf16 %v583, %v421
        %v692 = vsub.bf16 %v584, %v422
        %v693 = vsub.bf16 %v585, %v423
        %v694 = vsub.bf16 %v586, %v424
        %v695 = vsub.bf16 %v587, %v425
        %v696 = vsub.bf16 %v588, %v426
        %v697 = vsub.bf16 %v589, %v427
        %v698 = vsub.bf16 %v590, %v428
        %v699 = vsub.bf16 %v591, %v429
        %v700 = vsub.bf16 %v592, %v430
        %v701 = vsub.bf16 %v593, %v431
        %v702 = vsub.bf16 %v594, %v432
        %v703 = vsub.bf16 %v595, %v433
        %v704 = vsub.bf16 %v596, %v434
        %v705 = vsub.bf16 %v597, %v435
        %v706 = vsub.bf16 %v598, %v436
        %v707 = vsub.bf16 %v599, %v437
        %v708 = vsub.bf16 %v600, %v438
        %v709 = vsub.bf16 %v601, %v439
        %v710 = vsub.bf16 %v602, %v440
        %v711 = vsub.bf16 %v603, %v441
        %v712 = vsub.bf16 %v604, %v442
        %v713 = vsub.bf16 %v605, %v443
        %v714 = vsub.bf16 %v606, %v444
        %v715 = vsub.bf16 %v607, %v445
        %v716 = vsub.bf16 %v608, %v446
        %v717 = vsub.bf16 %v609, %v447
        %v718 = vsub.bf16 %v610, %v448
        %v719 = vsub.bf16 %v611, %v449
        %v720 = vsub.bf16 %v612, %v450
        %v721 = vsub.bf16 %v613, %v451
        %v722 = vsub.bf16 %v614, %v452
        %v723 = vsub.bf16 %v615, %v453
        %v724 = vsub.bf16 %v616, %v454
        %v725 = vsub.bf16 %v563, %v455
        %v726 = vsub.bf16 %v564, %v456
        %v727 = vsub.bf16 %v565, %v457
        %v728 = vsub.bf16 %v566, %v458
        %v729 = vsub.bf16 %v567, %v459
        %v730 = vsub.bf16 %v568, %v460
        %v731 = vsub.bf16 %v569, %v461
        %v732 = vsub.bf16 %v570, %v462
        %v733 = vsub.bf16 %v571, %v463
        %v734 = vsub.bf16 %v572, %v464
        %v735 = vsub.bf16 %v573, %v465
        %v736 = vsub.bf16 %v574, %v466
        %v737 = vsub.bf16 %v575, %v467
        %v738 = vsub.bf16 %v576, %v468
        %v739 = vsub.bf16 %v577, %v469
        %v740 = vsub.bf16 %v578, %v470
        %v741 = vsub.bf16 %v579, %v471
        %v742 = vsub.bf16 %v580, %v472
        %v743 = vsub.bf16 %v581, %v473
        %v744 = vsub.bf16 %v582, %v474
        %v745 = vsub.bf16 %v583, %v475
        %v746 = vsub.bf16 %v584, %v476
        %v747 = vsub.bf16 %v585, %v477
        %v748 = vsub.bf16 %v586, %v478
        %v749 = vsub.bf16 %v587, %v479
        %v750 = vsub.bf16 %v588, %v480
        %v751 = vsub.bf16 %v589, %v481
        %v752 = vsub.bf16 %v590, %v482
        %v753 = vsub.bf16 %v591, %v483
        %v754 = vsub.bf16 %v592, %v484
        %v755 = vsub.bf16 %v593, %v485
        %v756 = vsub.bf16 %v594, %v486
        %v757 = vsub.bf16 %v595, %v487
        %v758 = vsub.bf16 %v596, %v488
        %v759 = vsub.bf16 %v597, %v489
        %v760 = vsub.bf16 %v598, %v490
        %v761 = vsub.bf16 %v599, %v491
        %v762 = vsub.bf16 %v600, %v492
        %v763 = vsub.bf16 %v601, %v493
        %v764 = vsub.bf16 %v602, %v494
        %v765 = vsub.bf16 %v603, %v495
        %v766 = vsub.bf16 %v604, %v496
        %v767 = vsub.bf16 %v605, %v497
        %v768 = vsub.bf16 %v606, %v498
        %v769 = vsub.bf16 %v607, %v499
        %v770 = vsub.bf16 %v608, %v500
        %v771 = vsub.bf16 %v609, %v501
        %v772 = vsub.bf16 %v610, %v502
        %v773 = vsub.bf16 %v611, %v503
        %v774 = vsub.bf16 %v612, %v504
        %v775 = vsub.bf16 %v613, %v505
        %v776 = vsub.bf16 %v614, %v506
        %v777 = vsub.bf16 %v615, %v507
        %v778 = vsub.bf16 %v616, %v508
        %v779 = vsub.bf16 %v563, %v509
        %v780 = vsub.bf16 %v564, %v510
        %v781 = vsub.bf16 %v565, %v511
        %v782 = vsub.bf16 %v566, %v512
        %v783 = vsub.bf16 %v567, %v513
        %v784 = vsub.bf16 %v568, %v514
        %v785 = vsub.bf16 %v569, %v515
        %v786 = vsub.bf16 %v570, %v516
        %v787 = vsub.bf16 %v571, %v517
        %v788 = vsub.bf16 %v572, %v518
        %v789 = vsub.bf16 %v573, %v519
        %v790 = vsub.bf16 %v574, %v520
        %v791 = vsub.bf16 %v575, %v521
        %v792 = vsub.bf16 %v576, %v522
        %v793 = vsub.bf16 %v577, %v523
        %v794 = vsub.bf16 %v578, %v524
        %v795 = vsub.bf16 %v579, %v525
        %v796 = vsub.bf16 %v580, %v526
        %v797 = vsub.bf16 %v581, %v527
        %v798 = vsub.bf16 %v582, %v528
        %v799 = vsub.bf16 %v583, %v529
        %v800 = vsub.bf16 %v584, %v530
        %v801 = vsub.bf16 %v585, %v531
        %v802 = vsub.bf16 %v586, %v532
        %v803 = vsub.bf16 %v587, %v533
        %v804 = vsub.bf16 %v588, %v534
        %v805 = vsub.bf16 %v589, %v535
        %v806 = vsub.bf16 %v590, %v536
        %v807 = vsub.bf16 %v591, %v537
        %v808 = vsub.bf16 %v592, %v538
        %v809 = vsub.bf16 %v593, %v539
        %v810 = vsub.bf16 %v594, %v540
        %v811 = vsub.bf16 %v595, %v541
        %v812 = vsub.bf16 %v596, %v542
        %v813 = vsub.bf16 %v597, %v543
        %v814 = vsub.bf16 %v598, %v544
        %v815 = vsub.bf16 %v599, %v545
        %v816 = vsub.bf16 %v600, %v546
        %v817 = vsub.bf16 %v601, %v547
        %v818 = vsub.bf16 %v602, %v548
        %v819 = vsub.bf16 %v603, %v549
        %v820 = vsub.bf16 %v604, %v550
        %v821 = vsub.bf16 %v605, %v551
        %v822 = vsub.bf16 %v606, %v552
        %v823 = vsub.bf16 %v607, %v553
        %v824 = vsub.bf16 %v608, %v554
        %v825 = vsub.bf16 %v609, %v555
        %v826 = vsub.bf16 %v610, %v556
        %v827 = vsub.bf16 %v611, %v557
        %v828 = vsub.bf16 %v612, %v558
        %v829 = vsub.bf16 %v613, %v559
        %v830 = vsub.bf16 %v614, %v560
        %v831 = vsub.bf16 %v615, %v561
        %v832 = vsub.bf16 %v616, %v562
        %v961 = vunpack.c.l.b16 %v347
        %v962 = vunpack.c.l.b16 %v348
        %v963 = vunpack.c.l.b16 %v350
        %v964 = vunpack.c.l.b16 %v351
        %v965 = vunpack.c.l.b16 %v353
        %v966 = vunpack.c.l.b16 %v354
        %v967 = vunpack.c.l.b16 %v356
        %v968 = vunpack.c.l.b16 %v357
        %v969 = vunpack.c.l.b16 %v359
        %v970 = vunpack.c.l.b16 %v360
        %v971 = vunpack.c.l.b16 %v362
        %v972 = vunpack.c.l.b16 %v363
        %v973 = vunpack.c.l.b16 %v365
        %v974 = vunpack.c.l.b16 %v366
        %v975 = vunpack.c.l.b16 %v368
        %v976 = vunpack.c.l.b16 %v369
        %v977 = vunpack.c.l.b16 %v371
        %v978 = vunpack.c.l.b16 %v372
        %v979 = vunpack.c.l.b16 %v374
        %v980 = vunpack.c.l.b16 %v375
        %v981 = vunpack.c.l.b16 %v377
        %v982 = vunpack.c.l.b16 %v378
        %v983 = vunpack.c.l.b16 %v380
        %v984 = vunpack.c.l.b16 %v381
        %v985 = vunpack.c.l.b16 %v383
        %v986 = vunpack.c.l.b16 %v384
        %v987 = vunpack.c.l.b16 %v386
        %v988 = vunpack.c.l.b16 %v387
        %v989 = vunpack.c.l.b16 %v389
        %v990 = vunpack.c.l.b16 %v390
        %v991 = vunpack.c.l.b16 %v392
        %v992 = vunpack.c.l.b16 %v393
        %v993 = vunpack.c.l.b16 %v401
        %v994 = vunpack.c.l.b16 %v402
        %v995 = vunpack.c.l.b16 %v404
        %v996 = vunpack.c.l.b16 %v405
        %v997 = vunpack.c.l.b16 %v407
        %v998 = vunpack.c.l.b16 %v408
        %v999 = vunpack.c.l.b16 %v410
        %v1000 = vunpack.c.l.b16 %v411
        %v1001 = vunpack.c.l.b16 %v413
        %v1002 = vunpack.c.l.b16 %v414
        %v1003 = vunpack.c.l.b16 %v416
        %v1004 = vunpack.c.l.b16 %v417
        %v1005 = vunpack.c.l.b16 %v419
        %v1006 = vunpack.c.l.b16 %v420
        %v1007 = vunpack.c.l.b16 %v422
        %v1008 = vunpack.c.l.b16 %v423
        %v1009 = vunpack.c.l.b16 %v425
        %v1010 = vunpack.c.l.b16 %v426
        %v1011 = vunpack.c.l.b16 %v428
        %v1012 = vunpack.c.l.b16 %v429
        %v1013 = vunpack.c.l.b16 %v431
        %v1014 = vunpack.c.l.b16 %v432
        %v1015 = vunpack.c.l.b16 %v434
        %v1016 = vunpack.c.l.b16 %v435
        %v1017 = vunpack.c.l.b16 %v437
        %v1018 = vunpack.c.l.b16 %v438
        %v1019 = vunpack.c.l.b16 %v440
        %v1020 = vunpack.c.l.b16 %v441
        %v1021 = vunpack.c.l.b16 %v443
        %v1022 = vunpack.c.l.b16 %v444
        %v1023 = vunpack.c.l.b16 %v446
        %v1024 = vunpack.c.l.b16 %v447
        %v1025 = vunpack.c.l.b16 %v455
        %v1026 = vunpack.c.l.b16 %v456
        %v1027 = vunpack.c.l.b16 %v458
        %v1028 = vunpack.c.l.b16 %v459
        %v1029 = vunpack.c.l.b16 %v461
        %v1030 = vunpack.c.l.b16 %v462
        %v1031 = vunpack.c.l.b16 %v464
        %v1032 = vunpack.c.l.b16 %v465
        %v1033 = vunpack.c.l.b16 %v467
        %v1034 = vunpack.c.l.b16 %v468
        %v1035 = vunpack.c.l.b16 %v470
        %v1036 = vunpack.c.l.b16 %v471
        %v1037 = vunpack.c.l.b16 %v473
        %v1038 = vunpack.c.l.b16 %v474
        %v1039 = vunpack.c.l.b16 %v476
        %v1040 = vunpack.c.l.b16 %v477
        %v1041 = vunpack.c.l.b16 %v479
        %v1042 = vunpack.c.l.b16 %v480
        %v1043 = vunpack.c.l.b16 %v482
        %v1044 = vunpack.c.l.b16 %v483
        %v1045 = vunpack.c.l.b16 %v485
        %v1046 = vunpack.c.l.b16 %v486
        %v1047 = vunpack.c.l.b16 %v488
        %v1048 = vunpack.c.l.b16 %v489
        %v1049 = vunpack.c.l.b16 %v491
        %v1050 = vunpack.c.l.b16 %v492
        %v1051 = vunpack.c.l.b16 %v494
        %v1052 = vunpack.c.l.b16 %v495
        %v1053 = vunpack.c.l.b16 %v497
        %v1054 = vunpack.c.l.b16 %v498
        %v1055 = vunpack.c.l.b16 %v500
        %v1056 = vunpack.c.l.b16 %v501
        %v1057 = vunpack.c.l.b16 %v509
        %v1058 = vunpack.c.l.b16 %v510
        %v1059 = vunpack.c.l.b16 %v512
        %v1060 = vunpack.c.l.b16 %v513
        %v1061 = vunpack.c.l.b16 %v515
        %v1062 = vunpack.c.l.b16 %v516
        %v1063 = vunpack.c.l.b16 %v518
        %v1064 = vunpack.c.l.b16 %v519
        %v1065 = vunpack.c.l.b16 %v521
        %v1066 = vunpack.c.l.b16 %v522
        %v1067 = vunpack.c.l.b16 %v524
        %v1068 = vunpack.c.l.b16 %v525
        %v1069 = vunpack.c.l.b16 %v527
        %v1070 = vunpack.c.l.b16 %v528
        %v1071 = vunpack.c.l.b16 %v530
        %v1072 = vunpack.c.l.b16 %v531
        %v1073 = vunpack.c.l.b16 %v533
        %v1074 = vunpack.c.l.b16 %v534
        %v1075 = vunpack.c.l.b16 %v536
        %v1076 = vunpack.c.l.b16 %v537
        %v1077 = vunpack.c.l.b16 %v539
        %v1078 = vunpack.c.l.b16 %v540
        %v1079 = vunpack.c.l.b16 %v542
        %v1080 = vunpack.c.l.b16 %v543
        %v1081 = vunpack.c.l.b16 %v545
        %v1082 = vunpack.c.l.b16 %v546
        %v1083 = vunpack.c.l.b16 %v548
        %v1084 = vunpack.c.l.b16 %v549
        %v1085 = vunpack.c.l.b16 %v551
        %v1086 = vunpack.c.l.b16 %v552
        %v1087 = vunpack.c.l.b16 %v554
        %v1088 = vunpack.c.l.b16 %v555
        %v1089 = vpack.c.b16 %v962, %v961
        %v1090 = vpack.c.b16 %v964, %v963
        %v1091 = vpack.c.b16 %v966, %v965
        %v1092 = vpack.c.b16 %v968, %v967
        %v1093 = vpack.c.b16 %v970, %v969
        %v1094 = vpack.c.b16 %v972, %v971
        %v1095 = vpack.c.b16 %v974, %v973
        %v1096 = vpack.c.b16 %v976, %v975
        %v1097 = vpack.c.b16 %v978, %v977
        %v1098 = vpack.c.b16 %v980, %v979
        %v1099 = vpack.c.b16 %v982, %v981
        %v1100 = vpack.c.b16 %v984, %v983
        %v1101 = vpack.c.b16 %v986, %v985
        %v1102 = vpack.c.b16 %v988, %v987
        %v1103 = vpack.c.b16 %v990, %v989
        %v1104 = vpack.c.b16 %v992, %v991
        %v1105 = vpack.c.b16 %v994, %v993
        %v1106 = vpack.c.b16 %v996, %v995
        %v1107 = vpack.c.b16 %v998, %v997
        %v1108 = vpack.c.b16 %v1000, %v999
        %v1109 = vpack.c.b16 %v1002, %v1001
        %v1110 = vpack.c.b16 %v1004, %v1003
        %v1111 = vpack.c.b16 %v1006, %v1005
        %v1112 = vpack.c.b16 %v1008, %v1007
        %v1113 = vpack.c.b16 %v1010, %v1009
        %v1114 = vpack.c.b16 %v1012, %v1011
        %v1115 = vpack.c.b16 %v1014, %v1013
        %v1116 = vpack.c.b16 %v1016, %v1015
        %v1117 = vpack.c.b16 %v1018, %v1017
        %v1118 = vpack.c.b16 %v1020, %v1019
        %v1119 = vpack.c.b16 %v1022, %v1021
        %v1120 = vpack.c.b16 %v1024, %v1023
        %v1121 = vpack.c.b16 %v1026, %v1025
        %v1122 = vpack.c.b16 %v1028, %v1027
        %v1123 = vpack.c.b16 %v1030, %v1029
        %v1124 = vpack.c.b16 %v1032, %v1031
        %v1125 = vpack.c.b16 %v1034, %v1033
        %v1126 = vpack.c.b16 %v1036, %v1035
        %v1127 = vpack.c.b16 %v1038, %v1037
        %v1128 = vpack.c.b16 %v1040, %v1039
        %v1129 = vpack.c.b16 %v1042, %v1041
        %v1130 = vpack.c.b16 %v1044, %v1043
        %v1131 = vpack.c.b16 %v1046, %v1045
        %v1132 = vpack.c.b16 %v1048, %v1047
        %v1133 = vpack.c.b16 %v1050, %v1049
        %v1134 = vpack.c.b16 %v1052, %v1051
        %v1135 = vpack.c.b16 %v1054, %v1053
        %v1136 = vpack.c.b16 %v1056, %v1055
        %v1137 = vpack.c.b16 %v1058, %v1057
        %v1138 = vpack.c.b16 %v1060, %v1059
        %v1139 = vpack.c.b16 %v1062, %v1061
        %v1140 = vpack.c.b16 %v1064, %v1063
        %v1141 = vpack.c.b16 %v1066, %v1065
        %v1142 = vpack.c.b16 %v1068, %v1067
        %v1143 = vpack.c.b16 %v1070, %v1069
        %v1144 = vpack.c.b16 %v1072, %v1071
        %v1145 = vpack.c.b16 %v1074, %v1073
        %v1146 = vpack.c.b16 %v1076, %v1075
        %v1147 = vpack.c.b16 %v1078, %v1077
        %v1148 = vpack.c.b16 %v1080, %v1079
        %v1149 = vpack.c.b16 %v1082, %v1081
        %v1150 = vpack.c.b16 %v1084, %v1083
        %v1151 = vpack.c.b16 %v1086, %v1085
        %v1152 = vpack.c.b16 %v1088, %v1087
        %v1281 = vunpack.c.l.b16 %v617
        %v1282 = vunpack.c.l.b16 %v618
        %v1283 = vunpack.c.l.b16 %v620
        %v1284 = vunpack.c.l.b16 %v621
        %v1285 = vunpack.c.l.b16 %v623
        %v1286 = vunpack.c.l.b16 %v624
        %v1287 = vunpack.c.l.b16 %v626
        %v1288 = vunpack.c.l.b16 %v627
        %v1289 = vunpack.c.l.b16 %v629
        %v1290 = vunpack.c.l.b16 %v630
        %v1291 = vunpack.c.l.b16 %v632
        %v1292 = vunpack.c.l.b16 %v633
        %v1293 = vunpack.c.l.b16 %v635
        %v1294 = vunpack.c.l.b16 %v636
        %v1295 = vunpack.c.l.b16 %v638
        %v1296 = vunpack.c.l.b16 %v639
        %v1297 = vunpack.c.l.b16 %v641
        %v1298 = vunpack.c.l.b16 %v642
        %v1299 = vunpack.c.l.b16 %v644
        %v1300 = vunpack.c.l.b16 %v645
        %v1301 = vunpack.c.l.b16 %v647
        %v1302 = vunpack.c.l.b16 %v648
        %v1303 = vunpack.c.l.b16 %v650
        %v1304 = vunpack.c.l.b16 %v651
        %v1305 = vunpack.c.l.b16 %v653
        %v1306 = vunpack.c.l.b16 %v654
        %v1307 = vunpack.c.l.b16 %v656
        %v1308 = vunpack.c.l.b16 %v657
        %v1309 = vunpack.c.l.b16 %v659
        %v1310 = vunpack.c.l.b16 %v660
        %v1311 = vunpack.c.l.b16 %v662
        %v1312 = vunpack.c.l.b16 %v663
        %v1313 = vunpack.c.l.b16 %v671
        %v1314 = vunpack.c.l.b16 %v672
        %v1315 = vunpack.c.l.b16 %v674
        %v1316 = vunpack.c.l.b16 %v675
        %v1317 = vunpack.c.l.b16 %v677
        %v1318 = vunpack.c.l.b16 %v678
        %v1319 = vunpack.c.l.b16 %v680
        %v1320 = vunpack.c.l.b16 %v681
        %v1321 = vunpack.c.l.b16 %v683
        %v1322 = vunpack.c.l.b16 %v684
        %v1323 = vunpack.c.l.b16 %v686
        %v1324 = vunpack.c.l.b16 %v687
        %v1325 = vunpack.c.l.b16 %v689
        %v1326 = vunpack.c.l.b16 %v690
        %v1327 = vunpack.c.l.b16 %v692
        %v1328 = vunpack.c.l.b16 %v693
        %v1329 = vunpack.c.l.b16 %v695
        %v1330 = vunpack.c.l.b16 %v696
        %v1331 = vunpack.c.l.b16 %v698
        %v1332 = vunpack.c.l.b16 %v699
        %v1333 = vunpack.c.l.b16 %v701
        %v1334 = vunpack.c.l.b16 %v702
        %v1335 = vunpack.c.l.b16 %v704
        %v1336 = vunpack.c.l.b16 %v705
        %v1337 = vunpack.c.l.b16 %v707
        %v1338 = vunpack.c.l.b16 %v708
        %v1339 = vunpack.c.l.b16 %v710
        %v1340 = vunpack.c.l.b16 %v711
        %v1341 = vunpack.c.l.b16 %v713
        %v1342 = vunpack.c.l.b16 %v714
        %v1343 = vunpack.c.l.b16 %v716
        %v1344 = vunpack.c.l.b16 %v717
        %v1345 = vunpack.c.l.b16 %v725
        %v1346 = vunpack.c.l.b16 %v726
        %v1347 = vunpack.c.l.b16 %v728
        %v1348 = vunpack.c.l.b16 %v729
        %v1349 = vunpack.c.l.b16 %v731
        %v1350 = vunpack.c.l.b16 %v732
        %v1351 = vunpack.c.l.b16 %v734
        %v1352 = vunpack.c.l.b16 %v735
        %v1353 = vunpack.c.l.b16 %v737
        %v1354 = vunpack.c.l.b16 %v738
        %v1355 = vunpack.c.l.b16 %v740
        %v1356 = vunpack.c.l.b16 %v741
        %v1357 = vunpack.c.l.b16 %v743
        %v1358 = vunpack.c.l.b16 %v744
        %v1359 = vunpack.c.l.b16 %v746
        %v1360 = vunpack.c.l.b16 %v747
        %v1361 = vunpack.c.l.b16 %v749
        %v1362 = vunpack.c.l.b16 %v750
        %v1363 = vunpack.c.l.b16 %v752
        %v1364 = vunpack.c.l.b16 %v753
        %v1365 = vunpack.c.l.b16 %v755
        %v1366 = vunpack.c.l.b16 %v756
        %v1367 = vunpack.c.l.b16 %v758
        %v1368 = vunpack.c.l.b16 %v759
        %v1369 = vunpack.c.l.b16 %v761
        %v1370 = vunpack.c.l.b16 %v762
        %v1371 = vunpack.c.l.b16 %v764
        %v1372 = vunpack.c.l.b16 %v765
        %v1373 = vunpack.c.l.b16 %v767
        %v1374 = vunpack.c.l.b16 %v768
        %v1375 = vunpack.c.l.b16 %v770
        %v1376 = vunpack.c.l.b16 %v771
        %v1377 = vunpack.c.l.b16 %v779
        %v1378 = vunpack.c.l.b16 %v780
        %v1379 = vunpack.c.l.b16 %v782
        %v1380 = vunpack.c.l.b16 %v783
        %v1381 = vunpack.c.l.b16 %v785
        %v1382 = vunpack.c.l.b16 %v786
        %v1383 = vunpack.c.l.b16 %v788
        %v1384 = vunpack.c.l.b16 %v789
        %v1385 = vunpack.c.l.b16 %v791
        %v1386 = vunpack.c.l.b16 %v792
        %v1387 = vunpack.c.l.b16 %v794
        %v1388 = vunpack.c.l.b16 %v795
        %v1389 = vunpack.c.l.b16 %v797
        %v1390 = vunpack.c.l.b16 %v798
        %v1391 = vunpack.c.l.b16 %v800
        %v1392 = vunpack.c.l.b16 %v801
        %v1393 = vunpack.c.l.b16 %v803
        %v1394 = vunpack.c.l.b16 %v804
        %v1395 = vunpack.c.l.b16 %v806
        %v1396 = vunpack.c.l.b16 %v807
        %v1397 = vunpack.c.l.b16 %v809
        %v1398 = vunpack.c.l.b16 %v810
        %v1399 = vunpack.c.l.b16 %v812
        %v1400 = vunpack.c.l.b16 %v813
        %v1401 = vunpack.c.l.b16 %v815
        %v1402 = vunpack.c.l.b16 %v816
        %v1403 = vunpack.c.l.b16 %v818
        %v1404 = vunpack.c.l.b16 %v819
        %v1405 = vunpack.c.l.b16 %v821
        %v1406 = vunpack.c.l.b16 %v822
        %v1407 = vunpack.c.l.b16 %v824
        %v1408 = vunpack.c.l.b16 %v825
        %v1409 = vpack.c.b16 %v1282, %v1281
        %v1410 = vpack.c.b16 %v1284, %v1283
        %v1411 = vpack.c.b16 %v1286, %v1285
        %v1412 = vpack.c.b16 %v1288, %v1287
        %v1413 = vpack.c.b16 %v1290, %v1289
        %v1414 = vpack.c.b16 %v1292, %v1291
        %v1415 = vpack.c.b16 %v1294, %v1293
        %v1416 = vpack.c.b16 %v1296, %v1295
        %v1417 = vpack.c.b16 %v1298, %v1297
        %v1418 = vpack.c.b16 %v1300, %v1299
        %v1419 = vpack.c.b16 %v1302, %v1301
        %v1420 = vpack.c.b16 %v1304, %v1303
        %v1421 = vpack.c.b16 %v1306, %v1305
        %v1422 = vpack.c.b16 %v1308, %v1307
        %v1423 = vpack.c.b16 %v1310, %v1309
        %v1424 = vpack.c.b16 %v1312, %v1311
        %v1425 = vpack.c.b16 %v1314, %v1313
        %v1426 = vpack.c.b16 %v1316, %v1315
        %v1427 = vpack.c.b16 %v1318, %v1317
        %v1428 = vpack.c.b16 %v1320, %v1319
        %v1429 = vpack.c.b16 %v1322, %v1321
        %v1430 = vpack.c.b16 %v1324, %v1323
        %v1431 = vpack.c.b16 %v1326, %v1325
        %v1432 = vpack.c.b16 %v1328, %v1327
        %v1433 = vpack.c.b16 %v1330, %v1329
        %v1434 = vpack.c.b16 %v1332, %v1331
        %v1435 = vpack.c.b16 %v1334, %v1333
        %v1436 = vpack.c.b16 %v1336, %v1335
        %v1437 = vpack.c.b16 %v1338, %v1337
        %v1438 = vpack.c.b16 %v1340, %v1339
        %v1439 = vpack.c.b16 %v1342, %v1341
        %v1440 = vpack.c.b16 %v1344, %v1343
        %v1441 = vpack.c.b16 %v1346, %v1345
        %v1442 = vpack.c.b16 %v1348, %v1347
        %v1443 = vpack.c.b16 %v1350, %v1349
        %v1444 = vpack.c.b16 %v1352, %v1351
        %v1445 = vpack.c.b16 %v1354, %v1353
        %v1446 = vpack.c.b16 %v1356, %v1355
        %v1447 = vpack.c.b16 %v1358, %v1357
        %v1448 = vpack.c.b16 %v1360, %v1359
        %v1449 = vpack.c.b16 %v1362, %v1361
        %v1450 = vpack.c.b16 %v1364, %v1363
        %v1451 = vpack.c.b16 %v1366, %v1365
        %v1452 = vpack.c.b16 %v1368, %v1367
        %v1453 = vpack.c.b16 %v1370, %v1369
        %v1454 = vpack.c.b16 %v1372, %v1371
        %v1455 = vpack.c.b16 %v1374, %v1373
        %v1456 = vpack.c.b16 %v1376, %v1375
        %v1457 = vpack.c.b16 %v1378, %v1377
        %v1458 = vpack.c.b16 %v1380, %v1379
        %v1459 = vpack.c.b16 %v1382, %v1381
        %v1460 = vpack.c.b16 %v1384, %v1383
        %v1461 = vpack.c.b16 %v1386, %v1385
        %v1462 = vpack.c.b16 %v1388, %v1387
        %v1463 = vpack.c.b16 %v1390, %v1389
        %v1464 = vpack.c.b16 %v1392, %v1391
        %v1465 = vpack.c.b16 %v1394, %v1393
        %v1466 = vpack.c.b16 %v1396, %v1395
        %v1467 = vpack.c.b16 %v1398, %v1397
        %v1468 = vpack.c.b16 %v1400, %v1399
        %v1469 = vpack.c.b16 %v1402, %v1401
        %v1470 = vpack.c.b16 %v1404, %v1403
        %v1471 = vpack.c.b16 %v1406, %v1405
        %v1472 = vpack.c.b16 %v1408, %v1407
        %1473 = vrot.lane.b32.xlu0 %v1409, 3
        %v1474 = vpop.permute.xlu0 %1473
        %1475 = vrot.lane.b32.xlu0 %v1410, 3
        %v1476 = vpop.permute.xlu0 %1475
        %1477 = vrot.lane.b32.xlu0 %v1411, 3
        %v1478 = vpop.permute.xlu0 %1477
        %1479 = vrot.lane.b32.xlu0 %v1412, 3
        %v1480 = vpop.permute.xlu0 %1479
        %1481 = vrot.lane.b32.xlu0 %v1413, 3
        %v1482 = vpop.permute.xlu0 %1481
        %1483 = vrot.lane.b32.xlu0 %v1414, 3
        %v1484 = vpop.permute.xlu0 %1483
        %1485 = vrot.lane.b32.xlu0 %v1415, 3
        %v1486 = vpop.permute.xlu0 %1485
        %1487 = vrot.lane.b32.xlu0 %v1416, 3
        %v1488 = vpop.permute.xlu0 %1487
        %1489 = vrot.lane.b32.xlu0 %v1417, 3
        %v1490 = vpop.permute.xlu0 %1489
        %1491 = vrot.lane.b32.xlu0 %v1418, 3
        %v1492 = vpop.permute.xlu0 %1491
        %1493 = vrot.lane.b32.xlu0 %v1419, 3
        %v1494 = vpop.permute.xlu0 %1493
        %1495 = vrot.lane.b32.xlu0 %v1420, 3
        %v1496 = vpop.permute.xlu0 %1495
        %1497 = vrot.lane.b32.xlu0 %v1421, 3
        %v1498 = vpop.permute.xlu0 %1497
        %1499 = vrot.lane.b32.xlu0 %v1422, 3
        %v1500 = vpop.permute.xlu0 %1499
        %1501 = vrot.lane.b32.xlu0 %v1423, 3
        %v1502 = vpop.permute.xlu0 %1501
        %1503 = vrot.lane.b32.xlu0 %v1424, 3
        %v1504 = vpop.permute.xlu0 %1503
        %1505 = vrot.lane.b32.xlu0 %v1425, 3
        %v1506 = vpop.permute.xlu0 %1505
        %1507 = vrot.lane.b32.xlu0 %v1426, 3
        %v1508 = vpop.permute.xlu0 %1507
        %1509 = vrot.lane.b32.xlu0 %v1427, 3
        %v1510 = vpop.permute.xlu0 %1509
        %1511 = vrot.lane.b32.xlu0 %v1428, 3
        %v1512 = vpop.permute.xlu0 %1511
        %1513 = vrot.lane.b32.xlu0 %v1429, 3
        %v1514 = vpop.permute.xlu0 %1513
        %1515 = vrot.lane.b32.xlu0 %v1430, 3
        %v1516 = vpop.permute.xlu0 %1515
        %1517 = vrot.lane.b32.xlu0 %v1431, 3
        %v1518 = vpop.permute.xlu0 %1517
        %1519 = vrot.lane.b32.xlu0 %v1432, 3
        %v1520 = vpop.permute.xlu0 %1519
        %1521 = vrot.lane.b32.xlu0 %v1433, 3
        %v1522 = vpop.permute.xlu0 %1521
        %1523 = vrot.lane.b32.xlu0 %v1434, 3
        %v1524 = vpop.permute.xlu0 %1523
        %1525 = vrot.lane.b32.xlu0 %v1435, 3
        %v1526 = vpop.permute.xlu0 %1525
        %1527 = vrot.lane.b32.xlu0 %v1436, 3
        %v1528 = vpop.permute.xlu0 %1527
        %1529 = vrot.lane.b32.xlu0 %v1437, 3
        %v1530 = vpop.permute.xlu0 %1529
        %1531 = vrot.lane.b32.xlu0 %v1438, 3
        %v1532 = vpop.permute.xlu0 %1531
        %1533 = vrot.lane.b32.xlu0 %v1439, 3
        %v1534 = vpop.permute.xlu0 %1533
        %1535 = vrot.lane.b32.xlu0 %v1440, 3
        %v1536 = vpop.permute.xlu0 %1535
        %1537 = vrot.lane.b32.xlu0 %v1441, 3
        %v1538 = vpop.permute.xlu0 %1537
        %1539 = vrot.lane.b32.xlu0 %v1442, 3
        %v1540 = vpop.permute.xlu0 %1539
        %1541 = vrot.lane.b32.xlu0 %v1443, 3
        %v1542 = vpop.permute.xlu0 %1541
        %1543 = vrot.lane.b32.xlu0 %v1444, 3
        %v1544 = vpop.permute.xlu0 %1543
        %1545 = vrot.lane.b32.xlu0 %v1445, 3
        %v1546 = vpop.permute.xlu0 %1545
        %1547 = vrot.lane.b32.xlu0 %v1446, 3
        %v1548 = vpop.permute.xlu0 %1547
        %1549 = vrot.lane.b32.xlu0 %v1447, 3
        %v1550 = vpop.permute.xlu0 %1549
        %1551 = vrot.lane.b32.xlu0 %v1448, 3
        %v1552 = vpop.permute.xlu0 %1551
        %1553 = vrot.lane.b32.xlu0 %v1449, 3
        %v1554 = vpop.permute.xlu0 %1553
        %1555 = vrot.lane.b32.xlu0 %v1450, 3
        %v1556 = vpop.permute.xlu0 %1555
        %1557 = vrot.lane.b32.xlu0 %v1451, 3
        %v1558 = vpop.permute.xlu0 %1557
        %1559 = vrot.lane.b32.xlu0 %v1452, 3
        %v1560 = vpop.permute.xlu0 %1559
        %1561 = vrot.lane.b32.xlu0 %v1453, 3
        %v1562 = vpop.permute.xlu0 %1561
        %1563 = vrot.lane.b32.xlu0 %v1454, 3
        %v1564 = vpop.permute.xlu0 %1563
        %1565 = vrot.lane.b32.xlu0 %v1455, 3
        %v1566 = vpop.permute.xlu0 %1565
        %1567 = vrot.lane.b32.xlu0 %v1456, 3
        %v1568 = vpop.permute.xlu0 %1567
        %1569 = vrot.lane.b32.xlu0 %v1457, 3
        %v1570 = vpop.permute.xlu0 %1569
        %1571 = vrot.lane.b32.xlu0 %v1458, 3
        %v1572 = vpop.permute.xlu0 %1571
        %1573 = vrot.lane.b32.xlu0 %v1459, 3
        %v1574 = vpop.permute.xlu0 %1573
        %1575 = vrot.lane.b32.xlu0 %v1460, 3
        %v1576 = vpop.permute.xlu0 %1575
        %1577 = vrot.lane.b32.xlu0 %v1461, 3
        %v1578 = vpop.permute.xlu0 %1577
        %1579 = vrot.lane.b32.xlu0 %v1462, 3
        %v1580 = vpop.permute.xlu0 %1579
        %1581 = vrot.lane.b32.xlu0 %v1463, 3
        %v1582 = vpop.permute.xlu0 %1581
        %1583 = vrot.lane.b32.xlu0 %v1464, 3
        %v1584 = vpop.permute.xlu0 %1583
        %1585 = vrot.lane.b32.xlu0 %v1465, 3
        %v1586 = vpop.permute.xlu0 %1585
        %1587 = vrot.lane.b32.xlu0 %v1466, 3
        %v1588 = vpop.permute.xlu0 %1587
        %1589 = vrot.lane.b32.xlu0 %v1467, 3
        %v1590 = vpop.permute.xlu0 %1589
        %1591 = vrot.lane.b32.xlu0 %v1468, 3
        %v1592 = vpop.permute.xlu0 %1591
        %1593 = vrot.lane.b32.xlu0 %v1469, 3
        %v1594 = vpop.permute.xlu0 %1593
        %1595 = vrot.lane.b32.xlu0 %v1470, 3
        %v1596 = vpop.permute.xlu0 %1595
        %1597 = vrot.lane.b32.xlu0 %v1471, 3
        %v1598 = vpop.permute.xlu0 %1597
        %1599 = vrot.lane.b32.xlu0 %v1472, 3
        %v1600 = vpop.permute.xlu0 %1599
        %v1665 = vunpack.c.l.b16 %v349
        %v1666 = vunpack.c.l.b16 %v352
        %v1667 = vunpack.c.l.b16 %v355
        %v1668 = vunpack.c.l.b16 %v358
        %v1669 = vunpack.c.l.b16 %v361
        %v1670 = vunpack.c.l.b16 %v364
        %v1671 = vunpack.c.l.b16 %v367
        %v1672 = vunpack.c.l.b16 %v370
        %v1673 = vunpack.c.l.b16 %v373
        %v1674 = vunpack.c.l.b16 %v376
        %v1675 = vunpack.c.l.b16 %v379
        %v1676 = vunpack.c.l.b16 %v382
        %v1677 = vunpack.c.l.b16 %v385
        %v1678 = vunpack.c.l.b16 %v388
        %v1679 = vunpack.c.l.b16 %v391
        %v1680 = vunpack.c.l.b16 %v394
        %v1681 = vunpack.c.l.b16 %v403
        %v1682 = vunpack.c.l.b16 %v406
        %v1683 = vunpack.c.l.b16 %v409
        %v1684 = vunpack.c.l.b16 %v412
        %v1685 = vunpack.c.l.b16 %v415
        %v1686 = vunpack.c.l.b16 %v418
        %v1687 = vunpack.c.l.b16 %v421
        %v1688 = vunpack.c.l.b16 %v424
        %v1689 = vunpack.c.l.b16 %v427
        %v1690 = vunpack.c.l.b16 %v430
        %v1691 = vunpack.c.l.b16 %v433
        %v1692 = vunpack.c.l.b16 %v436
        %v1693 = vunpack.c.l.b16 %v439
        %v1694 = vunpack.c.l.b16 %v442
        %v1695 = vunpack.c.l.b16 %v445
        %v1696 = vunpack.c.l.b16 %v448
        %v1697 = vunpack.c.l.b16 %v457
        %v1698 = vunpack.c.l.b16 %v460
        %v1699 = vunpack.c.l.b16 %v463
        %v1700 = vunpack.c.l.b16 %v466
        %v1701 = vunpack.c.l.b16 %v469
        %v1702 = vunpack.c.l.b16 %v472
        %v1703 = vunpack.c.l.b16 %v475
        %v1704 = vunpack.c.l.b16 %v478
        %v1705 = vunpack.c.l.b16 %v481
        %v1706 = vunpack.c.l.b16 %v484
        %v1707 = vunpack.c.l.b16 %v487
        %v1708 = vunpack.c.l.b16 %v490
        %v1709 = vunpack.c.l.b16 %v493
        %v1710 = vunpack.c.l.b16 %v496
        %v1711 = vunpack.c.l.b16 %v499
        %v1712 = vunpack.c.l.b16 %v502
        %v1713 = vunpack.c.l.b16 %v511
        %v1714 = vunpack.c.l.b16 %v514
        %v1715 = vunpack.c.l.b16 %v517
        %v1716 = vunpack.c.l.b16 %v520
        %v1717 = vunpack.c.l.b16 %v523
        %v1718 = vunpack.c.l.b16 %v526
        %v1719 = vunpack.c.l.b16 %v529
        %v1720 = vunpack.c.l.b16 %v532
        %v1721 = vunpack.c.l.b16 %v535
        %v1722 = vunpack.c.l.b16 %v538
        %v1723 = vunpack.c.l.b16 %v541
        %v1724 = vunpack.c.l.b16 %v544
        %v1725 = vunpack.c.l.b16 %v547
        %v1726 = vunpack.c.l.b16 %v550
        %v1727 = vunpack.c.l.b16 %v553
        %v1728 = vunpack.c.l.b16 %v556
        %v1729 = vpack.c.b16 %v1665, %v1665
        %v1730 = vpack.c.b16 %v1666, %v1666
        %v1731 = vpack.c.b16 %v1667, %v1667
        %v1732 = vpack.c.b16 %v1668, %v1668
        %v1733 = vpack.c.b16 %v1669, %v1669
        %v1734 = vpack.c.b16 %v1670, %v1670
        %v1735 = vpack.c.b16 %v1671, %v1671
        %v1736 = vpack.c.b16 %v1672, %v1672
        %v1737 = vpack.c.b16 %v1673, %v1673
        %v1738 = vpack.c.b16 %v1674, %v1674
        %v1739 = vpack.c.b16 %v1675, %v1675
        %v1740 = vpack.c.b16 %v1676, %v1676
        %v1741 = vpack.c.b16 %v1677, %v1677
        %v1742 = vpack.c.b16 %v1678, %v1678
        %v1743 = vpack.c.b16 %v1679, %v1679
        %v1744 = vpack.c.b16 %v1680, %v1680
        %v1745 = vpack.c.b16 %v1681, %v1681
        %v1746 = vpack.c.b16 %v1682, %v1682
        %v1747 = vpack.c.b16 %v1683, %v1683
        %v1748 = vpack.c.b16 %v1684, %v1684
        %v1749 = vpack.c.b16 %v1685, %v1685
        %v1750 = vpack.c.b16 %v1686, %v1686
        %v1751 = vpack.c.b16 %v1687, %v1687
        %v1752 = vpack.c.b16 %v1688, %v1688
        %v1753 = vpack.c.b16 %v1689, %v1689
        %v1754 = vpack.c.b16 %v1690, %v1690
        %v1755 = vpack.c.b16 %v1691, %v1691
        %v1756 = vpack.c.b16 %v1692, %v1692
        %v1757 = vpack.c.b16 %v1693, %v1693
        %v1758 = vpack.c.b16 %v1694, %v1694
        %v1759 = vpack.c.b16 %v1695, %v1695
        %v1760 = vpack.c.b16 %v1696, %v1696
        %v1761 = vpack.c.b16 %v1697, %v1697
        %v1762 = vpack.c.b16 %v1698, %v1698
        %v1763 = vpack.c.b16 %v1699, %v1699
        %v1764 = vpack.c.b16 %v1700, %v1700
        %v1765 = vpack.c.b16 %v1701, %v1701
        %v1766 = vpack.c.b16 %v1702, %v1702
        %v1767 = vpack.c.b16 %v1703, %v1703
        %v1768 = vpack.c.b16 %v1704, %v1704
        %v1769 = vpack.c.b16 %v1705, %v1705
        %v1770 = vpack.c.b16 %v1706, %v1706
        %v1771 = vpack.c.b16 %v1707, %v1707
        %v1772 = vpack.c.b16 %v1708, %v1708
        %v1773 = vpack.c.b16 %v1709, %v1709
        %v1774 = vpack.c.b16 %v1710, %v1710
        %v1775 = vpack.c.b16 %v1711, %v1711
        %v1776 = vpack.c.b16 %v1712, %v1712
        %v1777 = vpack.c.b16 %v1713, %v1713
        %v1778 = vpack.c.b16 %v1714, %v1714
        %v1779 = vpack.c.b16 %v1715, %v1715
        %v1780 = vpack.c.b16 %v1716, %v1716
        %v1781 = vpack.c.b16 %v1717, %v1717
        %v1782 = vpack.c.b16 %v1718, %v1718
        %v1783 = vpack.c.b16 %v1719, %v1719
        %v1784 = vpack.c.b16 %v1720, %v1720
        %v1785 = vpack.c.b16 %v1721, %v1721
        %v1786 = vpack.c.b16 %v1722, %v1722
        %v1787 = vpack.c.b16 %v1723, %v1723
        %v1788 = vpack.c.b16 %v1724, %v1724
        %v1789 = vpack.c.b16 %v1725, %v1725
        %v1790 = vpack.c.b16 %v1726, %v1726
        %v1791 = vpack.c.b16 %v1727, %v1727
        %v1792 = vpack.c.b16 %v1728, %v1728
        %vm1793 = vsmask.f32 7424
        %v1795 = vshrl.u32 %v1089, 16
        %v1797 = vshll.u32 %v1089, 16
        %v1799 = vrot.slane %v1797, 1
        %v1800 = vor.u32 %v1795, %v1799
        %v1802 = vshll.u32 %v1729, 16
        %v1804 = vrot.slane %v1802, 1
        %v1805 = vsel %vm1793, %v1800, %v1804
        %v1807 = vshrl.u32 %v1090, 16
        %v1809 = vshll.u32 %v1090, 16
        %v1811 = vrot.slane %v1809, 1
        %v1812 = vor.u32 %v1807, %v1811
        %v1814 = vshll.u32 %v1730, 16
        %v1816 = vrot.slane %v1814, 1
        %v1817 = vsel %vm1793, %v1812, %v1816
        %v1819 = vshrl.u32 %v1091, 16
        %v1821 = vshll.u32 %v1091, 16
        %v1823 = vrot.slane %v1821, 1
        %v1824 = vor.u32 %v1819, %v1823
        %v1826 = vshll.u32 %v1731, 16
        %v1828 = vrot.slane %v1826, 1
        %v1829 = vsel %vm1793, %v1824, %v1828
        %v1831 = vshrl.u32 %v1092, 16
        %v1833 = vshll.u32 %v1092, 16
        %v1835 = vrot.slane %v1833, 1
        %v1836 = vor.u32 %v1831, %v1835
        %v1838 = vshll.u32 %v1732, 16
        %v1840 = vrot.slane %v1838, 1
        %v1841 = vsel %vm1793, %v1836, %v1840
        %v1843 = vshrl.u32 %v1093, 16
        %v1845 = vshll.u32 %v1093, 16
        %v1847 = vrot.slane %v1845, 1
        %v1848 = vor.u32 %v1843, %v1847
        %v1850 = vshll.u32 %v1733, 16
        %v1852 = vrot.slane %v1850, 1
        %v1853 = vsel %vm1793, %v1848, %v1852
        %v1855 = vshrl.u32 %v1094, 16
        %v1857 = vshll.u32 %v1094, 16
        %v1859 = vrot.slane %v1857, 1
        %v1860 = vor.u32 %v1855, %v1859
        %v1862 = vshll.u32 %v1734, 16
        %v1864 = vrot.slane %v1862, 1
        %v1865 = vsel %vm1793, %v1860, %v1864
        %v1867 = vshrl.u32 %v1095, 16
        %v1869 = vshll.u32 %v1095, 16
        %v1871 = vrot.slane %v1869, 1
        %v1872 = vor.u32 %v1867, %v1871
        %v1874 = vshll.u32 %v1735, 16
        %v1876 = vrot.slane %v1874, 1
        %v1877 = vsel %vm1793, %v1872, %v1876
        %v1879 = vshrl.u32 %v1096, 16
        %v1881 = vshll.u32 %v1096, 16
        %v1883 = vrot.slane %v1881, 1
        %v1884 = vor.u32 %v1879, %v1883
        %v1886 = vshll.u32 %v1736, 16
        %v1888 = vrot.slane %v1886, 1
        %v1889 = vsel %vm1793, %v1884, %v1888
        %v1891 = vshrl.u32 %v1097, 16
        %v1893 = vshll.u32 %v1097, 16
        %v1895 = vrot.slane %v1893, 1
        %v1896 = vor.u32 %v1891, %v1895
        %v1898 = vshll.u32 %v1737, 16
        %v1900 = vrot.slane %v1898, 1
        %v1901 = vsel %vm1793, %v1896, %v1900
        %v1903 = vshrl.u32 %v1098, 16
        %v1905 = vshll.u32 %v1098, 16
        %v1907 = vrot.slane %v1905, 1
        %v1908 = vor.u32 %v1903, %v1907
        %v1910 = vshll.u32 %v1738, 16
        %v1912 = vrot.slane %v1910, 1
        %v1913 = vsel %vm1793, %v1908, %v1912
        %v1915 = vshrl.u32 %v1099, 16
        %v1917 = vshll.u32 %v1099, 16
        %v1919 = vrot.slane %v1917, 1
        %v1920 = vor.u32 %v1915, %v1919
        %v1922 = vshll.u32 %v1739, 16
        %v1924 = vrot.slane %v1922, 1
        %v1925 = vsel %vm1793, %v1920, %v1924
        %v1927 = vshrl.u32 %v1100, 16
        %v1929 = vshll.u32 %v1100, 16
        %v1931 = vrot.slane %v1929, 1
        %v1932 = vor.u32 %v1927, %v1931
        %v1934 = vshll.u32 %v1740, 16
        %v1936 = vrot.slane %v1934, 1
        %v1937 = vsel %vm1793, %v1932, %v1936
        %v1939 = vshrl.u32 %v1101, 16
        %v1941 = vshll.u32 %v1101, 16
        %v1943 = vrot.slane %v1941, 1
        %v1944 = vor.u32 %v1939, %v1943
        %v1946 = vshll.u32 %v1741, 16
        %v1948 = vrot.slane %v1946, 1
        %v1949 = vsel %vm1793, %v1944, %v1948
        %v1951 = vshrl.u32 %v1102, 16
        %v1953 = vshll.u32 %v1102, 16
        %v1955 = vrot.slane %v1953, 1
        %v1956 = vor.u32 %v1951, %v1955
        %v1958 = vshll.u32 %v1742, 16
        %v1960 = vrot.slane %v1958, 1
        %v1961 = vsel %vm1793, %v1956, %v1960
        %v1963 = vshrl.u32 %v1103, 16
        %v1965 = vshll.u32 %v1103, 16
        %v1967 = vrot.slane %v1965, 1
        %v1968 = vor.u32 %v1963, %v1967
        %v1970 = vshll.u32 %v1743, 16
        %v1972 = vrot.slane %v1970, 1
        %v1973 = vsel %vm1793, %v1968, %v1972
        %v1975 = vshrl.u32 %v1104, 16
        %v1977 = vshll.u32 %v1104, 16
        %v1979 = vrot.slane %v1977, 1
        %v1980 = vor.u32 %v1975, %v1979
        %v1982 = vshll.u32 %v1744, 16
        %v1984 = vrot.slane %v1982, 1
        %v1985 = vsel %vm1793, %v1980, %v1984
        %v1987 = vshrl.u32 %v1105, 16
        %v1989 = vshll.u32 %v1105, 16
        %v1991 = vrot.slane %v1989, 1
        %v1992 = vor.u32 %v1987, %v1991
        %v1994 = vshll.u32 %v1745, 16
        %v1996 = vrot.slane %v1994, 1
        %v1997 = vsel %vm1793, %v1992, %v1996
        %v1999 = vshrl.u32 %v1106, 16
        %v2001 = vshll.u32 %v1106, 16
        %v2003 = vrot.slane %v2001, 1
        %v2004 = vor.u32 %v1999, %v2003
        %v2006 = vshll.u32 %v1746, 16
        %v2008 = vrot.slane %v2006, 1
        %v2009 = vsel %vm1793, %v2004, %v2008
        %v2011 = vshrl.u32 %v1107, 16
        %v2013 = vshll.u32 %v1107, 16
        %v2015 = vrot.slane %v2013, 1
        %v2016 = vor.u32 %v2011, %v2015
        %v2018 = vshll.u32 %v1747, 16
        %v2020 = vrot.slane %v2018, 1
        %v2021 = vsel %vm1793, %v2016, %v2020
        %v2023 = vshrl.u32 %v1108, 16
        %v2025 = vshll.u32 %v1108, 16
        %v2027 = vrot.slane %v2025, 1
        %v2028 = vor.u32 %v2023, %v2027
        %v2030 = vshll.u32 %v1748, 16
        %v2032 = vrot.slane %v2030, 1
        %v2033 = vsel %vm1793, %v2028, %v2032
        %v2035 = vshrl.u32 %v1109, 16
        %v2037 = vshll.u32 %v1109, 16
        %v2039 = vrot.slane %v2037, 1
        %v2040 = vor.u32 %v2035, %v2039
        %v2042 = vshll.u32 %v1749, 16
        %v2044 = vrot.slane %v2042, 1
        %v2045 = vsel %vm1793, %v2040, %v2044
        %v2047 = vshrl.u32 %v1110, 16
        %v2049 = vshll.u32 %v1110, 16
        %v2051 = vrot.slane %v2049, 1
        %v2052 = vor.u32 %v2047, %v2051
        %v2054 = vshll.u32 %v1750, 16
        %v2056 = vrot.slane %v2054, 1
        %v2057 = vsel %vm1793, %v2052, %v2056
        %v2059 = vshrl.u32 %v1111, 16
        %v2061 = vshll.u32 %v1111, 16
        %v2063 = vrot.slane %v2061, 1
        %v2064 = vor.u32 %v2059, %v2063
        %v2066 = vshll.u32 %v1751, 16
        %v2068 = vrot.slane %v2066, 1
        %v2069 = vsel %vm1793, %v2064, %v2068
        %v2071 = vshrl.u32 %v1112, 16
        %v2073 = vshll.u32 %v1112, 16
        %v2075 = vrot.slane %v2073, 1
        %v2076 = vor.u32 %v2071, %v2075
        %v2078 = vshll.u32 %v1752, 16
        %v2080 = vrot.slane %v2078, 1
        %v2081 = vsel %vm1793, %v2076, %v2080
        %v2083 = vshrl.u32 %v1113, 16
        %v2085 = vshll.u32 %v1113, 16
        %v2087 = vrot.slane %v2085, 1
        %v2088 = vor.u32 %v2083, %v2087
        %v2090 = vshll.u32 %v1753, 16
        %v2092 = vrot.slane %v2090, 1
        %v2093 = vsel %vm1793, %v2088, %v2092
        %v2095 = vshrl.u32 %v1114, 16
        %v2097 = vshll.u32 %v1114, 16
        %v2099 = vrot.slane %v2097, 1
        %v2100 = vor.u32 %v2095, %v2099
        %v2102 = vshll.u32 %v1754, 16
        %v2104 = vrot.slane %v2102, 1
        %v2105 = vsel %vm1793, %v2100, %v2104
        %v2107 = vshrl.u32 %v1115, 16
        %v2109 = vshll.u32 %v1115, 16
        %v2111 = vrot.slane %v2109, 1
        %v2112 = vor.u32 %v2107, %v2111
        %v2114 = vshll.u32 %v1755, 16
        %v2116 = vrot.slane %v2114, 1
        %v2117 = vsel %vm1793, %v2112, %v2116
        %v2119 = vshrl.u32 %v1116, 16
        %v2121 = vshll.u32 %v1116, 16
        %v2123 = vrot.slane %v2121, 1
        %v2124 = vor.u32 %v2119, %v2123
        %v2126 = vshll.u32 %v1756, 16
        %v2128 = vrot.slane %v2126, 1
        %v2129 = vsel %vm1793, %v2124, %v2128
        %v2131 = vshrl.u32 %v1117, 16
        %v2133 = vshll.u32 %v1117, 16
        %v2135 = vrot.slane %v2133, 1
        %v2136 = vor.u32 %v2131, %v2135
        %v2138 = vshll.u32 %v1757, 16
        %v2140 = vrot.slane %v2138, 1
        %v2141 = vsel %vm1793, %v2136, %v2140
        %v2143 = vshrl.u32 %v1118, 16
        %v2145 = vshll.u32 %v1118, 16
        %v2147 = vrot.slane %v2145, 1
        %v2148 = vor.u32 %v2143, %v2147
        %v2150 = vshll.u32 %v1758, 16
        %v2152 = vrot.slane %v2150, 1
        %v2153 = vsel %vm1793, %v2148, %v2152
        %v2155 = vshrl.u32 %v1119, 16
        %v2157 = vshll.u32 %v1119, 16
        %v2159 = vrot.slane %v2157, 1
        %v2160 = vor.u32 %v2155, %v2159
        %v2162 = vshll.u32 %v1759, 16
        %v2164 = vrot.slane %v2162, 1
        %v2165 = vsel %vm1793, %v2160, %v2164
        %v2167 = vshrl.u32 %v1120, 16
        %v2169 = vshll.u32 %v1120, 16
        %v2171 = vrot.slane %v2169, 1
        %v2172 = vor.u32 %v2167, %v2171
        %v2174 = vshll.u32 %v1760, 16
        %v2176 = vrot.slane %v2174, 1
        %v2177 = vsel %vm1793, %v2172, %v2176
        %v2179 = vshrl.u32 %v1121, 16
        %v2181 = vshll.u32 %v1121, 16
        %v2183 = vrot.slane %v2181, 1
        %v2184 = vor.u32 %v2179, %v2183
        %v2186 = vshll.u32 %v1761, 16
        %v2188 = vrot.slane %v2186, 1
        %v2189 = vsel %vm1793, %v2184, %v2188
        %v2191 = vshrl.u32 %v1122, 16
        %v2193 = vshll.u32 %v1122, 16
        %v2195 = vrot.slane %v2193, 1
        %v2196 = vor.u32 %v2191, %v2195
        %v2198 = vshll.u32 %v1762, 16
        %v2200 = vrot.slane %v2198, 1
        %v2201 = vsel %vm1793, %v2196, %v2200
        %v2203 = vshrl.u32 %v1123, 16
        %v2205 = vshll.u32 %v1123, 16
        %v2207 = vrot.slane %v2205, 1
        %v2208 = vor.u32 %v2203, %v2207
        %v2210 = vshll.u32 %v1763, 16
        %v2212 = vrot.slane %v2210, 1
        %v2213 = vsel %vm1793, %v2208, %v2212
        %v2215 = vshrl.u32 %v1124, 16
        %v2217 = vshll.u32 %v1124, 16
        %v2219 = vrot.slane %v2217, 1
        %v2220 = vor.u32 %v2215, %v2219
        %v2222 = vshll.u32 %v1764, 16
        %v2224 = vrot.slane %v2222, 1
        %v2225 = vsel %vm1793, %v2220, %v2224
        %v2227 = vshrl.u32 %v1125, 16
        %v2229 = vshll.u32 %v1125, 16
        %v2231 = vrot.slane %v2229, 1
        %v2232 = vor.u32 %v2227, %v2231
        %v2234 = vshll.u32 %v1765, 16
        %v2236 = vrot.slane %v2234, 1
        %v2237 = vsel %vm1793, %v2232, %v2236
        %v2239 = vshrl.u32 %v1126, 16
        %v2241 = vshll.u32 %v1126, 16
        %v2243 = vrot.slane %v2241, 1
        %v2244 = vor.u32 %v2239, %v2243
        %v2246 = vshll.u32 %v1766, 16
        %v2248 = vrot.slane %v2246, 1
        %v2249 = vsel %vm1793, %v2244, %v2248
        %v2251 = vshrl.u32 %v1127, 16
        %v2253 = vshll.u32 %v1127, 16
        %v2255 = vrot.slane %v2253, 1
        %v2256 = vor.u32 %v2251, %v2255
        %v2258 = vshll.u32 %v1767, 16
        %v2260 = vrot.slane %v2258, 1
        %v2261 = vsel %vm1793, %v2256, %v2260
        %v2263 = vshrl.u32 %v1128, 16
        %v2265 = vshll.u32 %v1128, 16
        %v2267 = vrot.slane %v2265, 1
        %v2268 = vor.u32 %v2263, %v2267
        %v2270 = vshll.u32 %v1768, 16
        %v2272 = vrot.slane %v2270, 1
        %v2273 = vsel %vm1793, %v2268, %v2272
        %v2275 = vshrl.u32 %v1129, 16
        %v2277 = vshll.u32 %v1129, 16
        %v2279 = vrot.slane %v2277, 1
        %v2280 = vor.u32 %v2275, %v2279
        %v2282 = vshll.u32 %v1769, 16
        %v2284 = vrot.slane %v2282, 1
        %v2285 = vsel %vm1793, %v2280, %v2284
        %v2287 = vshrl.u32 %v1130, 16
        %v2289 = vshll.u32 %v1130, 16
        %v2291 = vrot.slane %v2289, 1
        %v2292 = vor.u32 %v2287, %v2291
        %v2294 = vshll.u32 %v1770, 16
        %v2296 = vrot.slane %v2294, 1
        %v2297 = vsel %vm1793, %v2292, %v2296
        %v2299 = vshrl.u32 %v1131, 16
        %v2301 = vshll.u32 %v1131, 16
        %v2303 = vrot.slane %v2301, 1
        %v2304 = vor.u32 %v2299, %v2303
        %v2306 = vshll.u32 %v1771, 16
        %v2308 = vrot.slane %v2306, 1
        %v2309 = vsel %vm1793, %v2304, %v2308
        %v2311 = vshrl.u32 %v1132, 16
        %v2313 = vshll.u32 %v1132, 16
        %v2315 = vrot.slane %v2313, 1
        %v2316 = vor.u32 %v2311, %v2315
        %v2318 = vshll.u32 %v1772, 16
        %v2320 = vrot.slane %v2318, 1
        %v2321 = vsel %vm1793, %v2316, %v2320
        %v2323 = vshrl.u32 %v1133, 16
        %v2325 = vshll.u32 %v1133, 16
        %v2327 = vrot.slane %v2325, 1
        %v2328 = vor.u32 %v2323, %v2327
        %v2330 = vshll.u32 %v1773, 16
        %v2332 = vrot.slane %v2330, 1
        %v2333 = vsel %vm1793, %v2328, %v2332
        %v2335 = vshrl.u32 %v1134, 16
        %v2337 = vshll.u32 %v1134, 16
        %v2339 = vrot.slane %v2337, 1
        %v2340 = vor.u32 %v2335, %v2339
        %v2342 = vshll.u32 %v1774, 16
        %v2344 = vrot.slane %v2342, 1
        %v2345 = vsel %vm1793, %v2340, %v2344
        %v2347 = vshrl.u32 %v1135, 16
        %v2349 = vshll.u32 %v1135, 16
        %v2351 = vrot.slane %v2349, 1
        %v2352 = vor.u32 %v2347, %v2351
        %v2354 = vshll.u32 %v1775, 16
        %v2356 = vrot.slane %v2354, 1
        %v2357 = vsel %vm1793, %v2352, %v2356
        %v2359 = vshrl.u32 %v1136, 16
        %v2361 = vshll.u32 %v1136, 16
        %v2363 = vrot.slane %v2361, 1
        %v2364 = vor.u32 %v2359, %v2363
        %v2366 = vshll.u32 %v1776, 16
        %v2368 = vrot.slane %v2366, 1
        %v2369 = vsel %vm1793, %v2364, %v2368
        %v2371 = vshrl.u32 %v1137, 16
        %v2373 = vshll.u32 %v1137, 16
        %v2375 = vrot.slane %v2373, 1
        %v2376 = vor.u32 %v2371, %v2375
        %v2378 = vshll.u32 %v1777, 16
        %v2380 = vrot.slane %v2378, 1
        %v2381 = vsel %vm1793, %v2376, %v2380
        %v2383 = vshrl.u32 %v1138, 16
        %v2385 = vshll.u32 %v1138, 16
        %v2387 = vrot.slane %v2385, 1
        %v2388 = vor.u32 %v2383, %v2387
        %v2390 = vshll.u32 %v1778, 16
        %v2392 = vrot.slane %v2390, 1
        %v2393 = vsel %vm1793, %v2388, %v2392
        %v2395 = vshrl.u32 %v1139, 16
        %v2397 = vshll.u32 %v1139, 16
        %v2399 = vrot.slane %v2397, 1
        %v2400 = vor.u32 %v2395, %v2399
        %v2402 = vshll.u32 %v1779, 16
        %v2404 = vrot.slane %v2402, 1
        %v2405 = vsel %vm1793, %v2400, %v2404
        %v2407 = vshrl.u32 %v1140, 16
        %v2409 = vshll.u32 %v1140, 16
        %v2411 = vrot.slane %v2409, 1
        %v2412 = vor.u32 %v2407, %v2411
        %v2414 = vshll.u32 %v1780, 16
        %v2416 = vrot.slane %v2414, 1
        %v2417 = vsel %vm1793, %v2412, %v2416
        %v2419 = vshrl.u32 %v1141, 16
        %v2421 = vshll.u32 %v1141, 16
        %v2423 = vrot.slane %v2421, 1
        %v2424 = vor.u32 %v2419, %v2423
        %v2426 = vshll.u32 %v1781, 16
        %v2428 = vrot.slane %v2426, 1
        %v2429 = vsel %vm1793, %v2424, %v2428
        %v2431 = vshrl.u32 %v1142, 16
        %v2433 = vshll.u32 %v1142, 16
        %v2435 = vrot.slane %v2433, 1
        %v2436 = vor.u32 %v2431, %v2435
        %v2438 = vshll.u32 %v1782, 16
        %v2440 = vrot.slane %v2438, 1
        %v2441 = vsel %vm1793, %v2436, %v2440
        %v2443 = vshrl.u32 %v1143, 16
        %v2445 = vshll.u32 %v1143, 16
        %v2447 = vrot.slane %v2445, 1
        %v2448 = vor.u32 %v2443, %v2447
        %v2450 = vshll.u32 %v1783, 16
        %v2452 = vrot.slane %v2450, 1
        %v2453 = vsel %vm1793, %v2448, %v2452
        %v2455 = vshrl.u32 %v1144, 16
        %v2457 = vshll.u32 %v1144, 16
        %v2459 = vrot.slane %v2457, 1
        %v2460 = vor.u32 %v2455, %v2459
        %v2462 = vshll.u32 %v1784, 16
        %v2464 = vrot.slane %v2462, 1
        %v2465 = vsel %vm1793, %v2460, %v2464
        %v2467 = vshrl.u32 %v1145, 16
        %v2469 = vshll.u32 %v1145, 16
        %v2471 = vrot.slane %v2469, 1
        %v2472 = vor.u32 %v2467, %v2471
        %v2474 = vshll.u32 %v1785, 16
        %v2476 = vrot.slane %v2474, 1
        %v2477 = vsel %vm1793, %v2472, %v2476
        %v2479 = vshrl.u32 %v1146, 16
        %v2481 = vshll.u32 %v1146, 16
        %v2483 = vrot.slane %v2481, 1
        %v2484 = vor.u32 %v2479, %v2483
        %v2486 = vshll.u32 %v1786, 16
        %v2488 = vrot.slane %v2486, 1
        %v2489 = vsel %vm1793, %v2484, %v2488
        %v2491 = vshrl.u32 %v1147, 16
        %v2493 = vshll.u32 %v1147, 16
        %v2495 = vrot.slane %v2493, 1
        %v2496 = vor.u32 %v2491, %v2495
        %v2498 = vshll.u32 %v1787, 16
        %v2500 = vrot.slane %v2498, 1
        %v2501 = vsel %vm1793, %v2496, %v2500
        %v2503 = vshrl.u32 %v1148, 16
        %v2505 = vshll.u32 %v1148, 16
        %v2507 = vrot.slane %v2505, 1
        %v2508 = vor.u32 %v2503, %v2507
        %v2510 = vshll.u32 %v1788, 16
        %v2512 = vrot.slane %v2510, 1
        %v2513 = vsel %vm1793, %v2508, %v2512
        %v2515 = vshrl.u32 %v1149, 16
        %v2517 = vshll.u32 %v1149, 16
        %v2519 = vrot.slane %v2517, 1
        %v2520 = vor.u32 %v2515, %v2519
        %v2522 = vshll.u32 %v1789, 16
        %v2524 = vrot.slane %v2522, 1
        %v2525 = vsel %vm1793, %v2520, %v2524
        %v2527 = vshrl.u32 %v1150, 16
        %v2529 = vshll.u32 %v1150, 16
        %v2531 = vrot.slane %v2529, 1
        %v2532 = vor.u32 %v2527, %v2531
        %v2534 = vshll.u32 %v1790, 16
        %v2536 = vrot.slane %v2534, 1
        %v2537 = vsel %vm1793, %v2532, %v2536
        %v2539 = vshrl.u32 %v1151, 16
        %v2541 = vshll.u32 %v1151, 16
        %v2543 = vrot.slane %v2541, 1
        %v2544 = vor.u32 %v2539, %v2543
        %v2546 = vshll.u32 %v1791, 16
        %v2548 = vrot.slane %v2546, 1
        %v2549 = vsel %vm1793, %v2544, %v2548
        %v2551 = vshrl.u32 %v1152, 16
        %v2553 = vshll.u32 %v1152, 16
        %v2555 = vrot.slane %v2553, 1
        %v2556 = vor.u32 %v2551, %v2555
        %v2558 = vshll.u32 %v1792, 16
        %v2560 = vrot.slane %v2558, 1
        %v2561 = vsel %vm1793, %v2556, %v2560
        %2562 = vrot.lane.b32.xlu0 %v1805, 6
        %v2563 = vpop.permute.xlu0 %2562
        %2564 = vrot.lane.b32.xlu0 %v1817, 6
        %v2565 = vpop.permute.xlu0 %2564
        %2566 = vrot.lane.b32.xlu0 %v1829, 6
        %v2567 = vpop.permute.xlu0 %2566
        %2568 = vrot.lane.b32.xlu0 %v1841, 6
        %v2569 = vpop.permute.xlu0 %2568
        %2570 = vrot.lane.b32.xlu0 %v1853, 6
        %v2571 = vpop.permute.xlu0 %2570
        %2572 = vrot.lane.b32.xlu0 %v1865, 6
        %v2573 = vpop.permute.xlu0 %2572
        %2574 = vrot.lane.b32.xlu0 %v1877, 6
        %v2575 = vpop.permute.xlu0 %2574
        %2576 = vrot.lane.b32.xlu0 %v1889, 6
        %v2577 = vpop.permute.xlu0 %2576
        %2578 = vrot.lane.b32.xlu0 %v1901, 6
        %v2579 = vpop.permute.xlu0 %2578
        %2580 = vrot.lane.b32.xlu0 %v1913, 6
        %v2581 = vpop.permute.xlu0 %2580
        %2582 = vrot.lane.b32.xlu0 %v1925, 6
        %v2583 = vpop.permute.xlu0 %2582
        %2584 = vrot.lane.b32.xlu0 %v1937, 6
        %v2585 = vpop.permute.xlu0 %2584
        %2586 = vrot.lane.b32.xlu0 %v1949, 6
        %v2587 = vpop.permute.xlu0 %2586
        %2588 = vrot.lane.b32.xlu0 %v1961, 6
        %v2589 = vpop.permute.xlu0 %2588
        %2590 = vrot.lane.b32.xlu0 %v1973, 6
        %v2591 = vpop.permute.xlu0 %2590
        %2592 = vrot.lane.b32.xlu0 %v1985, 6
        %v2593 = vpop.permute.xlu0 %2592
        %2594 = vrot.lane.b32.xlu0 %v1997, 6
        %v2595 = vpop.permute.xlu0 %2594
        %2596 = vrot.lane.b32.xlu0 %v2009, 6
        %v2597 = vpop.permute.xlu0 %2596
        %2598 = vrot.lane.b32.xlu0 %v2021, 6
        %v2599 = vpop.permute.xlu0 %2598
        %2600 = vrot.lane.b32.xlu0 %v2033, 6
        %v2601 = vpop.permute.xlu0 %2600
        %2602 = vrot.lane.b32.xlu0 %v2045, 6
        %v2603 = vpop.permute.xlu0 %2602
        %2604 = vrot.lane.b32.xlu0 %v2057, 6
        %v2605 = vpop.permute.xlu0 %2604
        %2606 = vrot.lane.b32.xlu0 %v2069, 6
        %v2607 = vpop.permute.xlu0 %2606
        %2608 = vrot.lane.b32.xlu0 %v2081, 6
        %v2609 = vpop.permute.xlu0 %2608
        %2610 = vrot.lane.b32.xlu0 %v2093, 6
        %v2611 = vpop.permute.xlu0 %2610
        %2612 = vrot.lane.b32.xlu0 %v2105, 6
        %v2613 = vpop.permute.xlu0 %2612
        %2614 = vrot.lane.b32.xlu0 %v2117, 6
        %v2615 = vpop.permute.xlu0 %2614
        %2616 = vrot.lane.b32.xlu0 %v2129, 6
        %v2617 = vpop.permute.xlu0 %2616
        %2618 = vrot.lane.b32.xlu0 %v2141, 6
        %v2619 = vpop.permute.xlu0 %2618
        %2620 = vrot.lane.b32.xlu0 %v2153, 6
        %v2621 = vpop.permute.xlu0 %2620
        %2622 = vrot.lane.b32.xlu0 %v2165, 6
        %v2623 = vpop.permute.xlu0 %2622
        %2624 = vrot.lane.b32.xlu0 %v2177, 6
        %v2625 = vpop.permute.xlu0 %2624
        %2626 = vrot.lane.b32.xlu0 %v2189, 6
        %v2627 = vpop.permute.xlu0 %2626
        %2628 = vrot.lane.b32.xlu0 %v2201, 6
        %v2629 = vpop.permute.xlu0 %2628
        %2630 = vrot.lane.b32.xlu0 %v2213, 6
        %v2631 = vpop.permute.xlu0 %2630
        %2632 = vrot.lane.b32.xlu0 %v2225, 6
        %v2633 = vpop.permute.xlu0 %2632
        %2634 = vrot.lane.b32.xlu0 %v2237, 6
        %v2635 = vpop.permute.xlu0 %2634
        %2636 = vrot.lane.b32.xlu0 %v2249, 6
        %v2637 = vpop.permute.xlu0 %2636
        %2638 = vrot.lane.b32.xlu0 %v2261, 6
        %v2639 = vpop.permute.xlu0 %2638
        %2640 = vrot.lane.b32.xlu0 %v2273, 6
        %v2641 = vpop.permute.xlu0 %2640
        %2642 = vrot.lane.b32.xlu0 %v2285, 6
        %v2643 = vpop.permute.xlu0 %2642
        %2644 = vrot.lane.b32.xlu0 %v2297, 6
        %v2645 = vpop.permute.xlu0 %2644
        %2646 = vrot.lane.b32.xlu0 %v2309, 6
        %v2647 = vpop.permute.xlu0 %2646
        %2648 = vrot.lane.b32.xlu0 %v2321, 6
        %v2649 = vpop.permute.xlu0 %2648
        %2650 = vrot.lane.b32.xlu0 %v2333, 6
        %v2651 = vpop.permute.xlu0 %2650
        %2652 = vrot.lane.b32.xlu0 %v2345, 6
        %v2653 = vpop.permute.xlu0 %2652
        %2654 = vrot.lane.b32.xlu0 %v2357, 6
        %v2655 = vpop.permute.xlu0 %2654
        %2656 = vrot.lane.b32.xlu0 %v2369, 6
        %v2657 = vpop.permute.xlu0 %2656
        %2658 = vrot.lane.b32.xlu0 %v2381, 6
        %v2659 = vpop.permute.xlu0 %2658
        %2660 = vrot.lane.b32.xlu0 %v2393, 6
        %v2661 = vpop.permute.xlu0 %2660
        %2662 = vrot.lane.b32.xlu0 %v2405, 6
        %v2663 = vpop.permute.xlu0 %2662
        %2664 = vrot.lane.b32.xlu0 %v2417, 6
        %v2665 = vpop.permute.xlu0 %2664
        %2666 = vrot.lane.b32.xlu0 %v2429, 6
        %v2667 = vpop.permute.xlu0 %2666
        %2668 = vrot.lane.b32.xlu0 %v2441, 6
        %v2669 = vpop.permute.xlu0 %2668
        %2670 = vrot.lane.b32.xlu0 %v2453, 6
        %v2671 = vpop.permute.xlu0 %2670
        %2672 = vrot.lane.b32.xlu0 %v2465, 6
        %v2673 = vpop.permute.xlu0 %2672
        %2674 = vrot.lane.b32.xlu0 %v2477, 6
        %v2675 = vpop.permute.xlu0 %2674
        %2676 = vrot.lane.b32.xlu0 %v2489, 6
        %v2677 = vpop.permute.xlu0 %2676
        %2678 = vrot.lane.b32.xlu0 %v2501, 6
        %v2679 = vpop.permute.xlu0 %2678
        %2680 = vrot.lane.b32.xlu0 %v2513, 6
        %v2681 = vpop.permute.xlu0 %2680
        %2682 = vrot.lane.b32.xlu0 %v2525, 6
        %v2683 = vpop.permute.xlu0 %2682
        %2684 = vrot.lane.b32.xlu0 %v2537, 6
        %v2685 = vpop.permute.xlu0 %2684
        %2686 = vrot.lane.b32.xlu0 %v2549, 6
        %v2687 = vpop.permute.xlu0 %2686
        %2688 = vrot.lane.b32.xlu0 %v2561, 6
        %v2689 = vpop.permute.xlu0 %2688
        %v2754 = vunpack.c.l.b16 %v619
        %v2755 = vunpack.c.l.b16 %v622
        %v2756 = vunpack.c.l.b16 %v625
        %v2757 = vunpack.c.l.b16 %v628
        %v2758 = vunpack.c.l.b16 %v631
        %v2759 = vunpack.c.l.b16 %v634
        %v2760 = vunpack.c.l.b16 %v637
        %v2761 = vunpack.c.l.b16 %v640
        %v2762 = vunpack.c.l.b16 %v643
        %v2763 = vunpack.c.l.b16 %v646
        %v2764 = vunpack.c.l.b16 %v649
        %v2765 = vunpack.c.l.b16 %v652
        %v2766 = vunpack.c.l.b16 %v655
        %v2767 = vunpack.c.l.b16 %v658
        %v2768 = vunpack.c.l.b16 %v661
        %v2769 = vunpack.c.l.b16 %v664
        %v2770 = vunpack.c.l.b16 %v673
        %v2771 = vunpack.c.l.b16 %v676
        %v2772 = vunpack.c.l.b16 %v679
        %v2773 = vunpack.c.l.b16 %v682
        %v2774 = vunpack.c.l.b16 %v685
        %v2775 = vunpack.c.l.b16 %v688
        %v2776 = vunpack.c.l.b16 %v691
        %v2777 = vunpack.c.l.b16 %v694
        %v2778 = vunpack.c.l.b16 %v697
        %v2779 = vunpack.c.l.b16 %v700
        %v2780 = vunpack.c.l.b16 %v703
        %v2781 = vunpack.c.l.b16 %v706
        %v2782 = vunpack.c.l.b16 %v709
        %v2783 = vunpack.c.l.b16 %v712
        %v2784 = vunpack.c.l.b16 %v715
        %v2785 = vunpack.c.l.b16 %v718
        %v2786 = vunpack.c.l.b16 %v727
        %v2787 = vunpack.c.l.b16 %v730
        %v2788 = vunpack.c.l.b16 %v733
        %v2789 = vunpack.c.l.b16 %v736
        %v2790 = vunpack.c.l.b16 %v739
        %v2791 = vunpack.c.l.b16 %v742
        %v2792 = vunpack.c.l.b16 %v745
        %v2793 = vunpack.c.l.b16 %v748
        %v2794 = vunpack.c.l.b16 %v751
        %v2795 = vunpack.c.l.b16 %v754
        %v2796 = vunpack.c.l.b16 %v757
        %v2797 = vunpack.c.l.b16 %v760
        %v2798 = vunpack.c.l.b16 %v763
        %v2799 = vunpack.c.l.b16 %v766
        %v2800 = vunpack.c.l.b16 %v769
        %v2801 = vunpack.c.l.b16 %v772
        %v2802 = vunpack.c.l.b16 %v781
        %v2803 = vunpack.c.l.b16 %v784
        %v2804 = vunpack.c.l.b16 %v787
        %v2805 = vunpack.c.l.b16 %v790
        %v2806 = vunpack.c.l.b16 %v793
        %v2807 = vunpack.c.l.b16 %v796
        %v2808 = vunpack.c.l.b16 %v799
        %v2809 = vunpack.c.l.b16 %v802
        %v2810 = vunpack.c.l.b16 %v805
        %v2811 = vunpack.c.l.b16 %v808
        %v2812 = vunpack.c.l.b16 %v811
        %v2813 = vunpack.c.l.b16 %v814
        %v2814 = vunpack.c.l.b16 %v817
        %v2815 = vunpack.c.l.b16 %v820
        %v2816 = vunpack.c.l.b16 %v823
        %v2817 = vunpack.c.l.b16 %v826
        %v2818 = vpack.c.b16 %v2754, %v2754
        %v2819 = vpack.c.b16 %v2755, %v2755
        %v2820 = vpack.c.b16 %v2756, %v2756
        %v2821 = vpack.c.b16 %v2757, %v2757
        %v2822 = vpack.c.b16 %v2758, %v2758
        %v2823 = vpack.c.b16 %v2759, %v2759
        %v2824 = vpack.c.b16 %v2760, %v2760
        %v2825 = vpack.c.b16 %v2761, %v2761
        %v2826 = vpack.c.b16 %v2762, %v2762
        %v2827 = vpack.c.b16 %v2763, %v2763
        %v2828 = vpack.c.b16 %v2764, %v2764
        %v2829 = vpack.c.b16 %v2765, %v2765
        %v2830 = vpack.c.b16 %v2766, %v2766
        %v2831 = vpack.c.b16 %v2767, %v2767
        %v2832 = vpack.c.b16 %v2768, %v2768
        %v2833 = vpack.c.b16 %v2769, %v2769
        %v2834 = vpack.c.b16 %v2770, %v2770
        %v2835 = vpack.c.b16 %v2771, %v2771
        %v2836 = vpack.c.b16 %v2772, %v2772
        %v2837 = vpack.c.b16 %v2773, %v2773
        %v2838 = vpack.c.b16 %v2774, %v2774
        %v2839 = vpack.c.b16 %v2775, %v2775
        %v2840 = vpack.c.b16 %v2776, %v2776
        %v2841 = vpack.c.b16 %v2777, %v2777
        %v2842 = vpack.c.b16 %v2778, %v2778
        %v2843 = vpack.c.b16 %v2779, %v2779
        %v2844 = vpack.c.b16 %v2780, %v2780
        %v2845 = vpack.c.b16 %v2781, %v2781
        %v2846 = vpack.c.b16 %v2782, %v2782
        %v2847 = vpack.c.b16 %v2783, %v2783
        %v2848 = vpack.c.b16 %v2784, %v2784
        %v2849 = vpack.c.b16 %v2785, %v2785
        %v2850 = vpack.c.b16 %v2786, %v2786
        %v2851 = vpack.c.b16 %v2787, %v2787
        %v2852 = vpack.c.b16 %v2788, %v2788
        %v2853 = vpack.c.b16 %v2789, %v2789
        %v2854 = vpack.c.b16 %v2790, %v2790
        %v2855 = vpack.c.b16 %v2791, %v2791
        %v2856 = vpack.c.b16 %v2792, %v2792
        %v2857 = vpack.c.b16 %v2793, %v2793
        %v2858 = vpack.c.b16 %v2794, %v2794
        %v2859 = vpack.c.b16 %v2795, %v2795
        %v2860 = vpack.c.b16 %v2796, %v2796
        %v2861 = vpack.c.b16 %v2797, %v2797
        %v2862 = vpack.c.b16 %v2798, %v2798
        %v2863 = vpack.c.b16 %v2799, %v2799
        %v2864 = vpack.c.b16 %v2800, %v2800
        %v2865 = vpack.c.b16 %v2801, %v2801
        %v2866 = vpack.c.b16 %v2802, %v2802
        %v2867 = vpack.c.b16 %v2803, %v2803
        %v2868 = vpack.c.b16 %v2804, %v2804
        %v2869 = vpack.c.b16 %v2805, %v2805
        %v2870 = vpack.c.b16 %v2806, %v2806
        %v2871 = vpack.c.b16 %v2807, %v2807
        %v2872 = vpack.c.b16 %v2808, %v2808
        %v2873 = vpack.c.b16 %v2809, %v2809
        %v2874 = vpack.c.b16 %v2810, %v2810
        %v2875 = vpack.c.b16 %v2811, %v2811
        %v2876 = vpack.c.b16 %v2812, %v2812
        %v2877 = vpack.c.b16 %v2813, %v2813
        %v2878 = vpack.c.b16 %v2814, %v2814
        %v2879 = vpack.c.b16 %v2815, %v2815
        %v2880 = vpack.c.b16 %v2816, %v2816
        %v2881 = vpack.c.b16 %v2817, %v2817
        %v2883 = vshrl.u32 %v1409, 16
        %v2885 = vshll.u32 %v1409, 16
        %v2887 = vrot.slane %v2885, 1
        %v2888 = vor.u32 %v2883, %v2887
        %v2890 = vshll.u32 %v2818, 16
        %v2892 = vrot.slane %v2890, 1
        %v2893 = vsel %vm1793, %v2888, %v2892
        %v2895 = vshrl.u32 %v1410, 16
        %v2897 = vshll.u32 %v1410, 16
        %v2899 = vrot.slane %v2897, 1
        %v2900 = vor.u32 %v2895, %v2899
        %v2902 = vshll.u32 %v2819, 16
        %v2904 = vrot.slane %v2902, 1
        %v2905 = vsel %vm1793, %v2900, %v2904
        %v2907 = vshrl.u32 %v1411, 16
        %v2909 = vshll.u32 %v1411, 16
        %v2911 = vrot.slane %v2909, 1
        %v2912 = vor.u32 %v2907, %v2911
        %v2914 = vshll.u32 %v2820, 16
        %v2916 = vrot.slane %v2914, 1
        %v2917 = vsel %vm1793, %v2912, %v2916
        %v2919 = vshrl.u32 %v1412, 16
        %v2921 = vshll.u32 %v1412, 16
        %v2923 = vrot.slane %v2921, 1
        %v2924 = vor.u32 %v2919, %v2923
        %v2926 = vshll.u32 %v2821, 16
        %v2928 = vrot.slane %v2926, 1
        %v2929 = vsel %vm1793, %v2924, %v2928
        %v2931 = vshrl.u32 %v1413, 16
        %v2933 = vshll.u32 %v1413, 16
        %v2935 = vrot.slane %v2933, 1
        %v2936 = vor.u32 %v2931, %v2935
        %v2938 = vshll.u32 %v2822, 16
        %v2940 = vrot.slane %v2938, 1
        %v2941 = vsel %vm1793, %v2936, %v2940
        %v2943 = vshrl.u32 %v1414, 16
        %v2945 = vshll.u32 %v1414, 16
        %v2947 = vrot.slane %v2945, 1
        %v2948 = vor.u32 %v2943, %v2947
        %v2950 = vshll.u32 %v2823, 16
        %v2952 = vrot.slane %v2950, 1
        %v2953 = vsel %vm1793, %v2948, %v2952
        %v2955 = vshrl.u32 %v1415, 16
        %v2957 = vshll.u32 %v1415, 16
        %v2959 = vrot.slane %v2957, 1
        %v2960 = vor.u32 %v2955, %v2959
        %v2962 = vshll.u32 %v2824, 16
        %v2964 = vrot.slane %v2962, 1
        %v2965 = vsel %vm1793, %v2960, %v2964
        %v2967 = vshrl.u32 %v1416, 16
        %v2969 = vshll.u32 %v1416, 16
        %v2971 = vrot.slane %v2969, 1
        %v2972 = vor.u32 %v2967, %v2971
        %v2974 = vshll.u32 %v2825, 16
        %v2976 = vrot.slane %v2974, 1
        %v2977 = vsel %vm1793, %v2972, %v2976
        %v2979 = vshrl.u32 %v1417, 16
        %v2981 = vshll.u32 %v1417, 16
        %v2983 = vrot.slane %v2981, 1
        %v2984 = vor.u32 %v2979, %v2983
        %v2986 = vshll.u32 %v2826, 16
        %v2988 = vrot.slane %v2986, 1
        %v2989 = vsel %vm1793, %v2984, %v2988
        %v2991 = vshrl.u32 %v1418, 16
        %v2993 = vshll.u32 %v1418, 16
        %v2995 = vrot.slane %v2993, 1
        %v2996 = vor.u32 %v2991, %v2995
        %v2998 = vshll.u32 %v2827, 16
        %v3000 = vrot.slane %v2998, 1
        %v3001 = vsel %vm1793, %v2996, %v3000
        %v3003 = vshrl.u32 %v1419, 16
        %v3005 = vshll.u32 %v1419, 16
        %v3007 = vrot.slane %v3005, 1
        %v3008 = vor.u32 %v3003, %v3007
        %v3010 = vshll.u32 %v2828, 16
        %v3012 = vrot.slane %v3010, 1
        %v3013 = vsel %vm1793, %v3008, %v3012
        %v3015 = vshrl.u32 %v1420, 16
        %v3017 = vshll.u32 %v1420, 16
        %v3019 = vrot.slane %v3017, 1
        %v3020 = vor.u32 %v3015, %v3019
        %v3022 = vshll.u32 %v2829, 16
        %v3024 = vrot.slane %v3022, 1
        %v3025 = vsel %vm1793, %v3020, %v3024
        %v3027 = vshrl.u32 %v1421, 16
        %v3029 = vshll.u32 %v1421, 16
        %v3031 = vrot.slane %v3029, 1
        %v3032 = vor.u32 %v3027, %v3031
        %v3034 = vshll.u32 %v2830, 16
        %v3036 = vrot.slane %v3034, 1
        %v3037 = vsel %vm1793, %v3032, %v3036
        %v3039 = vshrl.u32 %v1422, 16
        %v3041 = vshll.u32 %v1422, 16
        %v3043 = vrot.slane %v3041, 1
        %v3044 = vor.u32 %v3039, %v3043
        %v3046 = vshll.u32 %v2831, 16
        %v3048 = vrot.slane %v3046, 1
        %v3049 = vsel %vm1793, %v3044, %v3048
        %v3051 = vshrl.u32 %v1423, 16
        %v3053 = vshll.u32 %v1423, 16
        %v3055 = vrot.slane %v3053, 1
        %v3056 = vor.u32 %v3051, %v3055
        %v3058 = vshll.u32 %v2832, 16
        %v3060 = vrot.slane %v3058, 1
        %v3061 = vsel %vm1793, %v3056, %v3060
        %v3063 = vshrl.u32 %v1424, 16
        %v3065 = vshll.u32 %v1424, 16
        %v3067 = vrot.slane %v3065, 1
        %v3068 = vor.u32 %v3063, %v3067
        %v3070 = vshll.u32 %v2833, 16
        %v3072 = vrot.slane %v3070, 1
        %v3073 = vsel %vm1793, %v3068, %v3072
        %v3075 = vshrl.u32 %v1425, 16
        %v3077 = vshll.u32 %v1425, 16
        %v3079 = vrot.slane %v3077, 1
        %v3080 = vor.u32 %v3075, %v3079
        %v3082 = vshll.u32 %v2834, 16
        %v3084 = vrot.slane %v3082, 1
        %v3085 = vsel %vm1793, %v3080, %v3084
        %v3087 = vshrl.u32 %v1426, 16
        %v3089 = vshll.u32 %v1426, 16
        %v3091 = vrot.slane %v3089, 1
        %v3092 = vor.u32 %v3087, %v3091
        %v3094 = vshll.u32 %v2835, 16
        %v3096 = vrot.slane %v3094, 1
        %v3097 = vsel %vm1793, %v3092, %v3096
        %v3099 = vshrl.u32 %v1427, 16
        %v3101 = vshll.u32 %v1427, 16
        %v3103 = vrot.slane %v3101, 1
        %v3104 = vor.u32 %v3099, %v3103
        %v3106 = vshll.u32 %v2836, 16
        %v3108 = vrot.slane %v3106, 1
        %v3109 = vsel %vm1793, %v3104, %v3108
        %v3111 = vshrl.u32 %v1428, 16
        %v3113 = vshll.u32 %v1428, 16
        %v3115 = vrot.slane %v3113, 1
        %v3116 = vor.u32 %v3111, %v3115
        %v3118 = vshll.u32 %v2837, 16
        %v3120 = vrot.slane %v3118, 1
        %v3121 = vsel %vm1793, %v3116, %v3120
        %v3123 = vshrl.u32 %v1429, 16
        %v3125 = vshll.u32 %v1429, 16
        %v3127 = vrot.slane %v3125, 1
        %v3128 = vor.u32 %v3123, %v3127
        %v3130 = vshll.u32 %v2838, 16
        %v3132 = vrot.slane %v3130, 1
        %v3133 = vsel %vm1793, %v3128, %v3132
        %v3135 = vshrl.u32 %v1430, 16
        %v3137 = vshll.u32 %v1430, 16
        %v3139 = vrot.slane %v3137, 1
        %v3140 = vor.u32 %v3135, %v3139
        %v3142 = vshll.u32 %v2839, 16
        %v3144 = vrot.slane %v3142, 1
        %v3145 = vsel %vm1793, %v3140, %v3144
        %v3147 = vshrl.u32 %v1431, 16
        %v3149 = vshll.u32 %v1431, 16
        %v3151 = vrot.slane %v3149, 1
        %v3152 = vor.u32 %v3147, %v3151
        %v3154 = vshll.u32 %v2840, 16
        %v3156 = vrot.slane %v3154, 1
        %v3157 = vsel %vm1793, %v3152, %v3156
        %v3159 = vshrl.u32 %v1432, 16
        %v3161 = vshll.u32 %v1432, 16
        %v3163 = vrot.slane %v3161, 1
        %v3164 = vor.u32 %v3159, %v3163
        %v3166 = vshll.u32 %v2841, 16
        %v3168 = vrot.slane %v3166, 1
        %v3169 = vsel %vm1793, %v3164, %v3168
        %v3171 = vshrl.u32 %v1433, 16
        %v3173 = vshll.u32 %v1433, 16
        %v3175 = vrot.slane %v3173, 1
        %v3176 = vor.u32 %v3171, %v3175
        %v3178 = vshll.u32 %v2842, 16
        %v3180 = vrot.slane %v3178, 1
        %v3181 = vsel %vm1793, %v3176, %v3180
        %v3183 = vshrl.u32 %v1434, 16
        %v3185 = vshll.u32 %v1434, 16
        %v3187 = vrot.slane %v3185, 1
        %v3188 = vor.u32 %v3183, %v3187
        %v3190 = vshll.u32 %v2843, 16
        %v3192 = vrot.slane %v3190, 1
        %v3193 = vsel %vm1793, %v3188, %v3192
        %v3195 = vshrl.u32 %v1435, 16
        %v3197 = vshll.u32 %v1435, 16
        %v3199 = vrot.slane %v3197, 1
        %v3200 = vor.u32 %v3195, %v3199
        %v3202 = vshll.u32 %v2844, 16
        %v3204 = vrot.slane %v3202, 1
        %v3205 = vsel %vm1793, %v3200, %v3204
        %v3207 = vshrl.u32 %v1436, 16
        %v3209 = vshll.u32 %v1436, 16
        %v3211 = vrot.slane %v3209, 1
        %v3212 = vor.u32 %v3207, %v3211
        %v3214 = vshll.u32 %v2845, 16
        %v3216 = vrot.slane %v3214, 1
        %v3217 = vsel %vm1793, %v3212, %v3216
        %v3219 = vshrl.u32 %v1437, 16
        %v3221 = vshll.u32 %v1437, 16
        %v3223 = vrot.slane %v3221, 1
        %v3224 = vor.u32 %v3219, %v3223
        %v3226 = vshll.u32 %v2846, 16
        %v3228 = vrot.slane %v3226, 1
        %v3229 = vsel %vm1793, %v3224, %v3228
        %v3231 = vshrl.u32 %v1438, 16
        %v3233 = vshll.u32 %v1438, 16
        %v3235 = vrot.slane %v3233, 1
        %v3236 = vor.u32 %v3231, %v3235
        %v3238 = vshll.u32 %v2847, 16
        %v3240 = vrot.slane %v3238, 1
        %v3241 = vsel %vm1793, %v3236, %v3240
        %v3243 = vshrl.u32 %v1439, 16
        %v3245 = vshll.u32 %v1439, 16
        %v3247 = vrot.slane %v3245, 1
        %v3248 = vor.u32 %v3243, %v3247
        %v3250 = vshll.u32 %v2848, 16
        %v3252 = vrot.slane %v3250, 1
        %v3253 = vsel %vm1793, %v3248, %v3252
        %v3255 = vshrl.u32 %v1440, 16
        %v3257 = vshll.u32 %v1440, 16
        %v3259 = vrot.slane %v3257, 1
        %v3260 = vor.u32 %v3255, %v3259
        %v3262 = vshll.u32 %v2849, 16
        %v3264 = vrot.slane %v3262, 1
        %v3265 = vsel %vm1793, %v3260, %v3264
        %v3267 = vshrl.u32 %v1441, 16
        %v3269 = vshll.u32 %v1441, 16
        %v3271 = vrot.slane %v3269, 1
        %v3272 = vor.u32 %v3267, %v3271
        %v3274 = vshll.u32 %v2850, 16
        %v3276 = vrot.slane %v3274, 1
        %v3277 = vsel %vm1793, %v3272, %v3276
        %v3279 = vshrl.u32 %v1442, 16
        %v3281 = vshll.u32 %v1442, 16
        %v3283 = vrot.slane %v3281, 1
        %v3284 = vor.u32 %v3279, %v3283
        %v3286 = vshll.u32 %v2851, 16
        %v3288 = vrot.slane %v3286, 1
        %v3289 = vsel %vm1793, %v3284, %v3288
        %v3291 = vshrl.u32 %v1443, 16
        %v3293 = vshll.u32 %v1443, 16
        %v3295 = vrot.slane %v3293, 1
        %v3296 = vor.u32 %v3291, %v3295
        %v3298 = vshll.u32 %v2852, 16
        %v3300 = vrot.slane %v3298, 1
        %v3301 = vsel %vm1793, %v3296, %v3300
        %v3303 = vshrl.u32 %v1444, 16
        %v3305 = vshll.u32 %v1444, 16
        %v3307 = vrot.slane %v3305, 1
        %v3308 = vor.u32 %v3303, %v3307
        %v3310 = vshll.u32 %v2853, 16
        %v3312 = vrot.slane %v3310, 1
        %v3313 = vsel %vm1793, %v3308, %v3312
        %v3315 = vshrl.u32 %v1445, 16
        %v3317 = vshll.u32 %v1445, 16
        %v3319 = vrot.slane %v3317, 1
        %v3320 = vor.u32 %v3315, %v3319
        %v3322 = vshll.u32 %v2854, 16
        %v3324 = vrot.slane %v3322, 1
        %v3325 = vsel %vm1793, %v3320, %v3324
        %v3327 = vshrl.u32 %v1446, 16
        %v3329 = vshll.u32 %v1446, 16
        %v3331 = vrot.slane %v3329, 1
        %v3332 = vor.u32 %v3327, %v3331
        %v3334 = vshll.u32 %v2855, 16
        %v3336 = vrot.slane %v3334, 1
        %v3337 = vsel %vm1793, %v3332, %v3336
        %v3339 = vshrl.u32 %v1447, 16
        %v3341 = vshll.u32 %v1447, 16
        %v3343 = vrot.slane %v3341, 1
        %v3344 = vor.u32 %v3339, %v3343
        %v3346 = vshll.u32 %v2856, 16
        %v3348 = vrot.slane %v3346, 1
        %v3349 = vsel %vm1793, %v3344, %v3348
        %v3351 = vshrl.u32 %v1448, 16
        %v3353 = vshll.u32 %v1448, 16
        %v3355 = vrot.slane %v3353, 1
        %v3356 = vor.u32 %v3351, %v3355
        %v3358 = vshll.u32 %v2857, 16
        %v3360 = vrot.slane %v3358, 1
        %v3361 = vsel %vm1793, %v3356, %v3360
        %v3363 = vshrl.u32 %v1449, 16
        %v3365 = vshll.u32 %v1449, 16
        %v3367 = vrot.slane %v3365, 1
        %v3368 = vor.u32 %v3363, %v3367
        %v3370 = vshll.u32 %v2858, 16
        %v3372 = vrot.slane %v3370, 1
        %v3373 = vsel %vm1793, %v3368, %v3372
        %v3375 = vshrl.u32 %v1450, 16
        %v3377 = vshll.u32 %v1450, 16
        %v3379 = vrot.slane %v3377, 1
        %v3380 = vor.u32 %v3375, %v3379
        %v3382 = vshll.u32 %v2859, 16
        %v3384 = vrot.slane %v3382, 1
        %v3385 = vsel %vm1793, %v3380, %v3384
        %v3387 = vshrl.u32 %v1451, 16
        %v3389 = vshll.u32 %v1451, 16
        %v3391 = vrot.slane %v3389, 1
        %v3392 = vor.u32 %v3387, %v3391
        %v3394 = vshll.u32 %v2860, 16
        %v3396 = vrot.slane %v3394, 1
        %v3397 = vsel %vm1793, %v3392, %v3396
        %v3399 = vshrl.u32 %v1452, 16
        %v3401 = vshll.u32 %v1452, 16
        %v3403 = vrot.slane %v3401, 1
        %v3404 = vor.u32 %v3399, %v3403
        %v3406 = vshll.u32 %v2861, 16
        %v3408 = vrot.slane %v3406, 1
        %v3409 = vsel %vm1793, %v3404, %v3408
        %v3411 = vshrl.u32 %v1453, 16
        %v3413 = vshll.u32 %v1453, 16
        %v3415 = vrot.slane %v3413, 1
        %v3416 = vor.u32 %v3411, %v3415
        %v3418 = vshll.u32 %v2862, 16
        %v3420 = vrot.slane %v3418, 1
        %v3421 = vsel %vm1793, %v3416, %v3420
        %v3423 = vshrl.u32 %v1454, 16
        %v3425 = vshll.u32 %v1454, 16
        %v3427 = vrot.slane %v3425, 1
        %v3428 = vor.u32 %v3423, %v3427
        %v3430 = vshll.u32 %v2863, 16
        %v3432 = vrot.slane %v3430, 1
        %v3433 = vsel %vm1793, %v3428, %v3432
        %v3435 = vshrl.u32 %v1455, 16
        %v3437 = vshll.u32 %v1455, 16
        %v3439 = vrot.slane %v3437, 1
        %v3440 = vor.u32 %v3435, %v3439
        %v3442 = vshll.u32 %v2864, 16
        %v3444 = vrot.slane %v3442, 1
        %v3445 = vsel %vm1793, %v3440, %v3444
        %v3447 = vshrl.u32 %v1456, 16
        %v3449 = vshll.u32 %v1456, 16
        %v3451 = vrot.slane %v3449, 1
        %v3452 = vor.u32 %v3447, %v3451
        %v3454 = vshll.u32 %v2865, 16
        %v3456 = vrot.slane %v3454, 1
        %v3457 = vsel %vm1793, %v3452, %v3456
        %v3459 = vshrl.u32 %v1457, 16
        %v3461 = vshll.u32 %v1457, 16
        %v3463 = vrot.slane %v3461, 1
        %v3464 = vor.u32 %v3459, %v3463
        %v3466 = vshll.u32 %v2866, 16
        %v3468 = vrot.slane %v3466, 1
        %v3469 = vsel %vm1793, %v3464, %v3468
        %v3471 = vshrl.u32 %v1458, 16
        %v3473 = vshll.u32 %v1458, 16
        %v3475 = vrot.slane %v3473, 1
        %v3476 = vor.u32 %v3471, %v3475
        %v3478 = vshll.u32 %v2867, 16
        %v3480 = vrot.slane %v3478, 1
        %v3481 = vsel %vm1793, %v3476, %v3480
        %v3483 = vshrl.u32 %v1459, 16
        %v3485 = vshll.u32 %v1459, 16
        %v3487 = vrot.slane %v3485, 1
        %v3488 = vor.u32 %v3483, %v3487
        %v3490 = vshll.u32 %v2868, 16
        %v3492 = vrot.slane %v3490, 1
        %v3493 = vsel %vm1793, %v3488, %v3492
        %v3495 = vshrl.u32 %v1460, 16
        %v3497 = vshll.u32 %v1460, 16
        %v3499 = vrot.slane %v3497, 1
        %v3500 = vor.u32 %v3495, %v3499
        %v3502 = vshll.u32 %v2869, 16
        %v3504 = vrot.slane %v3502, 1
        %v3505 = vsel %vm1793, %v3500, %v3504
        %v3507 = vshrl.u32 %v1461, 16
        %v3509 = vshll.u32 %v1461, 16
        %v3511 = vrot.slane %v3509, 1
        %v3512 = vor.u32 %v3507, %v3511
        %v3514 = vshll.u32 %v2870, 16
        %v3516 = vrot.slane %v3514, 1
        %v3517 = vsel %vm1793, %v3512, %v3516
        %v3519 = vshrl.u32 %v1462, 16
        %v3521 = vshll.u32 %v1462, 16
        %v3523 = vrot.slane %v3521, 1
        %v3524 = vor.u32 %v3519, %v3523
        %v3526 = vshll.u32 %v2871, 16
        %v3528 = vrot.slane %v3526, 1
        %v3529 = vsel %vm1793, %v3524, %v3528
        %v3531 = vshrl.u32 %v1463, 16
        %v3533 = vshll.u32 %v1463, 16
        %v3535 = vrot.slane %v3533, 1
        %v3536 = vor.u32 %v3531, %v3535
        %v3538 = vshll.u32 %v2872, 16
        %v3540 = vrot.slane %v3538, 1
        %v3541 = vsel %vm1793, %v3536, %v3540
        %v3543 = vshrl.u32 %v1464, 16
        %v3545 = vshll.u32 %v1464, 16
        %v3547 = vrot.slane %v3545, 1
        %v3548 = vor.u32 %v3543, %v3547
        %v3550 = vshll.u32 %v2873, 16
        %v3552 = vrot.slane %v3550, 1
        %v3553 = vsel %vm1793, %v3548, %v3552
        %v3555 = vshrl.u32 %v1465, 16
        %v3557 = vshll.u32 %v1465, 16
        %v3559 = vrot.slane %v3557, 1
        %v3560 = vor.u32 %v3555, %v3559
        %v3562 = vshll.u32 %v2874, 16
        %v3564 = vrot.slane %v3562, 1
        %v3565 = vsel %vm1793, %v3560, %v3564
        %v3567 = vshrl.u32 %v1466, 16
        %v3569 = vshll.u32 %v1466, 16
        %v3571 = vrot.slane %v3569, 1
        %v3572 = vor.u32 %v3567, %v3571
        %v3574 = vshll.u32 %v2875, 16
        %v3576 = vrot.slane %v3574, 1
        %v3577 = vsel %vm1793, %v3572, %v3576
        %v3579 = vshrl.u32 %v1467, 16
        %v3581 = vshll.u32 %v1467, 16
        %v3583 = vrot.slane %v3581, 1
        %v3584 = vor.u32 %v3579, %v3583
        %v3586 = vshll.u32 %v2876, 16
        %v3588 = vrot.slane %v3586, 1
        %v3589 = vsel %vm1793, %v3584, %v3588
        %v3591 = vshrl.u32 %v1468, 16
        %v3593 = vshll.u32 %v1468, 16
        %v3595 = vrot.slane %v3593, 1
        %v3596 = vor.u32 %v3591, %v3595
        %v3598 = vshll.u32 %v2877, 16
        %v3600 = vrot.slane %v3598, 1
        %v3601 = vsel %vm1793, %v3596, %v3600
        %v3603 = vshrl.u32 %v1469, 16
        %v3605 = vshll.u32 %v1469, 16
        %v3607 = vrot.slane %v3605, 1
        %v3608 = vor.u32 %v3603, %v3607
        %v3610 = vshll.u32 %v2878, 16
        %v3612 = vrot.slane %v3610, 1
        %v3613 = vsel %vm1793, %v3608, %v3612
        %v3615 = vshrl.u32 %v1470, 16
        %v3617 = vshll.u32 %v1470, 16
        %v3619 = vrot.slane %v3617, 1
        %v3620 = vor.u32 %v3615, %v3619
        %v3622 = vshll.u32 %v2879, 16
        %v3624 = vrot.slane %v3622, 1
        %v3625 = vsel %vm1793, %v3620, %v3624
        %v3627 = vshrl.u32 %v1471, 16
        %v3629 = vshll.u32 %v1471, 16
        %v3631 = vrot.slane %v3629, 1
        %v3632 = vor.u32 %v3627, %v3631
        %v3634 = vshll.u32 %v2880, 16
        %v3636 = vrot.slane %v3634, 1
        %v3637 = vsel %vm1793, %v3632, %v3636
        %v3639 = vshrl.u32 %v1472, 16
        %v3641 = vshll.u32 %v1472, 16
        %v3643 = vrot.slane %v3641, 1
        %v3644 = vor.u32 %v3639, %v3643
        %v3646 = vshll.u32 %v2881, 16
        %v3648 = vrot.slane %v3646, 1
        %v3649 = vsel %vm1793, %v3644, %v3648
        %3650 = vrot.lane.b32.xlu0 %v2893, 9
        %v3651 = vpop.permute.xlu0 %3650
        %3652 = vrot.lane.b32.xlu0 %v2905, 9
        %v3653 = vpop.permute.xlu0 %3652
        %3654 = vrot.lane.b32.xlu0 %v2917, 9
        %v3655 = vpop.permute.xlu0 %3654
        %3656 = vrot.lane.b32.xlu0 %v2929, 9
        %v3657 = vpop.permute.xlu0 %3656
        %3658 = vrot.lane.b32.xlu0 %v2941, 9
        %v3659 = vpop.permute.xlu0 %3658
        %3660 = vrot.lane.b32.xlu0 %v2953, 9
        %v3661 = vpop.permute.xlu0 %3660
        %3662 = vrot.lane.b32.xlu0 %v2965, 9
        %v3663 = vpop.permute.xlu0 %3662
        %3664 = vrot.lane.b32.xlu0 %v2977, 9
        %v3665 = vpop.permute.xlu0 %3664
        %3666 = vrot.lane.b32.xlu0 %v2989, 9
        %v3667 = vpop.permute.xlu0 %3666
        %3668 = vrot.lane.b32.xlu0 %v3001, 9
        %v3669 = vpop.permute.xlu0 %3668
        %3670 = vrot.lane.b32.xlu0 %v3013, 9
        %v3671 = vpop.permute.xlu0 %3670
        %3672 = vrot.lane.b32.xlu0 %v3025, 9
        %v3673 = vpop.permute.xlu0 %3672
        %3674 = vrot.lane.b32.xlu0 %v3037, 9
        %v3675 = vpop.permute.xlu0 %3674
        %3676 = vrot.lane.b32.xlu0 %v3049, 9
        %v3677 = vpop.permute.xlu0 %3676
        %3678 = vrot.lane.b32.xlu0 %v3061, 9
        %v3679 = vpop.permute.xlu0 %3678
        %3680 = vrot.lane.b32.xlu0 %v3073, 9
        %v3681 = vpop.permute.xlu0 %3680
        %3682 = vrot.lane.b32.xlu0 %v3085, 9
        %v3683 = vpop.permute.xlu0 %3682
        %3684 = vrot.lane.b32.xlu0 %v3097, 9
        %v3685 = vpop.permute.xlu0 %3684
        %3686 = vrot.lane.b32.xlu0 %v3109, 9
        %v3687 = vpop.permute.xlu0 %3686
        %3688 = vrot.lane.b32.xlu0 %v3121, 9
        %v3689 = vpop.permute.xlu0 %3688
        %3690 = vrot.lane.b32.xlu0 %v3133, 9
        %v3691 = vpop.permute.xlu0 %3690
        %3692 = vrot.lane.b32.xlu0 %v3145, 9
        %v3693 = vpop.permute.xlu0 %3692
        %3694 = vrot.lane.b32.xlu0 %v3157, 9
        %v3695 = vpop.permute.xlu0 %3694
        %3696 = vrot.lane.b32.xlu0 %v3169, 9
        %v3697 = vpop.permute.xlu0 %3696
        %3698 = vrot.lane.b32.xlu0 %v3181, 9
        %v3699 = vpop.permute.xlu0 %3698
        %3700 = vrot.lane.b32.xlu0 %v3193, 9
        %v3701 = vpop.permute.xlu0 %3700
        %3702 = vrot.lane.b32.xlu0 %v3205, 9
        %v3703 = vpop.permute.xlu0 %3702
        %3704 = vrot.lane.b32.xlu0 %v3217, 9
        %v3705 = vpop.permute.xlu0 %3704
        %3706 = vrot.lane.b32.xlu0 %v3229, 9
        %v3707 = vpop.permute.xlu0 %3706
        %3708 = vrot.lane.b32.xlu0 %v3241, 9
        %v3709 = vpop.permute.xlu0 %3708
        %3710 = vrot.lane.b32.xlu0 %v3253, 9
        %v3711 = vpop.permute.xlu0 %3710
        %3712 = vrot.lane.b32.xlu0 %v3265, 9
        %v3713 = vpop.permute.xlu0 %3712
        %3714 = vrot.lane.b32.xlu0 %v3277, 9
        %v3715 = vpop.permute.xlu0 %3714
        %3716 = vrot.lane.b32.xlu0 %v3289, 9
        %v3717 = vpop.permute.xlu0 %3716
        %3718 = vrot.lane.b32.xlu0 %v3301, 9
        %v3719 = vpop.permute.xlu0 %3718
        %3720 = vrot.lane.b32.xlu0 %v3313, 9
        %v3721 = vpop.permute.xlu0 %3720
        %3722 = vrot.lane.b32.xlu0 %v3325, 9
        %v3723 = vpop.permute.xlu0 %3722
        %3724 = vrot.lane.b32.xlu0 %v3337, 9
        %v3725 = vpop.permute.xlu0 %3724
        %3726 = vrot.lane.b32.xlu0 %v3349, 9
        %v3727 = vpop.permute.xlu0 %3726
        %3728 = vrot.lane.b32.xlu0 %v3361, 9
        %v3729 = vpop.permute.xlu0 %3728
        %3730 = vrot.lane.b32.xlu0 %v3373, 9
        %v3731 = vpop.permute.xlu0 %3730
        %3732 = vrot.lane.b32.xlu0 %v3385, 9
        %v3733 = vpop.permute.xlu0 %3732
        %3734 = vrot.lane.b32.xlu0 %v3397, 9
        %v3735 = vpop.permute.xlu0 %3734
        %3736 = vrot.lane.b32.xlu0 %v3409, 9
        %v3737 = vpop.permute.xlu0 %3736
        %3738 = vrot.lane.b32.xlu0 %v3421, 9
        %v3739 = vpop.permute.xlu0 %3738
        %3740 = vrot.lane.b32.xlu0 %v3433, 9
        %v3741 = vpop.permute.xlu0 %3740
        %3742 = vrot.lane.b32.xlu0 %v3445, 9
        %v3743 = vpop.permute.xlu0 %3742
        %3744 = vrot.lane.b32.xlu0 %v3457, 9
        %v3745 = vpop.permute.xlu0 %3744
        %3746 = vrot.lane.b32.xlu0 %v3469, 9
        %v3747 = vpop.permute.xlu0 %3746
        %3748 = vrot.lane.b32.xlu0 %v3481, 9
        %v3749 = vpop.permute.xlu0 %3748
        %3750 = vrot.lane.b32.xlu0 %v3493, 9
        %v3751 = vpop.permute.xlu0 %3750
        %3752 = vrot.lane.b32.xlu0 %v3505, 9
        %v3753 = vpop.permute.xlu0 %3752
        %3754 = vrot.lane.b32.xlu0 %v3517, 9
        %v3755 = vpop.permute.xlu0 %3754
        %3756 = vrot.lane.b32.xlu0 %v3529, 9
        %v3757 = vpop.permute.xlu0 %3756
        %3758 = vrot.lane.b32.xlu0 %v3541, 9
        %v3759 = vpop.permute.xlu0 %3758
        %3760 = vrot.lane.b32.xlu0 %v3553, 9
        %v3761 = vpop.permute.xlu0 %3760
        %3762 = vrot.lane.b32.xlu0 %v3565, 9
        %v3763 = vpop.permute.xlu0 %3762
        %3764 = vrot.lane.b32.xlu0 %v3577, 9
        %v3765 = vpop.permute.xlu0 %3764
        %3766 = vrot.lane.b32.xlu0 %v3589, 9
        %v3767 = vpop.permute.xlu0 %3766
        %3768 = vrot.lane.b32.xlu0 %v3601, 9
        %v3769 = vpop.permute.xlu0 %3768
        %3770 = vrot.lane.b32.xlu0 %v3613, 9
        %v3771 = vpop.permute.xlu0 %3770
        %3772 = vrot.lane.b32.xlu0 %v3625, 9
        %v3773 = vpop.permute.xlu0 %3772
        %3774 = vrot.lane.b32.xlu0 %v3637, 9
        %v3775 = vpop.permute.xlu0 %3774
        %3776 = vrot.lane.b32.xlu0 %v3649, 9
        %v3777 = vpop.permute.xlu0 %3776
        %vm3778 = vcmask 1046528
        %v3779 = vrot.slane %v1089, 1
        %v3780 = vrot.slane %v1729, 1
        %v3781 = vsel %vm3778, %v3779, %v3780
        %v3782 = vrot.slane %v1090, 1
        %v3783 = vrot.slane %v1730, 1
        %v3784 = vsel %vm3778, %v3782, %v3783
        %v3785 = vrot.slane %v1091, 1
        %v3786 = vrot.slane %v1731, 1
        %v3787 = vsel %vm3778, %v3785, %v3786
        %v3788 = vrot.slane %v1092, 1
        %v3789 = vrot.slane %v1732, 1
        %v3790 = vsel %vm3778, %v3788, %v3789
        %v3791 = vrot.slane %v1093, 1
        %v3792 = vrot.slane %v1733, 1
        %v3793 = vsel %vm3778, %v3791, %v3792
        %v3794 = vrot.slane %v1094, 1
        %v3795 = vrot.slane %v1734, 1
        %v3796 = vsel %vm3778, %v3794, %v3795
        %v3797 = vrot.slane %v1095, 1
        %v3798 = vrot.slane %v1735, 1
        %v3799 = vsel %vm3778, %v3797, %v3798
        %v3800 = vrot.slane %v1096, 1
        %v3801 = vrot.slane %v1736, 1
        %v3802 = vsel %vm3778, %v3800, %v3801
        %v3803 = vrot.slane %v1097, 1
        %v3804 = vrot.slane %v1737, 1
        %v3805 = vsel %vm3778, %v3803, %v3804
        %v3806 = vrot.slane %v1098, 1
        %v3807 = vrot.slane %v1738, 1
        %v3808 = vsel %vm3778, %v3806, %v3807
        %v3809 = vrot.slane %v1099, 1
        %v3810 = vrot.slane %v1739, 1
        %v3811 = vsel %vm3778, %v3809, %v3810
        %v3812 = vrot.slane %v1100, 1
        %v3813 = vrot.slane %v1740, 1
        %v3814 = vsel %vm3778, %v3812, %v3813
        %v3815 = vrot.slane %v1101, 1
        %v3816 = vrot.slane %v1741, 1
        %v3817 = vsel %vm3778, %v3815, %v3816
        %v3818 = vrot.slane %v1102, 1
        %v3819 = vrot.slane %v1742, 1
        %v3820 = vsel %vm3778, %v3818, %v3819
        %v3821 = vrot.slane %v1103, 1
        %v3822 = vrot.slane %v1743, 1
        %v3823 = vsel %vm3778, %v3821, %v3822
        %v3824 = vrot.slane %v1104, 1
        %v3825 = vrot.slane %v1744, 1
        %v3826 = vsel %vm3778, %v3824, %v3825
        %v3827 = vrot.slane %v1105, 1
        %v3828 = vrot.slane %v1745, 1
        %v3829 = vsel %vm3778, %v3827, %v3828
        %v3830 = vrot.slane %v1106, 1
        %v3831 = vrot.slane %v1746, 1
        %v3832 = vsel %vm3778, %v3830, %v3831
        %v3833 = vrot.slane %v1107, 1
        %v3834 = vrot.slane %v1747, 1
        %v3835 = vsel %vm3778, %v3833, %v3834
        %v3836 = vrot.slane %v1108, 1
        %v3837 = vrot.slane %v1748, 1
        %v3838 = vsel %vm3778, %v3836, %v3837
        %v3839 = vrot.slane %v1109, 1
        %v3840 = vrot.slane %v1749, 1
        %v3841 = vsel %vm3778, %v3839, %v3840
        %v3842 = vrot.slane %v1110, 1
        %v3843 = vrot.slane %v1750, 1
        %v3844 = vsel %vm3778, %v3842, %v3843
        %v3845 = vrot.slane %v1111, 1
        %v3846 = vrot.slane %v1751, 1
        %v3847 = vsel %vm3778, %v3845, %v3846
        %v3848 = vrot.slane %v1112, 1
        %v3849 = vrot.slane %v1752, 1
        %v3850 = vsel %vm3778, %v3848, %v3849
        %v3851 = vrot.slane %v1113, 1
        %v3852 = vrot.slane %v1753, 1
        %v3853 = vsel %vm3778, %v3851, %v3852
        %v3854 = vrot.slane %v1114, 1
        %v3855 = vrot.slane %v1754, 1
        %v3856 = vsel %vm3778, %v3854, %v3855
        %v3857 = vrot.slane %v1115, 1
        %v3858 = vrot.slane %v1755, 1
        %v3859 = vsel %vm3778, %v3857, %v3858
        %v3860 = vrot.slane %v1116, 1
        %v3861 = vrot.slane %v1756, 1
        %v3862 = vsel %vm3778, %v3860, %v3861
        %v3863 = vrot.slane %v1117, 1
        %v3864 = vrot.slane %v1757, 1
        %v3865 = vsel %vm3778, %v3863, %v3864
        %v3866 = vrot.slane %v1118, 1
        %v3867 = vrot.slane %v1758, 1
        %v3868 = vsel %vm3778, %v3866, %v3867
        %v3869 = vrot.slane %v1119, 1
        %v3870 = vrot.slane %v1759, 1
        %v3871 = vsel %vm3778, %v3869, %v3870
        %v3872 = vrot.slane %v1120, 1
        %v3873 = vrot.slane %v1760, 1
        %v3874 = vsel %vm3778, %v3872, %v3873
        %v3875 = vrot.slane %v1121, 1
        %v3876 = vrot.slane %v1761, 1
        %v3877 = vsel %vm3778, %v3875, %v3876
        %v3878 = vrot.slane %v1122, 1
        %v3879 = vrot.slane %v1762, 1
        %v3880 = vsel %vm3778, %v3878, %v3879
        %v3881 = vrot.slane %v1123, 1
        %v3882 = vrot.slane %v1763, 1
        %v3883 = vsel %vm3778, %v3881, %v3882
        %v3884 = vrot.slane %v1124, 1
        %v3885 = vrot.slane %v1764, 1
        %v3886 = vsel %vm3778, %v3884, %v3885
        %v3887 = vrot.slane %v1125, 1
        %v3888 = vrot.slane %v1765, 1
        %v3889 = vsel %vm3778, %v3887, %v3888
        %v3890 = vrot.slane %v1126, 1
        %v3891 = vrot.slane %v1766, 1
        %v3892 = vsel %vm3778, %v3890, %v3891
        %v3893 = vrot.slane %v1127, 1
        %v3894 = vrot.slane %v1767, 1
        %v3895 = vsel %vm3778, %v3893, %v3894
        %v3896 = vrot.slane %v1128, 1
        %v3897 = vrot.slane %v1768, 1
        %v3898 = vsel %vm3778, %v3896, %v3897
        %v3899 = vrot.slane %v1129, 1
        %v3900 = vrot.slane %v1769, 1
        %v3901 = vsel %vm3778, %v3899, %v3900
        %v3902 = vrot.slane %v1130, 1
        %v3903 = vrot.slane %v1770, 1
        %v3904 = vsel %vm3778, %v3902, %v3903
        %v3905 = vrot.slane %v1131, 1
        %v3906 = vrot.slane %v1771, 1
        %v3907 = vsel %vm3778, %v3905, %v3906
        %v3908 = vrot.slane %v1132, 1
        %v3909 = vrot.slane %v1772, 1
        %v3910 = vsel %vm3778, %v3908, %v3909
        %v3911 = vrot.slane %v1133, 1
        %v3912 = vrot.slane %v1773, 1
        %v3913 = vsel %vm3778, %v3911, %v3912
        %v3914 = vrot.slane %v1134, 1
        %v3915 = vrot.slane %v1774, 1
        %v3916 = vsel %vm3778, %v3914, %v3915
        %v3917 = vrot.slane %v1135, 1
        %v3918 = vrot.slane %v1775, 1
        %v3919 = vsel %vm3778, %v3917, %v3918
        %v3920 = vrot.slane %v1136, 1
        %v3921 = vrot.slane %v1776, 1
        %v3922 = vsel %vm3778, %v3920, %v3921
        %v3923 = vrot.slane %v1137, 1
        %v3924 = vrot.slane %v1777, 1
        %v3925 = vsel %vm3778, %v3923, %v3924
        %v3926 = vrot.slane %v1138, 1
        %v3927 = vrot.slane %v1778, 1
        %v3928 = vsel %vm3778, %v3926, %v3927
        %v3929 = vrot.slane %v1139, 1
        %v3930 = vrot.slane %v1779, 1
        %v3931 = vsel %vm3778, %v3929, %v3930
        %v3932 = vrot.slane %v1140, 1
        %v3933 = vrot.slane %v1780, 1
        %v3934 = vsel %vm3778, %v3932, %v3933
        %v3935 = vrot.slane %v1141, 1
        %v3936 = vrot.slane %v1781, 1
        %v3937 = vsel %vm3778, %v3935, %v3936
        %v3938 = vrot.slane %v1142, 1
        %v3939 = vrot.slane %v1782, 1
        %v3940 = vsel %vm3778, %v3938, %v3939
        %v3941 = vrot.slane %v1143, 1
        %v3942 = vrot.slane %v1783, 1
        %v3943 = vsel %vm3778, %v3941, %v3942
        %v3944 = vrot.slane %v1144, 1
        %v3945 = vrot.slane %v1784, 1
        %v3946 = vsel %vm3778, %v3944, %v3945
        %v3947 = vrot.slane %v1145, 1
        %v3948 = vrot.slane %v1785, 1
        %v3949 = vsel %vm3778, %v3947, %v3948
        %v3950 = vrot.slane %v1146, 1
        %v3951 = vrot.slane %v1786, 1
        %v3952 = vsel %vm3778, %v3950, %v3951
        %v3953 = vrot.slane %v1147, 1
        %v3954 = vrot.slane %v1787, 1
        %v3955 = vsel %vm3778, %v3953, %v3954
        %v3956 = vrot.slane %v1148, 1
        %v3957 = vrot.slane %v1788, 1
        %v3958 = vsel %vm3778, %v3956, %v3957
        %v3959 = vrot.slane %v1149, 1
        %v3960 = vrot.slane %v1789, 1
        %v3961 = vsel %vm3778, %v3959, %v3960
        %v3962 = vrot.slane %v1150, 1
        %v3963 = vrot.slane %v1790, 1
        %v3964 = vsel %vm3778, %v3962, %v3963
        %v3965 = vrot.slane %v1151, 1
        %v3966 = vrot.slane %v1791, 1
        %v3967 = vsel %vm3778, %v3965, %v3966
        %v3968 = vrot.slane %v1152, 1
        %v3969 = vrot.slane %v1792, 1
        %v3970 = vsel %vm3778, %v3968, %v3969
        %3971 = vrot.lane.b32.xlu0 %v3781, 12
        %v3972 = vpop.permute.xlu0 %3971
        %3973 = vrot.lane.b32.xlu0 %v3784, 12
        %v3974 = vpop.permute.xlu0 %3973
        %3975 = vrot.lane.b32.xlu0 %v3787, 12
        %v3976 = vpop.permute.xlu0 %3975
        %3977 = vrot.lane.b32.xlu0 %v3790, 12
        %v3978 = vpop.permute.xlu0 %3977
        %3979 = vrot.lane.b32.xlu0 %v3793, 12
        %v3980 = vpop.permute.xlu0 %3979
        %3981 = vrot.lane.b32.xlu0 %v3796, 12
        %v3982 = vpop.permute.xlu0 %3981
        %3983 = vrot.lane.b32.xlu0 %v3799, 12
        %v3984 = vpop.permute.xlu0 %3983
        %3985 = vrot.lane.b32.xlu0 %v3802, 12
        %v3986 = vpop.permute.xlu0 %3985
        %3987 = vrot.lane.b32.xlu0 %v3805, 12
        %v3988 = vpop.permute.xlu0 %3987
        %3989 = vrot.lane.b32.xlu0 %v3808, 12
        %v3990 = vpop.permute.xlu0 %3989
        %3991 = vrot.lane.b32.xlu0 %v3811, 12
        %v3992 = vpop.permute.xlu0 %3991
        %3993 = vrot.lane.b32.xlu0 %v3814, 12
        %v3994 = vpop.permute.xlu0 %3993
        %3995 = vrot.lane.b32.xlu0 %v3817, 12
        %v3996 = vpop.permute.xlu0 %3995
        %3997 = vrot.lane.b32.xlu0 %v3820, 12
        %v3998 = vpop.permute.xlu0 %3997
        %3999 = vrot.lane.b32.xlu0 %v3823, 12
        %v4000 = vpop.permute.xlu0 %3999
        %4001 = vrot.lane.b32.xlu0 %v3826, 12
        %v4002 = vpop.permute.xlu0 %4001
        %4003 = vrot.lane.b32.xlu0 %v3829, 12
        %v4004 = vpop.permute.xlu0 %4003
        %4005 = vrot.lane.b32.xlu0 %v3832, 12
        %v4006 = vpop.permute.xlu0 %4005
        %4007 = vrot.lane.b32.xlu0 %v3835, 12
        %v4008 = vpop.permute.xlu0 %4007
        %4009 = vrot.lane.b32.xlu0 %v3838, 12
        %v4010 = vpop.permute.xlu0 %4009
        %4011 = vrot.lane.b32.xlu0 %v3841, 12
        %v4012 = vpop.permute.xlu0 %4011
        %4013 = vrot.lane.b32.xlu0 %v3844, 12
        %v4014 = vpop.permute.xlu0 %4013
        %4015 = vrot.lane.b32.xlu0 %v3847, 12
        %v4016 = vpop.permute.xlu0 %4015
        %4017 = vrot.lane.b32.xlu0 %v3850, 12
        %v4018 = vpop.permute.xlu0 %4017
        %4019 = vrot.lane.b32.xlu0 %v3853, 12
        %v4020 = vpop.permute.xlu0 %4019
        %4021 = vrot.lane.b32.xlu0 %v3856, 12
        %v4022 = vpop.permute.xlu0 %4021
        %4023 = vrot.lane.b32.xlu0 %v3859, 12
        %v4024 = vpop.permute.xlu0 %4023
        %4025 = vrot.lane.b32.xlu0 %v3862, 12
        %v4026 = vpop.permute.xlu0 %4025
        %4027 = vrot.lane.b32.xlu0 %v3865, 12
        %v4028 = vpop.permute.xlu0 %4027
        %4029 = vrot.lane.b32.xlu0 %v3868, 12
        %v4030 = vpop.permute.xlu0 %4029
        %4031 = vrot.lane.b32.xlu0 %v3871, 12
        %v4032 = vpop.permute.xlu0 %4031
        %4033 = vrot.lane.b32.xlu0 %v3874, 12
        %v4034 = vpop.permute.xlu0 %4033
        %4035 = vrot.lane.b32.xlu0 %v3877, 12
        %v4036 = vpop.permute.xlu0 %4035
        %4037 = vrot.lane.b32.xlu0 %v3880, 12
        %v4038 = vpop.permute.xlu0 %4037
        %4039 = vrot.lane.b32.xlu0 %v3883, 12
        %v4040 = vpop.permute.xlu0 %4039
        %4041 = vrot.lane.b32.xlu0 %v3886, 12
        %v4042 = vpop.permute.xlu0 %4041
        %4043 = vrot.lane.b32.xlu0 %v3889, 12
        %v4044 = vpop.permute.xlu0 %4043
        %4045 = vrot.lane.b32.xlu0 %v3892, 12
        %v4046 = vpop.permute.xlu0 %4045
        %4047 = vrot.lane.b32.xlu0 %v3895, 12
        %v4048 = vpop.permute.xlu0 %4047
        %4049 = vrot.lane.b32.xlu0 %v3898, 12
        %v4050 = vpop.permute.xlu0 %4049
        %4051 = vrot.lane.b32.xlu0 %v3901, 12
        %v4052 = vpop.permute.xlu0 %4051
        %4053 = vrot.lane.b32.xlu0 %v3904, 12
        %v4054 = vpop.permute.xlu0 %4053
        %4055 = vrot.lane.b32.xlu0 %v3907, 12
        %v4056 = vpop.permute.xlu0 %4055
        %4057 = vrot.lane.b32.xlu0 %v3910, 12
        %v4058 = vpop.permute.xlu0 %4057
        %4059 = vrot.lane.b32.xlu0 %v3913, 12
        %v4060 = vpop.permute.xlu0 %4059
        %4061 = vrot.lane.b32.xlu0 %v3916, 12
        %v4062 = vpop.permute.xlu0 %4061
        %4063 = vrot.lane.b32.xlu0 %v3919, 12
        %v4064 = vpop.permute.xlu0 %4063
        %4065 = vrot.lane.b32.xlu0 %v3922, 12
        %v4066 = vpop.permute.xlu0 %4065
        %4067 = vrot.lane.b32.xlu0 %v3925, 12
        %v4068 = vpop.permute.xlu0 %4067
        %4069 = vrot.lane.b32.xlu0 %v3928, 12
        %v4070 = vpop.permute.xlu0 %4069
        %4071 = vrot.lane.b32.xlu0 %v3931, 12
        %v4072 = vpop.permute.xlu0 %4071
        %4073 = vrot.lane.b32.xlu0 %v3934, 12
        %v4074 = vpop.permute.xlu0 %4073
        %4075 = vrot.lane.b32.xlu0 %v3937, 12
        %v4076 = vpop.permute.xlu0 %4075
        %4077 = vrot.lane.b32.xlu0 %v3940, 12
        %v4078 = vpop.permute.xlu0 %4077
        %4079 = vrot.lane.b32.xlu0 %v3943, 12
        %v4080 = vpop.permute.xlu0 %4079
        %4081 = vrot.lane.b32.xlu0 %v3946, 12
        %v4082 = vpop.permute.xlu0 %4081
        %4083 = vrot.lane.b32.xlu0 %v3949, 12
        %v4084 = vpop.permute.xlu0 %4083
        %4085 = vrot.lane.b32.xlu0 %v3952, 12
        %v4086 = vpop.permute.xlu0 %4085
        %4087 = vrot.lane.b32.xlu0 %v3955, 12
        %v4088 = vpop.permute.xlu0 %4087
        %4089 = vrot.lane.b32.xlu0 %v3958, 12
        %v4090 = vpop.permute.xlu0 %4089
        %4091 = vrot.lane.b32.xlu0 %v3961, 12
        %v4092 = vpop.permute.xlu0 %4091
        %4093 = vrot.lane.b32.xlu0 %v3964, 12
        %v4094 = vpop.permute.xlu0 %4093
        %4095 = vrot.lane.b32.xlu0 %v3967, 12
        %v4096 = vpop.permute.xlu0 %4095
        %4097 = vrot.lane.b32.xlu0 %v3970, 12
        %v4098 = vpop.permute.xlu0 %4097
        %v4099 = vrot.slane %v1409, 1
        %v4100 = vrot.slane %v2818, 1
        %v4101 = vsel %vm3778, %v4099, %v4100
        %v4102 = vrot.slane %v1410, 1
        %v4103 = vrot.slane %v2819, 1
        %v4104 = vsel %vm3778, %v4102, %v4103
        %v4105 = vrot.slane %v1411, 1
        %v4106 = vrot.slane %v2820, 1
        %v4107 = vsel %vm3778, %v4105, %v4106
        %v4108 = vrot.slane %v1412, 1
        %v4109 = vrot.slane %v2821, 1
        %v4110 = vsel %vm3778, %v4108, %v4109
        %v4111 = vrot.slane %v1413, 1
        %v4112 = vrot.slane %v2822, 1
        %v4113 = vsel %vm3778, %v4111, %v4112
        %v4114 = vrot.slane %v1414, 1
        %v4115 = vrot.slane %v2823, 1
        %v4116 = vsel %vm3778, %v4114, %v4115
        %v4117 = vrot.slane %v1415, 1
        %v4118 = vrot.slane %v2824, 1
        %v4119 = vsel %vm3778, %v4117, %v4118
        %v4120 = vrot.slane %v1416, 1
        %v4121 = vrot.slane %v2825, 1
        %v4122 = vsel %vm3778, %v4120, %v4121
        %v4123 = vrot.slane %v1417, 1
        %v4124 = vrot.slane %v2826, 1
        %v4125 = vsel %vm3778, %v4123, %v4124
        %v4126 = vrot.slane %v1418, 1
        %v4127 = vrot.slane %v2827, 1
        %v4128 = vsel %vm3778, %v4126, %v4127
        %v4129 = vrot.slane %v1419, 1
        %v4130 = vrot.slane %v2828, 1
        %v4131 = vsel %vm3778, %v4129, %v4130
        %v4132 = vrot.slane %v1420, 1
        %v4133 = vrot.slane %v2829, 1
        %v4134 = vsel %vm3778, %v4132, %v4133
        %v4135 = vrot.slane %v1421, 1
        %v4136 = vrot.slane %v2830, 1
        %v4137 = vsel %vm3778, %v4135, %v4136
        %v4138 = vrot.slane %v1422, 1
        %v4139 = vrot.slane %v2831, 1
        %v4140 = vsel %vm3778, %v4138, %v4139
        %v4141 = vrot.slane %v1423, 1
        %v4142 = vrot.slane %v2832, 1
        %v4143 = vsel %vm3778, %v4141, %v4142
        %v4144 = vrot.slane %v1424, 1
        %v4145 = vrot.slane %v2833, 1
        %v4146 = vsel %vm3778, %v4144, %v4145
        %v4147 = vrot.slane %v1425, 1
        %v4148 = vrot.slane %v2834, 1
        %v4149 = vsel %vm3778, %v4147, %v4148
        %v4150 = vrot.slane %v1426, 1
        %v4151 = vrot.slane %v2835, 1
        %v4152 = vsel %vm3778, %v4150, %v4151
        %v4153 = vrot.slane %v1427, 1
        %v4154 = vrot.slane %v2836, 1
        %v4155 = vsel %vm3778, %v4153, %v4154
        %v4156 = vrot.slane %v1428, 1
        %v4157 = vrot.slane %v2837, 1
        %v4158 = vsel %vm3778, %v4156, %v4157
        %v4159 = vrot.slane %v1429, 1
        %v4160 = vrot.slane %v2838, 1
        %v4161 = vsel %vm3778, %v4159, %v4160
        %v4162 = vrot.slane %v1430, 1
        %v4163 = vrot.slane %v2839, 1
        %v4164 = vsel %vm3778, %v4162, %v4163
        %v4165 = vrot.slane %v1431, 1
        %v4166 = vrot.slane %v2840, 1
        %v4167 = vsel %vm3778, %v4165, %v4166
        %v4168 = vrot.slane %v1432, 1
        %v4169 = vrot.slane %v2841, 1
        %v4170 = vsel %vm3778, %v4168, %v4169
        %v4171 = vrot.slane %v1433, 1
        %v4172 = vrot.slane %v2842, 1
        %v4173 = vsel %vm3778, %v4171, %v4172
        %v4174 = vrot.slane %v1434, 1
        %v4175 = vrot.slane %v2843, 1
        %v4176 = vsel %vm3778, %v4174, %v4175
        %v4177 = vrot.slane %v1435, 1
        %v4178 = vrot.slane %v2844, 1
        %v4179 = vsel %vm3778, %v4177, %v4178
        %v4180 = vrot.slane %v1436, 1
        %v4181 = vrot.slane %v2845, 1
        %v4182 = vsel %vm3778, %v4180, %v4181
        %v4183 = vrot.slane %v1437, 1
        %v4184 = vrot.slane %v2846, 1
        %v4185 = vsel %vm3778, %v4183, %v4184
        %v4186 = vrot.slane %v1438, 1
        %v4187 = vrot.slane %v2847, 1
        %v4188 = vsel %vm3778, %v4186, %v4187
        %v4189 = vrot.slane %v1439, 1
        %v4190 = vrot.slane %v2848, 1
        %v4191 = vsel %vm3778, %v4189, %v4190
        %v4192 = vrot.slane %v1440, 1
        %v4193 = vrot.slane %v2849, 1
        %v4194 = vsel %vm3778, %v4192, %v4193
        %v4195 = vrot.slane %v1441, 1
        %v4196 = vrot.slane %v2850, 1
        %v4197 = vsel %vm3778, %v4195, %v4196
        %v4198 = vrot.slane %v1442, 1
        %v4199 = vrot.slane %v2851, 1
        %v4200 = vsel %vm3778, %v4198, %v4199
        %v4201 = vrot.slane %v1443, 1
        %v4202 = vrot.slane %v2852, 1
        %v4203 = vsel %vm3778, %v4201, %v4202
        %v4204 = vrot.slane %v1444, 1
        %v4205 = vrot.slane %v2853, 1
        %v4206 = vsel %vm3778, %v4204, %v4205
        %v4207 = vrot.slane %v1445, 1
        %v4208 = vrot.slane %v2854, 1
        %v4209 = vsel %vm3778, %v4207, %v4208
        %v4210 = vrot.slane %v1446, 1
        %v4211 = vrot.slane %v2855, 1
        %v4212 = vsel %vm3778, %v4210, %v4211
        %v4213 = vrot.slane %v1447, 1
        %v4214 = vrot.slane %v2856, 1
        %v4215 = vsel %vm3778, %v4213, %v4214
        %v4216 = vrot.slane %v1448, 1
        %v4217 = vrot.slane %v2857, 1
        %v4218 = vsel %vm3778, %v4216, %v4217
        %v4219 = vrot.slane %v1449, 1
        %v4220 = vrot.slane %v2858, 1
        %v4221 = vsel %vm3778, %v4219, %v4220
        %v4222 = vrot.slane %v1450, 1
        %v4223 = vrot.slane %v2859, 1
        %v4224 = vsel %vm3778, %v4222, %v4223
        %v4225 = vrot.slane %v1451, 1
        %v4226 = vrot.slane %v2860, 1
        %v4227 = vsel %vm3778, %v4225, %v4226
        %v4228 = vrot.slane %v1452, 1
        %v4229 = vrot.slane %v2861, 1
        %v4230 = vsel %vm3778, %v4228, %v4229
        %v4231 = vrot.slane %v1453, 1
        %v4232 = vrot.slane %v2862, 1
        %v4233 = vsel %vm3778, %v4231, %v4232
        %v4234 = vrot.slane %v1454, 1
        %v4235 = vrot.slane %v2863, 1
        %v4236 = vsel %vm3778, %v4234, %v4235
        %v4237 = vrot.slane %v1455, 1
        %v4238 = vrot.slane %v2864, 1
        %v4239 = vsel %vm3778, %v4237, %v4238
        %v4240 = vrot.slane %v1456, 1
        %v4241 = vrot.slane %v2865, 1
        %v4242 = vsel %vm3778, %v4240, %v4241
        %v4243 = vrot.slane %v1457, 1
        %v4244 = vrot.slane %v2866, 1
        %v4245 = vsel %vm3778, %v4243, %v4244
        %v4246 = vrot.slane %v1458, 1
        %v4247 = vrot.slane %v2867, 1
        %v4248 = vsel %vm3778, %v4246, %v4247
        %v4249 = vrot.slane %v1459, 1
        %v4250 = vrot.slane %v2868, 1
        %v4251 = vsel %vm3778, %v4249, %v4250
        %v4252 = vrot.slane %v1460, 1
        %v4253 = vrot.slane %v2869, 1
        %v4254 = vsel %vm3778, %v4252, %v4253
        %v4255 = vrot.slane %v1461, 1
        %v4256 = vrot.slane %v2870, 1
        %v4257 = vsel %vm3778, %v4255, %v4256
        %v4258 = vrot.slane %v1462, 1
        %v4259 = vrot.slane %v2871, 1
        %v4260 = vsel %vm3778, %v4258, %v4259
        %v4261 = vrot.slane %v1463, 1
        %v4262 = vrot.slane %v2872, 1
        %v4263 = vsel %vm3778, %v4261, %v4262
        %v4264 = vrot.slane %v1464, 1
        %v4265 = vrot.slane %v2873, 1
        %v4266 = vsel %vm3778, %v4264, %v4265
        %v4267 = vrot.slane %v1465, 1
        %v4268 = vrot.slane %v2874, 1
        %v4269 = vsel %vm3778, %v4267, %v4268
        %v4270 = vrot.slane %v1466, 1
        %v4271 = vrot.slane %v2875, 1
        %v4272 = vsel %vm3778, %v4270, %v4271
        %v4273 = vrot.slane %v1467, 1
        %v4274 = vrot.slane %v2876, 1
        %v4275 = vsel %vm3778, %v4273, %v4274
        %v4276 = vrot.slane %v1468, 1
        %v4277 = vrot.slane %v2877, 1
        %v4278 = vsel %vm3778, %v4276, %v4277
        %v4279 = vrot.slane %v1469, 1
        %v4280 = vrot.slane %v2878, 1
        %v4281 = vsel %vm3778, %v4279, %v4280
        %v4282 = vrot.slane %v1470, 1
        %v4283 = vrot.slane %v2879, 1
        %v4284 = vsel %vm3778, %v4282, %v4283
        %v4285 = vrot.slane %v1471, 1
        %v4286 = vrot.slane %v2880, 1
        %v4287 = vsel %vm3778, %v4285, %v4286
        %v4288 = vrot.slane %v1472, 1
        %v4289 = vrot.slane %v2881, 1
        %v4290 = vsel %vm3778, %v4288, %v4289
        %4291 = vrot.lane.b32.xlu0 %v4101, 15
        %v4292 = vpop.permute.xlu0 %4291
        %4293 = vrot.lane.b32.xlu0 %v4104, 15
        %v4294 = vpop.permute.xlu0 %4293
        %4295 = vrot.lane.b32.xlu0 %v4107, 15
        %v4296 = vpop.permute.xlu0 %4295
        %4297 = vrot.lane.b32.xlu0 %v4110, 15
        %v4298 = vpop.permute.xlu0 %4297
        %4299 = vrot.lane.b32.xlu0 %v4113, 15
        %v4300 = vpop.permute.xlu0 %4299
        %4301 = vrot.lane.b32.xlu0 %v4116, 15
        %v4302 = vpop.permute.xlu0 %4301
        %4303 = vrot.lane.b32.xlu0 %v4119, 15
        %v4304 = vpop.permute.xlu0 %4303
        %4305 = vrot.lane.b32.xlu0 %v4122, 15
        %v4306 = vpop.permute.xlu0 %4305
        %4307 = vrot.lane.b32.xlu0 %v4125, 15
        %v4308 = vpop.permute.xlu0 %4307
        %4309 = vrot.lane.b32.xlu0 %v4128, 15
        %v4310 = vpop.permute.xlu0 %4309
        %4311 = vrot.lane.b32.xlu0 %v4131, 15
        %v4312 = vpop.permute.xlu0 %4311
        %4313 = vrot.lane.b32.xlu0 %v4134, 15
        %v4314 = vpop.permute.xlu0 %4313
        %4315 = vrot.lane.b32.xlu0 %v4137, 15
        %v4316 = vpop.permute.xlu0 %4315
        %4317 = vrot.lane.b32.xlu0 %v4140, 15
        %v4318 = vpop.permute.xlu0 %4317
        %4319 = vrot.lane.b32.xlu0 %v4143, 15
        %v4320 = vpop.permute.xlu0 %4319
        %4321 = vrot.lane.b32.xlu0 %v4146, 15
        %v4322 = vpop.permute.xlu0 %4321
        %4323 = vrot.lane.b32.xlu0 %v4149, 15
        %v4324 = vpop.permute.xlu0 %4323
        %4325 = vrot.lane.b32.xlu0 %v4152, 15
        %v4326 = vpop.permute.xlu0 %4325
        %4327 = vrot.lane.b32.xlu0 %v4155, 15
        %v4328 = vpop.permute.xlu0 %4327
        %4329 = vrot.lane.b32.xlu0 %v4158, 15
        %v4330 = vpop.permute.xlu0 %4329
        %4331 = vrot.lane.b32.xlu0 %v4161, 15
        %v4332 = vpop.permute.xlu0 %4331
        %4333 = vrot.lane.b32.xlu0 %v4164, 15
        %v4334 = vpop.permute.xlu0 %4333
        %4335 = vrot.lane.b32.xlu0 %v4167, 15
        %v4336 = vpop.permute.xlu0 %4335
        %4337 = vrot.lane.b32.xlu0 %v4170, 15
        %v4338 = vpop.permute.xlu0 %4337
        %4339 = vrot.lane.b32.xlu0 %v4173, 15
        %v4340 = vpop.permute.xlu0 %4339
        %4341 = vrot.lane.b32.xlu0 %v4176, 15
        %v4342 = vpop.permute.xlu0 %4341
        %4343 = vrot.lane.b32.xlu0 %v4179, 15
        %v4344 = vpop.permute.xlu0 %4343
        %4345 = vrot.lane.b32.xlu0 %v4182, 15
        %v4346 = vpop.permute.xlu0 %4345
        %4347 = vrot.lane.b32.xlu0 %v4185, 15
        %v4348 = vpop.permute.xlu0 %4347
        %4349 = vrot.lane.b32.xlu0 %v4188, 15
        %v4350 = vpop.permute.xlu0 %4349
        %4351 = vrot.lane.b32.xlu0 %v4191, 15
        %v4352 = vpop.permute.xlu0 %4351
        %4353 = vrot.lane.b32.xlu0 %v4194, 15
        %v4354 = vpop.permute.xlu0 %4353
        %4355 = vrot.lane.b32.xlu0 %v4197, 15
        %v4356 = vpop.permute.xlu0 %4355
        %4357 = vrot.lane.b32.xlu0 %v4200, 15
        %v4358 = vpop.permute.xlu0 %4357
        %4359 = vrot.lane.b32.xlu0 %v4203, 15
        %v4360 = vpop.permute.xlu0 %4359
        %4361 = vrot.lane.b32.xlu0 %v4206, 15
        %v4362 = vpop.permute.xlu0 %4361
        %4363 = vrot.lane.b32.xlu0 %v4209, 15
        %v4364 = vpop.permute.xlu0 %4363
        %4365 = vrot.lane.b32.xlu0 %v4212, 15
        %v4366 = vpop.permute.xlu0 %4365
        %4367 = vrot.lane.b32.xlu0 %v4215, 15
        %v4368 = vpop.permute.xlu0 %4367
        %4369 = vrot.lane.b32.xlu0 %v4218, 15
        %v4370 = vpop.permute.xlu0 %4369
        %4371 = vrot.lane.b32.xlu0 %v4221, 15
        %v4372 = vpop.permute.xlu0 %4371
        %4373 = vrot.lane.b32.xlu0 %v4224, 15
        %v4374 = vpop.permute.xlu0 %4373
        %4375 = vrot.lane.b32.xlu0 %v4227, 15
        %v4376 = vpop.permute.xlu0 %4375
        %4377 = vrot.lane.b32.xlu0 %v4230, 15
        %v4378 = vpop.permute.xlu0 %4377
        %4379 = vrot.lane.b32.xlu0 %v4233, 15
        %v4380 = vpop.permute.xlu0 %4379
        %4381 = vrot.lane.b32.xlu0 %v4236, 15
        %v4382 = vpop.permute.xlu0 %4381
        %4383 = vrot.lane.b32.xlu0 %v4239, 15
        %v4384 = vpop.permute.xlu0 %4383
        %4385 = vrot.lane.b32.xlu0 %v4242, 15
        %v4386 = vpop.permute.xlu0 %4385
        %4387 = vrot.lane.b32.xlu0 %v4245, 15
        %v4388 = vpop.permute.xlu0 %4387
        %4389 = vrot.lane.b32.xlu0 %v4248, 15
        %v4390 = vpop.permute.xlu0 %4389
        %4391 = vrot.lane.b32.xlu0 %v4251, 15
        %v4392 = vpop.permute.xlu0 %4391
        %4393 = vrot.lane.b32.xlu0 %v4254, 15
        %v4394 = vpop.permute.xlu0 %4393
        %4395 = vrot.lane.b32.xlu0 %v4257, 15
        %v4396 = vpop.permute.xlu0 %4395
        %4397 = vrot.lane.b32.xlu0 %v4260, 15
        %v4398 = vpop.permute.xlu0 %4397
        %4399 = vrot.lane.b32.xlu0 %v4263, 15
        %v4400 = vpop.permute.xlu0 %4399
        %4401 = vrot.lane.b32.xlu0 %v4266, 15
        %v4402 = vpop.permute.xlu0 %4401
        %4403 = vrot.lane.b32.xlu0 %v4269, 15
        %v4404 = vpop.permute.xlu0 %4403
        %4405 = vrot.lane.b32.xlu0 %v4272, 15
        %v4406 = vpop.permute.xlu0 %4405
        %4407 = vrot.lane.b32.xlu0 %v4275, 15
        %v4408 = vpop.permute.xlu0 %4407
        %4409 = vrot.lane.b32.xlu0 %v4278, 15
        %v4410 = vpop.permute.xlu0 %4409
        %4411 = vrot.lane.b32.xlu0 %v4281, 15
        %v4412 = vpop.permute.xlu0 %4411
        %4413 = vrot.lane.b32.xlu0 %v4284, 15
        %v4414 = vpop.permute.xlu0 %4413
        %4415 = vrot.lane.b32.xlu0 %v4287, 15
        %v4416 = vpop.permute.xlu0 %4415
        %4417 = vrot.lane.b32.xlu0 %v4290, 15
        %v4418 = vpop.permute.xlu0 %4417
        %v4427 = vunpack.c.l.b16 %v395
        %v4428 = vunpack.c.l.b16 %v396
        %v4429 = vunpack.c.l.b16 %v449
        %v4430 = vunpack.c.l.b16 %v450
        %v4431 = vunpack.c.l.b16 %v503
        %v4432 = vunpack.c.l.b16 %v504
        %v4433 = vunpack.c.l.b16 %v557
        %v4434 = vunpack.c.l.b16 %v558
        %v4435 = vpack.c.b16 %v4428, %v4427
        %v4436 = vpack.c.b16 %v4430, %v4429
        %v4437 = vpack.c.b16 %v4432, %v4431
        %v4438 = vpack.c.b16 %v4434, %v4433
        %4439 = vrot.lane.b32.xlu0 %v1090, 18
        %v4440 = vpop.permute.xlu0 %4439
        %4441 = vrot.lane.b32.xlu0 %v1091, 18
        %v4442 = vpop.permute.xlu0 %4441
        %4443 = vrot.lane.b32.xlu0 %v1092, 18
        %v4444 = vpop.permute.xlu0 %4443
        %4445 = vrot.lane.b32.xlu0 %v1093, 18
        %v4446 = vpop.permute.xlu0 %4445
        %4447 = vrot.lane.b32.xlu0 %v1094, 18
        %v4448 = vpop.permute.xlu0 %4447
        %4449 = vrot.lane.b32.xlu0 %v1095, 18
        %v4450 = vpop.permute.xlu0 %4449
        %4451 = vrot.lane.b32.xlu0 %v1096, 18
        %v4452 = vpop.permute.xlu0 %4451
        %4453 = vrot.lane.b32.xlu0 %v1097, 18
        %v4454 = vpop.permute.xlu0 %4453
        %4455 = vrot.lane.b32.xlu0 %v1098, 18
        %v4456 = vpop.permute.xlu0 %4455
        %4457 = vrot.lane.b32.xlu0 %v1099, 18
        %v4458 = vpop.permute.xlu0 %4457
        %4459 = vrot.lane.b32.xlu0 %v1100, 18
        %v4460 = vpop.permute.xlu0 %4459
        %4461 = vrot.lane.b32.xlu0 %v1101, 18
        %v4462 = vpop.permute.xlu0 %4461
        %4463 = vrot.lane.b32.xlu0 %v1102, 18
        %v4464 = vpop.permute.xlu0 %4463
        %4465 = vrot.lane.b32.xlu0 %v1103, 18
        %v4466 = vpop.permute.xlu0 %4465
        %4467 = vrot.lane.b32.xlu0 %v1104, 18
        %v4468 = vpop.permute.xlu0 %4467
        %4469 = vrot.lane.b32.xlu0 %v4435, 18
        %v4470 = vpop.permute.xlu0 %4469
        %4471 = vrot.lane.b32.xlu0 %v1106, 18
        %v4472 = vpop.permute.xlu0 %4471
        %4473 = vrot.lane.b32.xlu0 %v1107, 18
        %v4474 = vpop.permute.xlu0 %4473
        %4475 = vrot.lane.b32.xlu0 %v1108, 18
        %v4476 = vpop.permute.xlu0 %4475
        %4477 = vrot.lane.b32.xlu0 %v1109, 18
        %v4478 = vpop.permute.xlu0 %4477
        %4479 = vrot.lane.b32.xlu0 %v1110, 18
        %v4480 = vpop.permute.xlu0 %4479
        %4481 = vrot.lane.b32.xlu0 %v1111, 18
        %v4482 = vpop.permute.xlu0 %4481
        %4483 = vrot.lane.b32.xlu0 %v1112, 18
        %v4484 = vpop.permute.xlu0 %4483
        %4485 = vrot.lane.b32.xlu0 %v1113, 18
        %v4486 = vpop.permute.xlu0 %4485
        %4487 = vrot.lane.b32.xlu0 %v1114, 18
        %v4488 = vpop.permute.xlu0 %4487
        %4489 = vrot.lane.b32.xlu0 %v1115, 18
        %v4490 = vpop.permute.xlu0 %4489
        %4491 = vrot.lane.b32.xlu0 %v1116, 18
        %v4492 = vpop.permute.xlu0 %4491
        %4493 = vrot.lane.b32.xlu0 %v1117, 18
        %v4494 = vpop.permute.xlu0 %4493
        %4495 = vrot.lane.b32.xlu0 %v1118, 18
        %v4496 = vpop.permute.xlu0 %4495
        %4497 = vrot.lane.b32.xlu0 %v1119, 18
        %v4498 = vpop.permute.xlu0 %4497
        %4499 = vrot.lane.b32.xlu0 %v1120, 18
        %v4500 = vpop.permute.xlu0 %4499
        %4501 = vrot.lane.b32.xlu0 %v4436, 18
        %v4502 = vpop.permute.xlu0 %4501
        %4503 = vrot.lane.b32.xlu0 %v1122, 18
        %v4504 = vpop.permute.xlu0 %4503
        %4505 = vrot.lane.b32.xlu0 %v1123, 18
        %v4506 = vpop.permute.xlu0 %4505
        %4507 = vrot.lane.b32.xlu0 %v1124, 18
        %v4508 = vpop.permute.xlu0 %4507
        %4509 = vrot.lane.b32.xlu0 %v1125, 18
        %v4510 = vpop.permute.xlu0 %4509
        %4511 = vrot.lane.b32.xlu0 %v1126, 18
        %v4512 = vpop.permute.xlu0 %4511
        %4513 = vrot.lane.b32.xlu0 %v1127, 18
        %v4514 = vpop.permute.xlu0 %4513
        %4515 = vrot.lane.b32.xlu0 %v1128, 18
        %v4516 = vpop.permute.xlu0 %4515
        %4517 = vrot.lane.b32.xlu0 %v1129, 18
        %v4518 = vpop.permute.xlu0 %4517
        %4519 = vrot.lane.b32.xlu0 %v1130, 18
        %v4520 = vpop.permute.xlu0 %4519
        %4521 = vrot.lane.b32.xlu0 %v1131, 18
        %v4522 = vpop.permute.xlu0 %4521
        %4523 = vrot.lane.b32.xlu0 %v1132, 18
        %v4524 = vpop.permute.xlu0 %4523
        %4525 = vrot.lane.b32.xlu0 %v1133, 18
        %v4526 = vpop.permute.xlu0 %4525
        %4527 = vrot.lane.b32.xlu0 %v1134, 18
        %v4528 = vpop.permute.xlu0 %4527
        %4529 = vrot.lane.b32.xlu0 %v1135, 18
        %v4530 = vpop.permute.xlu0 %4529
        %4531 = vrot.lane.b32.xlu0 %v1136, 18
        %v4532 = vpop.permute.xlu0 %4531
        %4533 = vrot.lane.b32.xlu0 %v4437, 18
        %v4534 = vpop.permute.xlu0 %4533
        %4535 = vrot.lane.b32.xlu0 %v1138, 18
        %v4536 = vpop.permute.xlu0 %4535
        %4537 = vrot.lane.b32.xlu0 %v1139, 18
        %v4538 = vpop.permute.xlu0 %4537
        %4539 = vrot.lane.b32.xlu0 %v1140, 18
        %v4540 = vpop.permute.xlu0 %4539
        %4541 = vrot.lane.b32.xlu0 %v1141, 18
        %v4542 = vpop.permute.xlu0 %4541
        %4543 = vrot.lane.b32.xlu0 %v1142, 18
        %v4544 = vpop.permute.xlu0 %4543
        %4545 = vrot.lane.b32.xlu0 %v1143, 18
        %v4546 = vpop.permute.xlu0 %4545
        %4547 = vrot.lane.b32.xlu0 %v1144, 18
        %v4548 = vpop.permute.xlu0 %4547
        %4549 = vrot.lane.b32.xlu0 %v1145, 18
        %v4550 = vpop.permute.xlu0 %4549
        %4551 = vrot.lane.b32.xlu0 %v1146, 18
        %v4552 = vpop.permute.xlu0 %4551
        %4553 = vrot.lane.b32.xlu0 %v1147, 18
        %v4554 = vpop.permute.xlu0 %4553
        %4555 = vrot.lane.b32.xlu0 %v1148, 18
        %v4556 = vpop.permute.xlu0 %4555
        %4557 = vrot.lane.b32.xlu0 %v1149, 18
        %v4558 = vpop.permute.xlu0 %4557
        %4559 = vrot.lane.b32.xlu0 %v1150, 18
        %v4560 = vpop.permute.xlu0 %4559
        %4561 = vrot.lane.b32.xlu0 %v1151, 18
        %v4562 = vpop.permute.xlu0 %4561
        %4563 = vrot.lane.b32.xlu0 %v1152, 18
        %v4564 = vpop.permute.xlu0 %4563
        %4565 = vrot.lane.b32.xlu0 %v4438, 18
        %v4566 = vpop.permute.xlu0 %4565
        %v4575 = vunpack.c.l.b16 %v665
        %v4576 = vunpack.c.l.b16 %v666
        %v4577 = vunpack.c.l.b16 %v719
        %v4578 = vunpack.c.l.b16 %v720
        %v4579 = vunpack.c.l.b16 %v773
        %v4580 = vunpack.c.l.b16 %v774
        %v4581 = vunpack.c.l.b16 %v827
        %v4582 = vunpack.c.l.b16 %v828
        %v4583 = vpack.c.b16 %v4576, %v4575
        %v4584 = vpack.c.b16 %v4578, %v4577
        %v4585 = vpack.c.b16 %v4580, %v4579
        %v4586 = vpack.c.b16 %v4582, %v4581
        %4587 = vrot.lane.b32.xlu0 %v1410, 21
        %v4588 = vpop.permute.xlu0 %4587
        %4589 = vrot.lane.b32.xlu0 %v1411, 21
        %v4590 = vpop.permute.xlu0 %4589
        %4591 = vrot.lane.b32.xlu0 %v1412, 21
        %v4592 = vpop.permute.xlu0 %4591
        %4593 = vrot.lane.b32.xlu0 %v1413, 21
        %v4594 = vpop.permute.xlu0 %4593
        %4595 = vrot.lane.b32.xlu0 %v1414, 21
        %v4596 = vpop.permute.xlu0 %4595
        %4597 = vrot.lane.b32.xlu0 %v1415, 21
        %v4598 = vpop.permute.xlu0 %4597
        %4599 = vrot.lane.b32.xlu0 %v1416, 21
        %v4600 = vpop.permute.xlu0 %4599
        %4601 = vrot.lane.b32.xlu0 %v1417, 21
        %v4602 = vpop.permute.xlu0 %4601
        %4603 = vrot.lane.b32.xlu0 %v1418, 21
        %v4604 = vpop.permute.xlu0 %4603
        %4605 = vrot.lane.b32.xlu0 %v1419, 21
        %v4606 = vpop.permute.xlu0 %4605
        %4607 = vrot.lane.b32.xlu0 %v1420, 21
        %v4608 = vpop.permute.xlu0 %4607
        %4609 = vrot.lane.b32.xlu0 %v1421, 21
        %v4610 = vpop.permute.xlu0 %4609
        %4611 = vrot.lane.b32.xlu0 %v1422, 21
        %v4612 = vpop.permute.xlu0 %4611
        %4613 = vrot.lane.b32.xlu0 %v1423, 21
        %v4614 = vpop.permute.xlu0 %4613
        %4615 = vrot.lane.b32.xlu0 %v1424, 21
        %v4616 = vpop.permute.xlu0 %4615
        %4617 = vrot.lane.b32.xlu0 %v4583, 21
        %v4618 = vpop.permute.xlu0 %4617
        %4619 = vrot.lane.b32.xlu0 %v1426, 21
        %v4620 = vpop.permute.xlu0 %4619
        %4621 = vrot.lane.b32.xlu0 %v1427, 21
        %v4622 = vpop.permute.xlu0 %4621
        %4623 = vrot.lane.b32.xlu0 %v1428, 21
        %v4624 = vpop.permute.xlu0 %4623
        %4625 = vrot.lane.b32.xlu0 %v1429, 21
        %v4626 = vpop.permute.xlu0 %4625
        %4627 = vrot.lane.b32.xlu0 %v1430, 21
        %v4628 = vpop.permute.xlu0 %4627
        %4629 = vrot.lane.b32.xlu0 %v1431, 21
        %v4630 = vpop.permute.xlu0 %4629
        %4631 = vrot.lane.b32.xlu0 %v1432, 21
        %v4632 = vpop.permute.xlu0 %4631
        %4633 = vrot.lane.b32.xlu0 %v1433, 21
        %v4634 = vpop.permute.xlu0 %4633
        %4635 = vrot.lane.b32.xlu0 %v1434, 21
        %v4636 = vpop.permute.xlu0 %4635
        %4637 = vrot.lane.b32.xlu0 %v1435, 21
        %v4638 = vpop.permute.xlu0 %4637
        %4639 = vrot.lane.b32.xlu0 %v1436, 21
        %v4640 = vpop.permute.xlu0 %4639
        %4641 = vrot.lane.b32.xlu0 %v1437, 21
        %v4642 = vpop.permute.xlu0 %4641
        %4643 = vrot.lane.b32.xlu0 %v1438, 21
        %v4644 = vpop.permute.xlu0 %4643
        %4645 = vrot.lane.b32.xlu0 %v1439, 21
        %v4646 = vpop.permute.xlu0 %4645
        %4647 = vrot.lane.b32.xlu0 %v1440, 21
        %v4648 = vpop.permute.xlu0 %4647
        %4649 = vrot.lane.b32.xlu0 %v4584, 21
        %v4650 = vpop.permute.xlu0 %4649
        %4651 = vrot.lane.b32.xlu0 %v1442, 21
        %v4652 = vpop.permute.xlu0 %4651
        %4653 = vrot.lane.b32.xlu0 %v1443, 21
        %v4654 = vpop.permute.xlu0 %4653
        %4655 = vrot.lane.b32.xlu0 %v1444, 21
        %v4656 = vpop.permute.xlu0 %4655
        %4657 = vrot.lane.b32.xlu0 %v1445, 21
        %v4658 = vpop.permute.xlu0 %4657
        %4659 = vrot.lane.b32.xlu0 %v1446, 21
        %v4660 = vpop.permute.xlu0 %4659
        %4661 = vrot.lane.b32.xlu0 %v1447, 21
        %v4662 = vpop.permute.xlu0 %4661
        %4663 = vrot.lane.b32.xlu0 %v1448, 21
        %v4664 = vpop.permute.xlu0 %4663
        %4665 = vrot.lane.b32.xlu0 %v1449, 21
        %v4666 = vpop.permute.xlu0 %4665
        %4667 = vrot.lane.b32.xlu0 %v1450, 21
        %v4668 = vpop.permute.xlu0 %4667
        %4669 = vrot.lane.b32.xlu0 %v1451, 21
        %v4670 = vpop.permute.xlu0 %4669
        %4671 = vrot.lane.b32.xlu0 %v1452, 21
        %v4672 = vpop.permute.xlu0 %4671
        %4673 = vrot.lane.b32.xlu0 %v1453, 21
        %v4674 = vpop.permute.xlu0 %4673
        %4675 = vrot.lane.b32.xlu0 %v1454, 21
        %v4676 = vpop.permute.xlu0 %4675
        %4677 = vrot.lane.b32.xlu0 %v1455, 21
        %v4678 = vpop.permute.xlu0 %4677
        %4679 = vrot.lane.b32.xlu0 %v1456, 21
        %v4680 = vpop.permute.xlu0 %4679
        %4681 = vrot.lane.b32.xlu0 %v4585, 21
        %v4682 = vpop.permute.xlu0 %4681
        %4683 = vrot.lane.b32.xlu0 %v1458, 21
        %v4684 = vpop.permute.xlu0 %4683
        %4685 = vrot.lane.b32.xlu0 %v1459, 21
        %v4686 = vpop.permute.xlu0 %4685
        %4687 = vrot.lane.b32.xlu0 %v1460, 21
        %v4688 = vpop.permute.xlu0 %4687
        %4689 = vrot.lane.b32.xlu0 %v1461, 21
        %v4690 = vpop.permute.xlu0 %4689
        %4691 = vrot.lane.b32.xlu0 %v1462, 21
        %v4692 = vpop.permute.xlu0 %4691
        %4693 = vrot.lane.b32.xlu0 %v1463, 21
        %v4694 = vpop.permute.xlu0 %4693
        %4695 = vrot.lane.b32.xlu0 %v1464, 21
        %v4696 = vpop.permute.xlu0 %4695
        %4697 = vrot.lane.b32.xlu0 %v1465, 21
        %v4698 = vpop.permute.xlu0 %4697
        %4699 = vrot.lane.b32.xlu0 %v1466, 21
        %v4700 = vpop.permute.xlu0 %4699
        %4701 = vrot.lane.b32.xlu0 %v1467, 21
        %v4702 = vpop.permute.xlu0 %4701
        %4703 = vrot.lane.b32.xlu0 %v1468, 21
        %v4704 = vpop.permute.xlu0 %4703
        %4705 = vrot.lane.b32.xlu0 %v1469, 21
        %v4706 = vpop.permute.xlu0 %4705
        %4707 = vrot.lane.b32.xlu0 %v1470, 21
        %v4708 = vpop.permute.xlu0 %4707
        %4709 = vrot.lane.b32.xlu0 %v1471, 21
        %v4710 = vpop.permute.xlu0 %4709
        %4711 = vrot.lane.b32.xlu0 %v1472, 21
        %v4712 = vpop.permute.xlu0 %4711
        %4713 = vrot.lane.b32.xlu0 %v4586, 21
        %v4714 = vpop.permute.xlu0 %4713
        %v4719 = vunpack.c.l.b16 %v397
        %v4720 = vunpack.c.l.b16 %v451
        %v4721 = vunpack.c.l.b16 %v505
        %v4722 = vunpack.c.l.b16 %v559
        %v4723 = vpack.c.b16 %v4719, %v4719
        %v4724 = vpack.c.b16 %v4720, %v4720
        %v4725 = vpack.c.b16 %v4721, %v4721
        %v4726 = vpack.c.b16 %v4722, %v4722
        %v4728 = vshrl.u32 %v4435, 16
        %v4730 = vshll.u32 %v4435, 16
        %v4732 = vrot.slane %v4730, 1
        %v4733 = vor.u32 %v4728, %v4732
        %v4735 = vshll.u32 %v4723, 16
        %v4737 = vrot.slane %v4735, 1
        %v4738 = vsel %vm1793, %v4733, %v4737
        %v4740 = vshrl.u32 %v4436, 16
        %v4742 = vshll.u32 %v4436, 16
        %v4744 = vrot.slane %v4742, 1
        %v4745 = vor.u32 %v4740, %v4744
        %v4747 = vshll.u32 %v4724, 16
        %v4749 = vrot.slane %v4747, 1
        %v4750 = vsel %vm1793, %v4745, %v4749
        %v4752 = vshrl.u32 %v4437, 16
        %v4754 = vshll.u32 %v4437, 16
        %v4756 = vrot.slane %v4754, 1
        %v4757 = vor.u32 %v4752, %v4756
        %v4759 = vshll.u32 %v4725, 16
        %v4761 = vrot.slane %v4759, 1
        %v4762 = vsel %vm1793, %v4757, %v4761
        %v4764 = vshrl.u32 %v4438, 16
        %v4766 = vshll.u32 %v4438, 16
        %v4768 = vrot.slane %v4766, 1
        %v4769 = vor.u32 %v4764, %v4768
        %v4771 = vshll.u32 %v4726, 16
        %v4773 = vrot.slane %v4771, 1
        %v4774 = vsel %vm1793, %v4769, %v4773
        %4775 = vrot.lane.b32.xlu0 %v1817, 24
        %v4776 = vpop.permute.xlu0 %4775
        %4777 = vrot.lane.b32.xlu0 %v1829, 24
        %v4778 = vpop.permute.xlu0 %4777
        %4779 = vrot.lane.b32.xlu0 %v1841, 24
        %v4780 = vpop.permute.xlu0 %4779
        %4781 = vrot.lane.b32.xlu0 %v1853, 24
        %v4782 = vpop.permute.xlu0 %4781
        %4783 = vrot.lane.b32.xlu0 %v1865, 24
        %v4784 = vpop.permute.xlu0 %4783
        %4785 = vrot.lane.b32.xlu0 %v1877, 24
        %v4786 = vpop.permute.xlu0 %4785
        %4787 = vrot.lane.b32.xlu0 %v1889, 24
        %v4788 = vpop.permute.xlu0 %4787
        %4789 = vrot.lane.b32.xlu0 %v1901, 24
        %v4790 = vpop.permute.xlu0 %4789
        %4791 = vrot.lane.b32.xlu0 %v1913, 24
        %v4792 = vpop.permute.xlu0 %4791
        %4793 = vrot.lane.b32.xlu0 %v1925, 24
        %v4794 = vpop.permute.xlu0 %4793
        %4795 = vrot.lane.b32.xlu0 %v1937, 24
        %v4796 = vpop.permute.xlu0 %4795
        %4797 = vrot.lane.b32.xlu0 %v1949, 24
        %v4798 = vpop.permute.xlu0 %4797
        %4799 = vrot.lane.b32.xlu0 %v1961, 24
        %v4800 = vpop.permute.xlu0 %4799
        %4801 = vrot.lane.b32.xlu0 %v1973, 24
        %v4802 = vpop.permute.xlu0 %4801
        %4803 = vrot.lane.b32.xlu0 %v1985, 24
        %v4804 = vpop.permute.xlu0 %4803
        %4805 = vrot.lane.b32.xlu0 %v4738, 24
        %v4806 = vpop.permute.xlu0 %4805
        %4807 = vrot.lane.b32.xlu0 %v2009, 24
        %v4808 = vpop.permute.xlu0 %4807
        %4809 = vrot.lane.b32.xlu0 %v2021, 24
        %v4810 = vpop.permute.xlu0 %4809
        %4811 = vrot.lane.b32.xlu0 %v2033, 24
        %v4812 = vpop.permute.xlu0 %4811
        %4813 = vrot.lane.b32.xlu0 %v2045, 24
        %v4814 = vpop.permute.xlu0 %4813
        %4815 = vrot.lane.b32.xlu0 %v2057, 24
        %v4816 = vpop.permute.xlu0 %4815
        %4817 = vrot.lane.b32.xlu0 %v2069, 24
        %v4818 = vpop.permute.xlu0 %4817
        %4819 = vrot.lane.b32.xlu0 %v2081, 24
        %v4820 = vpop.permute.xlu0 %4819
        %4821 = vrot.lane.b32.xlu0 %v2093, 24
        %v4822 = vpop.permute.xlu0 %4821
        %4823 = vrot.lane.b32.xlu0 %v2105, 24
        %v4824 = vpop.permute.xlu0 %4823
        %4825 = vrot.lane.b32.xlu0 %v2117, 24
        %v4826 = vpop.permute.xlu0 %4825
        %4827 = vrot.lane.b32.xlu0 %v2129, 24
        %v4828 = vpop.permute.xlu0 %4827
        %4829 = vrot.lane.b32.xlu0 %v2141, 24
        %v4830 = vpop.permute.xlu0 %4829
        %4831 = vrot.lane.b32.xlu0 %v2153, 24
        %v4832 = vpop.permute.xlu0 %4831
        %4833 = vrot.lane.b32.xlu0 %v2165, 24
        %v4834 = vpop.permute.xlu0 %4833
        %4835 = vrot.lane.b32.xlu0 %v2177, 24
        %v4836 = vpop.permute.xlu0 %4835
        %4837 = vrot.lane.b32.xlu0 %v4750, 24
        %v4838 = vpop.permute.xlu0 %4837
        %4839 = vrot.lane.b32.xlu0 %v2201, 24
        %v4840 = vpop.permute.xlu0 %4839
        %4841 = vrot.lane.b32.xlu0 %v2213, 24
        %v4842 = vpop.permute.xlu0 %4841
        %4843 = vrot.lane.b32.xlu0 %v2225, 24
        %v4844 = vpop.permute.xlu0 %4843
        %4845 = vrot.lane.b32.xlu0 %v2237, 24
        %v4846 = vpop.permute.xlu0 %4845
        %4847 = vrot.lane.b32.xlu0 %v2249, 24
        %v4848 = vpop.permute.xlu0 %4847
        %4849 = vrot.lane.b32.xlu0 %v2261, 24
        %v4850 = vpop.permute.xlu0 %4849
        %4851 = vrot.lane.b32.xlu0 %v2273, 24
        %v4852 = vpop.permute.xlu0 %4851
        %4853 = vrot.lane.b32.xlu0 %v2285, 24
        %v4854 = vpop.permute.xlu0 %4853
        %4855 = vrot.lane.b32.xlu0 %v2297, 24
        %v4856 = vpop.permute.xlu0 %4855
        %4857 = vrot.lane.b32.xlu0 %v2309, 24
        %v4858 = vpop.permute.xlu0 %4857
        %4859 = vrot.lane.b32.xlu0 %v2321, 24
        %v4860 = vpop.permute.xlu0 %4859
        %4861 = vrot.lane.b32.xlu0 %v2333, 24
        %v4862 = vpop.permute.xlu0 %4861
        %4863 = vrot.lane.b32.xlu0 %v2345, 24
        %v4864 = vpop.permute.xlu0 %4863
        %4865 = vrot.lane.b32.xlu0 %v2357, 24
        %v4866 = vpop.permute.xlu0 %4865
        %4867 = vrot.lane.b32.xlu0 %v2369, 24
        %v4868 = vpop.permute.xlu0 %4867
        %4869 = vrot.lane.b32.xlu0 %v4762, 24
        %v4870 = vpop.permute.xlu0 %4869
        %4871 = vrot.lane.b32.xlu0 %v2393, 24
        %v4872 = vpop.permute.xlu0 %4871
        %4873 = vrot.lane.b32.xlu0 %v2405, 24
        %v4874 = vpop.permute.xlu0 %4873
        %4875 = vrot.lane.b32.xlu0 %v2417, 24
        %v4876 = vpop.permute.xlu0 %4875
        %4877 = vrot.lane.b32.xlu0 %v2429, 24
        %v4878 = vpop.permute.xlu0 %4877
        %4879 = vrot.lane.b32.xlu0 %v2441, 24
        %v4880 = vpop.permute.xlu0 %4879
        %4881 = vrot.lane.b32.xlu0 %v2453, 24
        %v4882 = vpop.permute.xlu0 %4881
        %4883 = vrot.lane.b32.xlu0 %v2465, 24
        %v4884 = vpop.permute.xlu0 %4883
        %4885 = vrot.lane.b32.xlu0 %v2477, 24
        %v4886 = vpop.permute.xlu0 %4885
        %4887 = vrot.lane.b32.xlu0 %v2489, 24
        %v4888 = vpop.permute.xlu0 %4887
        %4889 = vrot.lane.b32.xlu0 %v2501, 24
        %v4890 = vpop.permute.xlu0 %4889
        %4891 = vrot.lane.b32.xlu0 %v2513, 24
        %v4892 = vpop.permute.xlu0 %4891
        %4893 = vrot.lane.b32.xlu0 %v2525, 24
        %v4894 = vpop.permute.xlu0 %4893
        %4895 = vrot.lane.b32.xlu0 %v2537, 24
        %v4896 = vpop.permute.xlu0 %4895
        %4897 = vrot.lane.b32.xlu0 %v2549, 24
        %v4898 = vpop.permute.xlu0 %4897
        %4899 = vrot.lane.b32.xlu0 %v2561, 24
        %v4900 = vpop.permute.xlu0 %4899
        %4901 = vrot.lane.b32.xlu0 %v4774, 24
        %v4902 = vpop.permute.xlu0 %4901
        %v4907 = vunpack.c.l.b16 %v667
        %v4908 = vunpack.c.l.b16 %v721
        %v4909 = vunpack.c.l.b16 %v775
        %v4910 = vunpack.c.l.b16 %v829
        %v4911 = vpack.c.b16 %v4907, %v4907
        %v4912 = vpack.c.b16 %v4908, %v4908
        %v4913 = vpack.c.b16 %v4909, %v4909
        %v4914 = vpack.c.b16 %v4910, %v4910
        %v4916 = vshrl.u32 %v4583, 16
        %v4918 = vshll.u32 %v4583, 16
        %v4920 = vrot.slane %v4918, 1
        %v4921 = vor.u32 %v4916, %v4920
        %v4923 = vshll.u32 %v4911, 16
        %v4925 = vrot.slane %v4923, 1
        %v4926 = vsel %vm1793, %v4921, %v4925
        %v4928 = vshrl.u32 %v4584, 16
        %v4930 = vshll.u32 %v4584, 16
        %v4932 = vrot.slane %v4930, 1
        %v4933 = vor.u32 %v4928, %v4932
        %v4935 = vshll.u32 %v4912, 16
        %v4937 = vrot.slane %v4935, 1
        %v4938 = vsel %vm1793, %v4933, %v4937
        %v4940 = vshrl.u32 %v4585, 16
        %v4942 = vshll.u32 %v4585, 16
        %v4944 = vrot.slane %v4942, 1
        %v4945 = vor.u32 %v4940, %v4944
        %v4947 = vshll.u32 %v4913, 16
        %v4949 = vrot.slane %v4947, 1
        %v4950 = vsel %vm1793, %v4945, %v4949
        %v4952 = vshrl.u32 %v4586, 16
        %v4954 = vshll.u32 %v4586, 16
        %v4956 = vrot.slane %v4954, 1
        %v4957 = vor.u32 %v4952, %v4956
        %v4959 = vshll.u32 %v4914, 16
        %v4961 = vrot.slane %v4959, 1
        %v4962 = vsel %vm1793, %v4957, %v4961
        %4963 = vrot.lane.b32.xlu0 %v2905, 27
        %v4964 = vpop.permute.xlu0 %4963
        %4965 = vrot.lane.b32.xlu0 %v2917, 27
        %v4966 = vpop.permute.xlu0 %4965
        %4967 = vrot.lane.b32.xlu0 %v2929, 27
        %v4968 = vpop.permute.xlu0 %4967
        %4969 = vrot.lane.b32.xlu0 %v2941, 27
        %v4970 = vpop.permute.xlu0 %4969
        %4971 = vrot.lane.b32.xlu0 %v2953, 27
        %v4972 = vpop.permute.xlu0 %4971
        %4973 = vrot.lane.b32.xlu0 %v2965, 27
        %v4974 = vpop.permute.xlu0 %4973
        %4975 = vrot.lane.b32.xlu0 %v2977, 27
        %v4976 = vpop.permute.xlu0 %4975
        %4977 = vrot.lane.b32.xlu0 %v2989, 27
        %v4978 = vpop.permute.xlu0 %4977
        %4979 = vrot.lane.b32.xlu0 %v3001, 27
        %v4980 = vpop.permute.xlu0 %4979
        %4981 = vrot.lane.b32.xlu0 %v3013, 27
        %v4982 = vpop.permute.xlu0 %4981
        %4983 = vrot.lane.b32.xlu0 %v3025, 27
        %v4984 = vpop.permute.xlu0 %4983
        %4985 = vrot.lane.b32.xlu0 %v3037, 27
        %v4986 = vpop.permute.xlu0 %4985
        %4987 = vrot.lane.b32.xlu0 %v3049, 27
        %v4988 = vpop.permute.xlu0 %4987
        %4989 = vrot.lane.b32.xlu0 %v3061, 27
        %v4990 = vpop.permute.xlu0 %4989
        %4991 = vrot.lane.b32.xlu0 %v3073, 27
        %v4992 = vpop.permute.xlu0 %4991
        %4993 = vrot.lane.b32.xlu0 %v4926, 27
        %v4994 = vpop.permute.xlu0 %4993
        %4995 = vrot.lane.b32.xlu0 %v3097, 27
        %v4996 = vpop.permute.xlu0 %4995
        %4997 = vrot.lane.b32.xlu0 %v3109, 27
        %v4998 = vpop.permute.xlu0 %4997
        %4999 = vrot.lane.b32.xlu0 %v3121, 27
        %v5000 = vpop.permute.xlu0 %4999
        %5001 = vrot.lane.b32.xlu0 %v3133, 27
        %v5002 = vpop.permute.xlu0 %5001
        %5003 = vrot.lane.b32.xlu0 %v3145, 27
        %v5004 = vpop.permute.xlu0 %5003
        %5005 = vrot.lane.b32.xlu0 %v3157, 27
        %v5006 = vpop.permute.xlu0 %5005
        %5007 = vrot.lane.b32.xlu0 %v3169, 27
        %v5008 = vpop.permute.xlu0 %5007
        %5009 = vrot.lane.b32.xlu0 %v3181, 27
        %v5010 = vpop.permute.xlu0 %5009
        %5011 = vrot.lane.b32.xlu0 %v3193, 27
        %v5012 = vpop.permute.xlu0 %5011
        %5013 = vrot.lane.b32.xlu0 %v3205, 27
        %v5014 = vpop.permute.xlu0 %5013
        %5015 = vrot.lane.b32.xlu0 %v3217, 27
        %v5016 = vpop.permute.xlu0 %5015
        %5017 = vrot.lane.b32.xlu0 %v3229, 27
        %v5018 = vpop.permute.xlu0 %5017
        %5019 = vrot.lane.b32.xlu0 %v3241, 27
        %v5020 = vpop.permute.xlu0 %5019
        %5021 = vrot.lane.b32.xlu0 %v3253, 27
        %v5022 = vpop.permute.xlu0 %5021
        %5023 = vrot.lane.b32.xlu0 %v3265, 27
        %v5024 = vpop.permute.xlu0 %5023
        %5025 = vrot.lane.b32.xlu0 %v4938, 27
        %v5026 = vpop.permute.xlu0 %5025
        %5027 = vrot.lane.b32.xlu0 %v3289, 27
        %v5028 = vpop.permute.xlu0 %5027
        %5029 = vrot.lane.b32.xlu0 %v3301, 27
        %v5030 = vpop.permute.xlu0 %5029
        %5031 = vrot.lane.b32.xlu0 %v3313, 27
        %v5032 = vpop.permute.xlu0 %5031
        %5033 = vrot.lane.b32.xlu0 %v3325, 27
        %v5034 = vpop.permute.xlu0 %5033
        %5035 = vrot.lane.b32.xlu0 %v3337, 27
        %v5036 = vpop.permute.xlu0 %5035
        %5037 = vrot.lane.b32.xlu0 %v3349, 27
        %v5038 = vpop.permute.xlu0 %5037
        %5039 = vrot.lane.b32.xlu0 %v3361, 27
        %v5040 = vpop.permute.xlu0 %5039
        %5041 = vrot.lane.b32.xlu0 %v3373, 27
        %v5042 = vpop.permute.xlu0 %5041
        %5043 = vrot.lane.b32.xlu0 %v3385, 27
        %v5044 = vpop.permute.xlu0 %5043
        %5045 = vrot.lane.b32.xlu0 %v3397, 27
        %v5046 = vpop.permute.xlu0 %5045
        %5047 = vrot.lane.b32.xlu0 %v3409, 27
        %v5048 = vpop.permute.xlu0 %5047
        %5049 = vrot.lane.b32.xlu0 %v3421, 27
        %v5050 = vpop.permute.xlu0 %5049
        %5051 = vrot.lane.b32.xlu0 %v3433, 27
        %v5052 = vpop.permute.xlu0 %5051
        %5053 = vrot.lane.b32.xlu0 %v3445, 27
        %v5054 = vpop.permute.xlu0 %5053
        %5055 = vrot.lane.b32.xlu0 %v3457, 27
        %v5056 = vpop.permute.xlu0 %5055
        %5057 = vrot.lane.b32.xlu0 %v4950, 27
        %v5058 = vpop.permute.xlu0 %5057
        %5059 = vrot.lane.b32.xlu0 %v3481, 27
        %v5060 = vpop.permute.xlu0 %5059
        %5061 = vrot.lane.b32.xlu0 %v3493, 27
        %v5062 = vpop.permute.xlu0 %5061
        %5063 = vrot.lane.b32.xlu0 %v3505, 27
        %v5064 = vpop.permute.xlu0 %5063
        %5065 = vrot.lane.b32.xlu0 %v3517, 27
        %v5066 = vpop.permute.xlu0 %5065
        %5067 = vrot.lane.b32.xlu0 %v3529, 27
        %v5068 = vpop.permute.xlu0 %5067
        %5069 = vrot.lane.b32.xlu0 %v3541, 27
        %v5070 = vpop.permute.xlu0 %5069
        %5071 = vrot.lane.b32.xlu0 %v3553, 27
        %v5072 = vpop.permute.xlu0 %5071
        %5073 = vrot.lane.b32.xlu0 %v3565, 27
        %v5074 = vpop.permute.xlu0 %5073
        %5075 = vrot.lane.b32.xlu0 %v3577, 27
        %v5076 = vpop.permute.xlu0 %5075
        %5077 = vrot.lane.b32.xlu0 %v3589, 27
        %v5078 = vpop.permute.xlu0 %5077
        %5079 = vrot.lane.b32.xlu0 %v3601, 27
        %v5080 = vpop.permute.xlu0 %5079
        %5081 = vrot.lane.b32.xlu0 %v3613, 27
        %v5082 = vpop.permute.xlu0 %5081
        %5083 = vrot.lane.b32.xlu0 %v3625, 27
        %v5084 = vpop.permute.xlu0 %5083
        %5085 = vrot.lane.b32.xlu0 %v3637, 27
        %v5086 = vpop.permute.xlu0 %5085
        %5087 = vrot.lane.b32.xlu0 %v3649, 27
        %v5088 = vpop.permute.xlu0 %5087
        %5089 = vrot.lane.b32.xlu0 %v4962, 27
        %v5090 = vpop.permute.xlu0 %5089
        %v5091 = vrot.slane %v4435, 1
        %v5092 = vrot.slane %v4723, 1
        %v5093 = vsel %vm3778, %v5091, %v5092
        %v5094 = vrot.slane %v4436, 1
        %v5095 = vrot.slane %v4724, 1
        %v5096 = vsel %vm3778, %v5094, %v5095
        %v5097 = vrot.slane %v4437, 1
        %v5098 = vrot.slane %v4725, 1
        %v5099 = vsel %vm3778, %v5097, %v5098
        %v5100 = vrot.slane %v4438, 1
        %v5101 = vrot.slane %v4726, 1
        %v5102 = vsel %vm3778, %v5100, %v5101
        %5103 = vrot.lane.b32.xlu0 %v3784, 30
        %v5104 = vpop.permute.xlu0 %5103
        %5105 = vrot.lane.b32.xlu0 %v3787, 30
        %v5106 = vpop.permute.xlu0 %5105
        %5107 = vrot.lane.b32.xlu0 %v3790, 30
        %v5108 = vpop.permute.xlu0 %5107
        %5109 = vrot.lane.b32.xlu0 %v3793, 30
        %v5110 = vpop.permute.xlu0 %5109
        %5111 = vrot.lane.b32.xlu0 %v3796, 30
        %v5112 = vpop.permute.xlu0 %5111
        %5113 = vrot.lane.b32.xlu0 %v3799, 30
        %v5114 = vpop.permute.xlu0 %5113
        %5115 = vrot.lane.b32.xlu0 %v3802, 30
        %v5116 = vpop.permute.xlu0 %5115
        %5117 = vrot.lane.b32.xlu0 %v3805, 30
        %v5118 = vpop.permute.xlu0 %5117
        %5119 = vrot.lane.b32.xlu0 %v3808, 30
        %v5120 = vpop.permute.xlu0 %5119
        %5121 = vrot.lane.b32.xlu0 %v3811, 30
        %v5122 = vpop.permute.xlu0 %5121
        %5123 = vrot.lane.b32.xlu0 %v3814, 30
        %v5124 = vpop.permute.xlu0 %5123
        %5125 = vrot.lane.b32.xlu0 %v3817, 30
        %v5126 = vpop.permute.xlu0 %5125
        %5127 = vrot.lane.b32.xlu0 %v3820, 30
        %v5128 = vpop.permute.xlu0 %5127
        %5129 = vrot.lane.b32.xlu0 %v3823, 30
        %v5130 = vpop.permute.xlu0 %5129
        %5131 = vrot.lane.b32.xlu0 %v3826, 30
        %v5132 = vpop.permute.xlu0 %5131
        %5133 = vrot.lane.b32.xlu0 %v5093, 30
        %v5134 = vpop.permute.xlu0 %5133
        %5135 = vrot.lane.b32.xlu0 %v3832, 30
        %v5136 = vpop.permute.xlu0 %5135
        %5137 = vrot.lane.b32.xlu0 %v3835, 30
        %v5138 = vpop.permute.xlu0 %5137
        %5139 = vrot.lane.b32.xlu0 %v3838, 30
        %v5140 = vpop.permute.xlu0 %5139
        %5141 = vrot.lane.b32.xlu0 %v3841, 30
        %v5142 = vpop.permute.xlu0 %5141
        %5143 = vrot.lane.b32.xlu0 %v3844, 30
        %v5144 = vpop.permute.xlu0 %5143
        %5145 = vrot.lane.b32.xlu0 %v3847, 30
        %v5146 = vpop.permute.xlu0 %5145
        %5147 = vrot.lane.b32.xlu0 %v3850, 30
        %v5148 = vpop.permute.xlu0 %5147
        %5149 = vrot.lane.b32.xlu0 %v3853, 30
        %v5150 = vpop.permute.xlu0 %5149
        %5151 = vrot.lane.b32.xlu0 %v3856, 30
        %v5152 = vpop.permute.xlu0 %5151
        %5153 = vrot.lane.b32.xlu0 %v3859, 30
        %v5154 = vpop.permute.xlu0 %5153
        %5155 = vrot.lane.b32.xlu0 %v3862, 30
        %v5156 = vpop.permute.xlu0 %5155
        %5157 = vrot.lane.b32.xlu0 %v3865, 30
        %v5158 = vpop.permute.xlu0 %5157
        %5159 = vrot.lane.b32.xlu0 %v3868, 30
        %v5160 = vpop.permute.xlu0 %5159
        %5161 = vrot.lane.b32.xlu0 %v3871, 30
        %v5162 = vpop.permute.xlu0 %5161
        %5163 = vrot.lane.b32.xlu0 %v3874, 30
        %v5164 = vpop.permute.xlu0 %5163
        %5165 = vrot.lane.b32.xlu0 %v5096, 30
        %v5166 = vpop.permute.xlu0 %5165
        %5167 = vrot.lane.b32.xlu0 %v3880, 30
        %v5168 = vpop.permute.xlu0 %5167
        %5169 = vrot.lane.b32.xlu0 %v3883, 30
        %v5170 = vpop.permute.xlu0 %5169
        %5171 = vrot.lane.b32.xlu0 %v3886, 30
        %v5172 = vpop.permute.xlu0 %5171
        %5173 = vrot.lane.b32.xlu0 %v3889, 30
        %v5174 = vpop.permute.xlu0 %5173
        %5175 = vrot.lane.b32.xlu0 %v3892, 30
        %v5176 = vpop.permute.xlu0 %5175
        %5177 = vrot.lane.b32.xlu0 %v3895, 30
        %v5178 = vpop.permute.xlu0 %5177
        %5179 = vrot.lane.b32.xlu0 %v3898, 30
        %v5180 = vpop.permute.xlu0 %5179
        %5181 = vrot.lane.b32.xlu0 %v3901, 30
        %v5182 = vpop.permute.xlu0 %5181
        %5183 = vrot.lane.b32.xlu0 %v3904, 30
        %v5184 = vpop.permute.xlu0 %5183
        %5185 = vrot.lane.b32.xlu0 %v3907, 30
        %v5186 = vpop.permute.xlu0 %5185
        %5187 = vrot.lane.b32.xlu0 %v3910, 30
        %v5188 = vpop.permute.xlu0 %5187
        %5189 = vrot.lane.b32.xlu0 %v3913, 30
        %v5190 = vpop.permute.xlu0 %5189
        %5191 = vrot.lane.b32.xlu0 %v3916, 30
        %v5192 = vpop.permute.xlu0 %5191
        %5193 = vrot.lane.b32.xlu0 %v3919, 30
        %v5194 = vpop.permute.xlu0 %5193
        %5195 = vrot.lane.b32.xlu0 %v3922, 30
        %v5196 = vpop.permute.xlu0 %5195
        %5197 = vrot.lane.b32.xlu0 %v5099, 30
        %v5198 = vpop.permute.xlu0 %5197
        %5199 = vrot.lane.b32.xlu0 %v3928, 30
        %v5200 = vpop.permute.xlu0 %5199
        %5201 = vrot.lane.b32.xlu0 %v3931, 30
        %v5202 = vpop.permute.xlu0 %5201
        %5203 = vrot.lane.b32.xlu0 %v3934, 30
        %v5204 = vpop.permute.xlu0 %5203
        %5205 = vrot.lane.b32.xlu0 %v3937, 30
        %v5206 = vpop.permute.xlu0 %5205
        %5207 = vrot.lane.b32.xlu0 %v3940, 30
        %v5208 = vpop.permute.xlu0 %5207
        %5209 = vrot.lane.b32.xlu0 %v3943, 30
        %v5210 = vpop.permute.xlu0 %5209
        %5211 = vrot.lane.b32.xlu0 %v3946, 30
        %v5212 = vpop.permute.xlu0 %5211
        %5213 = vrot.lane.b32.xlu0 %v3949, 30
        %v5214 = vpop.permute.xlu0 %5213
        %5215 = vrot.lane.b32.xlu0 %v3952, 30
        %v5216 = vpop.permute.xlu0 %5215
        %5217 = vrot.lane.b32.xlu0 %v3955, 30
        %v5218 = vpop.permute.xlu0 %5217
        %5219 = vrot.lane.b32.xlu0 %v3958, 30
        %v5220 = vpop.permute.xlu0 %5219
        %5221 = vrot.lane.b32.xlu0 %v3961, 30
        %v5222 = vpop.permute.xlu0 %5221
        %5223 = vrot.lane.b32.xlu0 %v3964, 30
        %v5224 = vpop.permute.xlu0 %5223
        %5225 = vrot.lane.b32.xlu0 %v3967, 30
        %v5226 = vpop.permute.xlu0 %5225
        %5227 = vrot.lane.b32.xlu0 %v3970, 30
        %v5228 = vpop.permute.xlu0 %5227
        %5229 = vrot.lane.b32.xlu0 %v5102, 30
        %v5230 = vpop.permute.xlu0 %5229
        %v5231 = vrot.slane %v4583, 1
        %v5232 = vrot.slane %v4911, 1
        %v5233 = vsel %vm3778, %v5231, %v5232
        %v5234 = vrot.slane %v4584, 1
        %v5235 = vrot.slane %v4912, 1
        %v5236 = vsel %vm3778, %v5234, %v5235
        %v5237 = vrot.slane %v4585, 1
        %v5238 = vrot.slane %v4913, 1
        %v5239 = vsel %vm3778, %v5237, %v5238
        %v5240 = vrot.slane %v4586, 1
        %v5241 = vrot.slane %v4914, 1
        %v5242 = vsel %vm3778, %v5240, %v5241
        %5243 = vrot.lane.b32.xlu0 %v4104, 33
        %v5244 = vpop.permute.xlu0 %5243
        %5245 = vrot.lane.b32.xlu0 %v4107, 33
        %v5246 = vpop.permute.xlu0 %5245
        %5247 = vrot.lane.b32.xlu0 %v4110, 33
        %v5248 = vpop.permute.xlu0 %5247
        %5249 = vrot.lane.b32.xlu0 %v4113, 33
        %v5250 = vpop.permute.xlu0 %5249
        %5251 = vrot.lane.b32.xlu0 %v4116, 33
        %v5252 = vpop.permute.xlu0 %5251
        %5253 = vrot.lane.b32.xlu0 %v4119, 33
        %v5254 = vpop.permute.xlu0 %5253
        %5255 = vrot.lane.b32.xlu0 %v4122, 33
        %v5256 = vpop.permute.xlu0 %5255
        %5257 = vrot.lane.b32.xlu0 %v4125, 33
        %v5258 = vpop.permute.xlu0 %5257
        %5259 = vrot.lane.b32.xlu0 %v4128, 33
        %v5260 = vpop.permute.xlu0 %5259
        %5261 = vrot.lane.b32.xlu0 %v4131, 33
        %v5262 = vpop.permute.xlu0 %5261
        %5263 = vrot.lane.b32.xlu0 %v4134, 33
        %v5264 = vpop.permute.xlu0 %5263
        %5265 = vrot.lane.b32.xlu0 %v4137, 33
        %v5266 = vpop.permute.xlu0 %5265
        %5267 = vrot.lane.b32.xlu0 %v4140, 33
        %v5268 = vpop.permute.xlu0 %5267
        %5269 = vrot.lane.b32.xlu0 %v4143, 33
        %v5270 = vpop.permute.xlu0 %5269
        %5271 = vrot.lane.b32.xlu0 %v4146, 33
        %v5272 = vpop.permute.xlu0 %5271
        %5273 = vrot.lane.b32.xlu0 %v5233, 33
        %v5274 = vpop.permute.xlu0 %5273
        %5275 = vrot.lane.b32.xlu0 %v4152, 33
        %v5276 = vpop.permute.xlu0 %5275
        %5277 = vrot.lane.b32.xlu0 %v4155, 33
        %v5278 = vpop.permute.xlu0 %5277
        %5279 = vrot.lane.b32.xlu0 %v4158, 33
        %v5280 = vpop.permute.xlu0 %5279
        %5281 = vrot.lane.b32.xlu0 %v4161, 33
        %v5282 = vpop.permute.xlu0 %5281
        %5283 = vrot.lane.b32.xlu0 %v4164, 33
        %v5284 = vpop.permute.xlu0 %5283
        %5285 = vrot.lane.b32.xlu0 %v4167, 33
        %v5286 = vpop.permute.xlu0 %5285
        %5287 = vrot.lane.b32.xlu0 %v4170, 33
        %v5288 = vpop.permute.xlu0 %5287
        %5289 = vrot.lane.b32.xlu0 %v4173, 33
        %v5290 = vpop.permute.xlu0 %5289
        %5291 = vrot.lane.b32.xlu0 %v4176, 33
        %v5292 = vpop.permute.xlu0 %5291
        %5293 = vrot.lane.b32.xlu0 %v4179, 33
        %v5294 = vpop.permute.xlu0 %5293
        %5295 = vrot.lane.b32.xlu0 %v4182, 33
        %v5296 = vpop.permute.xlu0 %5295
        %5297 = vrot.lane.b32.xlu0 %v4185, 33
        %v5298 = vpop.permute.xlu0 %5297
        %5299 = vrot.lane.b32.xlu0 %v4188, 33
        %v5300 = vpop.permute.xlu0 %5299
        %5301 = vrot.lane.b32.xlu0 %v4191, 33
        %v5302 = vpop.permute.xlu0 %5301
        %5303 = vrot.lane.b32.xlu0 %v4194, 33
        %v5304 = vpop.permute.xlu0 %5303
        %5305 = vrot.lane.b32.xlu0 %v5236, 33
        %v5306 = vpop.permute.xlu0 %5305
        %5307 = vrot.lane.b32.xlu0 %v4200, 33
        %v5308 = vpop.permute.xlu0 %5307
        %5309 = vrot.lane.b32.xlu0 %v4203, 33
        %v5310 = vpop.permute.xlu0 %5309
        %5311 = vrot.lane.b32.xlu0 %v4206, 33
        %v5312 = vpop.permute.xlu0 %5311
        %5313 = vrot.lane.b32.xlu0 %v4209, 33
        %v5314 = vpop.permute.xlu0 %5313
        %5315 = vrot.lane.b32.xlu0 %v4212, 33
        %v5316 = vpop.permute.xlu0 %5315
        %5317 = vrot.lane.b32.xlu0 %v4215, 33
        %v5318 = vpop.permute.xlu0 %5317
        %5319 = vrot.lane.b32.xlu0 %v4218, 33
        %v5320 = vpop.permute.xlu0 %5319
        %5321 = vrot.lane.b32.xlu0 %v4221, 33
        %v5322 = vpop.permute.xlu0 %5321
        %5323 = vrot.lane.b32.xlu0 %v4224, 33
        %v5324 = vpop.permute.xlu0 %5323
        %5325 = vrot.lane.b32.xlu0 %v4227, 33
        %v5326 = vpop.permute.xlu0 %5325
        %5327 = vrot.lane.b32.xlu0 %v4230, 33
        %v5328 = vpop.permute.xlu0 %5327
        %5329 = vrot.lane.b32.xlu0 %v4233, 33
        %v5330 = vpop.permute.xlu0 %5329
        %5331 = vrot.lane.b32.xlu0 %v4236, 33
        %v5332 = vpop.permute.xlu0 %5331
        %5333 = vrot.lane.b32.xlu0 %v4239, 33
        %v5334 = vpop.permute.xlu0 %5333
        %5335 = vrot.lane.b32.xlu0 %v4242, 33
        %v5336 = vpop.permute.xlu0 %5335
        %5337 = vrot.lane.b32.xlu0 %v5239, 33
        %v5338 = vpop.permute.xlu0 %5337
        %5339 = vrot.lane.b32.xlu0 %v4248, 33
        %v5340 = vpop.permute.xlu0 %5339
        %5341 = vrot.lane.b32.xlu0 %v4251, 33
        %v5342 = vpop.permute.xlu0 %5341
        %5343 = vrot.lane.b32.xlu0 %v4254, 33
        %v5344 = vpop.permute.xlu0 %5343
        %5345 = vrot.lane.b32.xlu0 %v4257, 33
        %v5346 = vpop.permute.xlu0 %5345
        %5347 = vrot.lane.b32.xlu0 %v4260, 33
        %v5348 = vpop.permute.xlu0 %5347
        %5349 = vrot.lane.b32.xlu0 %v4263, 33
        %v5350 = vpop.permute.xlu0 %5349
        %5351 = vrot.lane.b32.xlu0 %v4266, 33
        %v5352 = vpop.permute.xlu0 %5351
        %5353 = vrot.lane.b32.xlu0 %v4269, 33
        %v5354 = vpop.permute.xlu0 %5353
        %5355 = vrot.lane.b32.xlu0 %v4272, 33
        %v5356 = vpop.permute.xlu0 %5355
        %5357 = vrot.lane.b32.xlu0 %v4275, 33
        %v5358 = vpop.permute.xlu0 %5357
        %5359 = vrot.lane.b32.xlu0 %v4278, 33
        %v5360 = vpop.permute.xlu0 %5359
        %5361 = vrot.lane.b32.xlu0 %v4281, 33
        %v5362 = vpop.permute.xlu0 %5361
        %5363 = vrot.lane.b32.xlu0 %v4284, 33
        %v5364 = vpop.permute.xlu0 %5363
        %5365 = vrot.lane.b32.xlu0 %v4287, 33
        %v5366 = vpop.permute.xlu0 %5365
        %5367 = vrot.lane.b32.xlu0 %v4290, 33
        %v5368 = vpop.permute.xlu0 %5367
        %5369 = vrot.lane.b32.xlu0 %v5242, 33
        %v5370 = vpop.permute.xlu0 %5369
        %v5379 = vunpack.c.l.b16 %v398
        %v5380 = vunpack.c.l.b16 %v399
        %v5381 = vunpack.c.l.b16 %v452
        %v5382 = vunpack.c.l.b16 %v453
        %v5383 = vunpack.c.l.b16 %v506
        %v5384 = vunpack.c.l.b16 %v507
        %v5385 = vunpack.c.l.b16 %v560
        %v5386 = vunpack.c.l.b16 %v561
        %v5387 = vpack.c.b16 %v5380, %v5379
        %v5388 = vpack.c.b16 %v5382, %v5381
        %v5389 = vpack.c.b16 %v5384, %v5383
        %v5390 = vpack.c.b16 %v5386, %v5385
        %5391 = vrot.lane.b32.xlu0 %v1091, 36
        %v5392 = vpop.permute.xlu0 %5391
        %5393 = vrot.lane.b32.xlu0 %v1092, 36
        %v5394 = vpop.permute.xlu0 %5393
        %5395 = vrot.lane.b32.xlu0 %v1093, 36
        %v5396 = vpop.permute.xlu0 %5395
        %5397 = vrot.lane.b32.xlu0 %v1094, 36
        %v5398 = vpop.permute.xlu0 %5397
        %5399 = vrot.lane.b32.xlu0 %v1095, 36
        %v5400 = vpop.permute.xlu0 %5399
        %5401 = vrot.lane.b32.xlu0 %v1096, 36
        %v5402 = vpop.permute.xlu0 %5401
        %5403 = vrot.lane.b32.xlu0 %v1097, 36
        %v5404 = vpop.permute.xlu0 %5403
        %5405 = vrot.lane.b32.xlu0 %v1098, 36
        %v5406 = vpop.permute.xlu0 %5405
        %5407 = vrot.lane.b32.xlu0 %v1099, 36
        %v5408 = vpop.permute.xlu0 %5407
        %5409 = vrot.lane.b32.xlu0 %v1100, 36
        %v5410 = vpop.permute.xlu0 %5409
        %5411 = vrot.lane.b32.xlu0 %v1101, 36
        %v5412 = vpop.permute.xlu0 %5411
        %5413 = vrot.lane.b32.xlu0 %v1102, 36
        %v5414 = vpop.permute.xlu0 %5413
        %5415 = vrot.lane.b32.xlu0 %v1103, 36
        %v5416 = vpop.permute.xlu0 %5415
        %5417 = vrot.lane.b32.xlu0 %v1104, 36
        %v5418 = vpop.permute.xlu0 %5417
        %5419 = vrot.lane.b32.xlu0 %v4435, 36
        %v5420 = vpop.permute.xlu0 %5419
        %5421 = vrot.lane.b32.xlu0 %v5387, 36
        %v5422 = vpop.permute.xlu0 %5421
        %5423 = vrot.lane.b32.xlu0 %v1107, 36
        %v5424 = vpop.permute.xlu0 %5423
        %5425 = vrot.lane.b32.xlu0 %v1108, 36
        %v5426 = vpop.permute.xlu0 %5425
        %5427 = vrot.lane.b32.xlu0 %v1109, 36
        %v5428 = vpop.permute.xlu0 %5427
        %5429 = vrot.lane.b32.xlu0 %v1110, 36
        %v5430 = vpop.permute.xlu0 %5429
        %5431 = vrot.lane.b32.xlu0 %v1111, 36
        %v5432 = vpop.permute.xlu0 %5431
        %5433 = vrot.lane.b32.xlu0 %v1112, 36
        %v5434 = vpop.permute.xlu0 %5433
        %5435 = vrot.lane.b32.xlu0 %v1113, 36
        %v5436 = vpop.permute.xlu0 %5435
        %5437 = vrot.lane.b32.xlu0 %v1114, 36
        %v5438 = vpop.permute.xlu0 %5437
        %5439 = vrot.lane.b32.xlu0 %v1115, 36
        %v5440 = vpop.permute.xlu0 %5439
        %5441 = vrot.lane.b32.xlu0 %v1116, 36
        %v5442 = vpop.permute.xlu0 %5441
        %5443 = vrot.lane.b32.xlu0 %v1117, 36
        %v5444 = vpop.permute.xlu0 %5443
        %5445 = vrot.lane.b32.xlu0 %v1118, 36
        %v5446 = vpop.permute.xlu0 %5445
        %5447 = vrot.lane.b32.xlu0 %v1119, 36
        %v5448 = vpop.permute.xlu0 %5447
        %5449 = vrot.lane.b32.xlu0 %v1120, 36
        %v5450 = vpop.permute.xlu0 %5449
        %5451 = vrot.lane.b32.xlu0 %v4436, 36
        %v5452 = vpop.permute.xlu0 %5451
        %5453 = vrot.lane.b32.xlu0 %v5388, 36
        %v5454 = vpop.permute.xlu0 %5453
        %5455 = vrot.lane.b32.xlu0 %v1123, 36
        %v5456 = vpop.permute.xlu0 %5455
        %5457 = vrot.lane.b32.xlu0 %v1124, 36
        %v5458 = vpop.permute.xlu0 %5457
        %5459 = vrot.lane.b32.xlu0 %v1125, 36
        %v5460 = vpop.permute.xlu0 %5459
        %5461 = vrot.lane.b32.xlu0 %v1126, 36
        %v5462 = vpop.permute.xlu0 %5461
        %5463 = vrot.lane.b32.xlu0 %v1127, 36
        %v5464 = vpop.permute.xlu0 %5463
        %5465 = vrot.lane.b32.xlu0 %v1128, 36
        %v5466 = vpop.permute.xlu0 %5465
        %5467 = vrot.lane.b32.xlu0 %v1129, 36
        %v5468 = vpop.permute.xlu0 %5467
        %5469 = vrot.lane.b32.xlu0 %v1130, 36
        %v5470 = vpop.permute.xlu0 %5469
        %5471 = vrot.lane.b32.xlu0 %v1131, 36
        %v5472 = vpop.permute.xlu0 %5471
        %5473 = vrot.lane.b32.xlu0 %v1132, 36
        %v5474 = vpop.permute.xlu0 %5473
        %5475 = vrot.lane.b32.xlu0 %v1133, 36
        %v5476 = vpop.permute.xlu0 %5475
        %5477 = vrot.lane.b32.xlu0 %v1134, 36
        %v5478 = vpop.permute.xlu0 %5477
        %5479 = vrot.lane.b32.xlu0 %v1135, 36
        %v5480 = vpop.permute.xlu0 %5479
        %5481 = vrot.lane.b32.xlu0 %v1136, 36
        %v5482 = vpop.permute.xlu0 %5481
        %5483 = vrot.lane.b32.xlu0 %v4437, 36
        %v5484 = vpop.permute.xlu0 %5483
        %5485 = vrot.lane.b32.xlu0 %v5389, 36
        %v5486 = vpop.permute.xlu0 %5485
        %5487 = vrot.lane.b32.xlu0 %v1139, 36
        %v5488 = vpop.permute.xlu0 %5487
        %5489 = vrot.lane.b32.xlu0 %v1140, 36
        %v5490 = vpop.permute.xlu0 %5489
        %5491 = vrot.lane.b32.xlu0 %v1141, 36
        %v5492 = vpop.permute.xlu0 %5491
        %5493 = vrot.lane.b32.xlu0 %v1142, 36
        %v5494 = vpop.permute.xlu0 %5493
        %5495 = vrot.lane.b32.xlu0 %v1143, 36
        %v5496 = vpop.permute.xlu0 %5495
        %5497 = vrot.lane.b32.xlu0 %v1144, 36
        %v5498 = vpop.permute.xlu0 %5497
        %5499 = vrot.lane.b32.xlu0 %v1145, 36
        %v5500 = vpop.permute.xlu0 %5499
        %5501 = vrot.lane.b32.xlu0 %v1146, 36
        %v5502 = vpop.permute.xlu0 %5501
        %5503 = vrot.lane.b32.xlu0 %v1147, 36
        %v5504 = vpop.permute.xlu0 %5503
        %5505 = vrot.lane.b32.xlu0 %v1148, 36
        %v5506 = vpop.permute.xlu0 %5505
        %5507 = vrot.lane.b32.xlu0 %v1149, 36
        %v5508 = vpop.permute.xlu0 %5507
        %5509 = vrot.lane.b32.xlu0 %v1150, 36
        %v5510 = vpop.permute.xlu0 %5509
        %5511 = vrot.lane.b32.xlu0 %v1151, 36
        %v5512 = vpop.permute.xlu0 %5511
        %5513 = vrot.lane.b32.xlu0 %v1152, 36
        %v5514 = vpop.permute.xlu0 %5513
        %5515 = vrot.lane.b32.xlu0 %v4438, 36
        %v5516 = vpop.permute.xlu0 %5515
        %5517 = vrot.lane.b32.xlu0 %v5390, 36
        %v5518 = vpop.permute.xlu0 %5517
        %v5527 = vunpack.c.l.b16 %v668
        %v5528 = vunpack.c.l.b16 %v669
        %v5529 = vunpack.c.l.b16 %v722
        %v5530 = vunpack.c.l.b16 %v723
        %v5531 = vunpack.c.l.b16 %v776
        %v5532 = vunpack.c.l.b16 %v777
        %v5533 = vunpack.c.l.b16 %v830
        %v5534 = vunpack.c.l.b16 %v831
        %v5535 = vpack.c.b16 %v5528, %v5527
        %v5536 = vpack.c.b16 %v5530, %v5529
        %v5537 = vpack.c.b16 %v5532, %v5531
        %v5538 = vpack.c.b16 %v5534, %v5533
        %5539 = vrot.lane.b32.xlu0 %v1411, 39
        %v5540 = vpop.permute.xlu0 %5539
        %5541 = vrot.lane.b32.xlu0 %v1412, 39
        %v5542 = vpop.permute.xlu0 %5541
        %5543 = vrot.lane.b32.xlu0 %v1413, 39
        %v5544 = vpop.permute.xlu0 %5543
        %5545 = vrot.lane.b32.xlu0 %v1414, 39
        %v5546 = vpop.permute.xlu0 %5545
        %5547 = vrot.lane.b32.xlu0 %v1415, 39
        %v5548 = vpop.permute.xlu0 %5547
        %5549 = vrot.lane.b32.xlu0 %v1416, 39
        %v5550 = vpop.permute.xlu0 %5549
        %5551 = vrot.lane.b32.xlu0 %v1417, 39
        %v5552 = vpop.permute.xlu0 %5551
        %5553 = vrot.lane.b32.xlu0 %v1418, 39
        %v5554 = vpop.permute.xlu0 %5553
        %5555 = vrot.lane.b32.xlu0 %v1419, 39
        %v5556 = vpop.permute.xlu0 %5555
        %5557 = vrot.lane.b32.xlu0 %v1420, 39
        %v5558 = vpop.permute.xlu0 %5557
        %5559 = vrot.lane.b32.xlu0 %v1421, 39
        %v5560 = vpop.permute.xlu0 %5559
        %5561 = vrot.lane.b32.xlu0 %v1422, 39
        %v5562 = vpop.permute.xlu0 %5561
        %5563 = vrot.lane.b32.xlu0 %v1423, 39
        %v5564 = vpop.permute.xlu0 %5563
        %5565 = vrot.lane.b32.xlu0 %v1424, 39
        %v5566 = vpop.permute.xlu0 %5565
        %5567 = vrot.lane.b32.xlu0 %v4583, 39
        %v5568 = vpop.permute.xlu0 %5567
        %5569 = vrot.lane.b32.xlu0 %v5535, 39
        %v5570 = vpop.permute.xlu0 %5569
        %5571 = vrot.lane.b32.xlu0 %v1427, 39
        %v5572 = vpop.permute.xlu0 %5571
        %5573 = vrot.lane.b32.xlu0 %v1428, 39
        %v5574 = vpop.permute.xlu0 %5573
        %5575 = vrot.lane.b32.xlu0 %v1429, 39
        %v5576 = vpop.permute.xlu0 %5575
        %5577 = vrot.lane.b32.xlu0 %v1430, 39
        %v5578 = vpop.permute.xlu0 %5577
        %5579 = vrot.lane.b32.xlu0 %v1431, 39
        %v5580 = vpop.permute.xlu0 %5579
        %5581 = vrot.lane.b32.xlu0 %v1432, 39
        %v5582 = vpop.permute.xlu0 %5581
        %5583 = vrot.lane.b32.xlu0 %v1433, 39
        %v5584 = vpop.permute.xlu0 %5583
        %5585 = vrot.lane.b32.xlu0 %v1434, 39
        %v5586 = vpop.permute.xlu0 %5585
        %5587 = vrot.lane.b32.xlu0 %v1435, 39
        %v5588 = vpop.permute.xlu0 %5587
        %5589 = vrot.lane.b32.xlu0 %v1436, 39
        %v5590 = vpop.permute.xlu0 %5589
        %5591 = vrot.lane.b32.xlu0 %v1437, 39
        %v5592 = vpop.permute.xlu0 %5591
        %5593 = vrot.lane.b32.xlu0 %v1438, 39
        %v5594 = vpop.permute.xlu0 %5593
        %5595 = vrot.lane.b32.xlu0 %v1439, 39
        %v5596 = vpop.permute.xlu0 %5595
        %5597 = vrot.lane.b32.xlu0 %v1440, 39
        %v5598 = vpop.permute.xlu0 %5597
        %5599 = vrot.lane.b32.xlu0 %v4584, 39
        %v5600 = vpop.permute.xlu0 %5599
        %5601 = vrot.lane.b32.xlu0 %v5536, 39
        %v5602 = vpop.permute.xlu0 %5601
        %5603 = vrot.lane.b32.xlu0 %v1443, 39
        %v5604 = vpop.permute.xlu0 %5603
        %5605 = vrot.lane.b32.xlu0 %v1444, 39
        %v5606 = vpop.permute.xlu0 %5605
        %5607 = vrot.lane.b32.xlu0 %v1445, 39
        %v5608 = vpop.permute.xlu0 %5607
        %5609 = vrot.lane.b32.xlu0 %v1446, 39
        %v5610 = vpop.permute.xlu0 %5609
        %5611 = vrot.lane.b32.xlu0 %v1447, 39
        %v5612 = vpop.permute.xlu0 %5611
        %5613 = vrot.lane.b32.xlu0 %v1448, 39
        %v5614 = vpop.permute.xlu0 %5613
        %5615 = vrot.lane.b32.xlu0 %v1449, 39
        %v5616 = vpop.permute.xlu0 %5615
        %5617 = vrot.lane.b32.xlu0 %v1450, 39
        %v5618 = vpop.permute.xlu0 %5617
        %5619 = vrot.lane.b32.xlu0 %v1451, 39
        %v5620 = vpop.permute.xlu0 %5619
        %5621 = vrot.lane.b32.xlu0 %v1452, 39
        %v5622 = vpop.permute.xlu0 %5621
        %5623 = vrot.lane.b32.xlu0 %v1453, 39
        %v5624 = vpop.permute.xlu0 %5623
        %5625 = vrot.lane.b32.xlu0 %v1454, 39
        %v5626 = vpop.permute.xlu0 %5625
        %5627 = vrot.lane.b32.xlu0 %v1455, 39
        %v5628 = vpop.permute.xlu0 %5627
        %5629 = vrot.lane.b32.xlu0 %v1456, 39
        %v5630 = vpop.permute.xlu0 %5629
        %5631 = vrot.lane.b32.xlu0 %v4585, 39
        %v5632 = vpop.permute.xlu0 %5631
        %5633 = vrot.lane.b32.xlu0 %v5537, 39
        %v5634 = vpop.permute.xlu0 %5633
        %5635 = vrot.lane.b32.xlu0 %v1459, 39
        %v5636 = vpop.permute.xlu0 %5635
        %5637 = vrot.lane.b32.xlu0 %v1460, 39
        %v5638 = vpop.permute.xlu0 %5637
        %5639 = vrot.lane.b32.xlu0 %v1461, 39
        %v5640 = vpop.permute.xlu0 %5639
        %5641 = vrot.lane.b32.xlu0 %v1462, 39
        %v5642 = vpop.permute.xlu0 %5641
        %5643 = vrot.lane.b32.xlu0 %v1463, 39
        %v5644 = vpop.permute.xlu0 %5643
        %5645 = vrot.lane.b32.xlu0 %v1464, 39
        %v5646 = vpop.permute.xlu0 %5645
        %5647 = vrot.lane.b32.xlu0 %v1465, 39
        %v5648 = vpop.permute.xlu0 %5647
        %5649 = vrot.lane.b32.xlu0 %v1466, 39
        %v5650 = vpop.permute.xlu0 %5649
        %5651 = vrot.lane.b32.xlu0 %v1467, 39
        %v5652 = vpop.permute.xlu0 %5651
        %5653 = vrot.lane.b32.xlu0 %v1468, 39
        %v5654 = vpop.permute.xlu0 %5653
        %5655 = vrot.lane.b32.xlu0 %v1469, 39
        %v5656 = vpop.permute.xlu0 %5655
        %5657 = vrot.lane.b32.xlu0 %v1470, 39
        %v5658 = vpop.permute.xlu0 %5657
        %5659 = vrot.lane.b32.xlu0 %v1471, 39
        %v5660 = vpop.permute.xlu0 %5659
        %5661 = vrot.lane.b32.xlu0 %v1472, 39
        %v5662 = vpop.permute.xlu0 %5661
        %5663 = vrot.lane.b32.xlu0 %v4586, 39
        %v5664 = vpop.permute.xlu0 %5663
        %5665 = vrot.lane.b32.xlu0 %v5538, 39
        %v5666 = vpop.permute.xlu0 %5665
        %v5671 = vunpack.c.l.b16 %v400
        %v5672 = vunpack.c.l.b16 %v454
        %v5673 = vunpack.c.l.b16 %v508
        %v5674 = vunpack.c.l.b16 %v562
        %v5675 = vpack.c.b16 %v5671, %v5671
        %v5676 = vpack.c.b16 %v5672, %v5672
        %v5677 = vpack.c.b16 %v5673, %v5673
        %v5678 = vpack.c.b16 %v5674, %v5674
        %v5680 = vshrl.u32 %v5387, 16
        %v5682 = vshll.u32 %v5387, 16
        %v5684 = vrot.slane %v5682, 1
        %v5685 = vor.u32 %v5680, %v5684
        %v5687 = vshll.u32 %v5675, 16
        %v5689 = vrot.slane %v5687, 1
        %v5690 = vsel %vm1793, %v5685, %v5689
        %v5692 = vshrl.u32 %v5388, 16
        %v5694 = vshll.u32 %v5388, 16
        %v5696 = vrot.slane %v5694, 1
        %v5697 = vor.u32 %v5692, %v5696
        %v5699 = vshll.u32 %v5676, 16
        %v5701 = vrot.slane %v5699, 1
        %v5702 = vsel %vm1793, %v5697, %v5701
        %v5704 = vshrl.u32 %v5389, 16
        %v5706 = vshll.u32 %v5389, 16
        %v5708 = vrot.slane %v5706, 1
        %v5709 = vor.u32 %v5704, %v5708
        %v5711 = vshll.u32 %v5677, 16
        %v5713 = vrot.slane %v5711, 1
        %v5714 = vsel %vm1793, %v5709, %v5713
        %v5716 = vshrl.u32 %v5390, 16
        %v5718 = vshll.u32 %v5390, 16
        %v5720 = vrot.slane %v5718, 1
        %v5721 = vor.u32 %v5716, %v5720
        %v5723 = vshll.u32 %v5678, 16
        %v5725 = vrot.slane %v5723, 1
        %v5726 = vsel %vm1793, %v5721, %v5725
        %5727 = vrot.lane.b32.xlu0 %v1829, 42
        %v5728 = vpop.permute.xlu0 %5727
        %5729 = vrot.lane.b32.xlu0 %v1841, 42
        %v5730 = vpop.permute.xlu0 %5729
        %5731 = vrot.lane.b32.xlu0 %v1853, 42
        %v5732 = vpop.permute.xlu0 %5731
        %5733 = vrot.lane.b32.xlu0 %v1865, 42
        %v5734 = vpop.permute.xlu0 %5733
        %5735 = vrot.lane.b32.xlu0 %v1877, 42
        %v5736 = vpop.permute.xlu0 %5735
        %5737 = vrot.lane.b32.xlu0 %v1889, 42
        %v5738 = vpop.permute.xlu0 %5737
        %5739 = vrot.lane.b32.xlu0 %v1901, 42
        %v5740 = vpop.permute.xlu0 %5739
        %5741 = vrot.lane.b32.xlu0 %v1913, 42
        %v5742 = vpop.permute.xlu0 %5741
        %5743 = vrot.lane.b32.xlu0 %v1925, 42
        %v5744 = vpop.permute.xlu0 %5743
        %5745 = vrot.lane.b32.xlu0 %v1937, 42
        %v5746 = vpop.permute.xlu0 %5745
        %5747 = vrot.lane.b32.xlu0 %v1949, 42
        %v5748 = vpop.permute.xlu0 %5747
        %5749 = vrot.lane.b32.xlu0 %v1961, 42
        %v5750 = vpop.permute.xlu0 %5749
        %5751 = vrot.lane.b32.xlu0 %v1973, 42
        %v5752 = vpop.permute.xlu0 %5751
        %5753 = vrot.lane.b32.xlu0 %v1985, 42
        %v5754 = vpop.permute.xlu0 %5753
        %5755 = vrot.lane.b32.xlu0 %v4738, 42
        %v5756 = vpop.permute.xlu0 %5755
        %5757 = vrot.lane.b32.xlu0 %v5690, 42
        %v5758 = vpop.permute.xlu0 %5757
        %5759 = vrot.lane.b32.xlu0 %v2021, 42
        %v5760 = vpop.permute.xlu0 %5759
        %5761 = vrot.lane.b32.xlu0 %v2033, 42
        %v5762 = vpop.permute.xlu0 %5761
        %5763 = vrot.lane.b32.xlu0 %v2045, 42
        %v5764 = vpop.permute.xlu0 %5763
        %5765 = vrot.lane.b32.xlu0 %v2057, 42
        %v5766 = vpop.permute.xlu0 %5765
        %5767 = vrot.lane.b32.xlu0 %v2069, 42
        %v5768 = vpop.permute.xlu0 %5767
        %5769 = vrot.lane.b32.xlu0 %v2081, 42
        %v5770 = vpop.permute.xlu0 %5769
        %5771 = vrot.lane.b32.xlu0 %v2093, 42
        %v5772 = vpop.permute.xlu0 %5771
        %5773 = vrot.lane.b32.xlu0 %v2105, 42
        %v5774 = vpop.permute.xlu0 %5773
        %5775 = vrot.lane.b32.xlu0 %v2117, 42
        %v5776 = vpop.permute.xlu0 %5775
        %5777 = vrot.lane.b32.xlu0 %v2129, 42
        %v5778 = vpop.permute.xlu0 %5777
        %5779 = vrot.lane.b32.xlu0 %v2141, 42
        %v5780 = vpop.permute.xlu0 %5779
        %5781 = vrot.lane.b32.xlu0 %v2153, 42
        %v5782 = vpop.permute.xlu0 %5781
        %5783 = vrot.lane.b32.xlu0 %v2165, 42
        %v5784 = vpop.permute.xlu0 %5783
        %5785 = vrot.lane.b32.xlu0 %v2177, 42
        %v5786 = vpop.permute.xlu0 %5785
        %5787 = vrot.lane.b32.xlu0 %v4750, 42
        %v5788 = vpop.permute.xlu0 %5787
        %5789 = vrot.lane.b32.xlu0 %v5702, 42
        %v5790 = vpop.permute.xlu0 %5789
        %5791 = vrot.lane.b32.xlu0 %v2213, 42
        %v5792 = vpop.permute.xlu0 %5791
        %5793 = vrot.lane.b32.xlu0 %v2225, 42
        %v5794 = vpop.permute.xlu0 %5793
        %5795 = vrot.lane.b32.xlu0 %v2237, 42
        %v5796 = vpop.permute.xlu0 %5795
        %5797 = vrot.lane.b32.xlu0 %v2249, 42
        %v5798 = vpop.permute.xlu0 %5797
        %5799 = vrot.lane.b32.xlu0 %v2261, 42
        %v5800 = vpop.permute.xlu0 %5799
        %5801 = vrot.lane.b32.xlu0 %v2273, 42
        %v5802 = vpop.permute.xlu0 %5801
        %5803 = vrot.lane.b32.xlu0 %v2285, 42
        %v5804 = vpop.permute.xlu0 %5803
        %5805 = vrot.lane.b32.xlu0 %v2297, 42
        %v5806 = vpop.permute.xlu0 %5805
        %5807 = vrot.lane.b32.xlu0 %v2309, 42
        %v5808 = vpop.permute.xlu0 %5807
        %5809 = vrot.lane.b32.xlu0 %v2321, 42
        %v5810 = vpop.permute.xlu0 %5809
        %5811 = vrot.lane.b32.xlu0 %v2333, 42
        %v5812 = vpop.permute.xlu0 %5811
        %5813 = vrot.lane.b32.xlu0 %v2345, 42
        %v5814 = vpop.permute.xlu0 %5813
        %5815 = vrot.lane.b32.xlu0 %v2357, 42
        %v5816 = vpop.permute.xlu0 %5815
        %5817 = vrot.lane.b32.xlu0 %v2369, 42
        %v5818 = vpop.permute.xlu0 %5817
        %5819 = vrot.lane.b32.xlu0 %v4762, 42
        %v5820 = vpop.permute.xlu0 %5819
        %5821 = vrot.lane.b32.xlu0 %v5714, 42
        %v5822 = vpop.permute.xlu0 %5821
        %5823 = vrot.lane.b32.xlu0 %v2405, 42
        %v5824 = vpop.permute.xlu0 %5823
        %5825 = vrot.lane.b32.xlu0 %v2417, 42
        %v5826 = vpop.permute.xlu0 %5825
        %5827 = vrot.lane.b32.xlu0 %v2429, 42
        %v5828 = vpop.permute.xlu0 %5827
        %5829 = vrot.lane.b32.xlu0 %v2441, 42
        %v5830 = vpop.permute.xlu0 %5829
        %5831 = vrot.lane.b32.xlu0 %v2453, 42
        %v5832 = vpop.permute.xlu0 %5831
        %5833 = vrot.lane.b32.xlu0 %v2465, 42
        %v5834 = vpop.permute.xlu0 %5833
        %5835 = vrot.lane.b32.xlu0 %v2477, 42
        %v5836 = vpop.permute.xlu0 %5835
        %5837 = vrot.lane.b32.xlu0 %v2489, 42
        %v5838 = vpop.permute.xlu0 %5837
        %5839 = vrot.lane.b32.xlu0 %v2501, 42
        %v5840 = vpop.permute.xlu0 %5839
        %5841 = vrot.lane.b32.xlu0 %v2513, 42
        %v5842 = vpop.permute.xlu0 %5841
        %5843 = vrot.lane.b32.xlu0 %v2525, 42
        %v5844 = vpop.permute.xlu0 %5843
        %5845 = vrot.lane.b32.xlu0 %v2537, 42
        %v5846 = vpop.permute.xlu0 %5845
        %5847 = vrot.lane.b32.xlu0 %v2549, 42
        %v5848 = vpop.permute.xlu0 %5847
        %5849 = vrot.lane.b32.xlu0 %v2561, 42
        %v5850 = vpop.permute.xlu0 %5849
        %5851 = vrot.lane.b32.xlu0 %v4774, 42
        %v5852 = vpop.permute.xlu0 %5851
        %5853 = vrot.lane.b32.xlu0 %v5726, 42
        %v5854 = vpop.permute.xlu0 %5853
        %v5859 = vunpack.c.l.b16 %v670
        %v5860 = vunpack.c.l.b16 %v724
        %v5861 = vunpack.c.l.b16 %v778
        %v5862 = vunpack.c.l.b16 %v832
        %v5863 = vpack.c.b16 %v5859, %v5859
        %v5864 = vpack.c.b16 %v5860, %v5860
        %v5865 = vpack.c.b16 %v5861, %v5861
        %v5866 = vpack.c.b16 %v5862, %v5862
        %v5868 = vshrl.u32 %v5535, 16
        %v5870 = vshll.u32 %v5535, 16
        %v5872 = vrot.slane %v5870, 1
        %v5873 = vor.u32 %v5868, %v5872
        %v5875 = vshll.u32 %v5863, 16
        %v5877 = vrot.slane %v5875, 1
        %v5878 = vsel %vm1793, %v5873, %v5877
        %v5880 = vshrl.u32 %v5536, 16
        %v5882 = vshll.u32 %v5536, 16
        %v5884 = vrot.slane %v5882, 1
        %v5885 = vor.u32 %v5880, %v5884
        %v5887 = vshll.u32 %v5864, 16
        %v5889 = vrot.slane %v5887, 1
        %v5890 = vsel %vm1793, %v5885, %v5889
        %v5892 = vshrl.u32 %v5537, 16
        %v5894 = vshll.u32 %v5537, 16
        %v5896 = vrot.slane %v5894, 1
        %v5897 = vor.u32 %v5892, %v5896
        %v5899 = vshll.u32 %v5865, 16
        %v5901 = vrot.slane %v5899, 1
        %v5902 = vsel %vm1793, %v5897, %v5901
        %v5904 = vshrl.u32 %v5538, 16
        %v5906 = vshll.u32 %v5538, 16
        %v5908 = vrot.slane %v5906, 1
        %v5909 = vor.u32 %v5904, %v5908
        %v5911 = vshll.u32 %v5866, 16
        %v5913 = vrot.slane %v5911, 1
        %v5914 = vsel %vm1793, %v5909, %v5913
        %5915 = vrot.lane.b32.xlu0 %v2917, 45
        %v5916 = vpop.permute.xlu0 %5915
        %5917 = vrot.lane.b32.xlu0 %v2929, 45
        %v5918 = vpop.permute.xlu0 %5917
        %5919 = vrot.lane.b32.xlu0 %v2941, 45
        %v5920 = vpop.permute.xlu0 %5919
        %5921 = vrot.lane.b32.xlu0 %v2953, 45
        %v5922 = vpop.permute.xlu0 %5921
        %5923 = vrot.lane.b32.xlu0 %v2965, 45
        %v5924 = vpop.permute.xlu0 %5923
        %5925 = vrot.lane.b32.xlu0 %v2977, 45
        %v5926 = vpop.permute.xlu0 %5925
        %5927 = vrot.lane.b32.xlu0 %v2989, 45
        %v5928 = vpop.permute.xlu0 %5927
        %5929 = vrot.lane.b32.xlu0 %v3001, 45
        %v5930 = vpop.permute.xlu0 %5929
        %5931 = vrot.lane.b32.xlu0 %v3013, 45
        %v5932 = vpop.permute.xlu0 %5931
        %5933 = vrot.lane.b32.xlu0 %v3025, 45
        %v5934 = vpop.permute.xlu0 %5933
        %5935 = vrot.lane.b32.xlu0 %v3037, 45
        %v5936 = vpop.permute.xlu0 %5935
        %5937 = vrot.lane.b32.xlu0 %v3049, 45
        %v5938 = vpop.permute.xlu0 %5937
        %5939 = vrot.lane.b32.xlu0 %v3061, 45
        %v5940 = vpop.permute.xlu0 %5939
        %5941 = vrot.lane.b32.xlu0 %v3073, 45
        %v5942 = vpop.permute.xlu0 %5941
        %5943 = vrot.lane.b32.xlu0 %v4926, 45
        %v5944 = vpop.permute.xlu0 %5943
        %5945 = vrot.lane.b32.xlu0 %v5878, 45
        %v5946 = vpop.permute.xlu0 %5945
        %5947 = vrot.lane.b32.xlu0 %v3109, 45
        %v5948 = vpop.permute.xlu0 %5947
        %5949 = vrot.lane.b32.xlu0 %v3121, 45
        %v5950 = vpop.permute.xlu0 %5949
        %5951 = vrot.lane.b32.xlu0 %v3133, 45
        %v5952 = vpop.permute.xlu0 %5951
        %5953 = vrot.lane.b32.xlu0 %v3145, 45
        %v5954 = vpop.permute.xlu0 %5953
        %5955 = vrot.lane.b32.xlu0 %v3157, 45
        %v5956 = vpop.permute.xlu0 %5955
        %5957 = vrot.lane.b32.xlu0 %v3169, 45
        %v5958 = vpop.permute.xlu0 %5957
        %5959 = vrot.lane.b32.xlu0 %v3181, 45
        %v5960 = vpop.permute.xlu0 %5959
        %5961 = vrot.lane.b32.xlu0 %v3193, 45
        %v5962 = vpop.permute.xlu0 %5961
        %5963 = vrot.lane.b32.xlu0 %v3205, 45
        %v5964 = vpop.permute.xlu0 %5963
        %5965 = vrot.lane.b32.xlu0 %v3217, 45
        %v5966 = vpop.permute.xlu0 %5965
        %5967 = vrot.lane.b32.xlu0 %v3229, 45
        %v5968 = vpop.permute.xlu0 %5967
        %5969 = vrot.lane.b32.xlu0 %v3241, 45
        %v5970 = vpop.permute.xlu0 %5969
        %5971 = vrot.lane.b32.xlu0 %v3253, 45
        %v5972 = vpop.permute.xlu0 %5971
        %5973 = vrot.lane.b32.xlu0 %v3265, 45
        %v5974 = vpop.permute.xlu0 %5973
        %5975 = vrot.lane.b32.xlu0 %v4938, 45
        %v5976 = vpop.permute.xlu0 %5975
        %5977 = vrot.lane.b32.xlu0 %v5890, 45
        %v5978 = vpop.permute.xlu0 %5977
        %5979 = vrot.lane.b32.xlu0 %v3301, 45
        %v5980 = vpop.permute.xlu0 %5979
        %5981 = vrot.lane.b32.xlu0 %v3313, 45
        %v5982 = vpop.permute.xlu0 %5981
        %5983 = vrot.lane.b32.xlu0 %v3325, 45
        %v5984 = vpop.permute.xlu0 %5983
        %5985 = vrot.lane.b32.xlu0 %v3337, 45
        %v5986 = vpop.permute.xlu0 %5985
        %5987 = vrot.lane.b32.xlu0 %v3349, 45
        %v5988 = vpop.permute.xlu0 %5987
        %5989 = vrot.lane.b32.xlu0 %v3361, 45
        %v5990 = vpop.permute.xlu0 %5989
        %5991 = vrot.lane.b32.xlu0 %v3373, 45
        %v5992 = vpop.permute.xlu0 %5991
        %5993 = vrot.lane.b32.xlu0 %v3385, 45
        %v5994 = vpop.permute.xlu0 %5993
        %5995 = vrot.lane.b32.xlu0 %v3397, 45
        %v5996 = vpop.permute.xlu0 %5995
        %5997 = vrot.lane.b32.xlu0 %v3409, 45
        %v5998 = vpop.permute.xlu0 %5997
        %5999 = vrot.lane.b32.xlu0 %v3421, 45
        %v6000 = vpop.permute.xlu0 %5999
        %6001 = vrot.lane.b32.xlu0 %v3433, 45
        %v6002 = vpop.permute.xlu0 %6001
        %6003 = vrot.lane.b32.xlu0 %v3445, 45
        %v6004 = vpop.permute.xlu0 %6003
        %6005 = vrot.lane.b32.xlu0 %v3457, 45
        %v6006 = vpop.permute.xlu0 %6005
        %6007 = vrot.lane.b32.xlu0 %v4950, 45
        %v6008 = vpop.permute.xlu0 %6007
        %6009 = vrot.lane.b32.xlu0 %v5902, 45
        %v6010 = vpop.permute.xlu0 %6009
        %6011 = vrot.lane.b32.xlu0 %v3493, 45
        %v6012 = vpop.permute.xlu0 %6011
        %6013 = vrot.lane.b32.xlu0 %v3505, 45
        %v6014 = vpop.permute.xlu0 %6013
        %6015 = vrot.lane.b32.xlu0 %v3517, 45
        %v6016 = vpop.permute.xlu0 %6015
        %6017 = vrot.lane.b32.xlu0 %v3529, 45
        %v6018 = vpop.permute.xlu0 %6017
        %6019 = vrot.lane.b32.xlu0 %v3541, 45
        %v6020 = vpop.permute.xlu0 %6019
        %6021 = vrot.lane.b32.xlu0 %v3553, 45
        %v6022 = vpop.permute.xlu0 %6021
        %6023 = vrot.lane.b32.xlu0 %v3565, 45
        %v6024 = vpop.permute.xlu0 %6023
        %6025 = vrot.lane.b32.xlu0 %v3577, 45
        %v6026 = vpop.permute.xlu0 %6025
        %6027 = vrot.lane.b32.xlu0 %v3589, 45
        %v6028 = vpop.permute.xlu0 %6027
        %6029 = vrot.lane.b32.xlu0 %v3601, 45
        %v6030 = vpop.permute.xlu0 %6029
        %6031 = vrot.lane.b32.xlu0 %v3613, 45
        %v6032 = vpop.permute.xlu0 %6031
        %6033 = vrot.lane.b32.xlu0 %v3625, 45
        %v6034 = vpop.permute.xlu0 %6033
        %6035 = vrot.lane.b32.xlu0 %v3637, 45
        %v6036 = vpop.permute.xlu0 %6035
        %6037 = vrot.lane.b32.xlu0 %v3649, 45
        %v6038 = vpop.permute.xlu0 %6037
        %6039 = vrot.lane.b32.xlu0 %v4962, 45
        %v6040 = vpop.permute.xlu0 %6039
        %6041 = vrot.lane.b32.xlu0 %v5914, 45
        %v6042 = vpop.permute.xlu0 %6041
        %vm6043 = vcmask 23552
        %v6045 = vsel %vm6043, %v1089, %v1474
        %v6047 = vsel %vm6043, %v1090, %v1476
        %v6049 = vsel %vm6043, %v1091, %v1478
        %v6051 = vsel %vm6043, %v1092, %v1480
        %v6053 = vsel %vm6043, %v1093, %v1482
        %v6055 = vsel %vm6043, %v1094, %v1484
        %v6057 = vsel %vm6043, %v1095, %v1486
        %v6059 = vsel %vm6043, %v1096, %v1488
        %v6061 = vsel %vm6043, %v1097, %v1490
        %v6063 = vsel %vm6043, %v1098, %v1492
        %v6065 = vsel %vm6043, %v1099, %v1494
        %v6067 = vsel %vm6043, %v1100, %v1496
        %v6069 = vsel %vm6043, %v1101, %v1498
        %v6071 = vsel %vm6043, %v1102, %v1500
        %v6073 = vsel %vm6043, %v1103, %v1502
        %v6075 = vsel %vm6043, %v1104, %v1504
        %v6077 = vsel %vm6043, %v1105, %v1506
        %v6079 = vsel %vm6043, %v1106, %v1508
        %v6081 = vsel %vm6043, %v1107, %v1510
        %v6083 = vsel %vm6043, %v1108, %v1512
        %v6085 = vsel %vm6043, %v1109, %v1514
        %v6087 = vsel %vm6043, %v1110, %v1516
        %v6089 = vsel %vm6043, %v1111, %v1518
        %v6091 = vsel %vm6043, %v1112, %v1520
        %v6093 = vsel %vm6043, %v1113, %v1522
        %v6095 = vsel %vm6043, %v1114, %v1524
        %v6097 = vsel %vm6043, %v1115, %v1526
        %v6099 = vsel %vm6043, %v1116, %v1528
        %v6101 = vsel %vm6043, %v1117, %v1530
        %v6103 = vsel %vm6043, %v1118, %v1532
        %v6105 = vsel %vm6043, %v1119, %v1534
        %v6107 = vsel %vm6043, %v1120, %v1536
        %v6109 = vsel %vm6043, %v1121, %v1538
        %v6111 = vsel %vm6043, %v1122, %v1540
        %v6113 = vsel %vm6043, %v1123, %v1542
        %v6115 = vsel %vm6043, %v1124, %v1544
        %v6117 = vsel %vm6043, %v1125, %v1546
        %v6119 = vsel %vm6043, %v1126, %v1548
        %v6121 = vsel %vm6043, %v1127, %v1550
        %v6123 = vsel %vm6043, %v1128, %v1552
        %v6125 = vsel %vm6043, %v1129, %v1554
        %v6127 = vsel %vm6043, %v1130, %v1556
        %v6129 = vsel %vm6043, %v1131, %v1558
        %v6131 = vsel %vm6043, %v1132, %v1560
        %v6133 = vsel %vm6043, %v1133, %v1562
        %v6135 = vsel %vm6043, %v1134, %v1564
        %v6137 = vsel %vm6043, %v1135, %v1566
        %v6139 = vsel %vm6043, %v1136, %v1568
        %v6141 = vsel %vm6043, %v1137, %v1570
        %v6143 = vsel %vm6043, %v1138, %v1572
        %v6145 = vsel %vm6043, %v1139, %v1574
        %v6147 = vsel %vm6043, %v1140, %v1576
        %v6149 = vsel %vm6043, %v1141, %v1578
        %v6151 = vsel %vm6043, %v1142, %v1580
        %v6153 = vsel %vm6043, %v1143, %v1582
        %v6155 = vsel %vm6043, %v1144, %v1584
        %v6157 = vsel %vm6043, %v1145, %v1586
        %v6159 = vsel %vm6043, %v1146, %v1588
        %v6161 = vsel %vm6043, %v1147, %v1590
        %v6163 = vsel %vm6043, %v1148, %v1592
        %v6165 = vsel %vm6043, %v1149, %v1594
        %v6167 = vsel %vm6043, %v1150, %v1596
        %v6169 = vsel %vm6043, %v1151, %v1598
        %v6171 = vsel %vm6043, %v1152, %v1600
        %vm6172 = vcmask 48128
        %v6174 = vsel %vm6172, %v6045, %v2563
        %v6176 = vsel %vm6172, %v6047, %v2565
        %v6178 = vsel %vm6172, %v6049, %v2567
        %v6180 = vsel %vm6172, %v6051, %v2569
        %v6182 = vsel %vm6172, %v6053, %v2571
        %v6184 = vsel %vm6172, %v6055, %v2573
        %v6186 = vsel %vm6172, %v6057, %v2575
        %v6188 = vsel %vm6172, %v6059, %v2577
        %v6190 = vsel %vm6172, %v6061, %v2579
        %v6192 = vsel %vm6172, %v6063, %v2581
        %v6194 = vsel %vm6172, %v6065, %v2583
        %v6196 = vsel %vm6172, %v6067, %v2585
        %v6198 = vsel %vm6172, %v6069, %v2587
        %v6200 = vsel %vm6172, %v6071, %v2589
        %v6202 = vsel %vm6172, %v6073, %v2591
        %v6204 = vsel %vm6172, %v6075, %v2593
        %v6206 = vsel %vm6172, %v6077, %v2595
        %v6208 = vsel %vm6172, %v6079, %v2597
        %v6210 = vsel %vm6172, %v6081, %v2599
        %v6212 = vsel %vm6172, %v6083, %v2601
        %v6214 = vsel %vm6172, %v6085, %v2603
        %v6216 = vsel %vm6172, %v6087, %v2605
        %v6218 = vsel %vm6172, %v6089, %v2607
        %v6220 = vsel %vm6172, %v6091, %v2609
        %v6222 = vsel %vm6172, %v6093, %v2611
        %v6224 = vsel %vm6172, %v6095, %v2613
        %v6226 = vsel %vm6172, %v6097, %v2615
        %v6228 = vsel %vm6172, %v6099, %v2617
        %v6230 = vsel %vm6172, %v6101, %v2619
        %v6232 = vsel %vm6172, %v6103, %v2621
        %v6234 = vsel %vm6172, %v6105, %v2623
        %v6236 = vsel %vm6172, %v6107, %v2625
        %v6238 = vsel %vm6172, %v6109, %v2627
        %v6240 = vsel %vm6172, %v6111, %v2629
        %v6242 = vsel %vm6172, %v6113, %v2631
        %v6244 = vsel %vm6172, %v6115, %v2633
        %v6246 = vsel %vm6172, %v6117, %v2635
        %v6248 = vsel %vm6172, %v6119, %v2637
        %v6250 = vsel %vm6172, %v6121, %v2639
        %v6252 = vsel %vm6172, %v6123, %v2641
        %v6254 = vsel %vm6172, %v6125, %v2643
        %v6256 = vsel %vm6172, %v6127, %v2645
        %v6258 = vsel %vm6172, %v6129, %v2647
        %v6260 = vsel %vm6172, %v6131, %v2649
        %v6262 = vsel %vm6172, %v6133, %v2651
        %v6264 = vsel %vm6172, %v6135, %v2653
        %v6266 = vsel %vm6172, %v6137, %v2655
        %v6268 = vsel %vm6172, %v6139, %v2657
        %v6270 = vsel %vm6172, %v6141, %v2659
        %v6272 = vsel %vm6172, %v6143, %v2661
        %v6274 = vsel %vm6172, %v6145, %v2663
        %v6276 = vsel %vm6172, %v6147, %v2665
        %v6278 = vsel %vm6172, %v6149, %v2667
        %v6280 = vsel %vm6172, %v6151, %v2669
        %v6282 = vsel %vm6172, %v6153, %v2671
        %v6284 = vsel %vm6172, %v6155, %v2673
        %v6286 = vsel %vm6172, %v6157, %v2675
        %v6288 = vsel %vm6172, %v6159, %v2677
        %v6290 = vsel %vm6172, %v6161, %v2679
        %v6292 = vsel %vm6172, %v6163, %v2681
        %v6294 = vsel %vm6172, %v6165, %v2683
        %v6296 = vsel %vm6172, %v6167, %v2685
        %v6298 = vsel %vm6172, %v6169, %v2687
        %v6300 = vsel %vm6172, %v6171, %v2689
        %vm6301 = vcmask 72704
        %v6303 = vsel %vm6301, %v6174, %v3651
        %v6305 = vsel %vm6301, %v6176, %v3653
        %v6307 = vsel %vm6301, %v6178, %v3655
        %v6309 = vsel %vm6301, %v6180, %v3657
        %v6311 = vsel %vm6301, %v6182, %v3659
        %v6313 = vsel %vm6301, %v6184, %v3661
        %v6315 = vsel %vm6301, %v6186, %v3663
        %v6317 = vsel %vm6301, %v6188, %v3665
        %v6319 = vsel %vm6301, %v6190, %v3667
        %v6321 = vsel %vm6301, %v6192, %v3669
        %v6323 = vsel %vm6301, %v6194, %v3671
        %v6325 = vsel %vm6301, %v6196, %v3673
        %v6327 = vsel %vm6301, %v6198, %v3675
        %v6329 = vsel %vm6301, %v6200, %v3677
        %v6331 = vsel %vm6301, %v6202, %v3679
        %v6333 = vsel %vm6301, %v6204, %v3681
        %v6335 = vsel %vm6301, %v6206, %v3683
        %v6337 = vsel %vm6301, %v6208, %v3685
        %v6339 = vsel %vm6301, %v6210, %v3687
        %v6341 = vsel %vm6301, %v6212, %v3689
        %v6343 = vsel %vm6301, %v6214, %v3691
        %v6345 = vsel %vm6301, %v6216, %v3693
        %v6347 = vsel %vm6301, %v6218, %v3695
        %v6349 = vsel %vm6301, %v6220, %v3697
        %v6351 = vsel %vm6301, %v6222, %v3699
        %v6353 = vsel %vm6301, %v6224, %v3701
        %v6355 = vsel %vm6301, %v6226, %v3703
        %v6357 = vsel %vm6301, %v6228, %v3705
        %v6359 = vsel %vm6301, %v6230, %v3707
        %v6361 = vsel %vm6301, %v6232, %v3709
        %v6363 = vsel %vm6301, %v6234, %v3711
        %v6365 = vsel %vm6301, %v6236, %v3713
        %v6367 = vsel %vm6301, %v6238, %v3715
        %v6369 = vsel %vm6301, %v6240, %v3717
        %v6371 = vsel %vm6301, %v6242, %v3719
        %v6373 = vsel %vm6301, %v6244, %v3721
        %v6375 = vsel %vm6301, %v6246, %v3723
        %v6377 = vsel %vm6301, %v6248, %v3725
        %v6379 = vsel %vm6301, %v6250, %v3727
        %v6381 = vsel %vm6301, %v6252, %v3729
        %v6383 = vsel %vm6301, %v6254, %v3731
        %v6385 = vsel %vm6301, %v6256, %v3733
        %v6387 = vsel %vm6301, %v6258, %v3735
        %v6389 = vsel %vm6301, %v6260, %v3737
        %v6391 = vsel %vm6301, %v6262, %v3739
        %v6393 = vsel %vm6301, %v6264, %v3741
        %v6395 = vsel %vm6301, %v6266, %v3743
        %v6397 = vsel %vm6301, %v6268, %v3745
        %v6399 = vsel %vm6301, %v6270, %v3747
        %v6401 = vsel %vm6301, %v6272, %v3749
        %v6403 = vsel %vm6301, %v6274, %v3751
        %v6405 = vsel %vm6301, %v6276, %v3753
        %v6407 = vsel %vm6301, %v6278, %v3755
        %v6409 = vsel %vm6301, %v6280, %v3757
        %v6411 = vsel %vm6301, %v6282, %v3759
        %v6413 = vsel %vm6301, %v6284, %v3761
        %v6415 = vsel %vm6301, %v6286, %v3763
        %v6417 = vsel %vm6301, %v6288, %v3765
        %v6419 = vsel %vm6301, %v6290, %v3767
        %v6421 = vsel %vm6301, %v6292, %v3769
        %v6423 = vsel %vm6301, %v6294, %v3771
        %v6425 = vsel %vm6301, %v6296, %v3773
        %v6427 = vsel %vm6301, %v6298, %v3775
        %v6429 = vsel %vm6301, %v6300, %v3777
        %vm6430 = vcmask 97280
        %v6432 = vsel %vm6430, %v6303, %v3972
        %v6434 = vsel %vm6430, %v6305, %v3974
        %v6436 = vsel %vm6430, %v6307, %v3976
        %v6438 = vsel %vm6430, %v6309, %v3978
        %v6440 = vsel %vm6430, %v6311, %v3980
        %v6442 = vsel %vm6430, %v6313, %v3982
        %v6444 = vsel %vm6430, %v6315, %v3984
        %v6446 = vsel %vm6430, %v6317, %v3986
        %v6448 = vsel %vm6430, %v6319, %v3988
        %v6450 = vsel %vm6430, %v6321, %v3990
        %v6452 = vsel %vm6430, %v6323, %v3992
        %v6454 = vsel %vm6430, %v6325, %v3994
        %v6456 = vsel %vm6430, %v6327, %v3996
        %v6458 = vsel %vm6430, %v6329, %v3998
        %v6460 = vsel %vm6430, %v6331, %v4000
        %v6462 = vsel %vm6430, %v6333, %v4002
        %v6464 = vsel %vm6430, %v6335, %v4004
        %v6466 = vsel %vm6430, %v6337, %v4006
        %v6468 = vsel %vm6430, %v6339, %v4008
        %v6470 = vsel %vm6430, %v6341, %v4010
        %v6472 = vsel %vm6430, %v6343, %v4012
        %v6474 = vsel %vm6430, %v6345, %v4014
        %v6476 = vsel %vm6430, %v6347, %v4016
        %v6478 = vsel %vm6430, %v6349, %v4018
        %v6480 = vsel %vm6430, %v6351, %v4020
        %v6482 = vsel %vm6430, %v6353, %v4022
        %v6484 = vsel %vm6430, %v6355, %v4024
        %v6486 = vsel %vm6430, %v6357, %v4026
        %v6488 = vsel %vm6430, %v6359, %v4028
        %v6490 = vsel %vm6430, %v6361, %v4030
        %v6492 = vsel %vm6430, %v6363, %v4032
        %v6494 = vsel %vm6430, %v6365, %v4034
        %v6496 = vsel %vm6430, %v6367, %v4036
        %v6498 = vsel %vm6430, %v6369, %v4038
        %v6500 = vsel %vm6430, %v6371, %v4040
        %v6502 = vsel %vm6430, %v6373, %v4042
        %v6504 = vsel %vm6430, %v6375, %v4044
        %v6506 = vsel %vm6430, %v6377, %v4046
        %v6508 = vsel %vm6430, %v6379, %v4048
        %v6510 = vsel %vm6430, %v6381, %v4050
        %v6512 = vsel %vm6430, %v6383, %v4052
        %v6514 = vsel %vm6430, %v6385, %v4054
        %v6516 = vsel %vm6430, %v6387, %v4056
        %v6518 = vsel %vm6430, %v6389, %v4058
        %v6520 = vsel %vm6430, %v6391, %v4060
        %v6522 = vsel %vm6430, %v6393, %v4062
        %v6524 = vsel %vm6430, %v6395, %v4064
        %v6526 = vsel %vm6430, %v6397, %v4066
        %v6528 = vsel %vm6430, %v6399, %v4068
        %v6530 = vsel %vm6430, %v6401, %v4070
        %v6532 = vsel %vm6430, %v6403, %v4072
        %v6534 = vsel %vm6430, %v6405, %v4074
        %v6536 = vsel %vm6430, %v6407, %v4076
        %v6538 = vsel %vm6430, %v6409, %v4078
        %v6540 = vsel %vm6430, %v6411, %v4080
        %v6542 = vsel %vm6430, %v6413, %v4082
        %v6544 = vsel %vm6430, %v6415, %v4084
        %v6546 = vsel %vm6430, %v6417, %v4086
        %v6548 = vsel %vm6430, %v6419, %v4088
        %v6550 = vsel %vm6430, %v6421, %v4090
        %v6552 = vsel %vm6430, %v6423, %v4092
        %v6554 = vsel %vm6430, %v6425, %v4094
        %v6556 = vsel %vm6430, %v6427, %v4096
        %v6558 = vsel %vm6430, %v6429, %v4098
        %vm6559 = vcmask 121856
        %v6561 = vsel %vm6559, %v6432, %v4292
        %v6563 = vsel %vm6559, %v6434, %v4294
        %v6565 = vsel %vm6559, %v6436, %v4296
        %v6567 = vsel %vm6559, %v6438, %v4298
        %v6569 = vsel %vm6559, %v6440, %v4300
        %v6571 = vsel %vm6559, %v6442, %v4302
        %v6573 = vsel %vm6559, %v6444, %v4304
        %v6575 = vsel %vm6559, %v6446, %v4306
        %v6577 = vsel %vm6559, %v6448, %v4308
        %v6579 = vsel %vm6559, %v6450, %v4310
        %v6581 = vsel %vm6559, %v6452, %v4312
        %v6583 = vsel %vm6559, %v6454, %v4314
        %v6585 = vsel %vm6559, %v6456, %v4316
        %v6587 = vsel %vm6559, %v6458, %v4318
        %v6589 = vsel %vm6559, %v6460, %v4320
        %v6591 = vsel %vm6559, %v6462, %v4322
        %v6593 = vsel %vm6559, %v6464, %v4324
        %v6595 = vsel %vm6559, %v6466, %v4326
        %v6597 = vsel %vm6559, %v6468, %v4328
        %v6599 = vsel %vm6559, %v6470, %v4330
        %v6601 = vsel %vm6559, %v6472, %v4332
        %v6603 = vsel %vm6559, %v6474, %v4334
        %v6605 = vsel %vm6559, %v6476, %v4336
        %v6607 = vsel %vm6559, %v6478, %v4338
        %v6609 = vsel %vm6559, %v6480, %v4340
        %v6611 = vsel %vm6559, %v6482, %v4342
        %v6613 = vsel %vm6559, %v6484, %v4344
        %v6615 = vsel %vm6559, %v6486, %v4346
        %v6617 = vsel %vm6559, %v6488, %v4348
        %v6619 = vsel %vm6559, %v6490, %v4350
        %v6621 = vsel %vm6559, %v6492, %v4352
        %v6623 = vsel %vm6559, %v6494, %v4354
        %v6625 = vsel %vm6559, %v6496, %v4356
        %v6627 = vsel %vm6559, %v6498, %v4358
        %v6629 = vsel %vm6559, %v6500, %v4360
        %v6631 = vsel %vm6559, %v6502, %v4362
        %v6633 = vsel %vm6559, %v6504, %v4364
        %v6635 = vsel %vm6559, %v6506, %v4366
        %v6637 = vsel %vm6559, %v6508, %v4368
        %v6639 = vsel %vm6559, %v6510, %v4370
        %v6641 = vsel %vm6559, %v6512, %v4372
        %v6643 = vsel %vm6559, %v6514, %v4374
        %v6645 = vsel %vm6559, %v6516, %v4376
        %v6647 = vsel %vm6559, %v6518, %v4378
        %v6649 = vsel %vm6559, %v6520, %v4380
        %v6651 = vsel %vm6559, %v6522, %v4382
        %v6653 = vsel %vm6559, %v6524, %v4384
        %v6655 = vsel %vm6559, %v6526, %v4386
        %v6657 = vsel %vm6559, %v6528, %v4388
        %v6659 = vsel %vm6559, %v6530, %v4390
        %v6661 = vsel %vm6559, %v6532, %v4392
        %v6663 = vsel %vm6559, %v6534, %v4394
        %v6665 = vsel %vm6559, %v6536, %v4396
        %v6667 = vsel %vm6559, %v6538, %v4398
        %v6669 = vsel %vm6559, %v6540, %v4400
        %v6671 = vsel %vm6559, %v6542, %v4402
        %v6673 = vsel %vm6559, %v6544, %v4404
        %v6675 = vsel %vm6559, %v6546, %v4406
        %v6677 = vsel %vm6559, %v6548, %v4408
        %v6679 = vsel %vm6559, %v6550, %v4410
        %v6681 = vsel %vm6559, %v6552, %v4412
        %v6683 = vsel %vm6559, %v6554, %v4414
        %v6685 = vsel %vm6559, %v6556, %v4416
        %v6687 = vsel %vm6559, %v6558, %v4418
        %vm6688 = vcmask 146432
        %v6690 = vsel %vm6688, %v6561, %v4440
        %v6692 = vsel %vm6688, %v6563, %v4442
        %v6694 = vsel %vm6688, %v6565, %v4444
        %v6696 = vsel %vm6688, %v6567, %v4446
        %v6698 = vsel %vm6688, %v6569, %v4448
        %v6700 = vsel %vm6688, %v6571, %v4450
        %v6702 = vsel %vm6688, %v6573, %v4452
        %v6704 = vsel %vm6688, %v6575, %v4454
        %v6706 = vsel %vm6688, %v6577, %v4456
        %v6708 = vsel %vm6688, %v6579, %v4458
        %v6710 = vsel %vm6688, %v6581, %v4460
        %v6712 = vsel %vm6688, %v6583, %v4462
        %v6714 = vsel %vm6688, %v6585, %v4464
        %v6716 = vsel %vm6688, %v6587, %v4466
        %v6718 = vsel %vm6688, %v6589, %v4468
        %v6720 = vsel %vm6688, %v6591, %v4470
        %v6722 = vsel %vm6688, %v6593, %v4472
        %v6724 = vsel %vm6688, %v6595, %v4474
        %v6726 = vsel %vm6688, %v6597, %v4476
        %v6728 = vsel %vm6688, %v6599, %v4478
        %v6730 = vsel %vm6688, %v6601, %v4480
        %v6732 = vsel %vm6688, %v6603, %v4482
        %v6734 = vsel %vm6688, %v6605, %v4484
        %v6736 = vsel %vm6688, %v6607, %v4486
        %v6738 = vsel %vm6688, %v6609, %v4488
        %v6740 = vsel %vm6688, %v6611, %v4490
        %v6742 = vsel %vm6688, %v6613, %v4492
        %v6744 = vsel %vm6688, %v6615, %v4494
        %v6746 = vsel %vm6688, %v6617, %v4496
        %v6748 = vsel %vm6688, %v6619, %v4498
        %v6750 = vsel %vm6688, %v6621, %v4500
        %v6752 = vsel %vm6688, %v6623, %v4502
        %v6754 = vsel %vm6688, %v6625, %v4504
        %v6756 = vsel %vm6688, %v6627, %v4506
        %v6758 = vsel %vm6688, %v6629, %v4508
        %v6760 = vsel %vm6688, %v6631, %v4510
        %v6762 = vsel %vm6688, %v6633, %v4512
        %v6764 = vsel %vm6688, %v6635, %v4514
        %v6766 = vsel %vm6688, %v6637, %v4516
        %v6768 = vsel %vm6688, %v6639, %v4518
        %v6770 = vsel %vm6688, %v6641, %v4520
        %v6772 = vsel %vm6688, %v6643, %v4522
        %v6774 = vsel %vm6688, %v6645, %v4524
        %v6776 = vsel %vm6688, %v6647, %v4526
        %v6778 = vsel %vm6688, %v6649, %v4528
        %v6780 = vsel %vm6688, %v6651, %v4530
        %v6782 = vsel %vm6688, %v6653, %v4532
        %v6784 = vsel %vm6688, %v6655, %v4534
        %v6786 = vsel %vm6688, %v6657, %v4536
        %v6788 = vsel %vm6688, %v6659, %v4538
        %v6790 = vsel %vm6688, %v6661, %v4540
        %v6792 = vsel %vm6688, %v6663, %v4542
        %v6794 = vsel %vm6688, %v6665, %v4544
        %v6796 = vsel %vm6688, %v6667, %v4546
        %v6798 = vsel %vm6688, %v6669, %v4548
        %v6800 = vsel %vm6688, %v6671, %v4550
        %v6802 = vsel %vm6688, %v6673, %v4552
        %v6804 = vsel %vm6688, %v6675, %v4554
        %v6806 = vsel %vm6688, %v6677, %v4556
        %v6808 = vsel %vm6688, %v6679, %v4558
        %v6810 = vsel %vm6688, %v6681, %v4560
        %v6812 = vsel %vm6688, %v6683, %v4562
        %v6814 = vsel %vm6688, %v6685, %v4564
        %v6816 = vsel %vm6688, %v6687, %v4566
        %vm6817 = vcmask 171008
        %v6819 = vsel %vm6817, %v6690, %v4588
        %v6821 = vsel %vm6817, %v6692, %v4590
        %v6823 = vsel %vm6817, %v6694, %v4592
        %v6825 = vsel %vm6817, %v6696, %v4594
        %v6827 = vsel %vm6817, %v6698, %v4596
        %v6829 = vsel %vm6817, %v6700, %v4598
        %v6831 = vsel %vm6817, %v6702, %v4600
        %v6833 = vsel %vm6817, %v6704, %v4602
        %v6835 = vsel %vm6817, %v6706, %v4604
        %v6837 = vsel %vm6817, %v6708, %v4606
        %v6839 = vsel %vm6817, %v6710, %v4608
        %v6841 = vsel %vm6817, %v6712, %v4610
        %v6843 = vsel %vm6817, %v6714, %v4612
        %v6845 = vsel %vm6817, %v6716, %v4614
        %v6847 = vsel %vm6817, %v6718, %v4616
        %v6849 = vsel %vm6817, %v6720, %v4618
        %v6851 = vsel %vm6817, %v6722, %v4620
        %v6853 = vsel %vm6817, %v6724, %v4622
        %v6855 = vsel %vm6817, %v6726, %v4624
        %v6857 = vsel %vm6817, %v6728, %v4626
        %v6859 = vsel %vm6817, %v6730, %v4628
        %v6861 = vsel %vm6817, %v6732, %v4630
        %v6863 = vsel %vm6817, %v6734, %v4632
        %v6865 = vsel %vm6817, %v6736, %v4634
        %v6867 = vsel %vm6817, %v6738, %v4636
        %v6869 = vsel %vm6817, %v6740, %v4638
        %v6871 = vsel %vm6817, %v6742, %v4640
        %v6873 = vsel %vm6817, %v6744, %v4642
        %v6875 = vsel %vm6817, %v6746, %v4644
        %v6877 = vsel %vm6817, %v6748, %v4646
        %v6879 = vsel %vm6817, %v6750, %v4648
        %v6881 = vsel %vm6817, %v6752, %v4650
        %v6883 = vsel %vm6817, %v6754, %v4652
        %v6885 = vsel %vm6817, %v6756, %v4654
        %v6887 = vsel %vm6817, %v6758, %v4656
        %v6889 = vsel %vm6817, %v6760, %v4658
        %v6891 = vsel %vm6817, %v6762, %v4660
        %v6893 = vsel %vm6817, %v6764, %v4662
        %v6895 = vsel %vm6817, %v6766, %v4664
        %v6897 = vsel %vm6817, %v6768, %v4666
        %v6899 = vsel %vm6817, %v6770, %v4668
        %v6901 = vsel %vm6817, %v6772, %v4670
        %v6903 = vsel %vm6817, %v6774, %v4672
        %v6905 = vsel %vm6817, %v6776, %v4674
        %v6907 = vsel %vm6817, %v6778, %v4676
        %v6909 = vsel %vm6817, %v6780, %v4678
        %v6911 = vsel %vm6817, %v6782, %v4680
        %v6913 = vsel %vm6817, %v6784, %v4682
        %v6915 = vsel %vm6817, %v6786, %v4684
        %v6917 = vsel %vm6817, %v6788, %v4686
        %v6919 = vsel %vm6817, %v6790, %v4688
        %v6921 = vsel %vm6817, %v6792, %v4690
        %v6923 = vsel %vm6817, %v6794, %v4692
        %v6925 = vsel %vm6817, %v6796, %v4694
        %v6927 = vsel %vm6817, %v6798, %v4696
        %v6929 = vsel %vm6817, %v6800, %v4698
        %v6931 = vsel %vm6817, %v6802, %v4700
        %v6933 = vsel %vm6817, %v6804, %v4702
        %v6935 = vsel %vm6817, %v6806, %v4704
        %v6937 = vsel %vm6817, %v6808, %v4706
        %v6939 = vsel %vm6817, %v6810, %v4708
        %v6941 = vsel %vm6817, %v6812, %v4710
        %v6943 = vsel %vm6817, %v6814, %v4712
        %v6945 = vsel %vm6817, %v6816, %v4714
        %vm6946 = vcmask 195584
        %v6948 = vsel %vm6946, %v6819, %v4776
        %v6950 = vsel %vm6946, %v6821, %v4778
        %v6952 = vsel %vm6946, %v6823, %v4780
        %v6954 = vsel %vm6946, %v6825, %v4782
        %v6956 = vsel %vm6946, %v6827, %v4784
        %v6958 = vsel %vm6946, %v6829, %v4786
        %v6960 = vsel %vm6946, %v6831, %v4788
        %v6962 = vsel %vm6946, %v6833, %v4790
        %v6964 = vsel %vm6946, %v6835, %v4792
        %v6966 = vsel %vm6946, %v6837, %v4794
        %v6968 = vsel %vm6946, %v6839, %v4796
        %v6970 = vsel %vm6946, %v6841, %v4798
        %v6972 = vsel %vm6946, %v6843, %v4800
        %v6974 = vsel %vm6946, %v6845, %v4802
        %v6976 = vsel %vm6946, %v6847, %v4804
        %v6978 = vsel %vm6946, %v6849, %v4806
        %v6980 = vsel %vm6946, %v6851, %v4808
        %v6982 = vsel %vm6946, %v6853, %v4810
        %v6984 = vsel %vm6946, %v6855, %v4812
        %v6986 = vsel %vm6946, %v6857, %v4814
        %v6988 = vsel %vm6946, %v6859, %v4816
        %v6990 = vsel %vm6946, %v6861, %v4818
        %v6992 = vsel %vm6946, %v6863, %v4820
        %v6994 = vsel %vm6946, %v6865, %v4822
        %v6996 = vsel %vm6946, %v6867, %v4824
        %v6998 = vsel %vm6946, %v6869, %v4826
        %v7000 = vsel %vm6946, %v6871, %v4828
        %v7002 = vsel %vm6946, %v6873, %v4830
        %v7004 = vsel %vm6946, %v6875, %v4832
        %v7006 = vsel %vm6946, %v6877, %v4834
        %v7008 = vsel %vm6946, %v6879, %v4836
        %v7010 = vsel %vm6946, %v6881, %v4838
        %v7012 = vsel %vm6946, %v6883, %v4840
        %v7014 = vsel %vm6946, %v6885, %v4842
        %v7016 = vsel %vm6946, %v6887, %v4844
        %v7018 = vsel %vm6946, %v6889, %v4846
        %v7020 = vsel %vm6946, %v6891, %v4848
        %v7022 = vsel %vm6946, %v6893, %v4850
        %v7024 = vsel %vm6946, %v6895, %v4852
        %v7026 = vsel %vm6946, %v6897, %v4854
        %v7028 = vsel %vm6946, %v6899, %v4856
        %v7030 = vsel %vm6946, %v6901, %v4858
        %v7032 = vsel %vm6946, %v6903, %v4860
        %v7034 = vsel %vm6946, %v6905, %v4862
        %v7036 = vsel %vm6946, %v6907, %v4864
        %v7038 = vsel %vm6946, %v6909, %v4866
        %v7040 = vsel %vm6946, %v6911, %v4868
        %v7042 = vsel %vm6946, %v6913, %v4870
        %v7044 = vsel %vm6946, %v6915, %v4872
        %v7046 = vsel %vm6946, %v6917, %v4874
        %v7048 = vsel %vm6946, %v6919, %v4876
        %v7050 = vsel %vm6946, %v6921, %v4878
        %v7052 = vsel %vm6946, %v6923, %v4880
        %v7054 = vsel %vm6946, %v6925, %v4882
        %v7056 = vsel %vm6946, %v6927, %v4884
        %v7058 = vsel %vm6946, %v6929, %v4886
        %v7060 = vsel %vm6946, %v6931, %v4888
        %v7062 = vsel %vm6946, %v6933, %v4890
        %v7064 = vsel %vm6946, %v6935, %v4892
        %v7066 = vsel %vm6946, %v6937, %v4894
        %v7068 = vsel %vm6946, %v6939, %v4896
        %v7070 = vsel %vm6946, %v6941, %v4898
        %v7072 = vsel %vm6946, %v6943, %v4900
        %v7074 = vsel %vm6946, %v6945, %v4902
        %vm7075 = vcmask 220160
        %v7077 = vsel %vm7075, %v6948, %v4964
        %v7079 = vsel %vm7075, %v6950, %v4966
        %v7081 = vsel %vm7075, %v6952, %v4968
        %v7083 = vsel %vm7075, %v6954, %v4970
        %v7085 = vsel %vm7075, %v6956, %v4972
        %v7087 = vsel %vm7075, %v6958, %v4974
        %v7089 = vsel %vm7075, %v6960, %v4976
        %v7091 = vsel %vm7075, %v6962, %v4978
        %v7093 = vsel %vm7075, %v6964, %v4980
        %v7095 = vsel %vm7075, %v6966, %v4982
        %v7097 = vsel %vm7075, %v6968, %v4984
        %v7099 = vsel %vm7075, %v6970, %v4986
        %v7101 = vsel %vm7075, %v6972, %v4988
        %v7103 = vsel %vm7075, %v6974, %v4990
        %v7105 = vsel %vm7075, %v6976, %v4992
        %v7107 = vsel %vm7075, %v6978, %v4994
        %v7109 = vsel %vm7075, %v6980, %v4996
        %v7111 = vsel %vm7075, %v6982, %v4998
        %v7113 = vsel %vm7075, %v6984, %v5000
        %v7115 = vsel %vm7075, %v6986, %v5002
        %v7117 = vsel %vm7075, %v6988, %v5004
        %v7119 = vsel %vm7075, %v6990, %v5006
        %v7121 = vsel %vm7075, %v6992, %v5008
        %v7123 = vsel %vm7075, %v6994, %v5010
        %v7125 = vsel %vm7075, %v6996, %v5012
        %v7127 = vsel %vm7075, %v6998, %v5014
        %v7129 = vsel %vm7075, %v7000, %v5016
        %v7131 = vsel %vm7075, %v7002, %v5018
        %v7133 = vsel %vm7075, %v7004, %v5020
        %v7135 = vsel %vm7075, %v7006, %v5022
        %v7137 = vsel %vm7075, %v7008, %v5024
        %v7139 = vsel %vm7075, %v7010, %v5026
        %v7141 = vsel %vm7075, %v7012, %v5028
        %v7143 = vsel %vm7075, %v7014, %v5030
        %v7145 = vsel %vm7075, %v7016, %v5032
        %v7147 = vsel %vm7075, %v7018, %v5034
        %v7149 = vsel %vm7075, %v7020, %v5036
        %v7151 = vsel %vm7075, %v7022, %v5038
        %v7153 = vsel %vm7075, %v7024, %v5040
        %v7155 = vsel %vm7075, %v7026, %v5042
        %v7157 = vsel %vm7075, %v7028, %v5044
        %v7159 = vsel %vm7075, %v7030, %v5046
        %v7161 = vsel %vm7075, %v7032, %v5048
        %v7163 = vsel %vm7075, %v7034, %v5050
        %v7165 = vsel %vm7075, %v7036, %v5052
        %v7167 = vsel %vm7075, %v7038, %v5054
        %v7169 = vsel %vm7075, %v7040, %v5056
        %v7171 = vsel %vm7075, %v7042, %v5058
        %v7173 = vsel %vm7075, %v7044, %v5060
        %v7175 = vsel %vm7075, %v7046, %v5062
        %v7177 = vsel %vm7075, %v7048, %v5064
        %v7179 = vsel %vm7075, %v7050, %v5066
        %v7181 = vsel %vm7075, %v7052, %v5068
        %v7183 = vsel %vm7075, %v7054, %v5070
        %v7185 = vsel %vm7075, %v7056, %v5072
        %v7187 = vsel %vm7075, %v7058, %v5074
        %v7189 = vsel %vm7075, %v7060, %v5076
        %v7191 = vsel %vm7075, %v7062, %v5078
        %v7193 = vsel %vm7075, %v7064, %v5080
        %v7195 = vsel %vm7075, %v7066, %v5082
        %v7197 = vsel %vm7075, %v7068, %v5084
        %v7199 = vsel %vm7075, %v7070, %v5086
        %v7201 = vsel %vm7075, %v7072, %v5088
        %v7203 = vsel %vm7075, %v7074, %v5090
        %vm7204 = vcmask 244736
        %v7206 = vsel %vm7204, %v7077, %v5104
        %v7208 = vsel %vm7204, %v7079, %v5106
        %v7210 = vsel %vm7204, %v7081, %v5108
        %v7212 = vsel %vm7204, %v7083, %v5110
        %v7214 = vsel %vm7204, %v7085, %v5112
        %v7216 = vsel %vm7204, %v7087, %v5114
        %v7218 = vsel %vm7204, %v7089, %v5116
        %v7220 = vsel %vm7204, %v7091, %v5118
        %v7222 = vsel %vm7204, %v7093, %v5120
        %v7224 = vsel %vm7204, %v7095, %v5122
        %v7226 = vsel %vm7204, %v7097, %v5124
        %v7228 = vsel %vm7204, %v7099, %v5126
        %v7230 = vsel %vm7204, %v7101, %v5128
        %v7232 = vsel %vm7204, %v7103, %v5130
        %v7234 = vsel %vm7204, %v7105, %v5132
        %v7236 = vsel %vm7204, %v7107, %v5134
        %v7238 = vsel %vm7204, %v7109, %v5136
        %v7240 = vsel %vm7204, %v7111, %v5138
        %v7242 = vsel %vm7204, %v7113, %v5140
        %v7244 = vsel %vm7204, %v7115, %v5142
        %v7246 = vsel %vm7204, %v7117, %v5144
        %v7248 = vsel %vm7204, %v7119, %v5146
        %v7250 = vsel %vm7204, %v7121, %v5148
        %v7252 = vsel %vm7204, %v7123, %v5150
        %v7254 = vsel %vm7204, %v7125, %v5152
        %v7256 = vsel %vm7204, %v7127, %v5154
        %v7258 = vsel %vm7204, %v7129, %v5156
        %v7260 = vsel %vm7204, %v7131, %v5158
        %v7262 = vsel %vm7204, %v7133, %v5160
        %v7264 = vsel %vm7204, %v7135, %v5162
        %v7266 = vsel %vm7204, %v7137, %v5164
        %v7268 = vsel %vm7204, %v7139, %v5166
        %v7270 = vsel %vm7204, %v7141, %v5168
        %v7272 = vsel %vm7204, %v7143, %v5170
        %v7274 = vsel %vm7204, %v7145, %v5172
        %v7276 = vsel %vm7204, %v7147, %v5174
        %v7278 = vsel %vm7204, %v7149, %v5176
        %v7280 = vsel %vm7204, %v7151, %v5178
        %v7282 = vsel %vm7204, %v7153, %v5180
        %v7284 = vsel %vm7204, %v7155, %v5182
        %v7286 = vsel %vm7204, %v7157, %v5184
        %v7288 = vsel %vm7204, %v7159, %v5186
        %v7290 = vsel %vm7204, %v7161, %v5188
        %v7292 = vsel %vm7204, %v7163, %v5190
        %v7294 = vsel %vm7204, %v7165, %v5192
        %v7296 = vsel %vm7204, %v7167, %v5194
        %v7298 = vsel %vm7204, %v7169, %v5196
        %v7300 = vsel %vm7204, %v7171, %v5198
        %v7302 = vsel %vm7204, %v7173, %v5200
        %v7304 = vsel %vm7204, %v7175, %v5202
        %v7306 = vsel %vm7204, %v7177, %v5204
        %v7308 = vsel %vm7204, %v7179, %v5206
        %v7310 = vsel %vm7204, %v7181, %v5208
        %v7312 = vsel %vm7204, %v7183, %v5210
        %v7314 = vsel %vm7204, %v7185, %v5212
        %v7316 = vsel %vm7204, %v7187, %v5214
        %v7318 = vsel %vm7204, %v7189, %v5216
        %v7320 = vsel %vm7204, %v7191, %v5218
        %v7322 = vsel %vm7204, %v7193, %v5220
        %v7324 = vsel %vm7204, %v7195, %v5222
        %v7326 = vsel %vm7204, %v7197, %v5224
        %v7328 = vsel %vm7204, %v7199, %v5226
        %v7330 = vsel %vm7204, %v7201, %v5228
        %v7332 = vsel %vm7204, %v7203, %v5230
        %vm7333 = vcmask 269312
        %v7335 = vsel %vm7333, %v7206, %v5244
        %v7337 = vsel %vm7333, %v7208, %v5246
        %v7339 = vsel %vm7333, %v7210, %v5248
        %v7341 = vsel %vm7333, %v7212, %v5250
        %v7343 = vsel %vm7333, %v7214, %v5252
        %v7345 = vsel %vm7333, %v7216, %v5254
        %v7347 = vsel %vm7333, %v7218, %v5256
        %v7349 = vsel %vm7333, %v7220, %v5258
        %v7351 = vsel %vm7333, %v7222, %v5260
        %v7353 = vsel %vm7333, %v7224, %v5262
        %v7355 = vsel %vm7333, %v7226, %v5264
        %v7357 = vsel %vm7333, %v7228, %v5266
        %v7359 = vsel %vm7333, %v7230, %v5268
        %v7361 = vsel %vm7333, %v7232, %v5270
        %v7363 = vsel %vm7333, %v7234, %v5272
        %v7365 = vsel %vm7333, %v7236, %v5274
        %v7367 = vsel %vm7333, %v7238, %v5276
        %v7369 = vsel %vm7333, %v7240, %v5278
        %v7371 = vsel %vm7333, %v7242, %v5280
        %v7373 = vsel %vm7333, %v7244, %v5282
        %v7375 = vsel %vm7333, %v7246, %v5284
        %v7377 = vsel %vm7333, %v7248, %v5286
        %v7379 = vsel %vm7333, %v7250, %v5288
        %v7381 = vsel %vm7333, %v7252, %v5290
        %v7383 = vsel %vm7333, %v7254, %v5292
        %v7385 = vsel %vm7333, %v7256, %v5294
        %v7387 = vsel %vm7333, %v7258, %v5296
        %v7389 = vsel %vm7333, %v7260, %v5298
        %v7391 = vsel %vm7333, %v7262, %v5300
        %v7393 = vsel %vm7333, %v7264, %v5302
        %v7395 = vsel %vm7333, %v7266, %v5304
        %v7397 = vsel %vm7333, %v7268, %v5306
        %v7399 = vsel %vm7333, %v7270, %v5308
        %v7401 = vsel %vm7333, %v7272, %v5310
        %v7403 = vsel %vm7333, %v7274, %v5312
        %v7405 = vsel %vm7333, %v7276, %v5314
        %v7407 = vsel %vm7333, %v7278, %v5316
        %v7409 = vsel %vm7333, %v7280, %v5318
        %v7411 = vsel %vm7333, %v7282, %v5320
        %v7413 = vsel %vm7333, %v7284, %v5322
        %v7415 = vsel %vm7333, %v7286, %v5324
        %v7417 = vsel %vm7333, %v7288, %v5326
        %v7419 = vsel %vm7333, %v7290, %v5328
        %v7421 = vsel %vm7333, %v7292, %v5330
        %v7423 = vsel %vm7333, %v7294, %v5332
        %v7425 = vsel %vm7333, %v7296, %v5334
        %v7427 = vsel %vm7333, %v7298, %v5336
        %v7429 = vsel %vm7333, %v7300, %v5338
        %v7431 = vsel %vm7333, %v7302, %v5340
        %v7433 = vsel %vm7333, %v7304, %v5342
        %v7435 = vsel %vm7333, %v7306, %v5344
        %v7437 = vsel %vm7333, %v7308, %v5346
        %v7439 = vsel %vm7333, %v7310, %v5348
        %v7441 = vsel %vm7333, %v7312, %v5350
        %v7443 = vsel %vm7333, %v7314, %v5352
        %v7445 = vsel %vm7333, %v7316, %v5354
        %v7447 = vsel %vm7333, %v7318, %v5356
        %v7449 = vsel %vm7333, %v7320, %v5358
        %v7451 = vsel %vm7333, %v7322, %v5360
        %v7453 = vsel %vm7333, %v7324, %v5362
        %v7455 = vsel %vm7333, %v7326, %v5364
        %v7457 = vsel %vm7333, %v7328, %v5366
        %v7459 = vsel %vm7333, %v7330, %v5368
        %v7461 = vsel %vm7333, %v7332, %v5370
        %vm7462 = vcmask 293888
        %v7464 = vsel %vm7462, %v7335, %v5392
        %v7466 = vsel %vm7462, %v7337, %v5394
        %v7468 = vsel %vm7462, %v7339, %v5396
        %v7470 = vsel %vm7462, %v7341, %v5398
        %v7472 = vsel %vm7462, %v7343, %v5400
        %v7474 = vsel %vm7462, %v7345, %v5402
        %v7476 = vsel %vm7462, %v7347, %v5404
        %v7478 = vsel %vm7462, %v7349, %v5406
        %v7480 = vsel %vm7462, %v7351, %v5408
        %v7482 = vsel %vm7462, %v7353, %v5410
        %v7484 = vsel %vm7462, %v7355, %v5412
        %v7486 = vsel %vm7462, %v7357, %v5414
        %v7488 = vsel %vm7462, %v7359, %v5416
        %v7490 = vsel %vm7462, %v7361, %v5418
        %v7492 = vsel %vm7462, %v7363, %v5420
        %v7494 = vsel %vm7462, %v7365, %v5422
        %v7496 = vsel %vm7462, %v7367, %v5424
        %v7498 = vsel %vm7462, %v7369, %v5426
        %v7500 = vsel %vm7462, %v7371, %v5428
        %v7502 = vsel %vm7462, %v7373, %v5430
        %v7504 = vsel %vm7462, %v7375, %v5432
        %v7506 = vsel %vm7462, %v7377, %v5434
        %v7508 = vsel %vm7462, %v7379, %v5436
        %v7510 = vsel %vm7462, %v7381, %v5438
        %v7512 = vsel %vm7462, %v7383, %v5440
        %v7514 = vsel %vm7462, %v7385, %v5442
        %v7516 = vsel %vm7462, %v7387, %v5444
        %v7518 = vsel %vm7462, %v7389, %v5446
        %v7520 = vsel %vm7462, %v7391, %v5448
        %v7522 = vsel %vm7462, %v7393, %v5450
        %v7524 = vsel %vm7462, %v7395, %v5452
        %v7526 = vsel %vm7462, %v7397, %v5454
        %v7528 = vsel %vm7462, %v7399, %v5456
        %v7530 = vsel %vm7462, %v7401, %v5458
        %v7532 = vsel %vm7462, %v7403, %v5460
        %v7534 = vsel %vm7462, %v7405, %v5462
        %v7536 = vsel %vm7462, %v7407, %v5464
        %v7538 = vsel %vm7462, %v7409, %v5466
        %v7540 = vsel %vm7462, %v7411, %v5468
        %v7542 = vsel %vm7462, %v7413, %v5470
        %v7544 = vsel %vm7462, %v7415, %v5472
        %v7546 = vsel %vm7462, %v7417, %v5474
        %v7548 = vsel %vm7462, %v7419, %v5476
        %v7550 = vsel %vm7462, %v7421, %v5478
        %v7552 = vsel %vm7462, %v7423, %v5480
        %v7554 = vsel %vm7462, %v7425, %v5482
        %v7556 = vsel %vm7462, %v7427, %v5484
        %v7558 = vsel %vm7462, %v7429, %v5486
        %v7560 = vsel %vm7462, %v7431, %v5488
        %v7562 = vsel %vm7462, %v7433, %v5490
        %v7564 = vsel %vm7462, %v7435, %v5492
        %v7566 = vsel %vm7462, %v7437, %v5494
        %v7568 = vsel %vm7462, %v7439, %v5496
        %v7570 = vsel %vm7462, %v7441, %v5498
        %v7572 = vsel %vm7462, %v7443, %v5500
        %v7574 = vsel %vm7462, %v7445, %v5502
        %v7576 = vsel %vm7462, %v7447, %v5504
        %v7578 = vsel %vm7462, %v7449, %v5506
        %v7580 = vsel %vm7462, %v7451, %v5508
        %v7582 = vsel %vm7462, %v7453, %v5510
        %v7584 = vsel %vm7462, %v7455, %v5512
        %v7586 = vsel %vm7462, %v7457, %v5514
        %v7588 = vsel %vm7462, %v7459, %v5516
        %v7590 = vsel %vm7462, %v7461, %v5518
        %vm7591 = vcmask 318464
        %v7593 = vsel %vm7591, %v7464, %v5540
        %v7595 = vsel %vm7591, %v7466, %v5542
        %v7597 = vsel %vm7591, %v7468, %v5544
        %v7599 = vsel %vm7591, %v7470, %v5546
        %v7601 = vsel %vm7591, %v7472, %v5548
        %v7603 = vsel %vm7591, %v7474, %v5550
        %v7605 = vsel %vm7591, %v7476, %v5552
        %v7607 = vsel %vm7591, %v7478, %v5554
        %v7609 = vsel %vm7591, %v7480, %v5556
        %v7611 = vsel %vm7591, %v7482, %v5558
        %v7613 = vsel %vm7591, %v7484, %v5560
        %v7615 = vsel %vm7591, %v7486, %v5562
        %v7617 = vsel %vm7591, %v7488, %v5564
        %v7619 = vsel %vm7591, %v7490, %v5566
        %v7621 = vsel %vm7591, %v7492, %v5568
        %v7623 = vsel %vm7591, %v7494, %v5570
        %v7625 = vsel %vm7591, %v7496, %v5572
        %v7627 = vsel %vm7591, %v7498, %v5574
        %v7629 = vsel %vm7591, %v7500, %v5576
        %v7631 = vsel %vm7591, %v7502, %v5578
        %v7633 = vsel %vm7591, %v7504, %v5580
        %v7635 = vsel %vm7591, %v7506, %v5582
        %v7637 = vsel %vm7591, %v7508, %v5584
        %v7639 = vsel %vm7591, %v7510, %v5586
        %v7641 = vsel %vm7591, %v7512, %v5588
        %v7643 = vsel %vm7591, %v7514, %v5590
        %v7645 = vsel %vm7591, %v7516, %v5592
        %v7647 = vsel %vm7591, %v7518, %v5594
        %v7649 = vsel %vm7591, %v7520, %v5596
        %v7651 = vsel %vm7591, %v7522, %v5598
        %v7653 = vsel %vm7591, %v7524, %v5600
        %v7655 = vsel %vm7591, %v7526, %v5602
        %v7657 = vsel %vm7591, %v7528, %v5604
        %v7659 = vsel %vm7591, %v7530, %v5606
        %v7661 = vsel %vm7591, %v7532, %v5608
        %v7663 = vsel %vm7591, %v7534, %v5610
        %v7665 = vsel %vm7591, %v7536, %v5612
        %v7667 = vsel %vm7591, %v7538, %v5614
        %v7669 = vsel %vm7591, %v7540, %v5616
        %v7671 = vsel %vm7591, %v7542, %v5618
        %v7673 = vsel %vm7591, %v7544, %v5620
        %v7675 = vsel %vm7591, %v7546, %v5622
        %v7677 = vsel %vm7591, %v7548, %v5624
        %v7679 = vsel %vm7591, %v7550, %v5626
        %v7681 = vsel %vm7591, %v7552, %v5628
        %v7683 = vsel %vm7591, %v7554, %v5630
        %v7685 = vsel %vm7591, %v7556, %v5632
        %v7687 = vsel %vm7591, %v7558, %v5634
        %v7689 = vsel %vm7591, %v7560, %v5636
        %v7691 = vsel %vm7591, %v7562, %v5638
        %v7693 = vsel %vm7591, %v7564, %v5640
        %v7695 = vsel %vm7591, %v7566, %v5642
        %v7697 = vsel %vm7591, %v7568, %v5644
        %v7699 = vsel %vm7591, %v7570, %v5646
        %v7701 = vsel %vm7591, %v7572, %v5648
        %v7703 = vsel %vm7591, %v7574, %v5650
        %v7705 = vsel %vm7591, %v7576, %v5652
        %v7707 = vsel %vm7591, %v7578, %v5654
        %v7709 = vsel %vm7591, %v7580, %v5656
        %v7711 = vsel %vm7591, %v7582, %v5658
        %v7713 = vsel %vm7591, %v7584, %v5660
        %v7715 = vsel %vm7591, %v7586, %v5662
        %v7717 = vsel %vm7591, %v7588, %v5664
        %v7719 = vsel %vm7591, %v7590, %v5666
        %vm7720 = vcmask 343040
        %v7722 = vsel %vm7720, %v7593, %v5728
        %v7724 = vsel %vm7720, %v7595, %v5730
        %v7726 = vsel %vm7720, %v7597, %v5732
        %v7728 = vsel %vm7720, %v7599, %v5734
        %v7730 = vsel %vm7720, %v7601, %v5736
        %v7732 = vsel %vm7720, %v7603, %v5738
        %v7734 = vsel %vm7720, %v7605, %v5740
        %v7736 = vsel %vm7720, %v7607, %v5742
        %v7738 = vsel %vm7720, %v7609, %v5744
        %v7740 = vsel %vm7720, %v7611, %v5746
        %v7742 = vsel %vm7720, %v7613, %v5748
        %v7744 = vsel %vm7720, %v7615, %v5750
        %v7746 = vsel %vm7720, %v7617, %v5752
        %v7748 = vsel %vm7720, %v7619, %v5754
        %v7750 = vsel %vm7720, %v7621, %v5756
        %v7752 = vsel %vm7720, %v7623, %v5758
        %v7754 = vsel %vm7720, %v7625, %v5760
        %v7756 = vsel %vm7720, %v7627, %v5762
        %v7758 = vsel %vm7720, %v7629, %v5764
        %v7760 = vsel %vm7720, %v7631, %v5766
        %v7762 = vsel %vm7720, %v7633, %v5768
        %v7764 = vsel %vm7720, %v7635, %v5770
        %v7766 = vsel %vm7720, %v7637, %v5772
        %v7768 = vsel %vm7720, %v7639, %v5774
        %v7770 = vsel %vm7720, %v7641, %v5776
        %v7772 = vsel %vm7720, %v7643, %v5778
        %v7774 = vsel %vm7720, %v7645, %v5780
        %v7776 = vsel %vm7720, %v7647, %v5782
        %v7778 = vsel %vm7720, %v7649, %v5784
        %v7780 = vsel %vm7720, %v7651, %v5786
        %v7782 = vsel %vm7720, %v7653, %v5788
        %v7784 = vsel %vm7720, %v7655, %v5790
        %v7786 = vsel %vm7720, %v7657, %v5792
        %v7788 = vsel %vm7720, %v7659, %v5794
        %v7790 = vsel %vm7720, %v7661, %v5796
        %v7792 = vsel %vm7720, %v7663, %v5798
        %v7794 = vsel %vm7720, %v7665, %v5800
        %v7796 = vsel %vm7720, %v7667, %v5802
        %v7798 = vsel %vm7720, %v7669, %v5804
        %v7800 = vsel %vm7720, %v7671, %v5806
        %v7802 = vsel %vm7720, %v7673, %v5808
        %v7804 = vsel %vm7720, %v7675, %v5810
        %v7806 = vsel %vm7720, %v7677, %v5812
        %v7808 = vsel %vm7720, %v7679, %v5814
        %v7810 = vsel %vm7720, %v7681, %v5816
        %v7812 = vsel %vm7720, %v7683, %v5818
        %v7814 = vsel %vm7720, %v7685, %v5820
        %v7816 = vsel %vm7720, %v7687, %v5822
        %v7818 = vsel %vm7720, %v7689, %v5824
        %v7820 = vsel %vm7720, %v7691, %v5826
        %v7822 = vsel %vm7720, %v7693, %v5828
        %v7824 = vsel %vm7720, %v7695, %v5830
        %v7826 = vsel %vm7720, %v7697, %v5832
        %v7828 = vsel %vm7720, %v7699, %v5834
        %v7830 = vsel %vm7720, %v7701, %v5836
        %v7832 = vsel %vm7720, %v7703, %v5838
        %v7834 = vsel %vm7720, %v7705, %v5840
        %v7836 = vsel %vm7720, %v7707, %v5842
        %v7838 = vsel %vm7720, %v7709, %v5844
        %v7840 = vsel %vm7720, %v7711, %v5846
        %v7842 = vsel %vm7720, %v7713, %v5848
        %v7844 = vsel %vm7720, %v7715, %v5850
        %v7846 = vsel %vm7720, %v7717, %v5852
        %v7848 = vsel %vm7720, %v7719, %v5854
        %vm7849 = vcmask 367616
        %v7851 = vsel %vm7849, %v7722, %v5916
        %v7853 = vsel %vm7849, %v7724, %v5918
        %v7855 = vsel %vm7849, %v7726, %v5920
        %v7857 = vsel %vm7849, %v7728, %v5922
        %v7859 = vsel %vm7849, %v7730, %v5924
        %v7861 = vsel %vm7849, %v7732, %v5926
        %v7863 = vsel %vm7849, %v7734, %v5928
        %v7865 = vsel %vm7849, %v7736, %v5930
        %v7867 = vsel %vm7849, %v7738, %v5932
        %v7869 = vsel %vm7849, %v7740, %v5934
        %v7871 = vsel %vm7849, %v7742, %v5936
        %v7873 = vsel %vm7849, %v7744, %v5938
        %v7875 = vsel %vm7849, %v7746, %v5940
        %v7877 = vsel %vm7849, %v7748, %v5942
        %v7879 = vsel %vm7849, %v7750, %v5944
        %v7881 = vsel %vm7849, %v7752, %v5946
        %v7883 = vsel %vm7849, %v7754, %v5948
        %v7885 = vsel %vm7849, %v7756, %v5950
        %v7887 = vsel %vm7849, %v7758, %v5952
        %v7889 = vsel %vm7849, %v7760, %v5954
        %v7891 = vsel %vm7849, %v7762, %v5956
        %v7893 = vsel %vm7849, %v7764, %v5958
        %v7895 = vsel %vm7849, %v7766, %v5960
        %v7897 = vsel %vm7849, %v7768, %v5962
        %v7899 = vsel %vm7849, %v7770, %v5964
        %v7901 = vsel %vm7849, %v7772, %v5966
        %v7903 = vsel %vm7849, %v7774, %v5968
        %v7905 = vsel %vm7849, %v7776, %v5970
        %v7907 = vsel %vm7849, %v7778, %v5972
        %v7909 = vsel %vm7849, %v7780, %v5974
        %v7911 = vsel %vm7849, %v7782, %v5976
        %v7913 = vsel %vm7849, %v7784, %v5978
        %v7915 = vsel %vm7849, %v7786, %v5980
        %v7917 = vsel %vm7849, %v7788, %v5982
        %v7919 = vsel %vm7849, %v7790, %v5984
        %v7921 = vsel %vm7849, %v7792, %v5986
        %v7923 = vsel %vm7849, %v7794, %v5988
        %v7925 = vsel %vm7849, %v7796, %v5990
        %v7927 = vsel %vm7849, %v7798, %v5992
        %v7929 = vsel %vm7849, %v7800, %v5994
        %v7931 = vsel %vm7849, %v7802, %v5996
        %v7933 = vsel %vm7849, %v7804, %v5998
        %v7935 = vsel %vm7849, %v7806, %v6000
        %v7937 = vsel %vm7849, %v7808, %v6002
        %v7939 = vsel %vm7849, %v7810, %v6004
        %v7941 = vsel %vm7849, %v7812, %v6006
        %v7943 = vsel %vm7849, %v7814, %v6008
        %v7945 = vsel %vm7849, %v7816, %v6010
        %v7947 = vsel %vm7849, %v7818, %v6012
        %v7949 = vsel %vm7849, %v7820, %v6014
        %v7951 = vsel %vm7849, %v7822, %v6016
        %v7953 = vsel %vm7849, %v7824, %v6018
        %v7955 = vsel %vm7849, %v7826, %v6020
        %v7957 = vsel %vm7849, %v7828, %v6022
        %v7959 = vsel %vm7849, %v7830, %v6024
        %v7961 = vsel %vm7849, %v7832, %v6026
        %v7963 = vsel %vm7849, %v7834, %v6028
        %v7965 = vsel %vm7849, %v7836, %v6030
        %v7967 = vsel %vm7849, %v7838, %v6032
        %v7969 = vsel %vm7849, %v7840, %v6034
        %v7971 = vsel %vm7849, %v7842, %v6036
        %v7973 = vsel %vm7849, %v7844, %v6038
        %v7975 = vsel %vm7849, %v7846, %v6040
        %v7977 = vsel %vm7849, %v7848, %v6042
        %7978 = vrot.lane.b32.xlu0 %v2820, 3
        %v7979 = vpop.permute.xlu0 %7978
        %7980 = vrot.lane.b32.xlu0 %v2821, 3
        %v7981 = vpop.permute.xlu0 %7980
        %7982 = vrot.lane.b32.xlu0 %v2822, 3
        %v7983 = vpop.permute.xlu0 %7982
        %7984 = vrot.lane.b32.xlu0 %v2823, 3
        %v7985 = vpop.permute.xlu0 %7984
        %7986 = vrot.lane.b32.xlu0 %v2824, 3
        %v7987 = vpop.permute.xlu0 %7986
        %7988 = vrot.lane.b32.xlu0 %v2825, 3
        %v7989 = vpop.permute.xlu0 %7988
        %7990 = vrot.lane.b32.xlu0 %v2826, 3
        %v7991 = vpop.permute.xlu0 %7990
        %7992 = vrot.lane.b32.xlu0 %v2827, 3
        %v7993 = vpop.permute.xlu0 %7992
        %7994 = vrot.lane.b32.xlu0 %v2828, 3
        %v7995 = vpop.permute.xlu0 %7994
        %7996 = vrot.lane.b32.xlu0 %v2829, 3
        %v7997 = vpop.permute.xlu0 %7996
        %7998 = vrot.lane.b32.xlu0 %v2830, 3
        %v7999 = vpop.permute.xlu0 %7998
        %8000 = vrot.lane.b32.xlu0 %v2831, 3
        %v8001 = vpop.permute.xlu0 %8000
        %8002 = vrot.lane.b32.xlu0 %v2832, 3
        %v8003 = vpop.permute.xlu0 %8002
        %8004 = vrot.lane.b32.xlu0 %v2833, 3
        %v8005 = vpop.permute.xlu0 %8004
        %8006 = vrot.lane.b32.xlu0 %v4583, 3
        %v8007 = vpop.permute.xlu0 %8006
        %8008 = vrot.lane.b32.xlu0 %v4911, 3
        %v8009 = vpop.permute.xlu0 %8008
        %8010 = vrot.lane.b32.xlu0 %v5535, 3
        %v8011 = vpop.permute.xlu0 %8010
        %8012 = vrot.lane.b32.xlu0 %v5863, 3
        %v8013 = vpop.permute.xlu0 %8012
        %8014 = vrot.lane.b32.xlu0 %v2836, 3
        %v8015 = vpop.permute.xlu0 %8014
        %8016 = vrot.lane.b32.xlu0 %v2837, 3
        %v8017 = vpop.permute.xlu0 %8016
        %8018 = vrot.lane.b32.xlu0 %v2838, 3
        %v8019 = vpop.permute.xlu0 %8018
        %8020 = vrot.lane.b32.xlu0 %v2839, 3
        %v8021 = vpop.permute.xlu0 %8020
        %8022 = vrot.lane.b32.xlu0 %v2840, 3
        %v8023 = vpop.permute.xlu0 %8022
        %8024 = vrot.lane.b32.xlu0 %v2841, 3
        %v8025 = vpop.permute.xlu0 %8024
        %8026 = vrot.lane.b32.xlu0 %v2842, 3
        %v8027 = vpop.permute.xlu0 %8026
        %8028 = vrot.lane.b32.xlu0 %v2843, 3
        %v8029 = vpop.permute.xlu0 %8028
        %8030 = vrot.lane.b32.xlu0 %v2844, 3
        %v8031 = vpop.permute.xlu0 %8030
        %8032 = vrot.lane.b32.xlu0 %v2845, 3
        %v8033 = vpop.permute.xlu0 %8032
        %8034 = vrot.lane.b32.xlu0 %v2846, 3
        %v8035 = vpop.permute.xlu0 %8034
        %8036 = vrot.lane.b32.xlu0 %v2847, 3
        %v8037 = vpop.permute.xlu0 %8036
        %8038 = vrot.lane.b32.xlu0 %v2848, 3
        %v8039 = vpop.permute.xlu0 %8038
        %8040 = vrot.lane.b32.xlu0 %v2849, 3
        %v8041 = vpop.permute.xlu0 %8040
        %8042 = vrot.lane.b32.xlu0 %v4584, 3
        %v8043 = vpop.permute.xlu0 %8042
        %8044 = vrot.lane.b32.xlu0 %v4912, 3
        %v8045 = vpop.permute.xlu0 %8044
        %8046 = vrot.lane.b32.xlu0 %v5536, 3
        %v8047 = vpop.permute.xlu0 %8046
        %8048 = vrot.lane.b32.xlu0 %v5864, 3
        %v8049 = vpop.permute.xlu0 %8048
        %8050 = vrot.lane.b32.xlu0 %v2852, 3
        %v8051 = vpop.permute.xlu0 %8050
        %8052 = vrot.lane.b32.xlu0 %v2853, 3
        %v8053 = vpop.permute.xlu0 %8052
        %8054 = vrot.lane.b32.xlu0 %v2854, 3
        %v8055 = vpop.permute.xlu0 %8054
        %8056 = vrot.lane.b32.xlu0 %v2855, 3
        %v8057 = vpop.permute.xlu0 %8056
        %8058 = vrot.lane.b32.xlu0 %v2856, 3
        %v8059 = vpop.permute.xlu0 %8058
        %8060 = vrot.lane.b32.xlu0 %v2857, 3
        %v8061 = vpop.permute.xlu0 %8060
        %8062 = vrot.lane.b32.xlu0 %v2858, 3
        %v8063 = vpop.permute.xlu0 %8062
        %8064 = vrot.lane.b32.xlu0 %v2859, 3
        %v8065 = vpop.permute.xlu0 %8064
        %8066 = vrot.lane.b32.xlu0 %v2860, 3
        %v8067 = vpop.permute.xlu0 %8066
        %8068 = vrot.lane.b32.xlu0 %v2861, 3
        %v8069 = vpop.permute.xlu0 %8068
        %8070 = vrot.lane.b32.xlu0 %v2862, 3
        %v8071 = vpop.permute.xlu0 %8070
        %8072 = vrot.lane.b32.xlu0 %v2863, 3
        %v8073 = vpop.permute.xlu0 %8072
        %8074 = vrot.lane.b32.xlu0 %v2864, 3
        %v8075 = vpop.permute.xlu0 %8074
        %8076 = vrot.lane.b32.xlu0 %v2865, 3
        %v8077 = vpop.permute.xlu0 %8076
        %8078 = vrot.lane.b32.xlu0 %v4585, 3
        %v8079 = vpop.permute.xlu0 %8078
        %8080 = vrot.lane.b32.xlu0 %v4913, 3
        %v8081 = vpop.permute.xlu0 %8080
        %8082 = vrot.lane.b32.xlu0 %v5537, 3
        %v8083 = vpop.permute.xlu0 %8082
        %8084 = vrot.lane.b32.xlu0 %v5865, 3
        %v8085 = vpop.permute.xlu0 %8084
        %8086 = vrot.lane.b32.xlu0 %v2868, 3
        %v8087 = vpop.permute.xlu0 %8086
        %8088 = vrot.lane.b32.xlu0 %v2869, 3
        %v8089 = vpop.permute.xlu0 %8088
        %8090 = vrot.lane.b32.xlu0 %v2870, 3
        %v8091 = vpop.permute.xlu0 %8090
        %8092 = vrot.lane.b32.xlu0 %v2871, 3
        %v8093 = vpop.permute.xlu0 %8092
        %8094 = vrot.lane.b32.xlu0 %v2872, 3
        %v8095 = vpop.permute.xlu0 %8094
        %8096 = vrot.lane.b32.xlu0 %v2873, 3
        %v8097 = vpop.permute.xlu0 %8096
        %8098 = vrot.lane.b32.xlu0 %v2874, 3
        %v8099 = vpop.permute.xlu0 %8098
        %8100 = vrot.lane.b32.xlu0 %v2875, 3
        %v8101 = vpop.permute.xlu0 %8100
        %8102 = vrot.lane.b32.xlu0 %v2876, 3
        %v8103 = vpop.permute.xlu0 %8102
        %8104 = vrot.lane.b32.xlu0 %v2877, 3
        %v8105 = vpop.permute.xlu0 %8104
        %8106 = vrot.lane.b32.xlu0 %v2878, 3
        %v8107 = vpop.permute.xlu0 %8106
        %8108 = vrot.lane.b32.xlu0 %v2879, 3
        %v8109 = vpop.permute.xlu0 %8108
        %8110 = vrot.lane.b32.xlu0 %v2880, 3
        %v8111 = vpop.permute.xlu0 %8110
        %8112 = vrot.lane.b32.xlu0 %v2881, 3
        %v8113 = vpop.permute.xlu0 %8112
        %8114 = vrot.lane.b32.xlu0 %v4586, 3
        %v8115 = vpop.permute.xlu0 %8114
        %8116 = vrot.lane.b32.xlu0 %v4914, 3
        %v8117 = vpop.permute.xlu0 %8116
        %8118 = vrot.lane.b32.xlu0 %v5538, 3
        %v8119 = vpop.permute.xlu0 %8118
        %8120 = vrot.lane.b32.xlu0 %v5866, 3
        %v8121 = vpop.permute.xlu0 %8120
        %v8123 = vsel %vm6043, %v1731, %v7979
        %v8125 = vsel %vm6043, %v1732, %v7981
        %v8127 = vsel %vm6043, %v1733, %v7983
        %v8129 = vsel %vm6043, %v1734, %v7985
        %v8131 = vsel %vm6043, %v1735, %v7987
        %v8133 = vsel %vm6043, %v1736, %v7989
        %v8135 = vsel %vm6043, %v1737, %v7991
        %v8137 = vsel %vm6043, %v1738, %v7993
        %v8139 = vsel %vm6043, %v1739, %v7995
        %v8141 = vsel %vm6043, %v1740, %v7997
        %v8143 = vsel %vm6043, %v1741, %v7999
        %v8145 = vsel %vm6043, %v1742, %v8001
        %v8147 = vsel %vm6043, %v1743, %v8003
        %v8149 = vsel %vm6043, %v1744, %v8005
        %v8151 = vsel %vm6043, %v4435, %v8007
        %v8153 = vsel %vm6043, %v4723, %v8009
        %v8155 = vsel %vm6043, %v5387, %v8011
        %v8157 = vsel %vm6043, %v5675, %v8013
        %v8159 = vsel %vm6043, %v1747, %v8015
        %v8161 = vsel %vm6043, %v1748, %v8017
        %v8163 = vsel %vm6043, %v1749, %v8019
        %v8165 = vsel %vm6043, %v1750, %v8021
        %v8167 = vsel %vm6043, %v1751, %v8023
        %v8169 = vsel %vm6043, %v1752, %v8025
        %v8171 = vsel %vm6043, %v1753, %v8027
        %v8173 = vsel %vm6043, %v1754, %v8029
        %v8175 = vsel %vm6043, %v1755, %v8031
        %v8177 = vsel %vm6043, %v1756, %v8033
        %v8179 = vsel %vm6043, %v1757, %v8035
        %v8181 = vsel %vm6043, %v1758, %v8037
        %v8183 = vsel %vm6043, %v1759, %v8039
        %v8185 = vsel %vm6043, %v1760, %v8041
        %v8187 = vsel %vm6043, %v4436, %v8043
        %v8189 = vsel %vm6043, %v4724, %v8045
        %v8191 = vsel %vm6043, %v5388, %v8047
        %v8193 = vsel %vm6043, %v5676, %v8049
        %v8195 = vsel %vm6043, %v1763, %v8051
        %v8197 = vsel %vm6043, %v1764, %v8053
        %v8199 = vsel %vm6043, %v1765, %v8055
        %v8201 = vsel %vm6043, %v1766, %v8057
        %v8203 = vsel %vm6043, %v1767, %v8059
        %v8205 = vsel %vm6043, %v1768, %v8061
        %v8207 = vsel %vm6043, %v1769, %v8063
        %v8209 = vsel %vm6043, %v1770, %v8065
        %v8211 = vsel %vm6043, %v1771, %v8067
        %v8213 = vsel %vm6043, %v1772, %v8069
        %v8215 = vsel %vm6043, %v1773, %v8071
        %v8217 = vsel %vm6043, %v1774, %v8073
        %v8219 = vsel %vm6043, %v1775, %v8075
        %v8221 = vsel %vm6043, %v1776, %v8077
        %v8223 = vsel %vm6043, %v4437, %v8079
        %v8225 = vsel %vm6043, %v4725, %v8081
        %v8227 = vsel %vm6043, %v5389, %v8083
        %v8229 = vsel %vm6043, %v5677, %v8085
        %v8231 = vsel %vm6043, %v1779, %v8087
        %v8233 = vsel %vm6043, %v1780, %v8089
        %v8235 = vsel %vm6043, %v1781, %v8091
        %v8237 = vsel %vm6043, %v1782, %v8093
        %v8239 = vsel %vm6043, %v1783, %v8095
        %v8241 = vsel %vm6043, %v1784, %v8097
        %v8243 = vsel %vm6043, %v1785, %v8099
        %v8245 = vsel %vm6043, %v1786, %v8101
        %v8247 = vsel %vm6043, %v1787, %v8103
        %v8249 = vsel %vm6043, %v1788, %v8105
        %v8251 = vsel %vm6043, %v1789, %v8107
        %v8253 = vsel %vm6043, %v1790, %v8109
        %v8255 = vsel %vm6043, %v1791, %v8111
        %v8257 = vsel %vm6043, %v1792, %v8113
        %v8259 = vsel %vm6043, %v4438, %v8115
        %v8261 = vsel %vm6043, %v4726, %v8117
        %v8263 = vsel %vm6043, %v5390, %v8119
        %v8265 = vsel %vm6043, %v5678, %v8121
        %v8394 = vrot.slane %v6049, 1
        %v8395 = vrot.slane %v8123, 1
        %v8396 = vsel %vm3778, %v8394, %v8395
        %v8397 = vrot.slane %v6051, 1
        %v8398 = vrot.slane %v8125, 1
        %v8399 = vsel %vm3778, %v8397, %v8398
        %v8400 = vrot.slane %v6053, 1
        %v8401 = vrot.slane %v8127, 1
        %v8402 = vsel %vm3778, %v8400, %v8401
        %v8403 = vrot.slane %v6055, 1
        %v8404 = vrot.slane %v8129, 1
        %v8405 = vsel %vm3778, %v8403, %v8404
        %v8406 = vrot.slane %v6057, 1
        %v8407 = vrot.slane %v8131, 1
        %v8408 = vsel %vm3778, %v8406, %v8407
        %v8409 = vrot.slane %v6059, 1
        %v8410 = vrot.slane %v8133, 1
        %v8411 = vsel %vm3778, %v8409, %v8410
        %v8412 = vrot.slane %v6061, 1
        %v8413 = vrot.slane %v8135, 1
        %v8414 = vsel %vm3778, %v8412, %v8413
        %v8415 = vrot.slane %v6063, 1
        %v8416 = vrot.slane %v8137, 1
        %v8417 = vsel %vm3778, %v8415, %v8416
        %v8418 = vrot.slane %v6065, 1
        %v8419 = vrot.slane %v8139, 1
        %v8420 = vsel %vm3778, %v8418, %v8419
        %v8421 = vrot.slane %v6067, 1
        %v8422 = vrot.slane %v8141, 1
        %v8423 = vsel %vm3778, %v8421, %v8422
        %v8424 = vrot.slane %v6069, 1
        %v8425 = vrot.slane %v8143, 1
        %v8426 = vsel %vm3778, %v8424, %v8425
        %v8427 = vrot.slane %v6071, 1
        %v8428 = vrot.slane %v8145, 1
        %v8429 = vsel %vm3778, %v8427, %v8428
        %v8430 = vrot.slane %v6073, 1
        %v8431 = vrot.slane %v8147, 1
        %v8432 = vsel %vm3778, %v8430, %v8431
        %v8433 = vrot.slane %v6075, 1
        %v8434 = vrot.slane %v8149, 1
        %v8435 = vsel %vm3778, %v8433, %v8434
        %v8436 = vrot.slane %v8151, 1
        %v8437 = vrot.slane %v8153, 1
        %v8438 = vsel %vm3778, %v8436, %v8437
        %v8439 = vrot.slane %v8155, 1
        %v8440 = vrot.slane %v8157, 1
        %v8441 = vsel %vm3778, %v8439, %v8440
        %v8442 = vrot.slane %v6081, 1
        %v8443 = vrot.slane %v8159, 1
        %v8444 = vsel %vm3778, %v8442, %v8443
        %v8445 = vrot.slane %v6083, 1
        %v8446 = vrot.slane %v8161, 1
        %v8447 = vsel %vm3778, %v8445, %v8446
        %v8448 = vrot.slane %v6085, 1
        %v8449 = vrot.slane %v8163, 1
        %v8450 = vsel %vm3778, %v8448, %v8449
        %v8451 = vrot.slane %v6087, 1
        %v8452 = vrot.slane %v8165, 1
        %v8453 = vsel %vm3778, %v8451, %v8452
        %v8454 = vrot.slane %v6089, 1
        %v8455 = vrot.slane %v8167, 1
        %v8456 = vsel %vm3778, %v8454, %v8455
        %v8457 = vrot.slane %v6091, 1
        %v8458 = vrot.slane %v8169, 1
        %v8459 = vsel %vm3778, %v8457, %v8458
        %v8460 = vrot.slane %v6093, 1
        %v8461 = vrot.slane %v8171, 1
        %v8462 = vsel %vm3778, %v8460, %v8461
        %v8463 = vrot.slane %v6095, 1
        %v8464 = vrot.slane %v8173, 1
        %v8465 = vsel %vm3778, %v8463, %v8464
        %v8466 = vrot.slane %v6097, 1
        %v8467 = vrot.slane %v8175, 1
        %v8468 = vsel %vm3778, %v8466, %v8467
        %v8469 = vrot.slane %v6099, 1
        %v8470 = vrot.slane %v8177, 1
        %v8471 = vsel %vm3778, %v8469, %v8470
        %v8472 = vrot.slane %v6101, 1
        %v8473 = vrot.slane %v8179, 1
        %v8474 = vsel %vm3778, %v8472, %v8473
        %v8475 = vrot.slane %v6103, 1
        %v8476 = vrot.slane %v8181, 1
        %v8477 = vsel %vm3778, %v8475, %v8476
        %v8478 = vrot.slane %v6105, 1
        %v8479 = vrot.slane %v8183, 1
        %v8480 = vsel %vm3778, %v8478, %v8479
        %v8481 = vrot.slane %v6107, 1
        %v8482 = vrot.slane %v8185, 1
        %v8483 = vsel %vm3778, %v8481, %v8482
        %v8484 = vrot.slane %v8187, 1
        %v8485 = vrot.slane %v8189, 1
        %v8486 = vsel %vm3778, %v8484, %v8485
        %v8487 = vrot.slane %v8191, 1
        %v8488 = vrot.slane %v8193, 1
        %v8489 = vsel %vm3778, %v8487, %v8488
        %v8490 = vrot.slane %v6113, 1
        %v8491 = vrot.slane %v8195, 1
        %v8492 = vsel %vm3778, %v8490, %v8491
        %v8493 = vrot.slane %v6115, 1
        %v8494 = vrot.slane %v8197, 1
        %v8495 = vsel %vm3778, %v8493, %v8494
        %v8496 = vrot.slane %v6117, 1
        %v8497 = vrot.slane %v8199, 1
        %v8498 = vsel %vm3778, %v8496, %v8497
        %v8499 = vrot.slane %v6119, 1
        %v8500 = vrot.slane %v8201, 1
        %v8501 = vsel %vm3778, %v8499, %v8500
        %v8502 = vrot.slane %v6121, 1
        %v8503 = vrot.slane %v8203, 1
        %v8504 = vsel %vm3778, %v8502, %v8503
        %v8505 = vrot.slane %v6123, 1
        %v8506 = vrot.slane %v8205, 1
        %v8507 = vsel %vm3778, %v8505, %v8506
        %v8508 = vrot.slane %v6125, 1
        %v8509 = vrot.slane %v8207, 1
        %v8510 = vsel %vm3778, %v8508, %v8509
        %v8511 = vrot.slane %v6127, 1
        %v8512 = vrot.slane %v8209, 1
        %v8513 = vsel %vm3778, %v8511, %v8512
        %v8514 = vrot.slane %v6129, 1
        %v8515 = vrot.slane %v8211, 1
        %v8516 = vsel %vm3778, %v8514, %v8515
        %v8517 = vrot.slane %v6131, 1
        %v8518 = vrot.slane %v8213, 1
        %v8519 = vsel %vm3778, %v8517, %v8518
        %v8520 = vrot.slane %v6133, 1
        %v8521 = vrot.slane %v8215, 1
        %v8522 = vsel %vm3778, %v8520, %v8521
        %v8523 = vrot.slane %v6135, 1
        %v8524 = vrot.slane %v8217, 1
        %v8525 = vsel %vm3778, %v8523, %v8524
        %v8526 = vrot.slane %v6137, 1
        %v8527 = vrot.slane %v8219, 1
        %v8528 = vsel %vm3778, %v8526, %v8527
        %v8529 = vrot.slane %v6139, 1
        %v8530 = vrot.slane %v8221, 1
        %v8531 = vsel %vm3778, %v8529, %v8530
        %v8532 = vrot.slane %v8223, 1
        %v8533 = vrot.slane %v8225, 1
        %v8534 = vsel %vm3778, %v8532, %v8533
        %v8535 = vrot.slane %v8227, 1
        %v8536 = vrot.slane %v8229, 1
        %v8537 = vsel %vm3778, %v8535, %v8536
        %v8538 = vrot.slane %v6145, 1
        %v8539 = vrot.slane %v8231, 1
        %v8540 = vsel %vm3778, %v8538, %v8539
        %v8541 = vrot.slane %v6147, 1
        %v8542 = vrot.slane %v8233, 1
        %v8543 = vsel %vm3778, %v8541, %v8542
        %v8544 = vrot.slane %v6149, 1
        %v8545 = vrot.slane %v8235, 1
        %v8546 = vsel %vm3778, %v8544, %v8545
        %v8547 = vrot.slane %v6151, 1
        %v8548 = vrot.slane %v8237, 1
        %v8549 = vsel %vm3778, %v8547, %v8548
        %v8550 = vrot.slane %v6153, 1
        %v8551 = vrot.slane %v8239, 1
        %v8552 = vsel %vm3778, %v8550, %v8551
        %v8553 = vrot.slane %v6155, 1
        %v8554 = vrot.slane %v8241, 1
        %v8555 = vsel %vm3778, %v8553, %v8554
        %v8556 = vrot.slane %v6157, 1
        %v8557 = vrot.slane %v8243, 1
        %v8558 = vsel %vm3778, %v8556, %v8557
        %v8559 = vrot.slane %v6159, 1
        %v8560 = vrot.slane %v8245, 1
        %v8561 = vsel %vm3778, %v8559, %v8560
        %v8562 = vrot.slane %v6161, 1
        %v8563 = vrot.slane %v8247, 1
        %v8564 = vsel %vm3778, %v8562, %v8563
        %v8565 = vrot.slane %v6163, 1
        %v8566 = vrot.slane %v8249, 1
        %v8567 = vsel %vm3778, %v8565, %v8566
        %v8568 = vrot.slane %v6165, 1
        %v8569 = vrot.slane %v8251, 1
        %v8570 = vsel %vm3778, %v8568, %v8569
        %v8571 = vrot.slane %v6167, 1
        %v8572 = vrot.slane %v8253, 1
        %v8573 = vsel %vm3778, %v8571, %v8572
        %v8574 = vrot.slane %v6169, 1
        %v8575 = vrot.slane %v8255, 1
        %v8576 = vsel %vm3778, %v8574, %v8575
        %v8577 = vrot.slane %v6171, 1
        %v8578 = vrot.slane %v8257, 1
        %v8579 = vsel %vm3778, %v8577, %v8578
        %v8580 = vrot.slane %v8259, 1
        %v8581 = vrot.slane %v8261, 1
        %v8582 = vsel %vm3778, %v8580, %v8581
        %v8583 = vrot.slane %v8263, 1
        %v8584 = vrot.slane %v8265, 1
        %v8585 = vsel %vm3778, %v8583, %v8584
        %8586 = vrot.lane.b32.xlu0 %v8396, 48
        %v8587 = vpop.permute.xlu0 %8586
        %8588 = vrot.lane.b32.xlu0 %v8399, 48
        %v8589 = vpop.permute.xlu0 %8588
        %8590 = vrot.lane.b32.xlu0 %v8402, 48
        %v8591 = vpop.permute.xlu0 %8590
        %8592 = vrot.lane.b32.xlu0 %v8405, 48
        %v8593 = vpop.permute.xlu0 %8592
        %8594 = vrot.lane.b32.xlu0 %v8408, 48
        %v8595 = vpop.permute.xlu0 %8594
        %8596 = vrot.lane.b32.xlu0 %v8411, 48
        %v8597 = vpop.permute.xlu0 %8596
        %8598 = vrot.lane.b32.xlu0 %v8414, 48
        %v8599 = vpop.permute.xlu0 %8598
        %8600 = vrot.lane.b32.xlu0 %v8417, 48
        %v8601 = vpop.permute.xlu0 %8600
        %8602 = vrot.lane.b32.xlu0 %v8420, 48
        %v8603 = vpop.permute.xlu0 %8602
        %8604 = vrot.lane.b32.xlu0 %v8423, 48
        %v8605 = vpop.permute.xlu0 %8604
        %8606 = vrot.lane.b32.xlu0 %v8426, 48
        %v8607 = vpop.permute.xlu0 %8606
        %8608 = vrot.lane.b32.xlu0 %v8429, 48
        %v8609 = vpop.permute.xlu0 %8608
        %8610 = vrot.lane.b32.xlu0 %v8432, 48
        %v8611 = vpop.permute.xlu0 %8610
        %8612 = vrot.lane.b32.xlu0 %v8435, 48
        %v8613 = vpop.permute.xlu0 %8612
        %8614 = vrot.lane.b32.xlu0 %v8438, 48
        %v8615 = vpop.permute.xlu0 %8614
        %8616 = vrot.lane.b32.xlu0 %v8441, 48
        %v8617 = vpop.permute.xlu0 %8616
        %8618 = vrot.lane.b32.xlu0 %v8444, 48
        %v8619 = vpop.permute.xlu0 %8618
        %8620 = vrot.lane.b32.xlu0 %v8447, 48
        %v8621 = vpop.permute.xlu0 %8620
        %8622 = vrot.lane.b32.xlu0 %v8450, 48
        %v8623 = vpop.permute.xlu0 %8622
        %8624 = vrot.lane.b32.xlu0 %v8453, 48
        %v8625 = vpop.permute.xlu0 %8624
        %8626 = vrot.lane.b32.xlu0 %v8456, 48
        %v8627 = vpop.permute.xlu0 %8626
        %8628 = vrot.lane.b32.xlu0 %v8459, 48
        %v8629 = vpop.permute.xlu0 %8628
        %8630 = vrot.lane.b32.xlu0 %v8462, 48
        %v8631 = vpop.permute.xlu0 %8630
        %8632 = vrot.lane.b32.xlu0 %v8465, 48
        %v8633 = vpop.permute.xlu0 %8632
        %8634 = vrot.lane.b32.xlu0 %v8468, 48
        %v8635 = vpop.permute.xlu0 %8634
        %8636 = vrot.lane.b32.xlu0 %v8471, 48
        %v8637 = vpop.permute.xlu0 %8636
        %8638 = vrot.lane.b32.xlu0 %v8474, 48
        %v8639 = vpop.permute.xlu0 %8638
        %8640 = vrot.lane.b32.xlu0 %v8477, 48
        %v8641 = vpop.permute.xlu0 %8640
        %8642 = vrot.lane.b32.xlu0 %v8480, 48
        %v8643 = vpop.permute.xlu0 %8642
        %8644 = vrot.lane.b32.xlu0 %v8483, 48
        %v8645 = vpop.permute.xlu0 %8644
        %8646 = vrot.lane.b32.xlu0 %v8486, 48
        %v8647 = vpop.permute.xlu0 %8646
        %8648 = vrot.lane.b32.xlu0 %v8489, 48
        %v8649 = vpop.permute.xlu0 %8648
        %8650 = vrot.lane.b32.xlu0 %v8492, 48
        %v8651 = vpop.permute.xlu0 %8650
        %8652 = vrot.lane.b32.xlu0 %v8495, 48
        %v8653 = vpop.permute.xlu0 %8652
        %8654 = vrot.lane.b32.xlu0 %v8498, 48
        %v8655 = vpop.permute.xlu0 %8654
        %8656 = vrot.lane.b32.xlu0 %v8501, 48
        %v8657 = vpop.permute.xlu0 %8656
        %8658 = vrot.lane.b32.xlu0 %v8504, 48
        %v8659 = vpop.permute.xlu0 %8658
        %8660 = vrot.lane.b32.xlu0 %v8507, 48
        %v8661 = vpop.permute.xlu0 %8660
        %8662 = vrot.lane.b32.xlu0 %v8510, 48
        %v8663 = vpop.permute.xlu0 %8662
        %8664 = vrot.lane.b32.xlu0 %v8513, 48
        %v8665 = vpop.permute.xlu0 %8664
        %8666 = vrot.lane.b32.xlu0 %v8516, 48
        %v8667 = vpop.permute.xlu0 %8666
        %8668 = vrot.lane.b32.xlu0 %v8519, 48
        %v8669 = vpop.permute.xlu0 %8668
        %8670 = vrot.lane.b32.xlu0 %v8522, 48
        %v8671 = vpop.permute.xlu0 %8670
        %8672 = vrot.lane.b32.xlu0 %v8525, 48
        %v8673 = vpop.permute.xlu0 %8672
        %8674 = vrot.lane.b32.xlu0 %v8528, 48
        %v8675 = vpop.permute.xlu0 %8674
        %8676 = vrot.lane.b32.xlu0 %v8531, 48
        %v8677 = vpop.permute.xlu0 %8676
        %8678 = vrot.lane.b32.xlu0 %v8534, 48
        %v8679 = vpop.permute.xlu0 %8678
        %8680 = vrot.lane.b32.xlu0 %v8537, 48
        %v8681 = vpop.permute.xlu0 %8680
        %8682 = vrot.lane.b32.xlu0 %v8540, 48
        %v8683 = vpop.permute.xlu0 %8682
        %8684 = vrot.lane.b32.xlu0 %v8543, 48
        %v8685 = vpop.permute.xlu0 %8684
        %8686 = vrot.lane.b32.xlu0 %v8546, 48
        %v8687 = vpop.permute.xlu0 %8686
        %8688 = vrot.lane.b32.xlu0 %v8549, 48
        %v8689 = vpop.permute.xlu0 %8688
        %8690 = vrot.lane.b32.xlu0 %v8552, 48
        %v8691 = vpop.permute.xlu0 %8690
        %8692 = vrot.lane.b32.xlu0 %v8555, 48
        %v8693 = vpop.permute.xlu0 %8692
        %8694 = vrot.lane.b32.xlu0 %v8558, 48
        %v8695 = vpop.permute.xlu0 %8694
        %8696 = vrot.lane.b32.xlu0 %v8561, 48
        %v8697 = vpop.permute.xlu0 %8696
        %8698 = vrot.lane.b32.xlu0 %v8564, 48
        %v8699 = vpop.permute.xlu0 %8698
        %8700 = vrot.lane.b32.xlu0 %v8567, 48
        %v8701 = vpop.permute.xlu0 %8700
        %8702 = vrot.lane.b32.xlu0 %v8570, 48
        %v8703 = vpop.permute.xlu0 %8702
        %8704 = vrot.lane.b32.xlu0 %v8573, 48
        %v8705 = vpop.permute.xlu0 %8704
        %8706 = vrot.lane.b32.xlu0 %v8576, 48
        %v8707 = vpop.permute.xlu0 %8706
        %8708 = vrot.lane.b32.xlu0 %v8579, 48
        %v8709 = vpop.permute.xlu0 %8708
        %8710 = vrot.lane.b32.xlu0 %v8582, 48
        %v8711 = vpop.permute.xlu0 %8710
        %8712 = vrot.lane.b32.xlu0 %v8585, 48
        %v8713 = vpop.permute.xlu0 %8712
        %vm8714 = vcmask 392192
        %v8716 = vsel %vm8714, %v7851, %v8587
        %v8718 = vsel %vm8714, %v7853, %v8589
        %v8720 = vsel %vm8714, %v7855, %v8591
        %v8722 = vsel %vm8714, %v7857, %v8593
        %v8724 = vsel %vm8714, %v7859, %v8595
        %v8726 = vsel %vm8714, %v7861, %v8597
        %v8728 = vsel %vm8714, %v7863, %v8599
        %v8730 = vsel %vm8714, %v7865, %v8601
        %v8732 = vsel %vm8714, %v7867, %v8603
        %v8734 = vsel %vm8714, %v7869, %v8605
        %v8736 = vsel %vm8714, %v7871, %v8607
        %v8738 = vsel %vm8714, %v7873, %v8609
        %v8740 = vsel %vm8714, %v7875, %v8611
        %v8742 = vsel %vm8714, %v7877, %v8613
        %v8744 = vsel %vm8714, %v7879, %v8615
        %v8746 = vsel %vm8714, %v7881, %v8617
        %v8748 = vsel %vm8714, %v7883, %v8619
        %v8750 = vsel %vm8714, %v7885, %v8621
        %v8752 = vsel %vm8714, %v7887, %v8623
        %v8754 = vsel %vm8714, %v7889, %v8625
        %v8756 = vsel %vm8714, %v7891, %v8627
        %v8758 = vsel %vm8714, %v7893, %v8629
        %v8760 = vsel %vm8714, %v7895, %v8631
        %v8762 = vsel %vm8714, %v7897, %v8633
        %v8764 = vsel %vm8714, %v7899, %v8635
        %v8766 = vsel %vm8714, %v7901, %v8637
        %v8768 = vsel %vm8714, %v7903, %v8639
        %v8770 = vsel %vm8714, %v7905, %v8641
        %v8772 = vsel %vm8714, %v7907, %v8643
        %v8774 = vsel %vm8714, %v7909, %v8645
        %v8776 = vsel %vm8714, %v7911, %v8647
        %v8778 = vsel %vm8714, %v7913, %v8649
        %v8780 = vsel %vm8714, %v7915, %v8651
        %v8782 = vsel %vm8714, %v7917, %v8653
        %v8784 = vsel %vm8714, %v7919, %v8655
        %v8786 = vsel %vm8714, %v7921, %v8657
        %v8788 = vsel %vm8714, %v7923, %v8659
        %v8790 = vsel %vm8714, %v7925, %v8661
        %v8792 = vsel %vm8714, %v7927, %v8663
        %v8794 = vsel %vm8714, %v7929, %v8665
        %v8796 = vsel %vm8714, %v7931, %v8667
        %v8798 = vsel %vm8714, %v7933, %v8669
        %v8800 = vsel %vm8714, %v7935, %v8671
        %v8802 = vsel %vm8714, %v7937, %v8673
        %v8804 = vsel %vm8714, %v7939, %v8675
        %v8806 = vsel %vm8714, %v7941, %v8677
        %v8808 = vsel %vm8714, %v7943, %v8679
        %v8810 = vsel %vm8714, %v7945, %v8681
        %v8812 = vsel %vm8714, %v7947, %v8683
        %v8814 = vsel %vm8714, %v7949, %v8685
        %v8816 = vsel %vm8714, %v7951, %v8687
        %v8818 = vsel %vm8714, %v7953, %v8689
        %v8820 = vsel %vm8714, %v7955, %v8691
        %v8822 = vsel %vm8714, %v7957, %v8693
        %v8824 = vsel %vm8714, %v7959, %v8695
        %v8826 = vsel %vm8714, %v7961, %v8697
        %v8828 = vsel %vm8714, %v7963, %v8699
        %v8830 = vsel %vm8714, %v7965, %v8701
        %v8832 = vsel %vm8714, %v7967, %v8703
        %v8834 = vsel %vm8714, %v7969, %v8705
        %v8836 = vsel %vm8714, %v7971, %v8707
        %v8838 = vsel %vm8714, %v7973, %v8709
        %v8840 = vsel %vm8714, %v7975, %v8711
        %v8842 = vsel %vm8714, %v7977, %v8713
        %v8843 = vld [vmem:[%s2] sm:$0xf]
        %v8844 = vld [vmem:[%s2 + $0x4] sm:$0xf]
        %v8845 = vld [vmem:[%s2 + $0x8] sm:$0xf]
        %v8846 = vld [vmem:[%s2 + $0xc] sm:$0xf]
        %v8847 = vld [vmem:[%s2 + $0x10] sm:$0xf]
        %v8848 = vld [vmem:[%s2 + $0x14] sm:$0xf]
        %v8849 = vld [vmem:[%s2 + $0x18] sm:$0x7]
        %v8850 = vld [vmem:[%s3] sm:$0x1]
        %v8852 = vlaneseq
        %v8853 = vshrl.u32 %v8852, 7
        %v8854 = vsub.s32 0, %v8853
        %v8855 = vrot.slane %v8850, %v8854
        %v8864 = vunpack.c.l.b16 %v8843
        %v8865 = vunpack.c.l.b16 %v8844
        %v8866 = vunpack.c.l.b16 %v8845
        %v8867 = vunpack.c.l.b16 %v8846
        %v8868 = vunpack.c.l.b16 %v8847
        %v8869 = vunpack.c.l.b16 %v8848
        %v8870 = vunpack.c.l.b16 %v8849
        %v8871 = vpack.c.b16 %v8865, %v8864
        %v8872 = vpack.c.b16 %v8867, %v8866
        %v8873 = vpack.c.b16 %v8869, %v8868
        %v8874 = vpack.c.b16 %v8870, %v8870
        %vm8878 = vcmask 441344
        %v8879 = vsel %vm8878, %v8716, 0
        %v8881 = vsel %vm8878, %v8718, 0
        %v8883 = vsel %vm8878, %v8720, 0
        %v8885 = vsel %vm8878, %v8722, 0
        %v8887 = vsel %vm8878, %v8724, 0
        %v8889 = vsel %vm8878, %v8726, 0
        %v8891 = vsel %vm8878, %v8728, 0
        %v8893 = vsel %vm8878, %v8730, 0
        %v8895 = vsel %vm8878, %v8732, 0
        %v8897 = vsel %vm8878, %v8734, 0
        %v8899 = vsel %vm8878, %v8736, 0
        %v8901 = vsel %vm8878, %v8738, 0
        %v8903 = vsel %vm8878, %v8740, 0
        %v8905 = vsel %vm8878, %v8742, 0
        %v8907 = vsel %vm8878, %v8744, 0
        %v8909 = vsel %vm8878, %v8746, 0
        %v8911 = vsel %vm8878, %v8748, 0
        %v8913 = vsel %vm8878, %v8750, 0
        %v8915 = vsel %vm8878, %v8752, 0
        %v8917 = vsel %vm8878, %v8754, 0
        %v8919 = vsel %vm8878, %v8756, 0
        %v8921 = vsel %vm8878, %v8758, 0
        %v8923 = vsel %vm8878, %v8760, 0
        %v8925 = vsel %vm8878, %v8762, 0
        %v8927 = vsel %vm8878, %v8764, 0
        %v8929 = vsel %vm8878, %v8766, 0
        %v8931 = vsel %vm8878, %v8768, 0
        %v8933 = vsel %vm8878, %v8770, 0
        %v8935 = vsel %vm8878, %v8772, 0
        %v8937 = vsel %vm8878, %v8774, 0
        %v8939 = vsel %vm8878, %v8776, 0
        %v8941 = vsel %vm8878, %v8778, 0
        %v8943 = vsel %vm8878, %v8780, 0
        %v8945 = vsel %vm8878, %v8782, 0
        %v8947 = vsel %vm8878, %v8784, 0
        %v8949 = vsel %vm8878, %v8786, 0
        %v8951 = vsel %vm8878, %v8788, 0
        %v8953 = vsel %vm8878, %v8790, 0
        %v8955 = vsel %vm8878, %v8792, 0
        %v8957 = vsel %vm8878, %v8794, 0
        %v8959 = vsel %vm8878, %v8796, 0
        %v8961 = vsel %vm8878, %v8798, 0
        %v8963 = vsel %vm8878, %v8800, 0
        %v8965 = vsel %vm8878, %v8802, 0
        %v8967 = vsel %vm8878, %v8804, 0
        %v8969 = vsel %vm8878, %v8806, 0
        %v8971 = vsel %vm8878, %v8808, 0
        %v8973 = vsel %vm8878, %v8810, 0
        %v8975 = vsel %vm8878, %v8812, 0
        %v8977 = vsel %vm8878, %v8814, 0
        %v8979 = vsel %vm8878, %v8816, 0
        %v8981 = vsel %vm8878, %v8818, 0
        %v8983 = vsel %vm8878, %v8820, 0
        %v8985 = vsel %vm8878, %v8822, 0
        %v8987 = vsel %vm8878, %v8824, 0
        %v8989 = vsel %vm8878, %v8826, 0
        %v8991 = vsel %vm8878, %v8828, 0
        %v8993 = vsel %vm8878, %v8830, 0
        %v8995 = vsel %vm8878, %v8832, 0
        %v8997 = vsel %vm8878, %v8834, 0
        %v8999 = vsel %vm8878, %v8836, 0
        %v9001 = vsel %vm8878, %v8838, 0
        %v9003 = vsel %vm8878, %v8840, 0
        %v9005 = vsel %vm8878, %v8842, 0
        %vm9007 = vcmask 1042432
        %v9009 = vsel %vm9007, %v8874, 0
        %9011 = vmatprep.subr.bf16.mxu0 0
        %9012 = vmatpush1.bf16.msra.mxu0 %v8871
        %9013 = vmatprep.subr.bf16.mxu0 0
        %9014 = vmatpush1.bf16.msra.mxu0 %v8872
        %9015 = vmatprep.subr.bf16.mxu0 0
        %9016 = vmatpush1.bf16.msra.mxu0 %v8873
        %9017 = vmatprep.subr.bf16.mxu0 0
        %9018 = vmatpush1.bf16.msra.mxu0 %v9009
        %9019 = vmatprep.subr.bf16.mxu0 0
        %9020 = vmatpush1.bf16.msra.mxu0 0
        %9021 = vmatprep.subr.bf16.mxu0 0
        %9022 = vmatpush1.bf16.msra.mxu0 0
        %9023 = vmatprep.subr.bf16.mxu0 0
        %9024 = vmatpush1.bf16.msra.mxu0 0
        %9025 = vmatprep.subr.bf16.mxu0 0
        %9026 = vmatpush1.bf16.msra.mxu0 0
        %9027 = vmatprep.subr.bf16.mxu0 0
        %9028 = vmatpush1.bf16.msra.mxu0 0
        %9029 = vmatprep.subr.bf16.mxu0 0
        %9030 = vmatpush1.bf16.msra.mxu0 0
        %9031 = vmatprep.subr.bf16.mxu0 0
        %9032 = vmatpush1.bf16.msra.mxu0 0
        %9033 = vmatprep.subr.bf16.mxu0 0
        %9034 = vmatpush1.bf16.msra.mxu0 0
        %9035 = vmatprep.subr.bf16.mxu0 0
        %9036 = vmatpush1.bf16.msra.mxu0 0
        %9037 = vmatprep.subr.bf16.mxu0 0
        %9038 = vmatpush1.bf16.msra.mxu0 0
        %9039 = vmatprep.subr.bf16.mxu0 0
        %9040 = vmatpush1.bf16.msra.mxu0 0
        %9041 = vmatprep.subr.bf16.mxu0 0
        %9042 = vmatpush1.bf16.msra.mxu0 0
        %9043 = vmatprep.mubr.bf16.mxu0 0
        %9044 = vmatmul.mubr.bf16.gmra.mrb[0].mxu0 %v8879
        %v9045 = vpop.f32.mrb[0].mxu0
        %v9046 = vadd.f32 %v8855, %v9045
        %v9047 = vpop.f32.mrb[0].mxu0
        %v9048 = vpop.f32.mrb[0].mxu0
        %v9049 = vadd.f32 %v8855, %v9048
        %v9050 = vpop.f32.mrb[0].mxu0
        %9051 = vmatprep.mubr.bf16.mxu0 0
        %9052 = vmatmul.mubr.bf16.gmra.mrb[0].mxu0 %v8881
        %v9053 = vpop.f32.mrb[0].mxu0
        %v9054 = vadd.f32 %v8855, %v9053
        %v9055 = vpop.f32.mrb[0].mxu0
        %v9056 = vpop.f32.mrb[0].mxu0
        %v9057 = vadd.f32 %v8855, %v9056
        %v9058 = vpop.f32.mrb[0].mxu0
        %9059 = vmatprep.mubr.bf16.mxu0 0
        %9060 = vmatmul.mubr.bf16.gmra.mrb[0].mxu0 %v8883
        %v9061 = vpop.f32.mrb[0].mxu0
        %v9062 = vadd.f32 %v8855, %v9061
        %v9063 = vpop.f32.mrb[0].mxu0
        %v9064 = vpop.f32.mrb[0].mxu0
        %v9065 = vadd.f32 %v8855, %v9064
        %v9066 = vpop.f32.mrb[0].mxu0
        %9067 = vmatprep.mubr.bf16.mxu0 0
        %9068 = vmatmul.mubr.bf16.gmra.mrb[0].mxu0 %v8885
        %v9069 = vpop.f32.mrb[0].mxu0
        %v9070 = vadd.f32 %v8855, %v9069
        %v9071 = vpop.f32.mrb[0].mxu0
        %v9072 = vpop.f32.mrb[0].mxu0
        %v9073 = vadd.f32 %v8855, %v9072
        %v9074 = vpop.f32.mrb[0].mxu0
        %9075 = vmatprep.mubr.bf16.mxu0 0
        %9076 = vmatmul.mubr.bf16.gmra.mrb[0].mxu0 %v8887
        %v9077 = vpop.f32.mrb[0].mxu0
        %v9078 = vadd.f32 %v8855, %v9077
        %v9079 = vpop.f32.mrb[0].mxu0
        %v9080 = vpop.f32.mrb[0].mxu0
        %v9081 = vadd.f32 %v8855, %v9080
        %v9082 = vpop.f32.mrb[0].mxu0
        %9083 = vmatprep.mubr.bf16.mxu0 0
        %9084 = vmatmul.mubr.bf16.gmra.mrb[0].mxu0 %v8889
        %v9085 = vpop.f32.mrb[0].mxu0
        %v9086 = vadd.f32 %v8855, %v9085
        %v9087 = vpop.f32.mrb[0].mxu0
        %v9088 = vpop.f32.mrb[0].mxu0
        %v9089 = vadd.f32 %v8855, %v9088
        %v9090 = vpop.f32.mrb[0].mxu0
        %9091 = vmatprep.mubr.bf16.mxu0 0
        %9092 = vmatmul.mubr.bf16.gmra.mrb[0].mxu0 %v8891
        %v9093 = vpop.f32.mrb[0].mxu0
        %v9094 = vadd.f32 %v8855, %v9093
        %v9095 = vpop.f32.mrb[0].mxu0
        %v9096 = vpop.f32.mrb[0].mxu0
        %v9097 = vadd.f32 %v8855, %v9096
        %v9098 = vpop.f32.mrb[0].mxu0
        %9099 = vmatprep.mubr.bf16.mxu0 0
        %9100 = vmatmul.mubr.bf16.gmra.mrb[0].mxu0 %v8893
        %v9101 = vpop.f32.mrb[0].mxu0
        %v9102 = vadd.f32 %v8855, %v9101
        %v9103 = vpop.f32.mrb[0].mxu0
        %v9104 = vpop.f32.mrb[0].mxu0
        %v9105 = vadd.f32 %v8855, %v9104
        %v9106 = vpop.f32.mrb[0].mxu0
        %9107 = vmatprep.mubr.bf16.mxu0 0
        %9108 = vmatmul.mubr.bf16.gmra.mrb[0].mxu0 %v8895
        %v9109 = vpop.f32.mrb[0].mxu0
        %v9110 = vadd.f32 %v8855, %v9109
        %v9111 = vpop.f32.mrb[0].mxu0
        %v9112 = vpop.f32.mrb[0].mxu0
        %v9113 = vadd.f32 %v8855, %v9112
        %v9114 = vpop.f32.mrb[0].mxu0
        %9115 = vmatprep.mubr.bf16.mxu0 0
        %9116 = vmatmul.mubr.bf16.gmra.mrb[0].mxu0 %v8897
        %v9117 = vpop.f32.mrb[0].mxu0
        %v9118 = vadd.f32 %v8855, %v9117
        %v9119 = vpop.f32.mrb[0].mxu0
        %v9120 = vpop.f32.mrb[0].mxu0
        %v9121 = vadd.f32 %v8855, %v9120
        %v9122 = vpop.f32.mrb[0].mxu0
        %9123 = vmatprep.mubr.bf16.mxu0 0
        %9124 = vmatmul.mubr.bf16.gmra.mrb[0].mxu0 %v8899
        %v9125 = vpop.f32.mrb[0].mxu0
        %v9126 = vadd.f32 %v8855, %v9125
        %v9127 = vpop.f32.mrb[0].mxu0
        %v9128 = vpop.f32.mrb[0].mxu0
        %v9129 = vadd.f32 %v8855, %v9128
        %v9130 = vpop.f32.mrb[0].mxu0
        %9131 = vmatprep.mubr.bf16.mxu0 0
        %9132 = vmatmul.mubr.bf16.gmra.mrb[0].mxu0 %v8901
        %v9133 = vpop.f32.mrb[0].mxu0
        %v9134 = vadd.f32 %v8855, %v9133
        %v9135 = vpop.f32.mrb[0].mxu0
        %v9136 = vpop.f32.mrb[0].mxu0
        %v9137 = vadd.f32 %v8855, %v9136
        %v9138 = vpop.f32.mrb[0].mxu0
        %9139 = vmatprep.mubr.bf16.mxu0 0
        %9140 = vmatmul.mubr.bf16.gmra.mrb[0].mxu0 %v8903
        %v9141 = vpop.f32.mrb[0].mxu0
        %v9142 = vadd.f32 %v8855, %v9141
        %v9143 = vpop.f32.mrb[0].mxu0
        %v9144 = vpop.f32.mrb[0].mxu0
        %v9145 = vadd.f32 %v8855, %v9144
        %v9146 = vpop.f32.mrb[0].mxu0
        %9147 = vmatprep.mubr.bf16.mxu0 0
        %9148 = vmatmul.mubr.bf16.gmra.mrb[0].mxu0 %v8905
        %v9149 = vpop.f32.mrb[0].mxu0
        %v9150 = vadd.f32 %v8855, %v9149
        %v9151 = vpop.f32.mrb[0].mxu0
        %v9152 = vpop.f32.mrb[0].mxu0
        %v9153 = vadd.f32 %v8855, %v9152
        %v9154 = vpop.f32.mrb[0].mxu0
        %9155 = vmatprep.mubr.bf16.mxu0 0
        %9156 = vmatmul.mubr.bf16.gmra.mrb[0].mxu0 %v8907
        %v9157 = vpop.f32.mrb[0].mxu0
        %v9158 = vadd.f32 %v8855, %v9157
        %v9159 = vpop.f32.mrb[0].mxu0
        %v9160 = vpop.f32.mrb[0].mxu0
        %v9161 = vadd.f32 %v8855, %v9160
        %v9162 = vpop.f32.mrb[0].mxu0
        %9163 = vmatprep.mubr.bf16.mxu0 0
        %9164 = vmatmul.mubr.bf16.gmra.mrb[0].mxu0 %v8909
        %v9165 = vpop.f32.mrb[0].mxu0
        %v9166 = vadd.f32 %v8855, %v9165
        %v9167 = vpop.f32.mrb[0].mxu0
        %v9168 = vpop.f32.mrb[0].mxu0
        %v9169 = vadd.f32 %v8855, %v9168
        %v9170 = vpop.f32.mrb[0].mxu0
        %9171 = vmatprep.mubr.bf16.mxu0 0
        %9172 = vmatmul.mubr.bf16.gmra.mrb[0].mxu0 %v8911
        %v9173 = vpop.f32.mrb[0].mxu0
        %v9174 = vadd.f32 %v8855, %v9173
        %v9175 = vpop.f32.mrb[0].mxu0
        %v9176 = vpop.f32.mrb[0].mxu0
        %v9177 = vadd.f32 %v8855, %v9176
        %v9178 = vpop.f32.mrb[0].mxu0
        %9179 = vmatprep.mubr.bf16.mxu0 0
        %9180 = vmatmul.mubr.bf16.gmra.mrb[0].mxu0 %v8913
        %v9181 = vpop.f32.mrb[0].mxu0
        %v9182 = vadd.f32 %v8855, %v9181
        %v9183 = vpop.f32.mrb[0].mxu0
        %v9184 = vpop.f32.mrb[0].mxu0
        %v9185 = vadd.f32 %v8855, %v9184
        %v9186 = vpop.f32.mrb[0].mxu0
        %9187 = vmatprep.mubr.bf16.mxu0 0
        %9188 = vmatmul.mubr.bf16.gmra.mrb[0].mxu0 %v8915
        %v9189 = vpop.f32.mrb[0].mxu0
        %v9190 = vadd.f32 %v8855, %v9189
        %v9191 = vpop.f32.mrb[0].mxu0
        %v9192 = vpop.f32.mrb[0].mxu0
        %v9193 = vadd.f32 %v8855, %v9192
        %v9194 = vpop.f32.mrb[0].mxu0
        %9195 = vmatprep.mubr.bf16.mxu0 0
        %9196 = vmatmul.mubr.bf16.gmra.mrb[0].mxu0 %v8917
        %v9197 = vpop.f32.mrb[0].mxu0
        %v9198 = vadd.f32 %v8855, %v9197
        %v9199 = vpop.f32.mrb[0].mxu0
        %v9200 = vpop.f32.mrb[0].mxu0
        %v9201 = vadd.f32 %v8855, %v9200
        %v9202 = vpop.f32.mrb[0].mxu0
        %9203 = vmatprep.mubr.bf16.mxu0 0
        %9204 = vmatmul.mubr.bf16.gmra.mrb[0].mxu0 %v8919
        %v9205 = vpop.f32.mrb[0].mxu0
        %v9206 = vadd.f32 %v8855, %v9205
        %v9207 = vpop.f32.mrb[0].mxu0
        %v9208 = vpop.f32.mrb[0].mxu0
        %v9209 = vadd.f32 %v8855, %v9208
        %v9210 = vpop.f32.mrb[0].mxu0
        %9211 = vmatprep.mubr.bf16.mxu0 0
        %9212 = vmatmul.mubr.bf16.gmra.mrb[0].mxu0 %v8921
        %v9213 = vpop.f32.mrb[0].mxu0
        %v9214 = vadd.f32 %v8855, %v9213
        %v9215 = vpop.f32.mrb[0].mxu0
        %v9216 = vpop.f32.mrb[0].mxu0
        %v9217 = vadd.f32 %v8855, %v9216
        %v9218 = vpop.f32.mrb[0].mxu0
        %9219 = vmatprep.mubr.bf16.mxu0 0
        %9220 = vmatmul.mubr.bf16.gmra.mrb[0].mxu0 %v8923
        %v9221 = vpop.f32.mrb[0].mxu0
        %v9222 = vadd.f32 %v8855, %v9221
        %v9223 = vpop.f32.mrb[0].mxu0
        %v9224 = vpop.f32.mrb[0].mxu0
        %v9225 = vadd.f32 %v8855, %v9224
        %v9226 = vpop.f32.mrb[0].mxu0
        %9227 = vmatprep.mubr.bf16.mxu0 0
        %9228 = vmatmul.mubr.bf16.gmra.mrb[0].mxu0 %v8925
        %v9229 = vpop.f32.mrb[0].mxu0
        %v9230 = vadd.f32 %v8855, %v9229
        %v9231 = vpop.f32.mrb[0].mxu0
        %v9232 = vpop.f32.mrb[0].mxu0
        %v9233 = vadd.f32 %v8855, %v9232
        %v9234 = vpop.f32.mrb[0].mxu0
        %9235 = vmatprep.mubr.bf16.mxu0 0
        %9236 = vmatmul.mubr.bf16.gmra.mrb[0].mxu0 %v8927
        %v9237 = vpop.f32.mrb[0].mxu0
        %v9238 = vadd.f32 %v8855, %v9237
        %v9239 = vpop.f32.mrb[0].mxu0
        %v9240 = vpop.f32.mrb[0].mxu0
        %v9241 = vadd.f32 %v8855, %v9240
        %v9242 = vpop.f32.mrb[0].mxu0
        %9243 = vmatprep.mubr.bf16.mxu0 0
        %9244 = vmatmul.mubr.bf16.gmra.mrb[0].mxu0 %v8929
        %v9245 = vpop.f32.mrb[0].mxu0
        %v9246 = vadd.f32 %v8855, %v9245
        %v9247 = vpop.f32.mrb[0].mxu0
        %v9248 = vpop.f32.mrb[0].mxu0
        %v9249 = vadd.f32 %v8855, %v9248
        %v9250 = vpop.f32.mrb[0].mxu0
        %9251 = vmatprep.mubr.bf16.mxu0 0
        %9252 = vmatmul.mubr.bf16.gmra.mrb[0].mxu0 %v8931
        %v9253 = vpop.f32.mrb[0].mxu0
        %v9254 = vadd.f32 %v8855, %v9253
        %v9255 = vpop.f32.mrb[0].mxu0
        %v9256 = vpop.f32.mrb[0].mxu0
        %v9257 = vadd.f32 %v8855, %v9256
        %v9258 = vpop.f32.mrb[0].mxu0
        %9259 = vmatprep.mubr.bf16.mxu0 0
        %9260 = vmatmul.mubr.bf16.gmra.mrb[0].mxu0 %v8933
        %v9261 = vpop.f32.mrb[0].mxu0
        %v9262 = vadd.f32 %v8855, %v9261
        %v9263 = vpop.f32.mrb[0].mxu0
        %v9264 = vpop.f32.mrb[0].mxu0
        %v9265 = vadd.f32 %v8855, %v9264
        %v9266 = vpop.f32.mrb[0].mxu0
        %9267 = vmatprep.mubr.bf16.mxu0 0
        %9268 = vmatmul.mubr.bf16.gmra.mrb[0].mxu0 %v8935
        %v9269 = vpop.f32.mrb[0].mxu0
        %v9270 = vadd.f32 %v8855, %v9269
        %v9271 = vpop.f32.mrb[0].mxu0
        %v9272 = vpop.f32.mrb[0].mxu0
        %v9273 = vadd.f32 %v8855, %v9272
        %v9274 = vpop.f32.mrb[0].mxu0
        %9275 = vmatprep.mubr.bf16.mxu0 0
        %9276 = vmatmul.mubr.bf16.gmra.mrb[0].mxu0 %v8937
        %v9277 = vpop.f32.mrb[0].mxu0
        %v9278 = vadd.f32 %v8855, %v9277
        %v9279 = vpop.f32.mrb[0].mxu0
        %v9280 = vpop.f32.mrb[0].mxu0
        %v9281 = vadd.f32 %v8855, %v9280
        %v9282 = vpop.f32.mrb[0].mxu0
        %9283 = vmatprep.mubr.bf16.mxu0 0
        %9284 = vmatmul.mubr.bf16.gmra.mrb[0].mxu0 %v8939
        %v9285 = vpop.f32.mrb[0].mxu0
        %v9286 = vadd.f32 %v8855, %v9285
        %v9287 = vpop.f32.mrb[0].mxu0
        %v9288 = vpop.f32.mrb[0].mxu0
        %v9289 = vadd.f32 %v8855, %v9288
        %v9290 = vpop.f32.mrb[0].mxu0
        %9291 = vmatprep.mubr.bf16.mxu0 0
        %9292 = vmatmul.mubr.bf16.gmra.mrb[0].mxu0 %v8941
        %v9293 = vpop.f32.mrb[0].mxu0
        %v9294 = vadd.f32 %v8855, %v9293
        %v9295 = vpop.f32.mrb[0].mxu0
        %v9296 = vpop.f32.mrb[0].mxu0
        %v9297 = vadd.f32 %v8855, %v9296
        %v9298 = vpop.f32.mrb[0].mxu0
        %9299 = vmatprep.mubr.bf16.mxu0 0
        %9300 = vmatmul.mubr.bf16.gmra.mrb[0].mxu0 %v8943
        %v9301 = vpop.f32.mrb[0].mxu0
        %v9302 = vadd.f32 %v8855, %v9301
        %v9303 = vpop.f32.mrb[0].mxu0
        %v9304 = vpop.f32.mrb[0].mxu0
        %v9305 = vadd.f32 %v8855, %v9304
        %v9306 = vpop.f32.mrb[0].mxu0
        %9307 = vmatprep.mubr.bf16.mxu0 0
        %9308 = vmatmul.mubr.bf16.gmra.mrb[0].mxu0 %v8945
        %v9309 = vpop.f32.mrb[0].mxu0
        %v9310 = vadd.f32 %v8855, %v9309
        %v9311 = vpop.f32.mrb[0].mxu0
        %v9312 = vpop.f32.mrb[0].mxu0
        %v9313 = vadd.f32 %v8855, %v9312
        %v9314 = vpop.f32.mrb[0].mxu0
        %9315 = vmatprep.mubr.bf16.mxu0 0
        %9316 = vmatmul.mubr.bf16.gmra.mrb[0].mxu0 %v8947
        %v9317 = vpop.f32.mrb[0].mxu0
        %v9318 = vadd.f32 %v8855, %v9317
        %v9319 = vpop.f32.mrb[0].mxu0
        %v9320 = vpop.f32.mrb[0].mxu0
        %v9321 = vadd.f32 %v8855, %v9320
        %v9322 = vpop.f32.mrb[0].mxu0
        %9323 = vmatprep.mubr.bf16.mxu0 0
        %9324 = vmatmul.mubr.bf16.gmra.mrb[0].mxu0 %v8949
        %v9325 = vpop.f32.mrb[0].mxu0
        %v9326 = vadd.f32 %v8855, %v9325
        %v9327 = vpop.f32.mrb[0].mxu0
        %v9328 = vpop.f32.mrb[0].mxu0
        %v9329 = vadd.f32 %v8855, %v9328
        %v9330 = vpop.f32.mrb[0].mxu0
        %9331 = vmatprep.mubr.bf16.mxu0 0
        %9332 = vmatmul.mubr.bf16.gmra.mrb[0].mxu0 %v8951
        %v9333 = vpop.f32.mrb[0].mxu0
        %v9334 = vadd.f32 %v8855, %v9333
        %v9335 = vpop.f32.mrb[0].mxu0
        %v9336 = vpop.f32.mrb[0].mxu0
        %v9337 = vadd.f32 %v8855, %v9336
        %v9338 = vpop.f32.mrb[0].mxu0
        %9339 = vmatprep.mubr.bf16.mxu0 0
        %9340 = vmatmul.mubr.bf16.gmra.mrb[0].mxu0 %v8953
        %v9341 = vpop.f32.mrb[0].mxu0
        %v9342 = vadd.f32 %v8855, %v9341
        %v9343 = vpop.f32.mrb[0].mxu0
        %v9344 = vpop.f32.mrb[0].mxu0
        %v9345 = vadd.f32 %v8855, %v9344
        %v9346 = vpop.f32.mrb[0].mxu0
        %9347 = vmatprep.mubr.bf16.mxu0 0
        %9348 = vmatmul.mubr.bf16.gmra.mrb[0].mxu0 %v8955
        %v9349 = vpop.f32.mrb[0].mxu0
        %v9350 = vadd.f32 %v8855, %v9349
        %v9351 = vpop.f32.mrb[0].mxu0
        %v9352 = vpop.f32.mrb[0].mxu0
        %v9353 = vadd.f32 %v8855, %v9352
        %v9354 = vpop.f32.mrb[0].mxu0
        %9355 = vmatprep.mubr.bf16.mxu0 0
        %9356 = vmatmul.mubr.bf16.gmra.mrb[0].mxu0 %v8957
        %v9357 = vpop.f32.mrb[0].mxu0
        %v9358 = vadd.f32 %v8855, %v9357
        %v9359 = vpop.f32.mrb[0].mxu0
        %v9360 = vpop.f32.mrb[0].mxu0
        %v9361 = vadd.f32 %v8855, %v9360
        %v9362 = vpop.f32.mrb[0].mxu0
        %9363 = vmatprep.mubr.bf16.mxu0 0
        %9364 = vmatmul.mubr.bf16.gmra.mrb[0].mxu0 %v8959
        %v9365 = vpop.f32.mrb[0].mxu0
        %v9366 = vadd.f32 %v8855, %v9365
        %v9367 = vpop.f32.mrb[0].mxu0
        %v9368 = vpop.f32.mrb[0].mxu0
        %v9369 = vadd.f32 %v8855, %v9368
        %v9370 = vpop.f32.mrb[0].mxu0
        %9371 = vmatprep.mubr.bf16.mxu0 0
        %9372 = vmatmul.mubr.bf16.gmra.mrb[0].mxu0 %v8961
        %v9373 = vpop.f32.mrb[0].mxu0
        %v9374 = vadd.f32 %v8855, %v9373
        %v9375 = vpop.f32.mrb[0].mxu0
        %v9376 = vpop.f32.mrb[0].mxu0
        %v9377 = vadd.f32 %v8855, %v9376
        %v9378 = vpop.f32.mrb[0].mxu0
        %9379 = vmatprep.mubr.bf16.mxu0 0
        %9380 = vmatmul.mubr.bf16.gmra.mrb[0].mxu0 %v8963
        %v9381 = vpop.f32.mrb[0].mxu0
        %v9382 = vadd.f32 %v8855, %v9381
        %v9383 = vpop.f32.mrb[0].mxu0
        %v9384 = vpop.f32.mrb[0].mxu0
        %v9385 = vadd.f32 %v8855, %v9384
        %v9386 = vpop.f32.mrb[0].mxu0
        %9387 = vmatprep.mubr.bf16.mxu0 0
        %9388 = vmatmul.mubr.bf16.gmra.mrb[0].mxu0 %v8965
        %v9389 = vpop.f32.mrb[0].mxu0
        %v9390 = vadd.f32 %v8855, %v9389
        %v9391 = vpop.f32.mrb[0].mxu0
        %v9392 = vpop.f32.mrb[0].mxu0
        %v9393 = vadd.f32 %v8855, %v9392
        %v9394 = vpop.f32.mrb[0].mxu0
        %9395 = vmatprep.mubr.bf16.mxu0 0
        %9396 = vmatmul.mubr.bf16.gmra.mrb[0].mxu0 %v8967
        %v9397 = vpop.f32.mrb[0].mxu0
        %v9398 = vadd.f32 %v8855, %v9397
        %v9399 = vpop.f32.mrb[0].mxu0
        %v9400 = vpop.f32.mrb[0].mxu0
        %v9401 = vadd.f32 %v8855, %v9400
        %v9402 = vpop.f32.mrb[0].mxu0
        %9403 = vmatprep.mubr.bf16.mxu0 0
        %9404 = vmatmul.mubr.bf16.gmra.mrb[0].mxu0 %v8969
        %v9405 = vpop.f32.mrb[0].mxu0
        %v9406 = vadd.f32 %v8855, %v9405
        %v9407 = vpop.f32.mrb[0].mxu0
        %v9408 = vpop.f32.mrb[0].mxu0
        %v9409 = vadd.f32 %v8855, %v9408
        %v9410 = vpop.f32.mrb[0].mxu0
        %9411 = vmatprep.mubr.bf16.mxu0 0
        %9412 = vmatmul.mubr.bf16.gmra.mrb[0].mxu0 %v8971
        %v9413 = vpop.f32.mrb[0].mxu0
        %v9414 = vadd.f32 %v8855, %v9413
        %v9415 = vpop.f32.mrb[0].mxu0
        %v9416 = vpop.f32.mrb[0].mxu0
        %v9417 = vadd.f32 %v8855, %v9416
        %v9418 = vpop.f32.mrb[0].mxu0
        %9419 = vmatprep.mubr.bf16.mxu0 0
        %9420 = vmatmul.mubr.bf16.gmra.mrb[0].mxu0 %v8973
        %v9421 = vpop.f32.mrb[0].mxu0
        %v9422 = vadd.f32 %v8855, %v9421
        %v9423 = vpop.f32.mrb[0].mxu0
        %v9424 = vpop.f32.mrb[0].mxu0
        %v9425 = vadd.f32 %v8855, %v9424
        %v9426 = vpop.f32.mrb[0].mxu0
        %9427 = vmatprep.mubr.bf16.mxu0 0
        %9428 = vmatmul.mubr.bf16.gmra.mrb[0].mxu0 %v8975
        %v9429 = vpop.f32.mrb[0].mxu0
        %v9430 = vadd.f32 %v8855, %v9429
        %v9431 = vpop.f32.mrb[0].mxu0
        %v9432 = vpop.f32.mrb[0].mxu0
        %v9433 = vadd.f32 %v8855, %v9432
        %v9434 = vpop.f32.mrb[0].mxu0
        %9435 = vmatprep.mubr.bf16.mxu0 0
        %9436 = vmatmul.mubr.bf16.gmra.mrb[0].mxu0 %v8977
        %v9437 = vpop.f32.mrb[0].mxu0
        %v9438 = vadd.f32 %v8855, %v9437
        %v9439 = vpop.f32.mrb[0].mxu0
        %v9440 = vpop.f32.mrb[0].mxu0
        %v9441 = vadd.f32 %v8855, %v9440
        %v9442 = vpop.f32.mrb[0].mxu0
        %9443 = vmatprep.mubr.bf16.mxu0 0
        %9444 = vmatmul.mubr.bf16.gmra.mrb[0].mxu0 %v8979
        %v9445 = vpop.f32.mrb[0].mxu0
        %v9446 = vadd.f32 %v8855, %v9445
        %v9447 = vpop.f32.mrb[0].mxu0
        %v9448 = vpop.f32.mrb[0].mxu0
        %v9449 = vadd.f32 %v8855, %v9448
        %v9450 = vpop.f32.mrb[0].mxu0
        %9451 = vmatprep.mubr.bf16.mxu0 0
        %9452 = vmatmul.mubr.bf16.gmra.mrb[0].mxu0 %v8981
        %v9453 = vpop.f32.mrb[0].mxu0
        %v9454 = vadd.f32 %v8855, %v9453
        %v9455 = vpop.f32.mrb[0].mxu0
        %v9456 = vpop.f32.mrb[0].mxu0
        %v9457 = vadd.f32 %v8855, %v9456
        %v9458 = vpop.f32.mrb[0].mxu0
        %9459 = vmatprep.mubr.bf16.mxu0 0
        %9460 = vmatmul.mubr.bf16.gmra.mrb[0].mxu0 %v8983
        %v9461 = vpop.f32.mrb[0].mxu0
        %v9462 = vadd.f32 %v8855, %v9461
        %v9463 = vpop.f32.mrb[0].mxu0
        %v9464 = vpop.f32.mrb[0].mxu0
        %v9465 = vadd.f32 %v8855, %v9464
        %v9466 = vpop.f32.mrb[0].mxu0
        %9467 = vmatprep.mubr.bf16.mxu0 0
        %9468 = vmatmul.mubr.bf16.gmra.mrb[0].mxu0 %v8985
        %v9469 = vpop.f32.mrb[0].mxu0
        %v9470 = vadd.f32 %v8855, %v9469
        %v9471 = vpop.f32.mrb[0].mxu0
        %v9472 = vpop.f32.mrb[0].mxu0
        %v9473 = vadd.f32 %v8855, %v9472
        %v9474 = vpop.f32.mrb[0].mxu0
        %9475 = vmatprep.mubr.bf16.mxu0 0
        %9476 = vmatmul.mubr.bf16.gmra.mrb[0].mxu0 %v8987
        %v9477 = vpop.f32.mrb[0].mxu0
        %v9478 = vadd.f32 %v8855, %v9477
        %v9479 = vpop.f32.mrb[0].mxu0
        %v9480 = vpop.f32.mrb[0].mxu0
        %v9481 = vadd.f32 %v8855, %v9480
        %v9482 = vpop.f32.mrb[0].mxu0
        %9483 = vmatprep.mubr.bf16.mxu0 0
        %9484 = vmatmul.mubr.bf16.gmra.mrb[0].mxu0 %v8989
        %v9485 = vpop.f32.mrb[0].mxu0
        %v9486 = vadd.f32 %v8855, %v9485
        %v9487 = vpop.f32.mrb[0].mxu0
        %v9488 = vpop.f32.mrb[0].mxu0
        %v9489 = vadd.f32 %v8855, %v9488
        %v9490 = vpop.f32.mrb[0].mxu0
        %9491 = vmatprep.mubr.bf16.mxu0 0
        %9492 = vmatmul.mubr.bf16.gmra.mrb[0].mxu0 %v8991
        %v9493 = vpop.f32.mrb[0].mxu0
        %v9494 = vadd.f32 %v8855, %v9493
        %v9495 = vpop.f32.mrb[0].mxu0
        %v9496 = vpop.f32.mrb[0].mxu0
        %v9497 = vadd.f32 %v8855, %v9496
        %v9498 = vpop.f32.mrb[0].mxu0
        %9499 = vmatprep.mubr.bf16.mxu0 0
        %9500 = vmatmul.mubr.bf16.gmra.mrb[0].mxu0 %v8993
        %v9501 = vpop.f32.mrb[0].mxu0
        %v9502 = vadd.f32 %v8855, %v9501
        %v9503 = vpop.f32.mrb[0].mxu0
        %v9504 = vpop.f32.mrb[0].mxu0
        %v9505 = vadd.f32 %v8855, %v9504
        %v9506 = vpop.f32.mrb[0].mxu0
        %9507 = vmatprep.mubr.bf16.mxu0 0
        %9508 = vmatmul.mubr.bf16.gmra.mrb[0].mxu0 %v8995
        %v9509 = vpop.f32.mrb[0].mxu0
        %v9510 = vadd.f32 %v8855, %v9509
        %v9511 = vpop.f32.mrb[0].mxu0
        %v9512 = vpop.f32.mrb[0].mxu0
        %v9513 = vadd.f32 %v8855, %v9512
        %v9514 = vpop.f32.mrb[0].mxu0
        %9515 = vmatprep.mubr.bf16.mxu0 0
        %9516 = vmatmul.mubr.bf16.gmra.mrb[0].mxu0 %v8997
        %v9517 = vpop.f32.mrb[0].mxu0
        %v9518 = vadd.f32 %v8855, %v9517
        %v9519 = vpop.f32.mrb[0].mxu0
        %v9520 = vpop.f32.mrb[0].mxu0
        %v9521 = vadd.f32 %v8855, %v9520
        %v9522 = vpop.f32.mrb[0].mxu0
        %9523 = vmatprep.mubr.bf16.mxu0 0
        %9524 = vmatmul.mubr.bf16.gmra.mrb[0].mxu0 %v8999
        %v9525 = vpop.f32.mrb[0].mxu0
        %v9526 = vadd.f32 %v8855, %v9525
        %v9527 = vpop.f32.mrb[0].mxu0
        %v9528 = vpop.f32.mrb[0].mxu0
        %v9529 = vadd.f32 %v8855, %v9528
        %v9530 = vpop.f32.mrb[0].mxu0
        %9531 = vmatprep.mubr.bf16.mxu0 0
        %9532 = vmatmul.mubr.bf16.gmra.mrb[0].mxu0 %v9001
        %v9533 = vpop.f32.mrb[0].mxu0
        %v9534 = vadd.f32 %v8855, %v9533
        %v9535 = vpop.f32.mrb[0].mxu0
        %v9536 = vpop.f32.mrb[0].mxu0
        %v9537 = vadd.f32 %v8855, %v9536
        %v9538 = vpop.f32.mrb[0].mxu0
        %9539 = vmatprep.mubr.bf16.mxu0 0
        %9540 = vmatmul.mubr.bf16.gmra.mrb[0].mxu0 %v9003
        %v9541 = vpop.f32.mrb[0].mxu0
        %v9542 = vadd.f32 %v8855, %v9541
        %v9543 = vpop.f32.mrb[0].mxu0
        %v9544 = vpop.f32.mrb[0].mxu0
        %v9545 = vadd.f32 %v8855, %v9544
        %v9546 = vpop.f32.mrb[0].mxu0
        %9547 = vmatprep.mubr.bf16.mxu0 0
        %9548 = vmatmul.mubr.bf16.gmra.mrb[0].mxu0 %v9005
        %v9549 = vpop.f32.mrb[0].mxu0
        %v9550 = vadd.f32 %v8855, %v9549
        %v9551 = vpop.f32.mrb[0].mxu0
        %v9552 = vpop.f32.mrb[0].mxu0
        %v9553 = vadd.f32 %v8855, %v9552
        %v9554 = vpop.f32.mrb[0].mxu0
        %9555 = vdwg.mxu0
        %v9556 = vmax.f32 %v9046, 0.0
        %v9557 = vmax.f32 %v9049, 0.0
        %v9558 = vmax.f32 %v9054, 0.0
        %v9559 = vmax.f32 %v9057, 0.0
        %v9560 = vmax.f32 %v9062, 0.0
        %v9561 = vmax.f32 %v9065, 0.0
        %v9562 = vmax.f32 %v9070, 0.0
        %v9563 = vmax.f32 %v9073, 0.0
        %v9564 = vmax.f32 %v9078, 0.0
        %v9565 = vmax.f32 %v9081, 0.0
        %v9566 = vmax.f32 %v9086, 0.0
        %v9567 = vmax.f32 %v9089, 0.0
        %v9568 = vmax.f32 %v9094, 0.0
        %v9569 = vmax.f32 %v9097, 0.0
        %v9570 = vmax.f32 %v9102, 0.0
        %v9571 = vmax.f32 %v9105, 0.0
        %v9572 = vmax.f32 %v9110, 0.0
        %v9573 = vmax.f32 %v9113, 0.0
        %v9574 = vmax.f32 %v9118, 0.0
        %v9575 = vmax.f32 %v9121, 0.0
        %v9576 = vmax.f32 %v9126, 0.0
        %v9577 = vmax.f32 %v9129, 0.0
        %v9578 = vmax.f32 %v9134, 0.0
        %v9579 = vmax.f32 %v9137, 0.0
        %v9580 = vmax.f32 %v9142, 0.0
        %v9581 = vmax.f32 %v9145, 0.0
        %v9582 = vmax.f32 %v9150, 0.0
        %v9583 = vmax.f32 %v9153, 0.0
        %v9584 = vmax.f32 %v9158, 0.0
        %v9585 = vmax.f32 %v9161, 0.0
        %v9586 = vmax.f32 %v9166, 0.0
        %v9587 = vmax.f32 %v9169, 0.0
        %v9588 = vmax.f32 %v9174, 0.0
        %v9589 = vmax.f32 %v9177, 0.0
        %v9590 = vmax.f32 %v9182, 0.0
        %v9591 = vmax.f32 %v9185, 0.0
        %v9592 = vmax.f32 %v9190, 0.0
        %v9593 = vmax.f32 %v9193, 0.0
        %v9594 = vmax.f32 %v9198, 0.0
        %v9595 = vmax.f32 %v9201, 0.0
        %v9596 = vmax.f32 %v9206, 0.0
        %v9597 = vmax.f32 %v9209, 0.0
        %v9598 = vmax.f32 %v9214, 0.0
        %v9599 = vmax.f32 %v9217, 0.0
        %v9600 = vmax.f32 %v9222, 0.0
        %v9601 = vmax.f32 %v9225, 0.0
        %v9602 = vmax.f32 %v9230, 0.0
        %v9603 = vmax.f32 %v9233, 0.0
        %v9604 = vmax.f32 %v9238, 0.0
        %v9605 = vmax.f32 %v9241, 0.0
        %v9606 = vmax.f32 %v9246, 0.0
        %v9607 = vmax.f32 %v9249, 0.0
        %v9608 = vmax.f32 %v9254, 0.0
        %v9609 = vmax.f32 %v9257, 0.0
        %v9610 = vmax.f32 %v9262, 0.0
        %v9611 = vmax.f32 %v9265, 0.0
        %v9612 = vmax.f32 %v9270, 0.0
        %v9613 = vmax.f32 %v9273, 0.0
        %v9614 = vmax.f32 %v9278, 0.0
        %v9615 = vmax.f32 %v9281, 0.0
        %v9616 = vmax.f32 %v9286, 0.0
        %v9617 = vmax.f32 %v9289, 0.0
        %v9618 = vmax.f32 %v9294, 0.0
        %v9619 = vmax.f32 %v9297, 0.0
        %v9620 = vmax.f32 %v9302, 0.0
        %v9621 = vmax.f32 %v9305, 0.0
        %v9622 = vmax.f32 %v9310, 0.0
        %v9623 = vmax.f32 %v9313, 0.0
        %v9624 = vmax.f32 %v9318, 0.0
        %v9625 = vmax.f32 %v9321, 0.0
        %v9626 = vmax.f32 %v9326, 0.0
        %v9627 = vmax.f32 %v9329, 0.0
        %v9628 = vmax.f32 %v9334, 0.0
        %v9629 = vmax.f32 %v9337, 0.0
        %v9630 = vmax.f32 %v9342, 0.0
        %v9631 = vmax.f32 %v9345, 0.0
        %v9632 = vmax.f32 %v9350, 0.0
        %v9633 = vmax.f32 %v9353, 0.0
        %v9634 = vmax.f32 %v9358, 0.0
        %v9635 = vmax.f32 %v9361, 0.0
        %v9636 = vmax.f32 %v9366, 0.0
        %v9637 = vmax.f32 %v9369, 0.0
        %v9638 = vmax.f32 %v9374, 0.0
        %v9639 = vmax.f32 %v9377, 0.0
        %v9640 = vmax.f32 %v9382, 0.0
        %v9641 = vmax.f32 %v9385, 0.0
        %v9642 = vmax.f32 %v9390, 0.0
        %v9643 = vmax.f32 %v9393, 0.0
        %v9644 = vmax.f32 %v9398, 0.0
        %v9645 = vmax.f32 %v9401, 0.0
        %v9646 = vmax.f32 %v9406, 0.0
        %v9647 = vmax.f32 %v9409, 0.0
        %v9648 = vmax.f32 %v9414, 0.0
        %v9649 = vmax.f32 %v9417, 0.0
        %v9650 = vmax.f32 %v9422, 0.0
        %v9651 = vmax.f32 %v9425, 0.0
        %v9652 = vmax.f32 %v9430, 0.0
        %v9653 = vmax.f32 %v9433, 0.0
        %v9654 = vmax.f32 %v9438, 0.0
        %v9655 = vmax.f32 %v9441, 0.0
        %v9656 = vmax.f32 %v9446, 0.0
        %v9657 = vmax.f32 %v9449, 0.0
        %v9658 = vmax.f32 %v9454, 0.0
        %v9659 = vmax.f32 %v9457, 0.0
        %v9660 = vmax.f32 %v9462, 0.0
        %v9661 = vmax.f32 %v9465, 0.0
        %v9662 = vmax.f32 %v9470, 0.0
        %v9663 = vmax.f32 %v9473, 0.0
        %v9664 = vmax.f32 %v9478, 0.0
        %v9665 = vmax.f32 %v9481, 0.0
        %v9666 = vmax.f32 %v9486, 0.0
        %v9667 = vmax.f32 %v9489, 0.0
        %v9668 = vmax.f32 %v9494, 0.0
        %v9669 = vmax.f32 %v9497, 0.0
        %v9670 = vmax.f32 %v9502, 0.0
        %v9671 = vmax.f32 %v9505, 0.0
        %v9672 = vmax.f32 %v9510, 0.0
        %v9673 = vmax.f32 %v9513, 0.0
        %v9674 = vmax.f32 %v9518, 0.0
        %v9675 = vmax.f32 %v9521, 0.0
        %v9676 = vmax.f32 %v9526, 0.0
        %v9677 = vmax.f32 %v9529, 0.0
        %v9678 = vmax.f32 %v9534, 0.0
        %v9679 = vmax.f32 %v9537, 0.0
        %v9680 = vmax.f32 %v9542, 0.0
        %v9681 = vmax.f32 %v9545, 0.0
        %v9682 = vmax.f32 %v9550, 0.0
        %v9683 = vmax.f32 %v9553, 0.0
        %v9684 = vld [vmem:[%s4] sm:$0xff]
        %v9685 = vld [vmem:[%s4 + $0x8] sm:$0xff]
        %v9686 = vld [vmem:[%s4 + $0x10] sm:$0xff]
        %v9687 = vld [vmem:[%s4 + $0x18] sm:$0xff]
        %v9692 = vcombine.high %v9684, %v9684
        %v9693 = vcombine.high %v9685, %v9685
        %v9694 = vcombine.high %v9686, %v9686
        %v9695 = vcombine.high %v9687, %v9687
        %9700 = vmatprep.subr.mxu0 0.0
        %9701 = vmatpush1.msra.mxu0 %v9556
        %9702 = vmatprep.subr.mxu0 0.0
        %9703 = vmatpush1.msra.mxu0 %v9557
        %9704 = vmatprep.subr.mxu0 0.0
        %9705 = vmatpush1.msra.mxu0 %v9558
        %9706 = vmatprep.subr.mxu0 0.0
        %9707 = vmatpush1.msra.mxu0 %v9559
        %9708 = vmatprep.subr.mxu0 0.0
        %9709 = vmatpush1.msra.mxu0 %v9560
        %9710 = vmatprep.subr.mxu0 0.0
        %9711 = vmatpush1.msra.mxu0 %v9561
        %9712 = vmatprep.subr.mxu0 0.0
        %9713 = vmatpush1.msra.mxu0 %v9562
        %9714 = vmatprep.subr.mxu0 0.0
        %9715 = vmatpush1.msra.mxu0 %v9563
        %9716 = vmatprep.subr.mxu0 0.0
        %9717 = vmatpush1.msra.mxu0 %v9564
        %9718 = vmatprep.subr.mxu0 0.0
        %9719 = vmatpush1.msra.mxu0 %v9565
        %9720 = vmatprep.subr.mxu0 0.0
        %9721 = vmatpush1.msra.mxu0 %v9566
        %9722 = vmatprep.subr.mxu0 0.0
        %9723 = vmatpush1.msra.mxu0 %v9567
        %9724 = vmatprep.subr.mxu0 0.0
        %9725 = vmatpush1.msra.mxu0 %v9568
        %9726 = vmatprep.subr.mxu0 0.0
        %9727 = vmatpush1.msra.mxu0 %v9569
        %9728 = vmatprep.subr.mxu0 0.0
        %9729 = vmatpush1.msra.mxu0 %v9570
        %9730 = vmatprep.subr.mxu0 0.0
        %9731 = vmatpush1.msra.mxu0 %v9571
        %9732 = vmatprep.subr.mxu0 0.0
        %9733 = vmatpush1.msra.mxu0 %v9572
        %9734 = vmatprep.subr.mxu0 0.0
        %9735 = vmatpush1.msra.mxu0 %v9573
        %9736 = vmatprep.subr.mxu0 0.0
        %9737 = vmatpush1.msra.mxu0 %v9574
        %9738 = vmatprep.subr.mxu0 0.0
        %9739 = vmatpush1.msra.mxu0 %v9575
        %9740 = vmatprep.subr.mxu0 0.0
        %9741 = vmatpush1.msra.mxu0 %v9576
        %9742 = vmatprep.subr.mxu0 0.0
        %9743 = vmatpush1.msra.mxu0 %v9577
        %9744 = vmatprep.subr.mxu0 0.0
        %9745 = vmatpush1.msra.mxu0 %v9578
        %9746 = vmatprep.subr.mxu0 0.0
        %9747 = vmatpush1.msra.mxu0 %v9579
        %9748 = vmatprep.subr.mxu0 0.0
        %9749 = vmatpush1.msra.mxu0 %v9580
        %9750 = vmatprep.subr.mxu0 0.0
        %9751 = vmatpush1.msra.mxu0 %v9581
        %9752 = vmatprep.subr.mxu0 0.0
        %9753 = vmatpush1.msra.mxu0 %v9582
        %9754 = vmatprep.subr.mxu0 0.0
        %9755 = vmatpush1.msra.mxu0 %v9583
        %9756 = vmatprep.subr.mxu0 0.0
        %9757 = vmatpush1.msra.mxu0 %v9584
        %9758 = vmatprep.subr.mxu0 0.0
        %9759 = vmatpush1.msra.mxu0 %v9585
        %9760 = vmatprep.subr.mxu0 0.0
        %9761 = vmatpush1.msra.mxu0 %v9586
        %9762 = vmatprep.subr.mxu0 0.0
        %9763 = vmatpush1.msra.mxu0 %v9587
        %9764 = vmatprep.mubr.f32.mxu0 %v9692
        %9765 = vmatmul.mubr.f32.gmra.mrb[0].mxu0 %v9684
        %v9766 = vpop.f32.mrb[0].mxu0
        %v9767 = vadd.f32 0.0, %v9766
        %v9768 = vpop.f32.mrb[0].mxu0
        %9769 = vdwg.mxu0
        %9770 = vmatprep.subr.mxu0 0.0
        %9771 = vmatpush1.msra.mxu0 %v9588
        %9772 = vmatprep.subr.mxu0 0.0
        %9773 = vmatpush1.msra.mxu0 %v9589
        %9774 = vmatprep.subr.mxu0 0.0
        %9775 = vmatpush1.msra.mxu0 %v9590
        %9776 = vmatprep.subr.mxu0 0.0
        %9777 = vmatpush1.msra.mxu0 %v9591
        %9778 = vmatprep.subr.mxu0 0.0
        %9779 = vmatpush1.msra.mxu0 %v9592
        %9780 = vmatprep.subr.mxu0 0.0
        %9781 = vmatpush1.msra.mxu0 %v9593
        %9782 = vmatprep.subr.mxu0 0.0
        %9783 = vmatpush1.msra.mxu0 %v9594
        %9784 = vmatprep.subr.mxu0 0.0
        %9785 = vmatpush1.msra.mxu0 %v9595
        %9786 = vmatprep.subr.mxu0 0.0
        %9787 = vmatpush1.msra.mxu0 %v9596
        %9788 = vmatprep.subr.mxu0 0.0
        %9789 = vmatpush1.msra.mxu0 %v9597
        %9790 = vmatprep.subr.mxu0 0.0
        %9791 = vmatpush1.msra.mxu0 %v9598
        %9792 = vmatprep.subr.mxu0 0.0
        %9793 = vmatpush1.msra.mxu0 %v9599
        %9794 = vmatprep.subr.mxu0 0.0
        %9795 = vmatpush1.msra.mxu0 %v9600
        %9796 = vmatprep.subr.mxu0 0.0
        %9797 = vmatpush1.msra.mxu0 %v9601
        %9798 = vmatprep.subr.mxu0 0.0
        %9799 = vmatpush1.msra.mxu0 %v9602
        %9800 = vmatprep.subr.mxu0 0.0
        %9801 = vmatpush1.msra.mxu0 %v9603
        %9802 = vmatprep.subr.mxu0 0.0
        %9803 = vmatpush1.msra.mxu0 %v9604
        %9804 = vmatprep.subr.mxu0 0.0
        %9805 = vmatpush1.msra.mxu0 %v9605
        %9806 = vmatprep.subr.mxu0 0.0
        %9807 = vmatpush1.msra.mxu0 %v9606
        %9808 = vmatprep.subr.mxu0 0.0
        %9809 = vmatpush1.msra.mxu0 %v9607
        %9810 = vmatprep.subr.mxu0 0.0
        %9811 = vmatpush1.msra.mxu0 %v9608
        %9812 = vmatprep.subr.mxu0 0.0
        %9813 = vmatpush1.msra.mxu0 %v9609
        %9814 = vmatprep.subr.mxu0 0.0
        %9815 = vmatpush1.msra.mxu0 %v9610
        %9816 = vmatprep.subr.mxu0 0.0
        %9817 = vmatpush1.msra.mxu0 %v9611
        %9818 = vmatprep.subr.mxu0 0.0
        %9819 = vmatpush1.msra.mxu0 %v9612
        %9820 = vmatprep.subr.mxu0 0.0
        %9821 = vmatpush1.msra.mxu0 %v9613
        %9822 = vmatprep.subr.mxu0 0.0
        %9823 = vmatpush1.msra.mxu0 %v9614
        %9824 = vmatprep.subr.mxu0 0.0
        %9825 = vmatpush1.msra.mxu0 %v9615
        %9826 = vmatprep.subr.mxu0 0.0
        %9827 = vmatpush1.msra.mxu0 %v9616
        %9828 = vmatprep.subr.mxu0 0.0
        %9829 = vmatpush1.msra.mxu0 %v9617
        %9830 = vmatprep.subr.mxu0 0.0
        %9831 = vmatpush1.msra.mxu0 %v9618
        %9832 = vmatprep.subr.mxu0 0.0
        %9833 = vmatpush1.msra.mxu0 %v9619
        %9834 = vmatprep.mubr.f32.mxu0 %v9693
        %9835 = vmatmul.mubr.f32.gmra.mrb[0].mxu0 %v9685
        %v9836 = vpop.f32.mrb[0].mxu0
        %v9837 = vadd.f32 %v9767, %v9836
        %v9838 = vpop.f32.mrb[0].mxu0
        %9839 = vdwg.mxu0
        %9840 = vmatprep.subr.mxu0 0.0
        %9841 = vmatpush1.msra.mxu0 %v9620
        %9842 = vmatprep.subr.mxu0 0.0
        %9843 = vmatpush1.msra.mxu0 %v9621
        %9844 = vmatprep.subr.mxu0 0.0
        %9845 = vmatpush1.msra.mxu0 %v9622
        %9846 = vmatprep.subr.mxu0 0.0
        %9847 = vmatpush1.msra.mxu0 %v9623
        %9848 = vmatprep.subr.mxu0 0.0
        %9849 = vmatpush1.msra.mxu0 %v9624
        %9850 = vmatprep.subr.mxu0 0.0
        %9851 = vmatpush1.msra.mxu0 %v9625
        %9852 = vmatprep.subr.mxu0 0.0
        %9853 = vmatpush1.msra.mxu0 %v9626
        %9854 = vmatprep.subr.mxu0 0.0
        %9855 = vmatpush1.msra.mxu0 %v9627
        %9856 = vmatprep.subr.mxu0 0.0
        %9857 = vmatpush1.msra.mxu0 %v9628
        %9858 = vmatprep.subr.mxu0 0.0
        %9859 = vmatpush1.msra.mxu0 %v9629
        %9860 = vmatprep.subr.mxu0 0.0
        %9861 = vmatpush1.msra.mxu0 %v9630
        %9862 = vmatprep.subr.mxu0 0.0
        %9863 = vmatpush1.msra.mxu0 %v9631
        %9864 = vmatprep.subr.mxu0 0.0
        %9865 = vmatpush1.msra.mxu0 %v9632
        %9866 = vmatprep.subr.mxu0 0.0
        %9867 = vmatpush1.msra.mxu0 %v9633
        %9868 = vmatprep.subr.mxu0 0.0
        %9869 = vmatpush1.msra.mxu0 %v9634
        %9870 = vmatprep.subr.mxu0 0.0
        %9871 = vmatpush1.msra.mxu0 %v9635
        %9872 = vmatprep.subr.mxu0 0.0
        %9873 = vmatpush1.msra.mxu0 %v9636
        %9874 = vmatprep.subr.mxu0 0.0
        %9875 = vmatpush1.msra.mxu0 %v9637
        %9876 = vmatprep.subr.mxu0 0.0
        %9877 = vmatpush1.msra.mxu0 %v9638
        %9878 = vmatprep.subr.mxu0 0.0
        %9879 = vmatpush1.msra.mxu0 %v9639
        %9880 = vmatprep.subr.mxu0 0.0
        %9881 = vmatpush1.msra.mxu0 %v9640
        %9882 = vmatprep.subr.mxu0 0.0
        %9883 = vmatpush1.msra.mxu0 %v9641
        %9884 = vmatprep.subr.mxu0 0.0
        %9885 = vmatpush1.msra.mxu0 %v9642
        %9886 = vmatprep.subr.mxu0 0.0
        %9887 = vmatpush1.msra.mxu0 %v9643
        %9888 = vmatprep.subr.mxu0 0.0
        %9889 = vmatpush1.msra.mxu0 %v9644
        %9890 = vmatprep.subr.mxu0 0.0
        %9891 = vmatpush1.msra.mxu0 %v9645
        %9892 = vmatprep.subr.mxu0 0.0
        %9893 = vmatpush1.msra.mxu0 %v9646
        %9894 = vmatprep.subr.mxu0 0.0
        %9895 = vmatpush1.msra.mxu0 %v9647
        %9896 = vmatprep.subr.mxu0 0.0
        %9897 = vmatpush1.msra.mxu0 %v9648
        %9898 = vmatprep.subr.mxu0 0.0
        %9899 = vmatpush1.msra.mxu0 %v9649
        %9900 = vmatprep.subr.mxu0 0.0
        %9901 = vmatpush1.msra.mxu0 %v9650
        %9902 = vmatprep.subr.mxu0 0.0
        %9903 = vmatpush1.msra.mxu0 %v9651
        %9904 = vmatprep.mubr.f32.mxu0 %v9694
        %9905 = vmatmul.mubr.f32.gmra.mrb[0].mxu0 %v9686
        %v9906 = vpop.f32.mrb[0].mxu0
        %v9907 = vadd.f32 %v9837, %v9906
        %v9908 = vpop.f32.mrb[0].mxu0
        %9909 = vdwg.mxu0
        %9910 = vmatprep.subr.mxu0 0.0
        %9911 = vmatpush1.msra.mxu0 %v9652
        %9912 = vmatprep.subr.mxu0 0.0
        %9913 = vmatpush1.msra.mxu0 %v9653
        %9914 = vmatprep.subr.mxu0 0.0
        %9915 = vmatpush1.msra.mxu0 %v9654
        %9916 = vmatprep.subr.mxu0 0.0
        %9917 = vmatpush1.msra.mxu0 %v9655
        %9918 = vmatprep.subr.mxu0 0.0
        %9919 = vmatpush1.msra.mxu0 %v9656
        %9920 = vmatprep.subr.mxu0 0.0
        %9921 = vmatpush1.msra.mxu0 %v9657
        %9922 = vmatprep.subr.mxu0 0.0
        %9923 = vmatpush1.msra.mxu0 %v9658
        %9924 = vmatprep.subr.mxu0 0.0
        %9925 = vmatpush1.msra.mxu0 %v9659
        %9926 = vmatprep.subr.mxu0 0.0
        %9927 = vmatpush1.msra.mxu0 %v9660
        %9928 = vmatprep.subr.mxu0 0.0
        %9929 = vmatpush1.msra.mxu0 %v9661
        %9930 = vmatprep.subr.mxu0 0.0
        %9931 = vmatpush1.msra.mxu0 %v9662
        %9932 = vmatprep.subr.mxu0 0.0
        %9933 = vmatpush1.msra.mxu0 %v9663
        %9934 = vmatprep.subr.mxu0 0.0
        %9935 = vmatpush1.msra.mxu0 %v9664
        %9936 = vmatprep.subr.mxu0 0.0
        %9937 = vmatpush1.msra.mxu0 %v9665
        %9938 = vmatprep.subr.mxu0 0.0
        %9939 = vmatpush1.msra.mxu0 %v9666
        %9940 = vmatprep.subr.mxu0 0.0
        %9941 = vmatpush1.msra.mxu0 %v9667
        %9942 = vmatprep.subr.mxu0 0.0
        %9943 = vmatpush1.msra.mxu0 %v9668
        %9944 = vmatprep.subr.mxu0 0.0
        %9945 = vmatpush1.msra.mxu0 %v9669
        %9946 = vmatprep.subr.mxu0 0.0
        %9947 = vmatpush1.msra.mxu0 %v9670
        %9948 = vmatprep.subr.mxu0 0.0
        %9949 = vmatpush1.msra.mxu0 %v9671
        %9950 = vmatprep.subr.mxu0 0.0
        %9951 = vmatpush1.msra.mxu0 %v9672
        %9952 = vmatprep.subr.mxu0 0.0
        %9953 = vmatpush1.msra.mxu0 %v9673
        %9954 = vmatprep.subr.mxu0 0.0
        %9955 = vmatpush1.msra.mxu0 %v9674
        %9956 = vmatprep.subr.mxu0 0.0
        %9957 = vmatpush1.msra.mxu0 %v9675
        %9958 = vmatprep.subr.mxu0 0.0
        %9959 = vmatpush1.msra.mxu0 %v9676
        %9960 = vmatprep.subr.mxu0 0.0
        %9961 = vmatpush1.msra.mxu0 %v9677
        %9962 = vmatprep.subr.mxu0 0.0
        %9963 = vmatpush1.msra.mxu0 %v9678
        %9964 = vmatprep.subr.mxu0 0.0
        %9965 = vmatpush1.msra.mxu0 %v9679
        %9966 = vmatprep.subr.mxu0 0.0
        %9967 = vmatpush1.msra.mxu0 %v9680
        %9968 = vmatprep.subr.mxu0 0.0
        %9969 = vmatpush1.msra.mxu0 %v9681
        %9970 = vmatprep.subr.mxu0 0.0
        %9971 = vmatpush1.msra.mxu0 %v9682
        %9972 = vmatprep.subr.mxu0 0.0
        %9973 = vmatpush1.msra.mxu0 %v9683
        %9974 = vmatprep.mubr.f32.mxu0 %v9695
        %9975 = vmatmul.mubr.f32.gmra.mrb[0].mxu0 %v9687
        %v9976 = vpop.f32.mrb[0].mxu0
        %v9977 = vadd.f32 %v9907, %v9976
        %v9978 = vpop.f32.mrb[0].mxu0
        %9979 = vdwg.mxu0
        %v9980 = vld [vmem:[%s5] sm:$0xff]
        %v9981 = vld [vmem:[%s5 + $0x8] sm:$0xff]
        %v9982 = vld [vmem:[%s6] sm:$0x1]
        %v9984 = vlaneseq
        %v9985 = vshrl.u32 %v9984, 7
        %v9986 = vsub.s32 0, %v9985
        %v9987 = vrot.slane %v9982, %v9986
        %vm9989 = vcmask 130048
        %v9991 = vsel %vm9989, %v9977, 0
        %9993 = vmatprep.subr.mxu0 0.0
        %9994 = vmatpush1.msra.mxu0 %v9980
        %9995 = vmatprep.subr.mxu0 0.0
        %9996 = vmatpush1.msra.mxu0 %v9981
        %9997 = vmatprep.subr.mxu0 0.0
        %9998 = vmatpush1.msra.mxu0 0.0
        %9999 = vmatprep.subr.mxu0 0.0
        %10000 = vmatpush1.msra.mxu0 0.0
        %10001 = vmatprep.subr.mxu0 0.0
        %10002 = vmatpush1.msra.mxu0 0.0
        %10003 = vmatprep.subr.mxu0 0.0
        %10004 = vmatpush1.msra.mxu0 0.0
        %10005 = vmatprep.subr.mxu0 0.0
        %10006 = vmatpush1.msra.mxu0 0.0
        %10007 = vmatprep.subr.mxu0 0.0
        %10008 = vmatpush1.msra.mxu0 0.0
        %10009 = vmatprep.subr.mxu0 0.0
        %10010 = vmatpush1.msra.mxu0 0.0
        %10011 = vmatprep.subr.mxu0 0.0
        %10012 = vmatpush1.msra.mxu0 0.0
        %10013 = vmatprep.subr.mxu0 0.0
        %10014 = vmatpush1.msra.mxu0 0.0
        %10015 = vmatprep.subr.mxu0 0.0
        %10016 = vmatpush1.msra.mxu0 0.0
        %10017 = vmatprep.subr.mxu0 0.0
        %10018 = vmatpush1.msra.mxu0 0.0
        %10019 = vmatprep.subr.mxu0 0.0
        %10020 = vmatpush1.msra.mxu0 0.0
        %10021 = vmatprep.subr.mxu0 0.0
        %10022 = vmatpush1.msra.mxu0 0.0
        %10023 = vmatprep.subr.mxu0 0.0
        %10024 = vmatpush1.msra.mxu0 0.0
        %10025 = vmatprep.subr.mxu0 0.0
        %10026 = vmatpush1.msra.mxu0 0.0
        %10027 = vmatprep.subr.mxu0 0.0
        %10028 = vmatpush1.msra.mxu0 0.0
        %10029 = vmatprep.subr.mxu0 0.0
        %10030 = vmatpush1.msra.mxu0 0.0
        %10031 = vmatprep.subr.mxu0 0.0
        %10032 = vmatpush1.msra.mxu0 0.0
        %10033 = vmatprep.subr.mxu0 0.0
        %10034 = vmatpush1.msra.mxu0 0.0
        %10035 = vmatprep.subr.mxu0 0.0
        %10036 = vmatpush1.msra.mxu0 0.0
        %10037 = vmatprep.subr.mxu0 0.0
        %10038 = vmatpush1.msra.mxu0 0.0
        %10039 = vmatprep.subr.mxu0 0.0
        %10040 = vmatpush1.msra.mxu0 0.0
        %10041 = vmatprep.subr.mxu0 0.0
        %10042 = vmatpush1.msra.mxu0 0.0
        %10043 = vmatprep.subr.mxu0 0.0
        %10044 = vmatpush1.msra.mxu0 0.0
        %10045 = vmatprep.subr.mxu0 0.0
        %10046 = vmatpush1.msra.mxu0 0.0
        %10047 = vmatprep.subr.mxu0 0.0
        %10048 = vmatpush1.msra.mxu0 0.0
        %10049 = vmatprep.subr.mxu0 0.0
        %10050 = vmatpush1.msra.mxu0 0.0
        %10051 = vmatprep.subr.mxu0 0.0
        %10052 = vmatpush1.msra.mxu0 0.0
        %10053 = vmatprep.subr.mxu0 0.0
        %10054 = vmatpush1.msra.mxu0 0.0
        %10055 = vmatprep.subr.mxu0 0.0
        %10056 = vmatpush1.msra.mxu0 0.0
        %10057 = vmatprep.mubr.f32.mxu0 0.0
        %10058 = vmatmul.mubr.f32.gmra.mrb[0].mxu0 %v9991
        %v10059 = vpop.f32.mrb[0].mxu0
        %v10060 = vadd.f32 %v9987, %v10059
        %v10061 = vpop.f32.mrb[0].mxu0
        %10062 = vdwg.mxu0
        %vm10063 = vcmask 76800
        %v10064 = vsel %vm10063, %v10060, 0.0
        %v10065 = vrot.slane %v10064, 4
        %v10066 = vadd.f32 %v10064, %v10065
        %v10067 = vrot.slane %v10066, 2
        %v10068 = vadd.f32 %v10066, %v10067
        %v10069 = vrot.slane %v10068, 1
        %v10070 = vadd.f32 %v10068, %v10069
        %v10071 = vrcp.pop 4.0
        %v10072 = vmul.f32 %v10070, %v10071
        %v10073 = vmul.f32 %v10060, 0.5
        %v10074 = vtanh.pop %v10073
        %v10075 = vadd.f32 %v10074, 1.0
        %v10076 = vmul.f32 %v10075, 0.5
        %v10077 = vsel %vm10063, %v10076, 0.0
        %v10078 = vrot.slane %v10077, 4
        %v10079 = vadd.f32 %v10077, %v10078
        %v10080 = vrot.slane %v10079, 2
        %v10081 = vadd.f32 %v10079, %v10080
        %v10082 = vrot.slane %v10081, 1
        %v10083 = vadd.f32 %v10081, %v10082
        %v10084 = vmul.f32 %v10083, %v10071
        %v10085 = vsub.f32 %v10076, %v10084
        %v10086 = vmul.f32 %v10085, %v10085
        %v10087 = vsel %vm10063, %v10086, 0.0
        %v10088 = vrot.slane %v10087, 4
        %v10089 = vadd.f32 %v10087, %v10088
        %v10090 = vrot.slane %v10089, 2
        %v10091 = vadd.f32 %v10089, %v10090
        %v10092 = vrot.slane %v10091, 1
        %v10093 = vadd.f32 %v10091, %v10092
        %v10094 = vrcp.pop 3.0
        %v10095 = vmul.f32 %v10093, %v10094
        %v10096 = vrsqrt.pop %v10095
        %v10097 = vmul.f32 %v10095, %v10096
        %vm10098 = vcmp.eq.f32.partialorder %v10095, inf
        %v10099 = vsel %vm10098, %v10095, %v10097
        %vm10100 = vcmp.eq.f32.partialorder %v10095, 0.0
        %v10101 = vand.u32 %v10095, 2147483648
        %v10102 = vsel %vm10100, %v10101, %v10099
        %vm10103 = vcmask 80896
        %v10104 = vsel %vm10103, %v10102, 0.0
        %10105 = vadd.xlane.f32.xlu0 %v10104
        %v10106 = vpop.xlane.xlu0 %10105
        %v10107 = vrcp.pop 10.0
        %v10108 = vmul.f32 %v10106, %v10107
        %v10109 = vmul.f32 %v10108, 1.442695
        %v10110 = vpow.pop %v10109
        %v10111 = vadd.f32 %v10110, 1.0
        %v10112 = vrcp.pop %v10111
        %v10113 = vmul.f32 %v10072, %v10112
        %vm10114 = vcmask 73728
        %10115 = vst.msk [vmem:[%s328] sm:$0x1] %vm10114, %v10072
        %10116 = vst.msk [vmem:[%s334] sm:$0x1] %vm10114, %v10102
        %10117 = vst.msk [vmem:[%s340] sm:$0x1] %vm10114, %v10113
        %s10118 = sand.u32 %s187, 1
        %s10119 = scalar_lea.sflag [#allocation3], %s10118
        %s10120 = sand.u32 %s187, 1
        %s10121 = scalar_lea.vmem [#allocation2], %s10120
        %s10122 = sand.u32 %s27, 1
        %s10123 = scalar_lea.sflag [#allocation5], %s10122
        %s10124 = sand.u32 %s213, 1
        %s10125 = scalar_lea.vmem [#allocation4], %s10124
        %s10126 = sand.u32 %s27, 1
        %s10127 = scalar_lea.sflag [#allocation5], %s10126
        %s10128 = sand.u32 %s239, 1
        %s10129 = scalar_lea.vmem [#allocation6], %s10128
        // Predicated region
        $region49: #{tpu_custom_call.1} parent=47 // pred_check
          %p10130 = pneg %p197
        $region50: #{tpu_custom_call.1} parent=47 // pred_check_branch
          %10132 = sbr.rel (%p10130) target = $region52
        $region51: #{tpu_custom_call.1} parent=47 // pred_region
          %s10134 = ssub.s32 16, 16
          %10135 = vsyncadd %s10119, %s10134
          %s10136 = smul.addr %s27, 16
          %s10137 = scalar_lea.hbm %s7, %s10136
          %s10139 = sshll.u32 %s10121, 4
          %s10140 = int_to_ptr.vmem [resolvable:$true] %s10139
          %10142 = dma.vmem_to_hbm [thread:$0]  %s10140, 16, %s10137, %s10119
        $region52: #{tpu_custom_call.1} parent=47 // pred_fallthru
          _
        // Predicated region
        $region53: #{tpu_custom_call.1} parent=47 // pred_check
          %p10143 = pneg %p223
        $region54: #{tpu_custom_call.1} parent=47 // pred_check_branch
          %10145 = sbr.rel (%p10143) target = $region56
        $region55: #{tpu_custom_call.1} parent=47 // pred_region
          %s10147 = ssub.s32 16, 16
          %10148 = vsyncadd %s10123, %s10147
          %s10149 = smul.addr %s27, 16
          %s10150 = scalar_lea.hbm %s8, %s10149
          %s10152 = sshll.u32 %s10125, 4
          %s10153 = int_to_ptr.vmem [resolvable:$true] %s10152
          %10155 = dma.vmem_to_hbm [thread:$0]  %s10153, 16, %s10150, %s10123
        $region56: #{tpu_custom_call.1} parent=47 // pred_fallthru
          _
        // Predicated region
        $region57: #{tpu_custom_call.1} parent=47 // pred_check
          %p10156 = pneg %p249
        $region58: #{tpu_custom_call.1} parent=47 // pred_check_branch
          %10158 = sbr.rel (%p10156) target = $region60
        $region59: #{tpu_custom_call.1} parent=47 // pred_region
          %s10160 = ssub.s32 16, 16
          %10161 = vsyncadd %s10127, %s10160
          %s10162 = smul.addr %s27, 16
          %s10163 = scalar_lea.hbm %s9, %s10162
          %s10165 = sshll.u32 %s10129, 4
          %s10166 = int_to_ptr.vmem [resolvable:$true] %s10165
          %10168 = dma.vmem_to_hbm [thread:$0]  %s10166, 16, %s10163, %s10127
        $region60: #{tpu_custom_call.1} parent=47 // pred_fallthru
          _
      $region48: #{tpu_custom_call.1} parent=5 // pred_fallthru
        _
      %p10169 = scmp.le.s32.totalorder 2, %s22
      // Predicated region
      $region61: #{tpu_custom_call.1} parent=5 // pred_check
        %p10170 = pneg %p10169
      $region62: #{tpu_custom_call.1} parent=5 // pred_check_branch
        %10172 = sbr.rel (%p10170) target = $region64
      $region63: #{tpu_custom_call.1} parent=5 // pred_region
        %s10173 = ssub.s32 %s22, 2
        // Predicated region
        $region65: #{tpu_custom_call.1} parent=63 // pred_check
          %p10174 = pneg %p203
        $region66: #{tpu_custom_call.1} parent=63 // pred_check_branch
          %10176 = sbr.rel (%p10174) target = $region68
        $region67: #{tpu_custom_call.1} parent=63 // pred_region
          %s10177 = sand.u32 %s188, 1
          %s10178 = scalar_lea.sflag [#allocation3], %s10177
          %s10179 = sand.u32 %s188, 1
          %s10180 = scalar_lea.vmem [#allocation2], %s10179
          %10181 = dma.done %s10178, 16
        $region68: #{tpu_custom_call.1} parent=63 // pred_fallthru
          _
        // Predicated region
        $region69: #{tpu_custom_call.1} parent=63 // pred_check
          %p10182 = pneg %p229
        $region70: #{tpu_custom_call.1} parent=63 // pred_check_branch
          %10184 = sbr.rel (%p10182) target = $region72
        $region71: #{tpu_custom_call.1} parent=63 // pred_region
          %s10185 = sand.u32 %s28, 1
          %s10186 = scalar_lea.sflag [#allocation5], %s10185
          %s10187 = sand.u32 %s214, 1
          %s10188 = scalar_lea.vmem [#allocation4], %s10187
          %10189 = dma.done %s10186, 16
        $region72: #{tpu_custom_call.1} parent=63 // pred_fallthru
          _
        // Predicated region
        $region73: #{tpu_custom_call.1} parent=63 // pred_check
          %p10190 = pneg %p255
        $region74: #{tpu_custom_call.1} parent=63 // pred_check_branch
          %10192 = sbr.rel (%p10190) target = $region76
        $region75: #{tpu_custom_call.1} parent=63 // pred_region
          %s10193 = sand.u32 %s28, 1
          %s10194 = scalar_lea.sflag [#allocation5], %s10193
          %s10195 = sand.u32 %s240, 1
          %s10196 = scalar_lea.vmem [#allocation6], %s10195
          %10197 = dma.done %s10194, 16
        $region76: #{tpu_custom_call.1} parent=63 // pred_fallthru
          _
      $region64: #{tpu_custom_call.1} parent=5 // pred_fallthru
        _
    $region6: #{tpu_custom_call.1} parent=1 // loop_footer
      %s26 = sadd.s32 1, %s22
    $region7: #{tpu_custom_call.1} parent=1 // loop_footer_branch
      %21 = sbr.rel target = $region3
    $region8: #{tpu_custom_call.1} parent=1 // loop_exit
      _
    %10198 = vsyncpa [#allocation3], 1
    %s10199 = scalar_lea.sflag [#allocation3], 1
    %10200 = vsyncpa %s10199, 1
    %10201 = vsyncpa [#allocation5], 1
    %s10202 = scalar_lea.sflag [#allocation5], 1
    %10203 = vsyncpa %s10202, 1

</llo_original>
